<compile_context>
chip_gen: v6e
topology: v6e:2x2x1
jax: 0.10.0
libtpu: 0.0.40
codegen_flags: <defaults>
</compile_context>

<pallas_src>
import functools

import numpy as np

import jax
import jax.numpy as jnp
from jax import lax
from jax.experimental import pallas as pl
from jax.experimental.pallas import tpu as pltpu


# ----------------------------------------------------------------------------
# Fused Pallas kernel:
#   (optional) BN scale/shift + ReLU on the input tile (and its 1-row halos)
#   -> 3x3 'same' conv as 3 MXU matmuls (one per ky, kx-taps packed along N)
#   -> bias add
#   -> per-tile (sum, sum^2) of the raw conv output (next layer's BN stats)
# ----------------------------------------------------------------------------
def _conv3x3_fused_kernel(x_ref, top_ref, bot_ref, w_ref, b_ref, sc_ref, sh_ref,
                          o_ref, stat_ref, *, fuse_input_bn):
    th = x_ref.shape[1]            # rows per tile
    wd = x_ref.shape[2]            # image width
    cin = x_ref.shape[3]           # channels as stored in HBM (3 for layer 1)
    cin_k = w_ref.shape[1]         # channels the weights expect (>= cin)
    cout = o_ref.shape[3]
    t_idx = pl.program_id(1)
    last_t = pl.num_programs(1) - 1

    body = x_ref[0].astype(jnp.float32)        # (th, wd, cin)
    top = top_ref[0].astype(jnp.float32)       # (1,  wd, cin)
    bot = bot_ref[0].astype(jnp.float32)       # (1,  wd, cin)

    # Fused BatchNorm (precomputed per-channel scale/shift) + ReLU of the
    # *input* activation (the stored activation is the raw previous conv out).
    if fuse_input_bn:
        sc = sc_ref[...].reshape(1, 1, cin)
        sh = sh_ref[...].reshape(1, 1, cin)
        body = jnp.maximum(body * sc + sh, 0.0)
        top = jnp.maximum(top * sc + sh, 0.0)
        bot = jnp.maximum(bot * sc + sh, 0.0)

    # Zero the halo rows that fall outside the image (conv zero-padding applies
    # to the *activated* input).  Only the two 1-row slices are touched.
    top = top * jnp.where(t_idx == 0, 0.0, 1.0)
    bot = bot * jnp.where(t_idx == last_t, 0.0, 1.0)

    rows = jnp.concatenate([top, body, bot], axis=0)        # (th+2, wd, cin)
    rows = rows.astype(jnp.bfloat16)
    if cin_k > cin:
        # Layer 1: pad 3 -> 8 channels in VMEM (weight K-rows 3..7 are zero).
        rows = jnp.concatenate(
            [rows, jnp.zeros((th + 2, wd, cin_k - cin), jnp.bfloat16)], axis=-1)

    acc = jnp.zeros((th, wd, cout), jnp.float32)
    zc = jnp.zeros((th, 1, cout), jnp.float32)
    for ky in range(3):
        # One matmul per kernel row: K = cin_k, N = 3*cout (kx taps packed).
        slab = rows[ky:ky + th].reshape(th * wd, cin_k)
        y = jnp.dot(slab, w_ref[ky], preferred_element_type=jnp.float32)
        y = y.reshape(th, wd, 3 * cout)
        # kx = 0 : out[:, x] += y[:, x-1, 0:c]      (zero column at x == 0)
        acc = acc + jnp.concatenate([zc, y[:, :wd - 1, 0:cout]], axis=1)
        # kx = 1 : centre tap, no shift
        acc = acc + y[:, :, cout:2 * cout]
        # kx = 2 : out[:, x] += y[:, x+1, 2c:3c]    (zero column at x == wd-1)
        acc = acc + jnp.concatenate([y[:, 1:, 2 * cout:], zc], axis=1)

    acc = acc + b_ref[...].reshape(1, 1, cout)               # (th, wd, cout) f32
    o_ref[0] = acc.astype(o_ref.dtype)

    # Partial BN statistics of the raw (pre-activation) conv output.
    flat = acc.reshape(th * wd, cout)
    s1 = jnp.sum(flat, axis=0, keepdims=True)                # (1, cout)
    s2 = jnp.sum(flat * flat, axis=0, keepdims=True)         # (1, cout)
    stat_ref[0, 0] = jnp.concatenate([s1, s2], axis=0)       # (2, cout)


# ----------------------------------------------------------------------------
# VMEM budget & tile-height selection (generation aware)
# ----------------------------------------------------------------------------
def _vmem_limit_bytes():
    cap = 64 << 20                      # conservative default (v7x per-core VMEM)
    try:
        info = pltpu.get_tpu_info()
        cap = int(getattr(info, "vmem_capacity_bytes", cap))
    except Exception:
        pass
    # ~3/4 of physical, capped at 96 MiB:  v5e/v6e -> 96 MiB, v7x -> 48 MiB.
    return int(min(cap * 3 // 4, 96 << 20))


def _pick_tile_h(h, wd, cin_k, cout, in_bytes, out_bytes, budget):
    """Largest divisor of H whose per-grid-step VMEM footprint fits `budget`."""
    def footprint(th):
        body_io = 2 * th * wd * (cin_k * in_bytes + cout * out_bytes)   # dbl-buffered
        halos = 2 * 2 * 2 * wd * cin_k * in_bytes                       # 2 halos, dbl-buf
        wts = 2 * (3 * cin_k * 3 * cout * 2 + 4 * cout * 4)             # bf16 W + bias/stats
        rows = (th + 2) * wd * cin_k * (4 + 2)                          # f32 stage + bf16
        slab = th * wd * cin_k * 2                                      # per-ky matmul LHS
        ygrp = th * wd * 3 * cout * 4                                   # per-ky matmul out
        accs = 3 * th * wd * cout * 4                                   # acc + shift temps
        return body_io + halos + wts + rows + slab + ygrp + accs
    divisors = [d for d in range(1, h + 1) if h % d == 0]
    fits = [d for d in divisors if footprint(d) <= budget]
    if fits:
        return max(fits)
    return min(divisors)       # clean fallback: smallest tile (never silently H)


# ----------------------------------------------------------------------------
# Layer wrapper around pallas_call
# ----------------------------------------------------------------------------
def _conv3x3_bn_layer(x, w_packed, b, in_scale, in_shift, *, out_dtype,
                      tile_h=None, vmem_limit=48 << 20):
    """Fused [BN+ReLU on input] + 3x3 'same' conv + bias + BN-stat partials.

    x        : (N, H, W, Cin)        activation (f32 image or bf16 intermediate)
    w_packed : (3, Cin_k, 3*Cout)    per-ky weights, kx taps packed along N
    b        : (Cout,)               bias
    in_scale / in_shift : per-channel BN affine of the *input*, or None.
    Returns (y, stats): y (N,H,W,Cout); stats (N, T, 2, Cout) partial
    (sum, sum^2) of the raw conv output.
    """
    n, h, wd, cin = x.shape
    kh, cin_k, nk = w_packed.shape
    assert kh == 3 and nk % 3 == 0 and cin_k >= cin
    cout = nk // 3

    if tile_h is None:
        tile_h = _pick_tile_h(h, wd, cin_k, cout,
                              np.dtype(x.dtype).itemsize,
                              np.dtype(out_dtype).itemsize,
                              budget=int(vmem_limit * 0.6))
    assert h % tile_h == 0, (h, tile_h)
    th = tile_h
    t = h // th

    fuse = in_scale is not None
    if not fuse:
        in_scale = jnp.ones((1, cin), jnp.float32)
        in_shift = jnp.zeros((1, cin), jnp.float32)
    else:
        in_scale = in_scale.reshape(1, cin).astype(jnp.float32)
        in_shift = in_shift.reshape(1, cin).astype(jnp.float32)

    kernel = functools.partial(_conv3x3_fused_kernel, fuse_input_bn=fuse)

    body_spec = pl.BlockSpec((1, th, wd, cin), lambda i, j: (i, j, 0, 0))
    # Block size 1 along H => the returned index is an element (row) index.
    top_spec = pl.BlockSpec(
        (1, 1, wd, cin), lambda i, j: (i, jnp.maximum(j * th - 1, 0), 0, 0))
    bot_spec = pl.BlockSpec(
        (1, 1, wd, cin), lambda i, j: (i, jnp.minimum((j + 1) * th, h - 1), 0, 0))
    w_spec = pl.BlockSpec((3, cin_k, nk), lambda i, j: (0, 0, 0))
    b_spec = pl.BlockSpec((1, cout), lambda i, j: (0, 0))
    s_spec = pl.BlockSpec((1, cin), lambda i, j: (0, 0))

    y, stats = pl.pallas_call(
        kernel,
        out_shape=(jax.ShapeDtypeStruct((n, h, wd, cout), out_dtype),
                   jax.ShapeDtypeStruct((n, t, 2, cout), jnp.float32)),
        grid=(n, t),
        in_specs=[body_spec, top_spec, bot_spec, w_spec, b_spec, s_spec, s_spec],
        out_specs=(pl.BlockSpec((1, th, wd, cout), lambda i, j: (i, j, 0, 0)),
                   pl.BlockSpec((1, 1, 2, cout), lambda i, j: (i, j, 0, 0))),
        compiler_params=pltpu.CompilerParams(
            dimension_semantics=("parallel", "parallel"),
            vmem_limit_bytes=int(vmem_limit)),
    )(x, x, x, w_packed.astype(jnp.bfloat16),
      b.reshape(1, cout).astype(jnp.float32), in_scale, in_shift)
    return y, stats


def _bn_scale_shift(stats, gamma, beta, count, eps=1e-5):
    """Reduce per-tile (sum, sum^2) partials -> BN scale/shift (training mode)."""
    total = jnp.sum(stats, axis=(0, 1))                 # (2, C)
    mean = total[0] / count
    var = jnp.maximum(total[1] / count - mean * mean, 0.0)
    scale = gamma / jnp.sqrt(var + eps)
    shift = beta - mean * scale
    return scale, shift


# ----------------------------------------------------------------------------
# Weight layout helpers (PyTorch layouts -> packed kernel layout / ref HWIO)
# ----------------------------------------------------------------------------
def _conv_w_hwio(w_oihw):
    # torch Conv2d weight (Cout, Cin, 3, 3) -> (ky, kx, Cin, Cout)
    return jnp.transpose(w_oihw, (2, 3, 1, 0))


def _deconv_w_hwio(w_iokk):
    # torch ConvTranspose2d weight (Cin, Cout, 3, 3), stride=1 pad=1
    # == Conv2d with a 180-deg flipped kernel -> (ky, kx, Cin, Cout)
    return jnp.transpose(w_iokk[:, :, ::-1, ::-1], (2, 3, 0, 1))


def _pack_w(w_hwio, cin_k=None, cout_k=None):
    # (3, 3, Cin, Cout) -> (3, Cin_k, 3*Cout_k): per-ky, kx taps packed along N.
    kh, kw, cin, cout = w_hwio.shape
    if cin_k is not None and cin_k > cin:
        w_hwio = jnp.pad(w_hwio, ((0, 0), (0, 0), (0, cin_k - cin), (0, 0)))
    if cout_k is not None and cout_k > cout:
        w_hwio = jnp.pad(w_hwio, ((0, 0), (0, 0), (0, 0), (0, cout_k - cout)))
    w = jnp.transpose(w_hwio, (0, 2, 1, 3))            # (ky, cin, kx, cout)
    return w.reshape(kh, w.shape[1], kw * w.shape[3])


# ----------------------------------------------------------------------------
# Parameter construction (deterministic, matching the PyTorch module's shapes)
# ----------------------------------------------------------------------------
def init_params(key):
    ks = jax.random.split(key, 14)
    s = 0.05

    def nrm(k, shape):
        return jax.random.normal(k, shape, jnp.float32) * s

    p = {}
    p["w1"] = nrm(ks[0], (64, 3, 3, 3));    p["b1"] = nrm(ks[1], (64,))       # Conv2d
    p["g1"] = 1.0 + nrm(ks[2], (64,));      p["be1"] = nrm(ks[3], (64,))
    p["w2"] = nrm(ks[4], (128, 64, 3, 3));  p["b2"] = nrm(ks[5], (128,))      # Conv2d
    p["g2"] = 1.0 + nrm(ks[6], (128,));     p["be2"] = nrm(ks[7], (128,))
    p["w3"] = nrm(ks[8], (128, 64, 3, 3));  p["b3"] = nrm(ks[9], (64,))       # ConvT
    p["g3"] = 1.0 + nrm(ks[10], (64,));     p["be3"] = nrm(ks[11], (64,))
    p["w4"] = nrm(ks[12], (64, 3, 3, 3));   p["b4"] = nrm(ks[13], (3,))       # ConvT
    return p


# ----------------------------------------------------------------------------
# Forward pass (NCHW in / NCHW out, matching PyTorch)
# ----------------------------------------------------------------------------
@functools.partial(jax.jit, static_argnames=("tile_h",))
def dehaze_generator(x_nchw, params, tile_h=None):
    n, _, h, wd = x_nchw.shape
    cnt = n * h * wd
    vmem_limit = _vmem_limit_bytes()
    x = jnp.transpose(x_nchw, (0, 2, 3, 1)).astype(jnp.float32)        # -> NHWC

    # Packed weights.  Layer 1: K padded 3->8 (activation padded in-kernel).
    # Layer 4: Cout padded 3->8 (sliced back below).
    w1 = _pack_w(_conv_w_hwio(params["w1"]), cin_k=8)
    w2 = _pack_w(_conv_w_hwio(params["w2"]))
    w3 = _pack_w(_deconv_w_hwio(params["w3"]))
    w4 = _pack_w(_deconv_w_hwio(params["w4"]), cout_k=8)
    b4 = jnp.pad(params["b4"], (0, 5))

    y1, st1 = _conv3x3_bn_layer(x, w1, params["b1"], None, None,
                                out_dtype=jnp.bfloat16, tile_h=tile_h,
                                vmem_limit=vmem_limit)
    s1, t1 = _bn_scale_shift(st1, params["g1"], params["be1"], cnt)

    y2, st2 = _conv3x3_bn_layer(y1, w2, params["b2"], s1, t1,
                                out_dtype=jnp.bfloat16, tile_h=tile_h,
                                vmem_limit=vmem_limit)
    s2, t2 = _bn_scale_shift(st2, params["g2"], params["be2"], cnt)

    y3, st3 = _conv3x3_bn_layer(y2, w3, params["b3"], s2, t2,
                                out_dtype=jnp.bfloat16, tile_h=tile_h,
                                vmem_limit=vmem_limit)
    s3, t3 = _bn_scale_shift(st3, params["g3"], params["be3"], cnt)

    # TODO(synk): make layer 4 store lane-dense / NCHW directly in-kernel and
    #             drop the slice + XLA transpose below.
    y4, _ = _conv3x3_bn_layer(y3, w4, b4, s3, t3,
                              out_dtype=jnp.float32, tile_h=tile_h,
                              vmem_limit=vmem_limit)
    return jnp.transpose(y4[..., :3], (0, 3, 1, 2))                    # -> NCHW


# ----------------------------------------------------------------------------
# Pure-JAX reference mirroring the kernel's bf16 policy (for a sanity check)
# ----------------------------------------------------------------------------
def _forward_ref(x_nchw, p, eps=1e-5):
    a = jnp.transpose(x_nchw, (0, 2, 3, 1)).astype(jnp.float32)

    def conv(a, w_hwio, b):
        y = lax.conv_general_dilated(
            a.astype(jnp.bfloat16), w_hwio.astype(jnp.bfloat16),
            window_strides=(1, 1), padding="SAME",
            dimension_numbers=("NHWC", "HWIO", "NHWC"),
            preferred_element_type=jnp.float32)
        return y + b[None, None, None, :]

    def bn_relu_next(y, g, be):
        m = jnp.mean(y, axis=(0, 1, 2))
        v = jnp.maximum(jnp.mean(y * y, axis=(0, 1, 2)) - m * m, 0.0)
        sc = g / jnp.sqrt(v + eps)
        sh = be - m * sc
        # the Pallas pipeline stores inter-layer activations in bf16
        y_st = y.astype(jnp.bfloat16).astype(jnp.float32)
        return jnp.maximum(y_st * sc + sh, 0.0)

    y = conv(a, _conv_w_hwio(p["w1"]), p["b1"]);   a = bn_relu_next(y, p["g1"], p["be1"])
    y = conv(a, _conv_w_hwio(p["w2"]), p["b2"]);   a = bn_relu_next(y, p["g2"], p["be2"])
    y = conv(a, _deconv_w_hwio(p["w3"]), p["b3"]); a = bn_relu_next(y, p["g3"], p["be3"])
    y = conv(a, _deconv_w_hwio(p["w4"]), p["b4"])
    return jnp.transpose(y, (0, 3, 1, 2))


if __name__ == "__main__":
    key = jax.random.PRNGKey(0)
    k_x, k_p = jax.random.split(key)
    x = jax.random.normal(k_x, (2, 3, 16, 16), jnp.float32)   # NCHW, like PyTorch
    params = init_params(k_p)

    # tile_h=8 -> 2 row-tiles per image, exercising the halo / masking path.
    out = dehaze_generator(x, params, tile_h=8)
    out = jax.block_until_ready(out)
    assert out.shape == (2, 3, 16, 16), out.shape

    ref = _forward_ref(x, params)
    err = float(jnp.max(jnp.abs(out - ref)))
    assert jnp.allclose(out, ref, rtol=5e-3, atol=5e-3), err

    print("KERNEL_OK")
</pallas_src>

<mosaic_0001>
module attributes {stable_mosaic.version = 11 : i64} {
  func.func @_conv3x3_fused_kernel(%arg0: i32, %arg1: i32, %arg2: memref<1x8x16x3xf32, #tpu.memory_space<vmem>>, %arg3: memref<1x1x16x3xf32, #tpu.memory_space<vmem>>, %arg4: memref<1x1x16x3xf32, #tpu.memory_space<vmem>>, %arg5: memref<3x8x192xbf16, #tpu.memory_space<vmem>>, %arg6: memref<1x64xf32, #tpu.memory_space<vmem>>, %arg7: memref<1x3xf32, #tpu.memory_space<vmem>>, %arg8: memref<1x3xf32, #tpu.memory_space<vmem>>, %arg9: memref<1x8x16x64xbf16, #tpu.memory_space<vmem>>, %arg10: memref<1x1x2x64xf32, #tpu.memory_space<vmem>>) attributes {dimension_semantics = [#tpu.dimension_semantics<parallel>, #tpu.dimension_semantics<parallel>], iteration_bounds = array<i64: 2, 2>, scalar_prefetch = 0 : i64, scratch_operands = 0 : i64, tpu.core_type = #tpu.core_type<tc>, window_params = [{transform_indices = @transform_0, window_bounds = array<i64: 1, 8, 16, 3>}, {transform_indices = @transform_1, window_bounds = array<i64: 1, 1, 16, 3>}, {transform_indices = @transform_2, window_bounds = array<i64: 1, 1, 16, 3>}, {pipeline_mode = #tpu.pipeline_mode<synchronous>, transform_indices = @transform_3, window_bounds = array<i64: 3, 8, 192>}, {pipeline_mode = #tpu.pipeline_mode<synchronous>, transform_indices = @transform_4, window_bounds = array<i64: 1, 64>}, {pipeline_mode = #tpu.pipeline_mode<synchronous>, transform_indices = @transform_5, window_bounds = array<i64: 1, 3>}, {pipeline_mode = #tpu.pipeline_mode<synchronous>, transform_indices = @transform_6, window_bounds = array<i64: 1, 3>}, {transform_indices = @transform_7, window_bounds = array<i64: 1, 8, 16, 64>}, {transform_indices = @transform_8, window_bounds = array<i64: 1, 1, 2, 64>}]} {
    %c0 = arith.constant 0 : index
    %c0_0 = arith.constant 0 : index
    %c0_1 = arith.constant 0 : index
    %c0_2 = arith.constant 0 : index
    %0 = vector.load %arg2[%c0, %c0_0, %c0_1, %c0_2] : memref<1x8x16x3xf32, #tpu.memory_space<vmem>>, vector<1x8x16x3xf32>
    %1 = vector.shape_cast %0 : vector<1x8x16x3xf32> to vector<8x16x3xf32>
    %c0_3 = arith.constant 0 : index
    %c0_4 = arith.constant 0 : index
    %c0_5 = arith.constant 0 : index
    %c0_6 = arith.constant 0 : index
    %2 = vector.load %arg3[%c0_3, %c0_4, %c0_5, %c0_6] : memref<1x1x16x3xf32, #tpu.memory_space<vmem>>, vector<1x1x16x3xf32>
    %3 = vector.shape_cast %2 : vector<1x1x16x3xf32> to vector<1x16x3xf32>
    %c0_7 = arith.constant 0 : index
    %c0_8 = arith.constant 0 : index
    %c0_9 = arith.constant 0 : index
    %c0_10 = arith.constant 0 : index
    %4 = vector.load %arg4[%c0_7, %c0_8, %c0_9, %c0_10] : memref<1x1x16x3xf32, #tpu.memory_space<vmem>>, vector<1x1x16x3xf32>
    %5 = vector.shape_cast %4 : vector<1x1x16x3xf32> to vector<1x16x3xf32>
    %c0_i32 = arith.constant 0 : i32
    %6 = arith.cmpi eq, %arg1, %c0_i32 : i32
    %cst = arith.constant 0.000000e+00 : f32
    %cst_11 = arith.constant 1.000000e+00 : f32
    %7 = arith.select %6, %cst, %cst_11 : f32
    %8 = vector.broadcast %7 : f32 to vector<1x16x3xf32>
    %9 = arith.mulf %3, %8 : vector<1x16x3xf32>
    %c1_i32 = arith.constant 1 : i32
    %10 = arith.cmpi eq, %arg1, %c1_i32 : i32
    %cst_12 = arith.constant 0.000000e+00 : f32
    %cst_13 = arith.constant 1.000000e+00 : f32
    %11 = arith.select %10, %cst_12, %cst_13 : f32
    %12 = vector.broadcast %11 : f32 to vector<1x16x3xf32>
    %13 = arith.mulf %5, %12 : vector<1x16x3xf32>
    %14 = tpu.concatenate %9, %1, %13 in 0 : vector<1x16x3xf32>, vector<8x16x3xf32>, vector<1x16x3xf32> -> vector<10x16x3xf32>
    %15 = arith.truncf %14 : vector<10x16x3xf32> to vector<10x16x3xbf16>
    %cst_14 = arith.constant 0.000000e+00 : bf16
    %16 = vector.broadcast %cst_14 : bf16 to vector<10x16x5xbf16>
    %17 = tpu.concatenate %15, %16 in 2 : vector<10x16x3xbf16>, vector<10x16x5xbf16> -> vector<10x16x8xbf16>
    %cst_15 = arith.constant 0.000000e+00 : f32
    %18 = vector.broadcast %cst_15 : f32 to vector<8x16x64xf32>
    %cst_16 = arith.constant 0.000000e+00 : f32
    %19 = vector.broadcast %cst_16 : f32 to vector<8x1x64xf32>
    %20 = vector.extract_strided_slice %17 {offsets = [0, 0, 0], sizes = [8, 16, 8], strides = [1, 1, 1]} : vector<10x16x8xbf16> to vector<8x16x8xbf16>
    %21 = vector.shape_cast %20 : vector<8x16x8xbf16> to vector<128x8xbf16>
    %c0_17 = arith.constant 0 : index
    %c0_18 = arith.constant 0 : index
    %c0_19 = arith.constant 0 : index
    %22 = vector.load %arg5[%c0_17, %c0_18, %c0_19] : memref<3x8x192xbf16, #tpu.memory_space<vmem>>, vector<1x8x192xbf16>
    %23 = vector.shape_cast %22 : vector<1x8x192xbf16> to vector<8x192xbf16>
    %cst_20 = arith.constant dense<0.000000e+00> : vector<128x192xf32>
    %24 = tpu.matmul %21, %23, %cst_20 {dimension_numbers = #tpu.dot_dimension_numbers<[1], [0], [0], [1], [0, 0, 1, 1], [], []>} : vector<128x8xbf16>, vector<8x192xbf16>, vector<128x192xf32> -> vector<128x192xf32>
    %25 = vector.shape_cast %24 : vector<128x192xf32> to vector<8x16x192xf32>
    %26 = vector.extract_strided_slice %25 {offsets = [0, 0, 0], sizes = [8, 15, 64], strides = [1, 1, 1]} : vector<8x16x192xf32> to vector<8x15x64xf32>
    %27 = tpu.concatenate %19, %26 in 1 : vector<8x1x64xf32>, vector<8x15x64xf32> -> vector<8x16x64xf32>
    %28 = arith.addf %18, %27 : vector<8x16x64xf32>
    %29 = vector.extract_strided_slice %25 {offsets = [0, 0, 64], sizes = [8, 16, 64], strides = [1, 1, 1]} : vector<8x16x192xf32> to vector<8x16x64xf32>
    %30 = arith.addf %28, %29 : vector<8x16x64xf32>
    %31 = vector.extract_strided_slice %25 {offsets = [0, 1, 128], sizes = [8, 15, 64], strides = [1, 1, 1]} : vector<8x16x192xf32> to vector<8x15x64xf32>
    %32 = tpu.concatenate %31, %19 in 1 : vector<8x15x64xf32>, vector<8x1x64xf32> -> vector<8x16x64xf32>
    %33 = arith.addf %30, %32 : vector<8x16x64xf32>
    %34 = vector.extract_strided_slice %17 {offsets = [1, 0, 0], sizes = [8, 16, 8], strides = [1, 1, 1]} : vector<10x16x8xbf16> to vector<8x16x8xbf16>
    %35 = vector.shape_cast %34 : vector<8x16x8xbf16> to vector<128x8xbf16>
    %c1 = arith.constant 1 : index
    %c0_21 = arith.constant 0 : index
    %c0_22 = arith.constant 0 : index
    %36 = vector.load %arg5[%c1, %c0_21, %c0_22] : memref<3x8x192xbf16, #tpu.memory_space<vmem>>, vector<1x8x192xbf16>
    %37 = vector.shape_cast %36 : vector<1x8x192xbf16> to vector<8x192xbf16>
    %cst_23 = arith.constant dense<0.000000e+00> : vector<128x192xf32>
    %38 = tpu.matmul %35, %37, %cst_23 {dimension_numbers = #tpu.dot_dimension_numbers<[1], [0], [0], [1], [0, 0, 1, 1], [], []>} : vector<128x8xbf16>, vector<8x192xbf16>, vector<128x192xf32> -> vector<128x192xf32>
    %39 = vector.shape_cast %38 : vector<128x192xf32> to vector<8x16x192xf32>
    %40 = vector.extract_strided_slice %39 {offsets = [0, 0, 0], sizes = [8, 15, 64], strides = [1, 1, 1]} : vector<8x16x192xf32> to vector<8x15x64xf32>
    %41 = tpu.concatenate %19, %40 in 1 : vector<8x1x64xf32>, vector<8x15x64xf32> -> vector<8x16x64xf32>
    %42 = arith.addf %33, %41 : vector<8x16x64xf32>
    %43 = vector.extract_strided_slice %39 {offsets = [0, 0, 64], sizes = [8, 16, 64], strides = [1, 1, 1]} : vector<8x16x192xf32> to vector<8x16x64xf32>
    %44 = arith.addf %42, %43 : vector<8x16x64xf32>
    %45 = vector.extract_strided_slice %39 {offsets = [0, 1, 128], sizes = [8, 15, 64], strides = [1, 1, 1]} : vector<8x16x192xf32> to vector<8x15x64xf32>
    %46 = tpu.concatenate %45, %19 in 1 : vector<8x15x64xf32>, vector<8x1x64xf32> -> vector<8x16x64xf32>
    %47 = arith.addf %44, %46 : vector<8x16x64xf32>
    %48 = vector.extract_strided_slice %17 {offsets = [2, 0, 0], sizes = [8, 16, 8], strides = [1, 1, 1]} : vector<10x16x8xbf16> to vector<8x16x8xbf16>
    %49 = vector.shape_cast %48 : vector<8x16x8xbf16> to vector<128x8xbf16>
    %c2 = arith.constant 2 : index
    %c0_24 = arith.constant 0 : index
    %c0_25 = arith.constant 0 : index
    %50 = vector.load %arg5[%c2, %c0_24, %c0_25] : memref<3x8x192xbf16, #tpu.memory_space<vmem>>, vector<1x8x192xbf16>
    %51 = vector.shape_cast %50 : vector<1x8x192xbf16> to vector<8x192xbf16>
    %cst_26 = arith.constant dense<0.000000e+00> : vector<128x192xf32>
    %52 = tpu.matmul %49, %51, %cst_26 {dimension_numbers = #tpu.dot_dimension_numbers<[1], [0], [0], [1], [0, 0, 1, 1], [], []>} : vector<128x8xbf16>, vector<8x192xbf16>, vector<128x192xf32> -> vector<128x192xf32>
    %53 = vector.shape_cast %52 : vector<128x192xf32> to vector<8x16x192xf32>
    %54 = vector.extract_strided_slice %53 {offsets = [0, 0, 0], sizes = [8, 15, 64], strides = [1, 1, 1]} : vector<8x16x192xf32> to vector<8x15x64xf32>
    %55 = tpu.concatenate %19, %54 in 1 : vector<8x1x64xf32>, vector<8x15x64xf32> -> vector<8x16x64xf32>
    %56 = arith.addf %47, %55 : vector<8x16x64xf32>
    %57 = vector.extract_strided_slice %53 {offsets = [0, 0, 64], sizes = [8, 16, 64], strides = [1, 1, 1]} : vector<8x16x192xf32> to vector<8x16x64xf32>
    %58 = arith.addf %56, %57 : vector<8x16x64xf32>
    %59 = vector.extract_strided_slice %53 {offsets = [0, 1, 128], sizes = [8, 15, 64], strides = [1, 1, 1]} : vector<8x16x192xf32> to vector<8x15x64xf32>
    %60 = tpu.concatenate %59, %19 in 1 : vector<8x15x64xf32>, vector<8x1x64xf32> -> vector<8x16x64xf32>
    %61 = arith.addf %58, %60 : vector<8x16x64xf32>
    %c0_27 = arith.constant 0 : index
    %c0_28 = arith.constant 0 : index
    %62 = vector.load %arg6[%c0_27, %c0_28] : memref<1x64xf32, #tpu.memory_space<vmem>>, vector<1x64xf32>
    %63 = vector.shape_cast %62 : vector<1x64xf32> to vector<1x1x64xf32>
    %64 = vector.broadcast %63 : vector<1x1x64xf32> to vector<8x16x64xf32>
    %65 = arith.addf %61, %64 : vector<8x16x64xf32>
    %66 = arith.truncf %65 : vector<8x16x64xf32> to vector<8x16x64xbf16>
    %c0_29 = arith.constant 0 : index
    %c0_30 = arith.constant 0 : index
    %c0_31 = arith.constant 0 : index
    %c0_32 = arith.constant 0 : index
    %67 = vector.load %arg9[%c0_29, %c0_30, %c0_31, %c0_32] : memref<1x8x16x64xbf16, #tpu.memory_space<vmem>>, vector<1x8x16x64xbf16>
    %68 = vector.shape_cast %67 : vector<1x8x16x64xbf16> to vector<8x16x64xbf16>
    %69 = vector.shape_cast %66 : vector<8x16x64xbf16> to vector<1x8x16x64xbf16>
    tpu.vector_store %arg9[%c0_29, %c0_30, %c0_31, %c0_32], %69 {strides = array<i32>} : memref<1x8x16x64xbf16, #tpu.memory_space<vmem>>, vector<1x8x16x64xbf16>,
    %70 = vector.shape_cast %65 : vector<8x16x64xf32> to vector<128x64xf32>
    %cst_33 = arith.constant dense<0.000000e+00> : vector<64xf32>
    %71 = vector.multi_reduction <add>, %70, %cst_33 [0] : vector<128x64xf32> to vector<64xf32>
    %72 = vector.shape_cast %71 : vector<64xf32> to vector<1x64xf32>
    %73 = arith.mulf %70, %70 : vector<128x64xf32>
    %cst_34 = arith.constant dense<0.000000e+00> : vector<64xf32>
    %74 = vector.multi_reduction <add>, %73, %cst_34 [0] : vector<128x64xf32> to vector<64xf32>
    %75 = vector.shape_cast %74 : vector<64xf32> to vector<1x64xf32>
    %76 = tpu.concatenate %72, %75 in 0 : vector<1x64xf32>, vector<1x64xf32> -> vector<2x64xf32>
    %c0_35 = arith.constant 0 : index
    %c0_36 = arith.constant 0 : index
    %c0_37 = arith.constant 0 : index
    %c0_38 = arith.constant 0 : index
    %77 = vector.load %arg10[%c0_35, %c0_36, %c0_37, %c0_38] : memref<1x1x2x64xf32, #tpu.memory_space<vmem>>, vector<1x1x2x64xf32>
    %78 = vector.shape_cast %77 : vector<1x1x2x64xf32> to vector<2x64xf32>
    %79 = vector.shape_cast %76 : vector<2x64xf32> to vector<1x1x2x64xf32>
    tpu.vector_store %arg10[%c0_35, %c0_36, %c0_37, %c0_38], %79 {strides = array<i32>} : memref<1x1x2x64xf32, #tpu.memory_space<vmem>>, vector<1x1x2x64xf32>,
    return
  }
  func.func @transform_0(%arg0: i32, %arg1: i32) -> (i32, i32, i32, i32) {
    %c0_i32 = arith.constant 0 : i32
    %c0_i32_0 = arith.constant 0 : i32
    %c0_i32_1 = arith.constant 0 : i32
    return %arg0, %arg1, %c0_i32, %c0_i32_0 : i32, i32, i32, i32
  }
  func.func @transform_1(%arg0: i32, %arg1: i32) -> (i32, i32, i32, i32) {
    %c8_i32 = arith.constant 8 : i32
    %0 = arith.muli %arg1, %c8_i32 : i32
    %c1_i32 = arith.constant 1 : i32
    %1 = arith.subi %0, %c1_i32 : i32
    %c0_i32 = arith.constant 0 : i32
    %2 = arith.maxsi %1, %c0_i32 : i32
    %c0_i32_0 = arith.constant 0 : i32
    %c0_i32_1 = arith.constant 0 : i32
    %c0_i32_2 = arith.constant 0 : i32
    return %arg0, %2, %c0_i32_0, %c0_i32_1 : i32, i32, i32, i32
  }
  func.func @transform_2(%arg0: i32, %arg1: i32) -> (i32, i32, i32, i32) {
    %c1_i32 = arith.constant 1 : i32
    %0 = arith.addi %arg1, %c1_i32 : i32
    %c8_i32 = arith.constant 8 : i32
    %1 = arith.muli %0, %c8_i32 : i32
    %c15_i32 = arith.constant 15 : i32
    %2 = arith.minsi %1, %c15_i32 : i32
    %c0_i32 = arith.constant 0 : i32
    %c0_i32_0 = arith.constant 0 : i32
    %c0_i32_1 = arith.constant 0 : i32
    return %arg0, %2, %c0_i32, %c0_i32_0 : i32, i32, i32, i32
  }
  func.func @transform_3(%arg0: i32, %arg1: i32) -> (i32, i32, i32) {
    %c0_i32 = arith.constant 0 : i32
    %c0_i32_0 = arith.constant 0 : i32
    %c0_i32_1 = arith.constant 0 : i32
    %c0_i32_2 = arith.constant 0 : i32
    return %c0_i32, %c0_i32_0, %c0_i32_1 : i32, i32, i32
  }
  func.func @transform_4(%arg0: i32, %arg1: i32) -> (i32, i32) {
    %c0_i32 = arith.constant 0 : i32
    %c0_i32_0 = arith.constant 0 : i32
    %c0_i32_1 = arith.constant 0 : i32
    return %c0_i32, %c0_i32_0 : i32, i32
  }
  func.func @transform_5(%arg0: i32, %arg1: i32) -> (i32, i32) {
    %c0_i32 = arith.constant 0 : i32
    %c0_i32_0 = arith.constant 0 : i32
    %c0_i32_1 = arith.constant 0 : i32
    return %c0_i32, %c0_i32_0 : i32, i32
  }
  func.func @transform_6(%arg0: i32, %arg1: i32) -> (i32, i32) {
    %c0_i32 = arith.constant 0 : i32
    %c0_i32_0 = arith.constant 0 : i32
    %c0_i32_1 = arith.constant 0 : i32
    return %c0_i32, %c0_i32_0 : i32, i32
  }
  func.func @transform_7(%arg0: i32, %arg1: i32) -> (i32, i32, i32, i32) {
    %c0_i32 = arith.constant 0 : i32
    %c0_i32_0 = arith.constant 0 : i32
    %c0_i32_1 = arith.constant 0 : i32
    return %arg0, %arg1, %c0_i32, %c0_i32_0 : i32, i32, i32, i32
  }
  func.func @transform_8(%arg0: i32, %arg1: i32) -> (i32, i32, i32, i32) {
    %c0_i32 = arith.constant 0 : i32
    %c0_i32_0 = arith.constant 0 : i32
    %c0_i32_1 = arith.constant 0 : i32
    return %arg0, %arg1, %c0_i32, %c0_i32_0 : i32, i32, i32, i32
  }
}

module attributes {stable_mosaic.version = 11 : i64} {
  func.func @_conv3x3_fused_kernel(%arg0: i32, %arg1: i32, %arg2: memref<1x8x16x64xbf16, #tpu.memory_space<vmem>>, %arg3: memref<1x1x16x64xbf16, #tpu.memory_space<vmem>>, %arg4: memref<1x1x16x64xbf16, #tpu.memory_space<vmem>>, %arg5: memref<3x64x384xbf16, #tpu.memory_space<vmem>>, %arg6: memref<1x128xf32, #tpu.memory_space<vmem>>, %arg7: memref<1x64xf32, #tpu.memory_space<vmem>>, %arg8: memref<1x64xf32, #tpu.memory_space<vmem>>, %arg9: memref<1x8x16x128xbf16, #tpu.memory_space<vmem>>, %arg10: memref<1x1x2x128xf32, #tpu.memory_space<vmem>>) attributes {dimension_semantics = [#tpu.dimension_semantics<parallel>, #tpu.dimension_semantics<parallel>], iteration_bounds = array<i64: 2, 2>, scalar_prefetch = 0 : i64, scratch_operands = 0 : i64, tpu.core_type = #tpu.core_type<tc>, window_params = [{transform_indices = @transform_0, window_bounds = array<i64: 1, 8, 16, 64>}, {transform_indices = @transform_1, window_bounds = array<i64: 1, 1, 16, 64>}, {transform_indices = @transform_2, window_bounds = array<i64: 1, 1, 16, 64>}, {pipeline_mode = #tpu.pipeline_mode<synchronous>, transform_indices = @transform_3, window_bounds = array<i64: 3, 64, 384>}, {pipeline_mode = #tpu.pipeline_mode<synchronous>, transform_indices = @transform_4, window_bounds = array<i64: 1, 128>}, {pipeline_mode = #tpu.pipeline_mode<synchronous>, transform_indices = @transform_5, window_bounds = array<i64: 1, 64>}, {pipeline_mode = #tpu.pipeline_mode<synchronous>, transform_indices = @transform_6, window_bounds = array<i64: 1, 64>}, {transform_indices = @transform_7, window_bounds = array<i64: 1, 8, 16, 128>}, {transform_indices = @transform_8, window_bounds = array<i64: 1, 1, 2, 128>}]} {
    %c0 = arith.constant 0 : index
    %c0_0 = arith.constant 0 : index
    %c0_1 = arith.constant 0 : index
    %c0_2 = arith.constant 0 : index
    %0 = vector.load %arg2[%c0, %c0_0, %c0_1, %c0_2] : memref<1x8x16x64xbf16, #tpu.memory_space<vmem>>, vector<1x8x16x64xbf16>
    %1 = vector.shape_cast %0 : vector<1x8x16x64xbf16> to vector<8x16x64xbf16>
    %2 = arith.extf %1 : vector<8x16x64xbf16> to vector<8x16x64xf32>
    %c0_3 = arith.constant 0 : index
    %c0_4 = arith.constant 0 : index
    %c0_5 = arith.constant 0 : index
    %c0_6 = arith.constant 0 : index
    %3 = vector.load %arg3[%c0_3, %c0_4, %c0_5, %c0_6] : memref<1x1x16x64xbf16, #tpu.memory_space<vmem>>, vector<1x1x16x64xbf16>
    %4 = vector.shape_cast %3 : vector<1x1x16x64xbf16> to vector<1x16x64xbf16>
    %5 = arith.extf %4 : vector<1x16x64xbf16> to vector<1x16x64xf32>
    %c0_7 = arith.constant 0 : index
    %c0_8 = arith.constant 0 : index
    %c0_9 = arith.constant 0 : index
    %c0_10 = arith.constant 0 : index
    %6 = vector.load %arg4[%c0_7, %c0_8, %c0_9, %c0_10] : memref<1x1x16x64xbf16, #tpu.memory_space<vmem>>, vector<1x1x16x64xbf16>
    %7 = vector.shape_cast %6 : vector<1x1x16x64xbf16> to vector<1x16x64xbf16>
    %8 = arith.extf %7 : vector<1x16x64xbf16> to vector<1x16x64xf32>
    %c0_11 = arith.constant 0 : index
    %c0_12 = arith.constant 0 : index
    %9 = vector.load %arg7[%c0_11, %c0_12] : memref<1x64xf32, #tpu.memory_space<vmem>>, vector<1x64xf32>
    %10 = vector.shape_cast %9 : vector<1x64xf32> to vector<1x1x64xf32>
    %c0_13 = arith.constant 0 : index
    %c0_14 = arith.constant 0 : index
    %11 = vector.load %arg8[%c0_13, %c0_14] : memref<1x64xf32, #tpu.memory_space<vmem>>, vector<1x64xf32>
    %12 = vector.shape_cast %11 : vector<1x64xf32> to vector<1x1x64xf32>
    %13 = vector.broadcast %10 : vector<1x1x64xf32> to vector<8x16x64xf32>
    %14 = arith.mulf %2, %13 : vector<8x16x64xf32>
    %15 = vector.broadcast %12 : vector<1x1x64xf32> to vector<8x16x64xf32>
    %16 = arith.addf %14, %15 : vector<8x16x64xf32>
    %cst = arith.constant 0.000000e+00 : f32
    %17 = vector.broadcast %cst : f32 to vector<8x16x64xf32>
    %18 = arith.maximumf %16, %17 : vector<8x16x64xf32>
    %19 = vector.broadcast %10 : vector<1x1x64xf32> to vector<1x16x64xf32>
    %20 = arith.mulf %5, %19 : vector<1x16x64xf32>
    %21 = vector.broadcast %12 : vector<1x1x64xf32> to vector<1x16x64xf32>
    %22 = arith.addf %20, %21 : vector<1x16x64xf32>
    %cst_15 = arith.constant 0.000000e+00 : f32
    %23 = vector.broadcast %cst_15 : f32 to vector<1x16x64xf32>
    %24 = arith.maximumf %22, %23 : vector<1x16x64xf32>
    %25 = vector.broadcast %10 : vector<1x1x64xf32> to vector<1x16x64xf32>
    %26 = arith.mulf %8, %25 : vector<1x16x64xf32>
    %27 = vector.broadcast %12 : vector<1x1x64xf32> to vector<1x16x64xf32>
    %28 = arith.addf %26, %27 : vector<1x16x64xf32>
    %cst_16 = arith.constant 0.000000e+00 : f32
    %29 = vector.broadcast %cst_16 : f32 to vector<1x16x64xf32>
    %30 = arith.maximumf %28, %29 : vector<1x16x64xf32>
    %c0_i32 = arith.constant 0 : i32
    %31 = arith.cmpi eq, %arg1, %c0_i32 : i32
    %cst_17 = arith.constant 0.000000e+00 : f32
    %cst_18 = arith.constant 1.000000e+00 : f32
    %32 = arith.select %31, %cst_17, %cst_18 : f32
    %33 = vector.broadcast %32 : f32 to vector<1x16x64xf32>
    %34 = arith.mulf %24, %33 : vector<1x16x64xf32>
    %c1_i32 = arith.constant 1 : i32
    %35 = arith.cmpi eq, %arg1, %c1_i32 : i32
    %cst_19 = arith.constant 0.000000e+00 : f32
    %cst_20 = arith.constant 1.000000e+00 : f32
    %36 = arith.select %35, %cst_19, %cst_20 : f32
    %37 = vector.broadcast %36 : f32 to vector<1x16x64xf32>
    %38 = arith.mulf %30, %37 : vector<1x16x64xf32>
    %39 = tpu.concatenate %34, %18, %38 in 0 : vector<1x16x64xf32>, vector<8x16x64xf32>, vector<1x16x64xf32> -> vector<10x16x64xf32>
    %40 = arith.truncf %39 : vector<10x16x64xf32> to vector<10x16x64xbf16>
    %cst_21 = arith.constant 0.000000e+00 : f32
    %41 = vector.broadcast %cst_21 : f32 to vector<8x16x128xf32>
    %cst_22 = arith.constant 0.000000e+00 : f32
    %42 = vector.broadcast %cst_22 : f32 to vector<8x1x128xf32>
    %43 = vector.extract_strided_slice %40 {offsets = [0, 0, 0], sizes = [8, 16, 64], strides = [1, 1, 1]} : vector<10x16x64xbf16> to vector<8x16x64xbf16>
    %44 = vector.shape_cast %43 : vector<8x16x64xbf16> to vector<128x64xbf16>
    %c0_23 = arith.constant 0 : index
    %c0_24 = arith.constant 0 : index
    %c0_25 = arith.constant 0 : index
    %45 = vector.load %arg5[%c0_23, %c0_24, %c0_25] : memref<3x64x384xbf16, #tpu.memory_space<vmem>>, vector<1x64x384xbf16>
    %46 = vector.shape_cast %45 : vector<1x64x384xbf16> to vector<64x384xbf16>
    %cst_26 = arith.constant dense<0.000000e+00> : vector<128x384xf32>
    %47 = tpu.matmul %44, %46, %cst_26 {dimension_numbers = #tpu.dot_dimension_numbers<[1], [0], [0], [1], [0, 0, 1, 1], [], []>} : vector<128x64xbf16>, vector<64x384xbf16>, vector<128x384xf32> -> vector<128x384xf32>
    %48 = vector.shape_cast %47 : vector<128x384xf32> to vector<8x16x384xf32>
    %49 = vector.extract_strided_slice %48 {offsets = [0, 0, 0], sizes = [8, 15, 128], strides = [1, 1, 1]} : vector<8x16x384xf32> to vector<8x15x128xf32>
    %50 = tpu.concatenate %42, %49 in 1 : vector<8x1x128xf32>, vector<8x15x128xf32> -> vector<8x16x128xf32>
    %51 = arith.addf %41, %50 : vector<8x16x128xf32>
    %52 = vector.extract_strided_slice %48 {offsets = [0, 0, 128], sizes = [8, 16, 128], strides = [1, 1, 1]} : vector<8x16x384xf32> to vector<8x16x128xf32>
    %53 = arith.addf %51, %52 : vector<8x16x128xf32>
    %54 = vector.extract_strided_slice %48 {offsets = [0, 1, 256], sizes = [8, 15, 128], strides = [1, 1, 1]} : vector<8x16x384xf32> to vector<8x15x128xf32>
    %55 = tpu.concatenate %54, %42 in 1 : vector<8x15x128xf32>, vector<8x1x128xf32> -> vector<8x16x128xf32>
    %56 = arith.addf %53, %55 : vector<8x16x128xf32>
    %57 = vector.extract_strided_slice %40 {offsets = [1, 0, 0], sizes = [8, 16, 64], strides = [1, 1, 1]} : vector<10x16x64xbf16> to vector<8x16x64xbf16>
    %58 = vector.shape_cast %57 : vector<8x16x64xbf16> to vector<128x64xbf16>
    %c1 = arith.constant 1 : index
    %c0_27 = arith.constant 0 : index
    %c0_28 = arith.constant 0 : index
    %59 = vector.load %arg5[%c1, %c0_27, %c0_28] : memref<3x64x384xbf16, #tpu.memory_space<vmem>>, vector<1x64x384xbf16>
    %60 = vector.shape_cast %59 : vector<1x64x384xbf16> to vector<64x384xbf16>
    %cst_29 = arith.constant dense<0.000000e+00> : vector<128x384xf32>
    %61 = tpu.matmul %58, %60, %cst_29 {dimension_numbers = #tpu.dot_dimension_numbers<[1], [0], [0], [1], [0, 0, 1, 1], [], []>} : vector<128x64xbf16>, vector<64x384xbf16>, vector<128x384xf32> -> vector<128x384xf32>
    %62 = vector.shape_cast %61 : vector<128x384xf32> to vector<8x16x384xf32>
    %63 = vector.extract_strided_slice %62 {offsets = [0, 0, 0], sizes = [8, 15, 128], strides = [1, 1, 1]} : vector<8x16x384xf32> to vector<8x15x128xf32>
    %64 = tpu.concatenate %42, %63 in 1 : vector<8x1x128xf32>, vector<8x15x128xf32> -> vector<8x16x128xf32>
    %65 = arith.addf %56, %64 : vector<8x16x128xf32>
    %66 = vector.extract_strided_slice %62 {offsets = [0, 0, 128], sizes = [8, 16, 128], strides = [1, 1, 1]} : vector<8x16x384xf32> to vector<8x16x128xf32>
    %67 = arith.addf %65, %66 : vector<8x16x128xf32>
    %68 = vector.extract_strided_slice %62 {offsets = [0, 1, 256], sizes = [8, 15, 128], strides = [1, 1, 1]} : vector<8x16x384xf32> to vector<8x15x128xf32>
    %69 = tpu.concatenate %68, %42 in 1 : vector<8x15x128xf32>, vector<8x1x128xf32> -> vector<8x16x128xf32>
    %70 = arith.addf %67, %69 : vector<8x16x128xf32>
    %71 = vector.extract_strided_slice %40 {offsets = [2, 0, 0], sizes = [8, 16, 64], strides = [1, 1, 1]} : vector<10x16x64xbf16> to vector<8x16x64xbf16>
    %72 = vector.shape_cast %71 : vector<8x16x64xbf16> to vector<128x64xbf16>
    %c2 = arith.constant 2 : index
    %c0_30 = arith.constant 0 : index
    %c0_31 = arith.constant 0 : index
    %73 = vector.load %arg5[%c2, %c0_30, %c0_31] : memref<3x64x384xbf16, #tpu.memory_space<vmem>>, vector<1x64x384xbf16>
    %74 = vector.shape_cast %73 : vector<1x64x384xbf16> to vector<64x384xbf16>
    %cst_32 = arith.constant dense<0.000000e+00> : vector<128x384xf32>
    %75 = tpu.matmul %72, %74, %cst_32 {dimension_numbers = #tpu.dot_dimension_numbers<[1], [0], [0], [1], [0, 0, 1, 1], [], []>} : vector<128x64xbf16>, vector<64x384xbf16>, vector<128x384xf32> -> vector<128x384xf32>
    %76 = vector.shape_cast %75 : vector<128x384xf32> to vector<8x16x384xf32>
    %77 = vector.extract_strided_slice %76 {offsets = [0, 0, 0], sizes = [8, 15, 128], strides = [1, 1, 1]} : vector<8x16x384xf32> to vector<8x15x128xf32>
    %78 = tpu.concatenate %42, %77 in 1 : vector<8x1x128xf32>, vector<8x15x128xf32> -> vector<8x16x128xf32>
    %79 = arith.addf %70, %78 : vector<8x16x128xf32>
    %80 = vector.extract_strided_slice %76 {offsets = [0, 0, 128], sizes = [8, 16, 128], strides = [1, 1, 1]} : vector<8x16x384xf32> to vector<8x16x128xf32>
    %81 = arith.addf %79, %80 : vector<8x16x128xf32>
    %82 = vector.extract_strided_slice %76 {offsets = [0, 1, 256], sizes = [8, 15, 128], strides = [1, 1, 1]} : vector<8x16x384xf32> to vector<8x15x128xf32>
    %83 = tpu.concatenate %82, %42 in 1 : vector<8x15x128xf32>, vector<8x1x128xf32> -> vector<8x16x128xf32>
    %84 = arith.addf %81, %83 : vector<8x16x128xf32>
    %c0_33 = arith.constant 0 : index
    %c0_34 = arith.constant 0 : index
    %85 = vector.load %arg6[%c0_33, %c0_34] : memref<1x128xf32, #tpu.memory_space<vmem>>, vector<1x128xf32>
    %86 = vector.shape_cast %85 : vector<1x128xf32> to vector<1x1x128xf32>
    %87 = vector.broadcast %86 : vector<1x1x128xf32> to vector<8x16x128xf32>
    %88 = arith.addf %84, %87 : vector<8x16x128xf32>
    %89 = arith.truncf %88 : vector<8x16x128xf32> to vector<8x16x128xbf16>
    %c0_35 = arith.constant 0 : index
    %c0_36 = arith.constant 0 : index
    %c0_37 = arith.constant 0 : index
    %c0_38 = arith.constant 0 : index
    %90 = vector.load %arg9[%c0_35, %c0_36, %c0_37, %c0_38] : memref<1x8x16x128xbf16, #tpu.memory_space<vmem>>, vector<1x8x16x128xbf16>
    %91 = vector.shape_cast %90 : vector<1x8x16x128xbf16> to vector<8x16x128xbf16>
    %92 = vector.shape_cast %89 : vector<8x16x128xbf16> to vector<1x8x16x128xbf16>
    tpu.vector_store %arg9[%c0_35, %c0_36, %c0_37, %c0_38], %92 {strides = array<i32>} : memref<1x8x16x128xbf16, #tpu.memory_space<vmem>>, vector<1x8x16x128xbf16>,
    %93 = vector.shape_cast %88 : vector<8x16x128xf32> to vector<128x128xf32>
    %cst_39 = arith.constant dense<0.000000e+00> : vector<128xf32>
    %94 = vector.multi_reduction <add>, %93, %cst_39 [0] : vector<128x128xf32> to vector<128xf32>
    %95 = vector.shape_cast %94 : vector<128xf32> to vector<1x128xf32>
    %96 = arith.mulf %93, %93 : vector<128x128xf32>
    %cst_40 = arith.constant dense<0.000000e+00> : vector<128xf32>
    %97 = vector.multi_reduction <add>, %96, %cst_40 [0] : vector<128x128xf32> to vector<128xf32>
    %98 = vector.shape_cast %97 : vector<128xf32> to vector<1x128xf32>
    %99 = tpu.concatenate %95, %98 in 0 : vector<1x128xf32>, vector<1x128xf32> -> vector<2x128xf32>
    %c0_41 = arith.constant 0 : index
    %c0_42 = arith.constant 0 : index
    %c0_43 = arith.constant 0 : index
    %c0_44 = arith.constant 0 : index
    %100 = vector.load %arg10[%c0_41, %c0_42, %c0_43, %c0_44] : memref<1x1x2x128xf32, #tpu.memory_space<vmem>>, vector<1x1x2x128xf32>
    %101 = vector.shape_cast %100 : vector<1x1x2x128xf32> to vector<2x128xf32>
    %102 = vector.shape_cast %99 : vector<2x128xf32> to vector<1x1x2x128xf32>
    tpu.vector_store %arg10[%c0_41, %c0_42, %c0_43, %c0_44], %102 {strides = array<i32>} : memref<1x1x2x128xf32, #tpu.memory_space<vmem>>, vector<1x1x2x128xf32>,
    return
  }
  func.func @transform_0(%arg0: i32, %arg1: i32) -> (i32, i32, i32, i32) {
    %c0_i32 = arith.constant 0 : i32
    %c0_i32_0 = arith.constant 0 : i32
    %c0_i32_1 = arith.constant 0 : i32
    return %arg0, %arg1, %c0_i32, %c0_i32_0 : i32, i32, i32, i32
  }
  func.func @transform_1(%arg0: i32, %arg1: i32) -> (i32, i32, i32, i32) {
    %c8_i32 = arith.constant 8 : i32
    %0 = arith.muli %arg1, %c8_i32 : i32
    %c1_i32 = arith.constant 1 : i32
    %1 = arith.subi %0, %c1_i32 : i32
    %c0_i32 = arith.constant 0 : i32
    %2 = arith.maxsi %1, %c0_i32 : i32
    %c0_i32_0 = arith.constant 0 : i32
    %c0_i32_1 = arith.constant 0 : i32
    %c0_i32_2 = arith.constant 0 : i32
    return %arg0, %2, %c0_i32_0, %c0_i32_1 : i32, i32, i32, i32
  }
  func.func @transform_2(%arg0: i32, %arg1: i32) -> (i32, i32, i32, i32) {
    %c1_i32 = arith.constant 1 : i32
    %0 = arith.addi %arg1, %c1_i32 : i32
    %c8_i32 = arith.constant 8 : i32
    %1 = arith.muli %0, %c8_i32 : i32
    %c15_i32 = arith.constant 15 : i32
    %2 = arith.minsi %1, %c15_i32 : i32
    %c0_i32 = arith.constant 0 : i32
    %c0_i32_0 = arith.constant 0 : i32
    %c0_i32_1 = arith.constant 0 : i32
    return %arg0, %2, %c0_i32, %c0_i32_0 : i32, i32, i32, i32
  }
  func.func @transform_3(%arg0: i32, %arg1: i32) -> (i32, i32, i32) {
    %c0_i32 = arith.constant 0 : i32
    %c0_i32_0 = arith.constant 0 : i32
    %c0_i32_1 = arith.constant 0 : i32
    %c0_i32_2 = arith.constant 0 : i32
    return %c0_i32, %c0_i32_0, %c0_i32_1 : i32, i32, i32
  }
  func.func @transform_4(%arg0: i32, %arg1: i32) -> (i32, i32) {
    %c0_i32 = arith.constant 0 : i32
    %c0_i32_0 = arith.constant 0 : i32
    %c0_i32_1 = arith.constant 0 : i32
    return %c0_i32, %c0_i32_0 : i32, i32
  }
  func.func @transform_5(%arg0: i32, %arg1: i32) -> (i32, i32) {
    %c0_i32 = arith.constant 0 : i32
    %c0_i32_0 = arith.constant 0 : i32
    %c0_i32_1 = arith.constant 0 : i32
    return %c0_i32, %c0_i32_0 : i32, i32
  }
  func.func @transform_6(%arg0: i32, %arg1: i32) -> (i32, i32) {
    %c0_i32 = arith.constant 0 : i32
    %c0_i32_0 = arith.constant 0 : i32
    %c0_i32_1 = arith.constant 0 : i32
    return %c0_i32, %c0_i32_0 : i32, i32
  }
  func.func @transform_7(%arg0: i32, %arg1: i32) -> (i32, i32, i32, i32) {
    %c0_i32 = arith.constant 0 : i32
    %c0_i32_0 = arith.constant 0 : i32
    %c0_i32_1 = arith.constant 0 : i32
    return %arg0, %arg1, %c0_i32, %c0_i32_0 : i32, i32, i32, i32
  }
  func.func @transform_8(%arg0: i32, %arg1: i32) -> (i32, i32, i32, i32) {
    %c0_i32 = arith.constant 0 : i32
    %c0_i32_0 = arith.constant 0 : i32
    %c0_i32_1 = arith.constant 0 : i32
    return %arg0, %arg1, %c0_i32, %c0_i32_0 : i32, i32, i32, i32
  }
}

module attributes {stable_mosaic.version = 11 : i64} {
  func.func @_conv3x3_fused_kernel(%arg0: i32, %arg1: i32, %arg2: memref<1x8x16x128xbf16, #tpu.memory_space<vmem>>, %arg3: memref<1x1x16x128xbf16, #tpu.memory_space<vmem>>, %arg4: memref<1x1x16x128xbf16, #tpu.memory_space<vmem>>, %arg5: memref<3x128x192xbf16, #tpu.memory_space<vmem>>, %arg6: memref<1x64xf32, #tpu.memory_space<vmem>>, %arg7: memref<1x128xf32, #tpu.memory_space<vmem>>, %arg8: memref<1x128xf32, #tpu.memory_space<vmem>>, %arg9: memref<1x8x16x64xbf16, #tpu.memory_space<vmem>>, %arg10: memref<1x1x2x64xf32, #tpu.memory_space<vmem>>) attributes {dimension_semantics = [#tpu.dimension_semantics<parallel>, #tpu.dimension_semantics<parallel>], iteration_bounds = array<i64: 2, 2>, scalar_prefetch = 0 : i64, scratch_operands = 0 : i64, tpu.core_type = #tpu.core_type<tc>, window_params = [{transform_indices = @transform_0, window_bounds = array<i64: 1, 8, 16, 128>}, {transform_indices = @transform_1, window_bounds = array<i64: 1, 1, 16, 128>}, {transform_indices = @transform_2, window_bounds = array<i64: 1, 1, 16, 128>}, {pipeline_mode = #tpu.pipeline_mode<synchronous>, transform_indices = @transform_3, window_bounds = array<i64: 3, 128, 192>}, {pipeline_mode = #tpu.pipeline_mode<synchronous>, transform_indices = @transform_4, window_bounds = array<i64: 1, 64>}, {pipeline_mode = #tpu.pipeline_mode<synchronous>, transform_indices = @transform_5, window_bounds = array<i64: 1, 128>}, {pipeline_mode = #tpu.pipeline_mode<synchronous>, transform_indices = @transform_6, window_bounds = array<i64: 1, 128>}, {transform_indices = @transform_7, window_bounds = array<i64: 1, 8, 16, 64>}, {transform_indices = @transform_8, window_bounds = array<i64: 1, 1, 2, 64>}]} {
    %c0 = arith.constant 0 : index
    %c0_0 = arith.constant 0 : index
    %c0_1 = arith.constant 0 : index
    %c0_2 = arith.constant 0 : index
    %0 = vector.load %arg2[%c0, %c0_0, %c0_1, %c0_2] : memref<1x8x16x128xbf16, #tpu.memory_space<vmem>>, vector<1x8x16x128xbf16>
    %1 = vector.shape_cast %0 : vector<1x8x16x128xbf16> to vector<8x16x128xbf16>
    %2 = arith.extf %1 : vector<8x16x128xbf16> to vector<8x16x128xf32>
    %c0_3 = arith.constant 0 : index
    %c0_4 = arith.constant 0 : index
    %c0_5 = arith.constant 0 : index
    %c0_6 = arith.constant 0 : index
    %3 = vector.load %arg3[%c0_3, %c0_4, %c0_5, %c0_6] : memref<1x1x16x128xbf16, #tpu.memory_space<vmem>>, vector<1x1x16x128xbf16>
    %4 = vector.shape_cast %3 : vector<1x1x16x128xbf16> to vector<1x16x128xbf16>
    %5 = arith.extf %4 : vector<1x16x128xbf16> to vector<1x16x128xf32>
    %c0_7 = arith.constant 0 : index
    %c0_8 = arith.constant 0 : index
    %c0_9 = arith.constant 0 : index
    %c0_10 = arith.constant 0 : index
    %6 = vector.load %arg4[%c0_7, %c0_8, %c0_9, %c0_10] : memref<1x1x16x128xbf16, #tpu.memory_space<vmem>>, vector<1x1x16x128xbf16>
    %7 = vector.shape_cast %6 : vector<1x1x16x128xbf16> to vector<1x16x128xbf16>
    %8 = arith.extf %7 : vector<1x16x128xbf16> to vector<1x16x128xf32>
    %c0_11 = arith.constant 0 : index
    %c0_12 = arith.constant 0 : index
    %9 = vector.load %arg7[%c0_11, %c0_12] : memref<1x128xf32, #tpu.memory_space<vmem>>, vector<1x128xf32>
    %10 = vector.shape_cast %9 : vector<1x128xf32> to vector<1x1x128xf32>
    %c0_13 = arith.constant 0 : index
    %c0_14 = arith.constant 0 : index
    %11 = vector.load %arg8[%c0_13, %c0_14] : memref<1x128xf32, #tpu.memory_space<vmem>>, vector<1x128xf32>
    %12 = vector.shape_cast %11 : vector<1x128xf32> to vector<1x1x128xf32>
    %13 = vector.broadcast %10 : vector<1x1x128xf32> to vector<8x16x128xf32>
    %14 = arith.mulf %2, %13 : vector<8x16x128xf32>
    %15 = vector.broadcast %12 : vector<1x1x128xf32> to vector<8x16x128xf32>
    %16 = arith.addf %14, %15 : vector<8x16x128xf32>
    %cst = arith.constant 0.000000e+00 : f32
    %17 = vector.broadcast %cst : f32 to vector<8x16x128xf32>
    %18 = arith.maximumf %16, %17 : vector<8x16x128xf32>
    %19 = vector.broadcast %10 : vector<1x1x128xf32> to vector<1x16x128xf32>
    %20 = arith.mulf %5, %19 : vector<1x16x128xf32>
    %21 = vector.broadcast %12 : vector<1x1x128xf32> to vector<1x16x128xf32>
    %22 = arith.addf %20, %21 : vector<1x16x128xf32>
    %cst_15 = arith.constant 0.000000e+00 : f32
    %23 = vector.broadcast %cst_15 : f32 to vector<1x16x128xf32>
    %24 = arith.maximumf %22, %23 : vector<1x16x128xf32>
    %25 = vector.broadcast %10 : vector<1x1x128xf32> to vector<1x16x128xf32>
    %26 = arith.mulf %8, %25 : vector<1x16x128xf32>
    %27 = vector.broadcast %12 : vector<1x1x128xf32> to vector<1x16x128xf32>
    %28 = arith.addf %26, %27 : vector<1x16x128xf32>
    %cst_16 = arith.constant 0.000000e+00 : f32
    %29 = vector.broadcast %cst_16 : f32 to vector<1x16x128xf32>
    %30 = arith.maximumf %28, %29 : vector<1x16x128xf32>
    %c0_i32 = arith.constant 0 : i32
    %31 = arith.cmpi eq, %arg1, %c0_i32 : i32
    %cst_17 = arith.constant 0.000000e+00 : f32
    %cst_18 = arith.constant 1.000000e+00 : f32
    %32 = arith.select %31, %cst_17, %cst_18 : f32
    %33 = vector.broadcast %32 : f32 to vector<1x16x128xf32>
    %34 = arith.mulf %24, %33 : vector<1x16x128xf32>
    %c1_i32 = arith.constant 1 : i32
    %35 = arith.cmpi eq, %arg1, %c1_i32 : i32
    %cst_19 = arith.constant 0.000000e+00 : f32
    %cst_20 = arith.constant 1.000000e+00 : f32
    %36 = arith.select %35, %cst_19, %cst_20 : f32
    %37 = vector.broadcast %36 : f32 to vector<1x16x128xf32>
    %38 = arith.mulf %30, %37 : vector<1x16x128xf32>
    %39 = tpu.concatenate %34, %18, %38 in 0 : vector<1x16x128xf32>, vector<8x16x128xf32>, vector<1x16x128xf32> -> vector<10x16x128xf32>
    %40 = arith.truncf %39 : vector<10x16x128xf32> to vector<10x16x128xbf16>
    %cst_21 = arith.constant 0.000000e+00 : f32
    %41 = vector.broadcast %cst_21 : f32 to vector<8x16x64xf32>
    %cst_22 = arith.constant 0.000000e+00 : f32
    %42 = vector.broadcast %cst_22 : f32 to vector<8x1x64xf32>
    %43 = vector.extract_strided_slice %40 {offsets = [0, 0, 0], sizes = [8, 16, 128], strides = [1, 1, 1]} : vector<10x16x128xbf16> to vector<8x16x128xbf16>
    %44 = vector.shape_cast %43 : vector<8x16x128xbf16> to vector<128x128xbf16>
    %c0_23 = arith.constant 0 : index
    %c0_24 = arith.constant 0 : index
    %c0_25 = arith.constant 0 : index
    %45 = vector.load %arg5[%c0_23, %c0_24, %c0_25] : memref<3x128x192xbf16, #tpu.memory_space<vmem>>, vector<1x128x192xbf16>
    %46 = vector.shape_cast %45 : vector<1x128x192xbf16> to vector<128x192xbf16>
    %cst_26 = arith.constant dense<0.000000e+00> : vector<128x192xf32>
    %47 = tpu.matmul %44, %46, %cst_26 {dimension_numbers = #tpu.dot_dimension_numbers<[1], [0], [0], [1], [0, 0, 1, 1], [], []>} : vector<128x128xbf16>, vector<128x192xbf16>, vector<128x192xf32> -> vector<128x192xf32>
    %48 = vector.shape_cast %47 : vector<128x192xf32> to vector<8x16x192xf32>
    %49 = vector.extract_strided_slice %48 {offsets = [0, 0, 0], sizes = [8, 15, 64], strides = [1, 1, 1]} : vector<8x16x192xf32> to vector<8x15x64xf32>
    %50 = tpu.concatenate %42, %49 in 1 : vector<8x1x64xf32>, vector<8x15x64xf32> -> vector<8x16x64xf32>
    %51 = arith.addf %41, %50 : vector<8x16x64xf32>
    %52 = vector.extract_strided_slice %48 {offsets = [0, 0, 64], sizes = [8, 16, 64], strides = [1, 1, 1]} : vector<8x16x192xf32> to vector<8x16x64xf32>
    %53 = arith.addf %51, %52 : vector<8x16x64xf32>
    %54 = vector.extract_strided_slice %48 {offsets = [0, 1, 128], sizes = [8, 15, 64], strides = [1, 1, 1]} : vector<8x16x192xf32> to vector<8x15x64xf32>
    %55 = tpu.concatenate %54, %42 in 1 : vector<8x15x64xf32>, vector<8x1x64xf32> -> vector<8x16x64xf32>
    %56 = arith.addf %53, %55 : vector<8x16x64xf32>
    %57 = vector.extract_strided_slice %40 {offsets = [1, 0, 0], sizes = [8, 16, 128], strides = [1, 1, 1]} : vector<10x16x128xbf16> to vector<8x16x128xbf16>
    %58 = vector.shape_cast %57 : vector<8x16x128xbf16> to vector<128x128xbf16>
    %c1 = arith.constant 1 : index
    %c0_27 = arith.constant 0 : index
    %c0_28 = arith.constant 0 : index
    %59 = vector.load %arg5[%c1, %c0_27, %c0_28] : memref<3x128x192xbf16, #tpu.memory_space<vmem>>, vector<1x128x192xbf16>
    %60 = vector.shape_cast %59 : vector<1x128x192xbf16> to vector<128x192xbf16>
    %cst_29 = arith.constant dense<0.000000e+00> : vector<128x192xf32>
    %61 = tpu.matmul %58, %60, %cst_29 {dimension_numbers = #tpu.dot_dimension_numbers<[1], [0], [0], [1], [0, 0, 1, 1], [], []>} : vector<128x128xbf16>, vector<128x192xbf16>, vector<128x192xf32> -> vector<128x192xf32>
    %62 = vector.shape_cast %61 : vector<128x192xf32> to vector<8x16x192xf32>
    %63 = vector.extract_strided_slice %62 {offsets = [0, 0, 0], sizes = [8, 15, 64], strides = [1, 1, 1]} : vector<8x16x192xf32> to vector<8x15x64xf32>
    %64 = tpu.concatenate %42, %63 in 1 : vector<8x1x64xf32>, vector<8x15x64xf32> -> vector<8x16x64xf32>
    %65 = arith.addf %56, %64 : vector<8x16x64xf32>
    %66 = vector.extract_strided_slice %62 {offsets = [0, 0, 64], sizes = [8, 16, 64], strides = [1, 1, 1]} : vector<8x16x192xf32> to vector<8x16x64xf32>
    %67 = arith.addf %65, %66 : vector<8x16x64xf32>
    %68 = vector.extract_strided_slice %62 {offsets = [0, 1, 128], sizes = [8, 15, 64], strides = [1, 1, 1]} : vector<8x16x192xf32> to vector<8x15x64xf32>
    %69 = tpu.concatenate %68, %42 in 1 : vector<8x15x64xf32>, vector<8x1x64xf32> -> vector<8x16x64xf32>
    %70 = arith.addf %67, %69 : vector<8x16x64xf32>
    %71 = vector.extract_strided_slice %40 {offsets = [2, 0, 0], sizes = [8, 16, 128], strides = [1, 1, 1]} : vector<10x16x128xbf16> to vector<8x16x128xbf16>
    %72 = vector.shape_cast %71 : vector<8x16x128xbf16> to vector<128x128xbf16>
    %c2 = arith.constant 2 : index
    %c0_30 = arith.constant 0 : index
    %c0_31 = arith.constant 0 : index
    %73 = vector.load %arg5[%c2, %c0_30, %c0_31] : memref<3x128x192xbf16, #tpu.memory_space<vmem>>, vector<1x128x192xbf16>
    %74 = vector.shape_cast %73 : vector<1x128x192xbf16> to vector<128x192xbf16>
    %cst_32 = arith.constant dense<0.000000e+00> : vector<128x192xf32>
    %75 = tpu.matmul %72, %74, %cst_32 {dimension_numbers = #tpu.dot_dimension_numbers<[1], [0], [0], [1], [0, 0, 1, 1], [], []>} : vector<128x128xbf16>, vector<128x192xbf16>, vector<128x192xf32> -> vector<128x192xf32>
    %76 = vector.shape_cast %75 : vector<128x192xf32> to vector<8x16x192xf32>
    %77 = vector.extract_strided_slice %76 {offsets = [0, 0, 0], sizes = [8, 15, 64], strides = [1, 1, 1]} : vector<8x16x192xf32> to vector<8x15x64xf32>
    %78 = tpu.concatenate %42, %77 in 1 : vector<8x1x64xf32>, vector<8x15x64xf32> -> vector<8x16x64xf32>
    %79 = arith.addf %70, %78 : vector<8x16x64xf32>
    %80 = vector.extract_strided_slice %76 {offsets = [0, 0, 64], sizes = [8, 16, 64], strides = [1, 1, 1]} : vector<8x16x192xf32> to vector<8x16x64xf32>
    %81 = arith.addf %79, %80 : vector<8x16x64xf32>
    %82 = vector.extract_strided_slice %76 {offsets = [0, 1, 128], sizes = [8, 15, 64], strides = [1, 1, 1]} : vector<8x16x192xf32> to vector<8x15x64xf32>
    %83 = tpu.concatenate %82, %42 in 1 : vector<8x15x64xf32>, vector<8x1x64xf32> -> vector<8x16x64xf32>
    %84 = arith.addf %81, %83 : vector<8x16x64xf32>
    %c0_33 = arith.constant 0 : index
    %c0_34 = arith.constant 0 : index
    %85 = vector.load %arg6[%c0_33, %c0_34] : memref<1x64xf32, #tpu.memory_space<vmem>>, vector<1x64xf32>
    %86 = vector.shape_cast %85 : vector<1x64xf32> to vector<1x1x64xf32>
    %87 = vector.broadcast %86 : vector<1x1x64xf32> to vector<8x16x64xf32>
    %88 = arith.addf %84, %87 : vector<8x16x64xf32>
    %89 = arith.truncf %88 : vector<8x16x64xf32> to vector<8x16x64xbf16>
    %c0_35 = arith.constant 0 : index
    %c0_36 = arith.constant 0 : index
    %c0_37 = arith.constant 0 : index
    %c0_38 = arith.constant 0 : index
    %90 = vector.load %arg9[%c0_35, %c0_36, %c0_37, %c0_38] : memref<1x8x16x64xbf16, #tpu.memory_space<vmem>>, vector<1x8x16x64xbf16>
    %91 = vector.shape_cast %90 : vector<1x8x16x64xbf16> to vector<8x16x64xbf16>
    %92 = vector.shape_cast %89 : vector<8x16x64xbf16> to vector<1x8x16x64xbf16>
    tpu.vector_store %arg9[%c0_35, %c0_36, %c0_37, %c0_38], %92 {strides = array<i32>} : memref<1x8x16x64xbf16, #tpu.memory_space<vmem>>, vector<1x8x16x64xbf16>,
    %93 = vector.shape_cast %88 : vector<8x16x64xf32> to vector<128x64xf32>
    %cst_39 = arith.constant dense<0.000000e+00> : vector<64xf32>
    %94 = vector.multi_reduction <add>, %93, %cst_39 [0] : vector<128x64xf32> to vector<64xf32>
    %95 = vector.shape_cast %94 : vector<64xf32> to vector<1x64xf32>
    %96 = arith.mulf %93, %93 : vector<128x64xf32>
    %cst_40 = arith.constant dense<0.000000e+00> : vector<64xf32>
    %97 = vector.multi_reduction <add>, %96, %cst_40 [0] : vector<128x64xf32> to vector<64xf32>
    %98 = vector.shape_cast %97 : vector<64xf32> to vector<1x64xf32>
    %99 = tpu.concatenate %95, %98 in 0 : vector<1x64xf32>, vector<1x64xf32> -> vector<2x64xf32>
    %c0_41 = arith.constant 0 : index
    %c0_42 = arith.constant 0 : index
    %c0_43 = arith.constant 0 : index
    %c0_44 = arith.constant 0 : index
    %100 = vector.load %arg10[%c0_41, %c0_42, %c0_43, %c0_44] : memref<1x1x2x64xf32, #tpu.memory_space<vmem>>, vector<1x1x2x64xf32>
    %101 = vector.shape_cast %100 : vector<1x1x2x64xf32> to vector<2x64xf32>
    %102 = vector.shape_cast %99 : vector<2x64xf32> to vector<1x1x2x64xf32>
    tpu.vector_store %arg10[%c0_41, %c0_42, %c0_43, %c0_44], %102 {strides = array<i32>} : memref<1x1x2x64xf32, #tpu.memory_space<vmem>>, vector<1x1x2x64xf32>,
    return
  }
  func.func @transform_0(%arg0: i32, %arg1: i32) -> (i32, i32, i32, i32) {
    %c0_i32 = arith.constant 0 : i32
    %c0_i32_0 = arith.constant 0 : i32
    %c0_i32_1 = arith.constant 0 : i32
    return %arg0, %arg1, %c0_i32, %c0_i32_0 : i32, i32, i32, i32
  }
  func.func @transform_1(%arg0: i32, %arg1: i32) -> (i32, i32, i32, i32) {
    %c8_i32 = arith.constant 8 : i32
    %0 = arith.muli %arg1, %c8_i32 : i32
    %c1_i32 = arith.constant 1 : i32
    %1 = arith.subi %0, %c1_i32 : i32
    %c0_i32 = arith.constant 0 : i32
    %2 = arith.maxsi %1, %c0_i32 : i32
    %c0_i32_0 = arith.constant 0 : i32
    %c0_i32_1 = arith.constant 0 : i32
    %c0_i32_2 = arith.constant 0 : i32
    return %arg0, %2, %c0_i32_0, %c0_i32_1 : i32, i32, i32, i32
  }
  func.func @transform_2(%arg0: i32, %arg1: i32) -> (i32, i32, i32, i32) {
    %c1_i32 = arith.constant 1 : i32
    %0 = arith.addi %arg1, %c1_i32 : i32
    %c8_i32 = arith.constant 8 : i32
    %1 = arith.muli %0, %c8_i32 : i32
    %c15_i32 = arith.constant 15 : i32
    %2 = arith.minsi %1, %c15_i32 : i32
    %c0_i32 = arith.constant 0 : i32
    %c0_i32_0 = arith.constant 0 : i32
    %c0_i32_1 = arith.constant 0 : i32
    return %arg0, %2, %c0_i32, %c0_i32_0 : i32, i32, i32, i32
  }
  func.func @transform_3(%arg0: i32, %arg1: i32) -> (i32, i32, i32) {
    %c0_i32 = arith.constant 0 : i32
    %c0_i32_0 = arith.constant 0 : i32
    %c0_i32_1 = arith.constant 0 : i32
    %c0_i32_2 = arith.constant 0 : i32
    return %c0_i32, %c0_i32_0, %c0_i32_1 : i32, i32, i32
  }
  func.func @transform_4(%arg0: i32, %arg1: i32) -> (i32, i32) {
    %c0_i32 = arith.constant 0 : i32
    %c0_i32_0 = arith.constant 0 : i32
    %c0_i32_1 = arith.constant 0 : i32
    return %c0_i32, %c0_i32_0 : i32, i32
  }
  func.func @transform_5(%arg0: i32, %arg1: i32) -> (i32, i32) {
    %c0_i32 = arith.constant 0 : i32
    %c0_i32_0 = arith.constant 0 : i32
    %c0_i32_1 = arith.constant 0 : i32
    return %c0_i32, %c0_i32_0 : i32, i32
  }
  func.func @transform_6(%arg0: i32, %arg1: i32) -> (i32, i32) {
    %c0_i32 = arith.constant 0 : i32
    %c0_i32_0 = arith.constant 0 : i32
    %c0_i32_1 = arith.constant 0 : i32
    return %c0_i32, %c0_i32_0 : i32, i32
  }
  func.func @transform_7(%arg0: i32, %arg1: i32) -> (i32, i32, i32, i32) {
    %c0_i32 = arith.constant 0 : i32
    %c0_i32_0 = arith.constant 0 : i32
    %c0_i32_1 = arith.constant 0 : i32
    return %arg0, %arg1, %c0_i32, %c0_i32_0 : i32, i32, i32, i32
  }
  func.func @transform_8(%arg0: i32, %arg1: i32) -> (i32, i32, i32, i32) {
    %c0_i32 = arith.constant 0 : i32
    %c0_i32_0 = arith.constant 0 : i32
    %c0_i32_1 = arith.constant 0 : i32
    return %arg0, %arg1, %c0_i32, %c0_i32_0 : i32, i32, i32, i32
  }
}

module attributes {stable_mosaic.version = 11 : i64} {
  func.func @_conv3x3_fused_kernel(%arg0: i32, %arg1: i32, %arg2: memref<1x8x16x64xbf16, #tpu.memory_space<vmem>>, %arg3: memref<1x1x16x64xbf16, #tpu.memory_space<vmem>>, %arg4: memref<1x1x16x64xbf16, #tpu.memory_space<vmem>>, %arg5: memref<3x64x24xbf16, #tpu.memory_space<vmem>>, %arg6: memref<1x8xf32, #tpu.memory_space<vmem>>, %arg7: memref<1x64xf32, #tpu.memory_space<vmem>>, %arg8: memref<1x64xf32, #tpu.memory_space<vmem>>, %arg9: memref<1x8x16x8xf32, #tpu.memory_space<vmem>>, %arg10: memref<1x1x2x8xf32, #tpu.memory_space<vmem>>) attributes {dimension_semantics = [#tpu.dimension_semantics<parallel>, #tpu.dimension_semantics<parallel>], iteration_bounds = array<i64: 2, 2>, scalar_prefetch = 0 : i64, scratch_operands = 0 : i64, tpu.core_type = #tpu.core_type<tc>, window_params = [{transform_indices = @transform_0, window_bounds = array<i64: 1, 8, 16, 64>}, {transform_indices = @transform_1, window_bounds = array<i64: 1, 1, 16, 64>}, {transform_indices = @transform_2, window_bounds = array<i64: 1, 1, 16, 64>}, {pipeline_mode = #tpu.pipeline_mode<synchronous>, transform_indices = @transform_3, window_bounds = array<i64: 3, 64, 24>}, {pipeline_mode = #tpu.pipeline_mode<synchronous>, transform_indices = @transform_4, window_bounds = array<i64: 1, 8>}, {pipeline_mode = #tpu.pipeline_mode<synchronous>, transform_indices = @transform_5, window_bounds = array<i64: 1, 64>}, {pipeline_mode = #tpu.pipeline_mode<synchronous>, transform_indices = @transform_6, window_bounds = array<i64: 1, 64>}, {transform_indices = @transform_7, window_bounds = array<i64: 1, 8, 16, 8>}, {transform_indices = @transform_8, window_bounds = array<i64: 1, 1, 2, 8>}]} {
    %c0 = arith.constant 0 : index
    %c0_0 = arith.constant 0 : index
    %c0_1 = arith.constant 0 : index
    %c0_2 = arith.constant 0 : index
    %0 = vector.load %arg2[%c0, %c0_0, %c0_1, %c0_2] : memref<1x8x16x64xbf16, #tpu.memory_space<vmem>>, vector<1x8x16x64xbf16>
    %1 = vector.shape_cast %0 : vector<1x8x16x64xbf16> to vector<8x16x64xbf16>
    %2 = arith.extf %1 : vector<8x16x64xbf16> to vector<8x16x64xf32>
    %c0_3 = arith.constant 0 : index
    %c0_4 = arith.constant 0 : index
    %c0_5 = arith.constant 0 : index
    %c0_6 = arith.constant 0 : index
    %3 = vector.load %arg3[%c0_3, %c0_4, %c0_5, %c0_6] : memref<1x1x16x64xbf16, #tpu.memory_space<vmem>>, vector<1x1x16x64xbf16>
    %4 = vector.shape_cast %3 : vector<1x1x16x64xbf16> to vector<1x16x64xbf16>
    %5 = arith.extf %4 : vector<1x16x64xbf16> to vector<1x16x64xf32>
    %c0_7 = arith.constant 0 : index
    %c0_8 = arith.constant 0 : index
    %c0_9 = arith.constant 0 : index
    %c0_10 = arith.constant 0 : index
    %6 = vector.load %arg4[%c0_7, %c0_8, %c0_9, %c0_10] : memref<1x1x16x64xbf16, #tpu.memory_space<vmem>>, vector<1x1x16x64xbf16>
    %7 = vector.shape_cast %6 : vector<1x1x16x64xbf16> to vector<1x16x64xbf16>
    %8 = arith.extf %7 : vector<1x16x64xbf16> to vector<1x16x64xf32>
    %c0_11 = arith.constant 0 : index
    %c0_12 = arith.constant 0 : index
    %9 = vector.load %arg7[%c0_11, %c0_12] : memref<1x64xf32, #tpu.memory_space<vmem>>, vector<1x64xf32>
    %10 = vector.shape_cast %9 : vector<1x64xf32> to vector<1x1x64xf32>
    %c0_13 = arith.constant 0 : index
    %c0_14 = arith.constant 0 : index
    %11 = vector.load %arg8[%c0_13, %c0_14] : memref<1x64xf32, #tpu.memory_space<vmem>>, vector<1x64xf32>
    %12 = vector.shape_cast %11 : vector<1x64xf32> to vector<1x1x64xf32>
    %13 = vector.broadcast %10 : vector<1x1x64xf32> to vector<8x16x64xf32>
    %14 = arith.mulf %2, %13 : vector<8x16x64xf32>
    %15 = vector.broadcast %12 : vector<1x1x64xf32> to vector<8x16x64xf32>
    %16 = arith.addf %14, %15 : vector<8x16x64xf32>
    %cst = arith.constant 0.000000e+00 : f32
    %17 = vector.broadcast %cst : f32 to vector<8x16x64xf32>
    %18 = arith.maximumf %16, %17 : vector<8x16x64xf32>
    %19 = vector.broadcast %10 : vector<1x1x64xf32> to vector<1x16x64xf32>
    %20 = arith.mulf %5, %19 : vector<1x16x64xf32>
    %21 = vector.broadcast %12 : vector<1x1x64xf32> to vector<1x16x64xf32>
    %22 = arith.addf %20, %21 : vector<1x16x64xf32>
    %cst_15 = arith.constant 0.000000e+00 : f32
    %23 = vector.broadcast %cst_15 : f32 to vector<1x16x64xf32>
    %24 = arith.maximumf %22, %23 : vector<1x16x64xf32>
    %25 = vector.broadcast %10 : vector<1x1x64xf32> to vector<1x16x64xf32>
    %26 = arith.mulf %8, %25 : vector<1x16x64xf32>
    %27 = vector.broadcast %12 : vector<1x1x64xf32> to vector<1x16x64xf32>
    %28 = arith.addf %26, %27 : vector<1x16x64xf32>
    %cst_16 = arith.constant 0.000000e+00 : f32
    %29 = vector.broadcast %cst_16 : f32 to vector<1x16x64xf32>
    %30 = arith.maximumf %28, %29 : vector<1x16x64xf32>
    %c0_i32 = arith.constant 0 : i32
    %31 = arith.cmpi eq, %arg1, %c0_i32 : i32
    %cst_17 = arith.constant 0.000000e+00 : f32
    %cst_18 = arith.constant 1.000000e+00 : f32
    %32 = arith.select %31, %cst_17, %cst_18 : f32
    %33 = vector.broadcast %32 : f32 to vector<1x16x64xf32>
    %34 = arith.mulf %24, %33 : vector<1x16x64xf32>
    %c1_i32 = arith.constant 1 : i32
    %35 = arith.cmpi eq, %arg1, %c1_i32 : i32
    %cst_19 = arith.constant 0.000000e+00 : f32
    %cst_20 = arith.constant 1.000000e+00 : f32
    %36 = arith.select %35, %cst_19, %cst_20 : f32
    %37 = vector.broadcast %36 : f32 to vector<1x16x64xf32>
    %38 = arith.mulf %30, %37 : vector<1x16x64xf32>
    %39 = tpu.concatenate %34, %18, %38 in 0 : vector<1x16x64xf32>, vector<8x16x64xf32>, vector<1x16x64xf32> -> vector<10x16x64xf32>
    %40 = arith.truncf %39 : vector<10x16x64xf32> to vector<10x16x64xbf16>
    %cst_21 = arith.constant 0.000000e+00 : f32
    %41 = vector.broadcast %cst_21 : f32 to vector<8x16x8xf32>
    %cst_22 = arith.constant 0.000000e+00 : f32
    %42 = vector.broadcast %cst_22 : f32 to vector<8x1x8xf32>
    %43 = vector.extract_strided_slice %40 {offsets = [0, 0, 0], sizes = [8, 16, 64], strides = [1, 1, 1]} : vector<10x16x64xbf16> to vector<8x16x64xbf16>
    %44 = vector.shape_cast %43 : vector<8x16x64xbf16> to vector<128x64xbf16>
    %c0_23 = arith.constant 0 : index
    %c0_24 = arith.constant 0 : index
    %c0_25 = arith.constant 0 : index
    %45 = vector.load %arg5[%c0_23, %c0_24, %c0_25] : memref<3x64x24xbf16, #tpu.memory_space<vmem>>, vector<1x64x24xbf16>
    %46 = vector.shape_cast %45 : vector<1x64x24xbf16> to vector<64x24xbf16>
    %cst_26 = arith.constant dense<0.000000e+00> : vector<128x24xf32>
    %47 = tpu.matmul %44, %46, %cst_26 {dimension_numbers = #tpu.dot_dimension_numbers<[1], [0], [0], [1], [0, 0, 1, 1], [], []>} : vector<128x64xbf16>, vector<64x24xbf16>, vector<128x24xf32> -> vector<128x24xf32>
    %48 = vector.shape_cast %47 : vector<128x24xf32> to vector<8x16x24xf32>
    %49 = vector.extract_strided_slice %48 {offsets = [0, 0, 0], sizes = [8, 15, 8], strides = [1, 1, 1]} : vector<8x16x24xf32> to vector<8x15x8xf32>
    %50 = tpu.concatenate %42, %49 in 1 : vector<8x1x8xf32>, vector<8x15x8xf32> -> vector<8x16x8xf32>
    %51 = arith.addf %41, %50 : vector<8x16x8xf32>
    %52 = vector.extract_strided_slice %48 {offsets = [0, 0, 8], sizes = [8, 16, 8], strides = [1, 1, 1]} : vector<8x16x24xf32> to vector<8x16x8xf32>
    %53 = arith.addf %51, %52 : vector<8x16x8xf32>
    %54 = vector.extract_strided_slice %48 {offsets = [0, 1, 16], sizes = [8, 15, 8], strides = [1, 1, 1]} : vector<8x16x24xf32> to vector<8x15x8xf32>
    %55 = tpu.concatenate %54, %42 in 1 : vector<8x15x8xf32>, vector<8x1x8xf32> -> vector<8x16x8xf32>
    %56 = arith.addf %53, %55 : vector<8x16x8xf32>
    %57 = vector.extract_strided_slice %40 {offsets = [1, 0, 0], sizes = [8, 16, 64], strides = [1, 1, 1]} : vector<10x16x64xbf16> to vector<8x16x64xbf16>
    %58 = vector.shape_cast %57 : vector<8x16x64xbf16> to vector<128x64xbf16>
    %c1 = arith.constant 1 : index
    %c0_27 = arith.constant 0 : index
    %c0_28 = arith.constant 0 : index
    %59 = vector.load %arg5[%c1, %c0_27, %c0_28] : memref<3x64x24xbf16, #tpu.memory_space<vmem>>, vector<1x64x24xbf16>
    %60 = vector.shape_cast %59 : vector<1x64x24xbf16> to vector<64x24xbf16>
    %cst_29 = arith.constant dense<0.000000e+00> : vector<128x24xf32>
    %61 = tpu.matmul %58, %60, %cst_29 {dimension_numbers = #tpu.dot_dimension_numbers<[1], [0], [0], [1], [0, 0, 1, 1], [], []>} : vector<128x64xbf16>, vector<64x24xbf16>, vector<128x24xf32> -> vector<128x24xf32>
    %62 = vector.shape_cast %61 : vector<128x24xf32> to vector<8x16x24xf32>
    %63 = vector.extract_strided_slice %62 {offsets = [0, 0, 0], sizes = [8, 15, 8], strides = [1, 1, 1]} : vector<8x16x24xf32> to vector<8x15x8xf32>
    %64 = tpu.concatenate %42, %63 in 1 : vector<8x1x8xf32>, vector<8x15x8xf32> -> vector<8x16x8xf32>
    %65 = arith.addf %56, %64 : vector<8x16x8xf32>
    %66 = vector.extract_strided_slice %62 {offsets = [0, 0, 8], sizes = [8, 16, 8], strides = [1, 1, 1]} : vector<8x16x24xf32> to vector<8x16x8xf32>
    %67 = arith.addf %65, %66 : vector<8x16x8xf32>
    %68 = vector.extract_strided_slice %62 {offsets = [0, 1, 16], sizes = [8, 15, 8], strides = [1, 1, 1]} : vector<8x16x24xf32> to vector<8x15x8xf32>
    %69 = tpu.concatenate %68, %42 in 1 : vector<8x15x8xf32>, vector<8x1x8xf32> -> vector<8x16x8xf32>
    %70 = arith.addf %67, %69 : vector<8x16x8xf32>
    %71 = vector.extract_strided_slice %40 {offsets = [2, 0, 0], sizes = [8, 16, 64], strides = [1, 1, 1]} : vector<10x16x64xbf16> to vector<8x16x64xbf16>
    %72 = vector.shape_cast %71 : vector<8x16x64xbf16> to vector<128x64xbf16>
    %c2 = arith.constant 2 : index
    %c0_30 = arith.constant 0 : index
    %c0_31 = arith.constant 0 : index
    %73 = vector.load %arg5[%c2, %c0_30, %c0_31] : memref<3x64x24xbf16, #tpu.memory_space<vmem>>, vector<1x64x24xbf16>
    %74 = vector.shape_cast %73 : vector<1x64x24xbf16> to vector<64x24xbf16>
    %cst_32 = arith.constant dense<0.000000e+00> : vector<128x24xf32>
    %75 = tpu.matmul %72, %74, %cst_32 {dimension_numbers = #tpu.dot_dimension_numbers<[1], [0], [0], [1], [0, 0, 1, 1], [], []>} : vector<128x64xbf16>, vector<64x24xbf16>, vector<128x24xf32> -> vector<128x24xf32>
    %76 = vector.shape_cast %75 : vector<128x24xf32> to vector<8x16x24xf32>
    %77 = vector.extract_strided_slice %76 {offsets = [0, 0, 0], sizes = [8, 15, 8], strides = [1, 1, 1]} : vector<8x16x24xf32> to vector<8x15x8xf32>
    %78 = tpu.concatenate %42, %77 in 1 : vector<8x1x8xf32>, vector<8x15x8xf32> -> vector<8x16x8xf32>
    %79 = arith.addf %70, %78 : vector<8x16x8xf32>
    %80 = vector.extract_strided_slice %76 {offsets = [0, 0, 8], sizes = [8, 16, 8], strides = [1, 1, 1]} : vector<8x16x24xf32> to vector<8x16x8xf32>
    %81 = arith.addf %79, %80 : vector<8x16x8xf32>
    %82 = vector.extract_strided_slice %76 {offsets = [0, 1, 16], sizes = [8, 15, 8], strides = [1, 1, 1]} : vector<8x16x24xf32> to vector<8x15x8xf32>
    %83 = tpu.concatenate %82, %42 in 1 : vector<8x15x8xf32>, vector<8x1x8xf32> -> vector<8x16x8xf32>
    %84 = arith.addf %81, %83 : vector<8x16x8xf32>
    %c0_33 = arith.constant 0 : index
    %c0_34 = arith.constant 0 : index
    %85 = vector.load %arg6[%c0_33, %c0_34] : memref<1x8xf32, #tpu.memory_space<vmem>>, vector<1x8xf32>
    %86 = vector.shape_cast %85 : vector<1x8xf32> to vector<1x1x8xf32>
    %87 = vector.broadcast %86 : vector<1x1x8xf32> to vector<8x16x8xf32>
    %88 = arith.addf %84, %87 : vector<8x16x8xf32>
    %c0_35 = arith.constant 0 : index
    %c0_36 = arith.constant 0 : index
    %c0_37 = arith.constant 0 : index
    %c0_38 = arith.constant 0 : index
    %89 = vector.load %arg9[%c0_35, %c0_36, %c0_37, %c0_38] : memref<1x8x16x8xf32, #tpu.memory_space<vmem>>, vector<1x8x16x8xf32>
    %90 = vector.shape_cast %89 : vector<1x8x16x8xf32> to vector<8x16x8xf32>
    %91 = vector.shape_cast %88 : vector<8x16x8xf32> to vector<1x8x16x8xf32>
    tpu.vector_store %arg9[%c0_35, %c0_36, %c0_37, %c0_38], %91 {strides = array<i32>} : memref<1x8x16x8xf32, #tpu.memory_space<vmem>>, vector<1x8x16x8xf32>,
    %92 = vector.shape_cast %88 : vector<8x16x8xf32> to vector<128x8xf32>
    %cst_39 = arith.constant dense<0.000000e+00> : vector<8xf32>
    %93 = vector.multi_reduction <add>, %92, %cst_39 [0] : vector<128x8xf32> to vector<8xf32>
    %94 = vector.shape_cast %93 : vector<8xf32> to vector<1x8xf32>
    %95 = arith.mulf %92, %92 : vector<128x8xf32>
    %cst_40 = arith.constant dense<0.000000e+00> : vector<8xf32>
    %96 = vector.multi_reduction <add>, %95, %cst_40 [0] : vector<128x8xf32> to vector<8xf32>
    %97 = vector.shape_cast %96 : vector<8xf32> to vector<1x8xf32>
    %98 = tpu.concatenate %94, %97 in 0 : vector<1x8xf32>, vector<1x8xf32> -> vector<2x8xf32>
    %c0_41 = arith.constant 0 : index
    %c0_42 = arith.constant 0 : index
    %c0_43 = arith.constant 0 : index
    %c0_44 = arith.constant 0 : index
    %99 = vector.load %arg10[%c0_41, %c0_42, %c0_43, %c0_44] : memref<1x1x2x8xf32, #tpu.memory_space<vmem>>, vector<1x1x2x8xf32>
    %100 = vector.shape_cast %99 : vector<1x1x2x8xf32> to vector<2x8xf32>
    %101 = vector.shape_cast %98 : vector<2x8xf32> to vector<1x1x2x8xf32>
    tpu.vector_store %arg10[%c0_41, %c0_42, %c0_43, %c0_44], %101 {strides = array<i32>} : memref<1x1x2x8xf32, #tpu.memory_space<vmem>>, vector<1x1x2x8xf32>,
    return
  }
  func.func @transform_0(%arg0: i32, %arg1: i32) -> (i32, i32, i32, i32) {
    %c0_i32 = arith.constant 0 : i32
    %c0_i32_0 = arith.constant 0 : i32
    %c0_i32_1 = arith.constant 0 : i32
    return %arg0, %arg1, %c0_i32, %c0_i32_0 : i32, i32, i32, i32
  }
  func.func @transform_1(%arg0: i32, %arg1: i32) -> (i32, i32, i32, i32) {
    %c8_i32 = arith.constant 8 : i32
    %0 = arith.muli %arg1, %c8_i32 : i32
    %c1_i32 = arith.constant 1 : i32
    %1 = arith.subi %0, %c1_i32 : i32
    %c0_i32 = arith.constant 0 : i32
    %2 = arith.maxsi %1, %c0_i32 : i32
    %c0_i32_0 = arith.constant 0 : i32
    %c0_i32_1 = arith.constant 0 : i32
    %c0_i32_2 = arith.constant 0 : i32
    return %arg0, %2, %c0_i32_0, %c0_i32_1 : i32, i32, i32, i32
  }
  func.func @transform_2(%arg0: i32, %arg1: i32) -> (i32, i32, i32, i32) {
    %c1_i32 = arith.constant 1 : i32
    %0 = arith.addi %arg1, %c1_i32 : i32
    %c8_i32 = arith.constant 8 : i32
    %1 = arith.muli %0, %c8_i32 : i32
    %c15_i32 = arith.constant 15 : i32
    %2 = arith.minsi %1, %c15_i32 : i32
    %c0_i32 = arith.constant 0 : i32
    %c0_i32_0 = arith.constant 0 : i32
    %c0_i32_1 = arith.constant 0 : i32
    return %arg0, %2, %c0_i32, %c0_i32_0 : i32, i32, i32, i32
  }
  func.func @transform_3(%arg0: i32, %arg1: i32) -> (i32, i32, i32) {
    %c0_i32 = arith.constant 0 : i32
    %c0_i32_0 = arith.constant 0 : i32
    %c0_i32_1 = arith.constant 0 : i32
    %c0_i32_2 = arith.constant 0 : i32
    return %c0_i32, %c0_i32_0, %c0_i32_1 : i32, i32, i32
  }
  func.func @transform_4(%arg0: i32, %arg1: i32) -> (i32, i32) {
    %c0_i32 = arith.constant 0 : i32
    %c0_i32_0 = arith.constant 0 : i32
    %c0_i32_1 = arith.constant 0 : i32
    return %c0_i32, %c0_i32_0 : i32, i32
  }
  func.func @transform_5(%arg0: i32, %arg1: i32) -> (i32, i32) {
    %c0_i32 = arith.constant 0 : i32
    %c0_i32_0 = arith.constant 0 : i32
    %c0_i32_1 = arith.constant 0 : i32
    return %c0_i32, %c0_i32_0 : i32, i32
  }
  func.func @transform_6(%arg0: i32, %arg1: i32) -> (i32, i32) {
    %c0_i32 = arith.constant 0 : i32
    %c0_i32_0 = arith.constant 0 : i32
    %c0_i32_1 = arith.constant 0 : i32
    return %c0_i32, %c0_i32_0 : i32, i32
  }
  func.func @transform_7(%arg0: i32, %arg1: i32) -> (i32, i32, i32, i32) {
    %c0_i32 = arith.constant 0 : i32
    %c0_i32_0 = arith.constant 0 : i32
    %c0_i32_1 = arith.constant 0 : i32
    return %arg0, %arg1, %c0_i32, %c0_i32_0 : i32, i32, i32, i32
  }
  func.func @transform_8(%arg0: i32, %arg1: i32) -> (i32, i32, i32, i32) {
    %c0_i32 = arith.constant 0 : i32
    %c0_i32_0 = arith.constant 0 : i32
    %c0_i32_1 = arith.constant 0 : i32
    return %arg0, %arg1, %c0_i32, %c0_i32_0 : i32, i32, i32, i32
  }
}

</mosaic_0001>

<llo_original>
// kernel: dehaze_generator.4
$region0: #{dehaze_generator.4}
  #allocation0 [shape = 'u32[]', space=smem, size = 0x4, offset = 0x4, fixed_abs, tag = 'smem constant byte address 0x4 - core index']
  #allocation1 [shape = 'u32[144,128]{1,0:T(1,128)}', space=vmem, size = 0x12000, scoped, tag = 'internal scratch']
  %s0 = inlined_call_operand.vmem [shape: f32[2,16,16,3], index: 0, kind: input, shape index: {}, may-alias: {0,1,2}]
  %s1 = inlined_call_operand.vmem [shape: f32[2,16,16,3], index: 1, kind: input, shape index: {}, may-alias: {0,1,2}]
  %s2 = inlined_call_operand.vmem [shape: f32[2,16,16,3], index: 2, kind: input, shape index: {}, may-alias: {0,1,2}]
  %s3 = inlined_call_operand.vmem [shape: bf16[3,8,192], index: 3, kind: input, shape index: {}]
  %s4 = inlined_call_operand.vmem [shape: f32[1,64], index: 4, kind: input, shape index: {}]
  %s5 = inlined_call_operand.vmem [shape: f32[1,3], index: 5, kind: input, shape index: {}]
  %s6 = inlined_call_operand.vmem [shape: f32[1,3], index: 6, kind: input, shape index: {}]
  %s7 = inlined_call_operand.vmem [shape: bf16[2,16,16,64], index: 7, kind: output, shape index: {0}]
  %s8 = inlined_call_operand.vmem [shape: f32[2,2,2,64], index: 8, kind: output, shape index: {1}]
  %9 = xla_tuple %s7, %s8
  %s10 = sld [smem:[#allocation0]]
  $region69: #{dehaze_generator.4} parent=0
    _
  %s12 = ssub.s32 1, %s10
  %s13 = scalar_select 0, %s12, %s10
  loop: start=0, step=1, limit=6
  $region2: #{dehaze_generator.4} parent=0 // loop_pre_header
    _
  $region3: #{dehaze_generator.4} parent=0 // loop_header
    %s15 = sphi 0, %s19
    %p16 = scmp.ge.s32.totalorder %s15, 6
    %s22 = sphi 0, %s34
    %s23 = sphi 0, %s30
    %s24 = sphi 0, %s22
    %s25 = sphi 0, %s23
    %s26 = sphi 0, %s24
    %s27 = sphi 0, %s25
    %s39 = sphi 0, %s41
    %s42 = sphi 0, %s39
    %s43 = sphi 0, %s42
    %s59 = sphi 0, %s43
    %s75 = sphi 0, %s77
    %s78 = sphi 0, %s75
    %s79 = sphi 0, %s78
    %s95 = sphi 0, %s79
    %s111 = sphi 0, %s113
    %s114 = sphi 0, %s111
    %s115 = sphi 0, %s114
    %s131 = sphi 0, %s115
    %s135 = sphi 0, %s135
    %s137 = sphi 0, %s135
    %s138 = sphi 0, %s137
    %s152 = sphi 0, %s138
    %s156 = sphi 0, %s156
    %s158 = sphi 0, %s156
    %s159 = sphi 0, %s158
    %s173 = sphi 0, %s159
    %s177 = sphi 0, %s177
    %s179 = sphi 0, %s177
    %s180 = sphi 0, %s179
    %s194 = sphi 0, %s180
    %s198 = sphi 0, %s198
    %s200 = sphi 0, %s198
    %s201 = sphi 0, %s200
    %s215 = sphi 0, %s201
    %s223 = sphi 0, %s225
    %s226 = sphi 0, %s223
    %s227 = sphi 0, %s226
    %s243 = sphi 0, %s227
    %s251 = sphi 0, %s253
    %s254 = sphi 0, %s251
    %s255 = sphi 0, %s254
    %s271 = sphi 0, %s255
  $region4: #{dehaze_generator.4} parent=0 // loop_header_branch
    %18 = sbr.rel (%p16) target = $region8
  $region5: #{dehaze_generator.4} parent=0 // loop_body
    %s20 = ssub.s32 %s15, 1
    %s21 = ssub.s32 %s15, 2
    %s28 = sadd.s32 1, %s23
    %p29 = scmp.ge.s32.totalorder %s28, 2
    %s30 = scalar_select %p29, 0, %s28
    %s31 = sadd.s32 1, %s22
    %s32 = scalar_select %p29, %s31, %s22
    %p33 = scmp.ge.s32.totalorder %s32, 2
    %s34 = scalar_select %p33, 0, %s32
    %s35 = ssub.s32 %s22, %s34
    %s36 = ssub.s32 %s23, %s30
    %s37 = sor.u32 %s35, %s36
    %p38 = scmp.eq.s32.totalorder %s37, 0
    %s40 = sadd.s32 %s39, 1
    %s41 = scalar_select %p38, %s39, %s40
    %p44 = pneg %p38
    %p45 = scmp.eq.s32.totalorder %s15, 3
    %p46 = por %p44, %p45
    %p47 = scmp.ne.s32.totalorder %s39, %s42
    %p48 = scmp.eq.s32.totalorder %s15, 0
    %p49 = por %p47, %p48
    %p50 = scmp.ne.s32.totalorder %s39, %s42
    %p51 = scmp.eq.s32.totalorder %s20, 3
    %p52 = por %p50, %p51
    %p53 = scmp.ne.s32.totalorder %s42, %s43
    %p54 = scmp.eq.s32.totalorder %s20, 0
    %p55 = por %p53, %p54
    %p56 = scmp.ne.s32.totalorder %s42, %s43
    %p57 = scmp.eq.s32.totalorder %s21, 3
    %p58 = por %p56, %p57
    %p60 = scmp.ne.s32.totalorder %s43, %s59
    %p61 = scmp.eq.s32.totalorder %s21, 0
    %p62 = por %p60, %p61
    %s63 = smul.u32 %s23, 8
    %s64 = ssub.s32 %s63, 1
    %p65 = scmp.gt.s32.totalorder %s64, 0
    %s66 = scalar_select %p65, %s64, 0
    %s67 = smul.u32 %s30, 8
    %s68 = ssub.s32 %s67, 1
    %p69 = scmp.gt.s32.totalorder %s68, 0
    %s70 = scalar_select %p69, %s68, 0
    %s71 = ssub.s32 %s22, %s34
    %s72 = ssub.s32 %s66, %s70
    %s73 = sor.u32 %s71, %s72
    %p74 = scmp.eq.s32.totalorder %s73, 0
    %s76 = sadd.s32 %s75, 1
    %s77 = scalar_select %p74, %s75, %s76
    %p80 = pneg %p74
    %p81 = scmp.eq.s32.totalorder %s15, 3
    %p82 = por %p80, %p81
    %p83 = scmp.ne.s32.totalorder %s75, %s78
    %p84 = scmp.eq.s32.totalorder %s15, 0
    %p85 = por %p83, %p84
    %p86 = scmp.ne.s32.totalorder %s75, %s78
    %p87 = scmp.eq.s32.totalorder %s20, 3
    %p88 = por %p86, %p87
    %p89 = scmp.ne.s32.totalorder %s78, %s79
    %p90 = scmp.eq.s32.totalorder %s20, 0
    %p91 = por %p89, %p90
    %p92 = scmp.ne.s32.totalorder %s78, %s79
    %p93 = scmp.eq.s32.totalorder %s21, 3
    %p94 = por %p92, %p93
    %p96 = scmp.ne.s32.totalorder %s79, %s95
    %p97 = scmp.eq.s32.totalorder %s21, 0
    %p98 = por %p96, %p97
    %s99 = sadd.s32 %s23, 1
    %s100 = smul.u32 %s99, 8
    %p101 = scmp.lt.s32.totalorder %s100, 15
    %s102 = scalar_select %p101, %s100, 15
    %s103 = sadd.s32 %s30, 1
    %s104 = smul.u32 %s103, 8
    %p105 = scmp.lt.s32.totalorder %s104, 15
    %s106 = scalar_select %p105, %s104, 15
    %s107 = ssub.s32 %s22, %s34
    %s108 = ssub.s32 %s102, %s106
    %s109 = sor.u32 %s107, %s108
    %p110 = scmp.eq.s32.totalorder %s109, 0
    %s112 = sadd.s32 %s111, 1
    %s113 = scalar_select %p110, %s111, %s112
    %p116 = pneg %p110
    %p117 = scmp.eq.s32.totalorder %s15, 3
    %p118 = por %p116, %p117
    %p119 = scmp.ne.s32.totalorder %s111, %s114
    %p120 = scmp.eq.s32.totalorder %s15, 0
    %p121 = por %p119, %p120
    %p122 = scmp.ne.s32.totalorder %s111, %s114
    %p123 = scmp.eq.s32.totalorder %s20, 3
    %p124 = por %p122, %p123
    %p125 = scmp.ne.s32.totalorder %s114, %s115
    %p126 = scmp.eq.s32.totalorder %s20, 0
    %p127 = por %p125, %p126
    %p128 = scmp.ne.s32.totalorder %s114, %s115
    %p129 = scmp.eq.s32.totalorder %s21, 3
    %p130 = por %p128, %p129
    %p132 = scmp.ne.s32.totalorder %s115, %s131
    %p133 = scmp.eq.s32.totalorder %s21, 0
    %p134 = por %p132, %p133
    %s136 = sadd.s32 %s135, 1
    %p139 = scmp.eq.s32.totalorder %s15, 3
    %p140 = scmp.ne.s32.totalorder %s135, %s137
    %p141 = scmp.eq.s32.totalorder %s15, 0
    %p142 = por %p140, %p141
    %p143 = scmp.ne.s32.totalorder %s135, %s137
    %p144 = scmp.eq.s32.totalorder %s20, 3
    %p145 = por %p143, %p144
    %p146 = scmp.ne.s32.totalorder %s137, %s138
    %p147 = scmp.eq.s32.totalorder %s20, 0
    %p148 = por %p146, %p147
    %p149 = scmp.ne.s32.totalorder %s137, %s138
    %p150 = scmp.eq.s32.totalorder %s21, 3
    %p151 = por %p149, %p150
    %p153 = scmp.ne.s32.totalorder %s138, %s152
    %p154 = scmp.eq.s32.totalorder %s21, 0
    %p155 = por %p153, %p154
    %s157 = sadd.s32 %s156, 1
    %p160 = scmp.eq.s32.totalorder %s15, 3
    %p161 = scmp.ne.s32.totalorder %s156, %s158
    %p162 = scmp.eq.s32.totalorder %s15, 0
    %p163 = por %p161, %p162
    %p164 = scmp.ne.s32.totalorder %s156, %s158
    %p165 = scmp.eq.s32.totalorder %s20, 3
    %p166 = por %p164, %p165
    %p167 = scmp.ne.s32.totalorder %s158, %s159
    %p168 = scmp.eq.s32.totalorder %s20, 0
    %p169 = por %p167, %p168
    %p170 = scmp.ne.s32.totalorder %s158, %s159
    %p171 = scmp.eq.s32.totalorder %s21, 3
    %p172 = por %p170, %p171
    %p174 = scmp.ne.s32.totalorder %s159, %s173
    %p175 = scmp.eq.s32.totalorder %s21, 0
    %p176 = por %p174, %p175
    %s178 = sadd.s32 %s177, 1
    %p181 = scmp.eq.s32.totalorder %s15, 3
    %p182 = scmp.ne.s32.totalorder %s177, %s179
    %p183 = scmp.eq.s32.totalorder %s15, 0
    %p184 = por %p182, %p183
    %p185 = scmp.ne.s32.totalorder %s177, %s179
    %p186 = scmp.eq.s32.totalorder %s20, 3
    %p187 = por %p185, %p186
    %p188 = scmp.ne.s32.totalorder %s179, %s180
    %p189 = scmp.eq.s32.totalorder %s20, 0
    %p190 = por %p188, %p189
    %p191 = scmp.ne.s32.totalorder %s179, %s180
    %p192 = scmp.eq.s32.totalorder %s21, 3
    %p193 = por %p191, %p192
    %p195 = scmp.ne.s32.totalorder %s180, %s194
    %p196 = scmp.eq.s32.totalorder %s21, 0
    %p197 = por %p195, %p196
    %s199 = sadd.s32 %s198, 1
    %p202 = scmp.eq.s32.totalorder %s15, 3
    %p203 = scmp.ne.s32.totalorder %s198, %s200
    %p204 = scmp.eq.s32.totalorder %s15, 0
    %p205 = por %p203, %p204
    %p206 = scmp.ne.s32.totalorder %s198, %s200
    %p207 = scmp.eq.s32.totalorder %s20, 3
    %p208 = por %p206, %p207
    %p209 = scmp.ne.s32.totalorder %s200, %s201
    %p210 = scmp.eq.s32.totalorder %s20, 0
    %p211 = por %p209, %p210
    %p212 = scmp.ne.s32.totalorder %s200, %s201
    %p213 = scmp.eq.s32.totalorder %s21, 3
    %p214 = por %p212, %p213
    %p216 = scmp.ne.s32.totalorder %s201, %s215
    %p217 = scmp.eq.s32.totalorder %s21, 0
    %p218 = por %p216, %p217
    %s219 = ssub.s32 %s22, %s34
    %s220 = ssub.s32 %s23, %s30
    %s221 = sor.u32 %s219, %s220
    %p222 = scmp.eq.s32.totalorder %s221, 0
    %s224 = sadd.s32 %s223, 1
    %s225 = scalar_select %p222, %s223, %s224
    %p228 = pneg %p222
    %p229 = scmp.eq.s32.totalorder %s15, 3
    %p230 = por %p228, %p229
    %p231 = scmp.ne.s32.totalorder %s223, %s226
    %p232 = scmp.eq.s32.totalorder %s15, 0
    %p233 = por %p231, %p232
    %p234 = scmp.ne.s32.totalorder %s223, %s226
    %p235 = scmp.eq.s32.totalorder %s20, 3
    %p236 = por %p234, %p235
    %p237 = scmp.ne.s32.totalorder %s226, %s227
    %p238 = scmp.eq.s32.totalorder %s20, 0
    %p239 = por %p237, %p238
    %p240 = scmp.ne.s32.totalorder %s226, %s227
    %p241 = scmp.eq.s32.totalorder %s21, 3
    %p242 = por %p240, %p241
    %p244 = scmp.ne.s32.totalorder %s227, %s243
    %p245 = scmp.eq.s32.totalorder %s21, 0
    %p246 = por %p244, %p245
    %s247 = ssub.s32 %s22, %s34
    %s248 = ssub.s32 %s23, %s30
    %s249 = sor.u32 %s247, %s248
    %p250 = scmp.eq.s32.totalorder %s249, 0
    %s252 = sadd.s32 %s251, 1
    %s253 = scalar_select %p250, %s251, %s252
    %p256 = pneg %p250
    %p257 = scmp.eq.s32.totalorder %s15, 3
    %p258 = por %p256, %p257
    %p259 = scmp.ne.s32.totalorder %s251, %s254
    %p260 = scmp.eq.s32.totalorder %s15, 0
    %p261 = por %p259, %p260
    %p262 = scmp.ne.s32.totalorder %s251, %s254
    %p263 = scmp.eq.s32.totalorder %s20, 3
    %p264 = por %p262, %p263
    %p265 = scmp.ne.s32.totalorder %s254, %s255
    %p266 = scmp.eq.s32.totalorder %s20, 0
    %p267 = por %p265, %p266
    %p268 = scmp.ne.s32.totalorder %s254, %s255
    %p269 = scmp.eq.s32.totalorder %s21, 3
    %p270 = por %p268, %p269
    %p272 = scmp.ne.s32.totalorder %s255, %s271
    %p273 = scmp.eq.s32.totalorder %s21, 0
    %p274 = por %p272, %p273
    %p275 = scmp.le.s32.totalorder 1, %s15
    %p276 = scmp.lt.s32.totalorder %s15, 5
    %p277 = pnand %p275, %p276
    %p278 = pneg %p277
    // Predicated region
    $region9: #{dehaze_generator.4} parent=5 // pred_check
      _
    $region10: #{dehaze_generator.4} parent=5 // pred_check_branch
      %280 = sbr.rel (%p277) target = $region12
    $region11: #{dehaze_generator.4} parent=5 // pred_region
      %s281 = ssub.s32 %s15, 1
      // Predicated region
      $region13: #{dehaze_generator.4} parent=11 // pred_check
        %p282 = pneg %p148
      $region14: #{dehaze_generator.4} parent=11 // pred_check_branch
        %284 = sbr.rel (%p282) target = $region16
      $region15: #{dehaze_generator.4} parent=11 // pred_region
        _
      $region16: #{dehaze_generator.4} parent=11 // pred_fallthru
        _
      // Predicated region
      $region17: #{dehaze_generator.4} parent=11 // pred_check
        %p285 = pneg %p169
      $region18: #{dehaze_generator.4} parent=11 // pred_check_branch
        %287 = sbr.rel (%p285) target = $region20
      $region19: #{dehaze_generator.4} parent=11 // pred_region
        _
      $region20: #{dehaze_generator.4} parent=11 // pred_fallthru
        _
      // Predicated region
      $region21: #{dehaze_generator.4} parent=11 // pred_check
        %p288 = pneg %p190
      $region22: #{dehaze_generator.4} parent=11 // pred_check_branch
        %290 = sbr.rel (%p288) target = $region24
      $region23: #{dehaze_generator.4} parent=11 // pred_region
        _
      $region24: #{dehaze_generator.4} parent=11 // pred_fallthru
        _
      // Predicated region
      $region25: #{dehaze_generator.4} parent=11 // pred_check
        %p291 = pneg %p211
      $region26: #{dehaze_generator.4} parent=11 // pred_check_branch
        %293 = sbr.rel (%p291) target = $region28
      $region27: #{dehaze_generator.4} parent=11 // pred_region
        _
      $region28: #{dehaze_generator.4} parent=11 // pred_fallthru
        _
    $region12: #{dehaze_generator.4} parent=5 // pred_fallthru
      _
    %p294 = scmp.lt.s32.totalorder %s15, 4
    // Predicated region
    $region29: #{dehaze_generator.4} parent=5 // pred_check
      %p295 = pneg %p294
    $region30: #{dehaze_generator.4} parent=5 // pred_check_branch
      %297 = sbr.rel (%p295) target = $region32
    $region31: #{dehaze_generator.4} parent=5 // pred_region
      // Predicated region
      $region33: #{dehaze_generator.4} parent=31 // pred_check
        %p298 = pneg %p49
      $region34: #{dehaze_generator.4} parent=31 // pred_check_branch
        %300 = sbr.rel (%p298) target = $region36
      $region35: #{dehaze_generator.4} parent=31 // pred_region
        %s301 = smul.u32 8, %s23
        %p302 = scmp.lt.s32.totalorder %s22, 1
        %s303 = scalar_select %p302, %s22, 1
        %p304 = scmp.lt.s32.totalorder %s301, 15
        %s305 = scalar_select %p304, %s301, 15
        %s306 = smul.addr %s305, 2
        %s307 = smul.addr %s303, 32
        %s308 = sadd.s32 %s306, %s307
        %s309 = smul.addr %s308, 8
        %s310 = scalar_lea.vmem %s0, %s309
        %s311 = smul.u32 8, %s23
      $region36: #{dehaze_generator.4} parent=31 // pred_fallthru
        _
      // Predicated region
      $region37: #{dehaze_generator.4} parent=31 // pred_check
        %p312 = pneg %p85
      $region38: #{dehaze_generator.4} parent=31 // pred_check_branch
        %314 = sbr.rel (%p312) target = $region40
      $region39: #{dehaze_generator.4} parent=31 // pred_region
        %s315 = smul.u32 %s23, 8
        %s316 = ssub.s32 %s315, 1
        %p317 = scmp.gt.s32.totalorder %s316, 0
        %s318 = scalar_select %p317, %s316, 0
        %p319 = scmp.lt.s32.totalorder %s22, 1
        %s320 = scalar_select %p319, %s22, 1
        %p321 = scmp.lt.s32.totalorder %s318, 15
        %s322 = scalar_select %p321, %s318, 15
        %s323 = smul.addr %s322, 2
        %s324 = smul.addr %s320, 32
        %s325 = sadd.s32 %s323, %s324
        %s326 = smul.addr %s325, 8
        %s327 = scalar_lea.vmem %s1, %s326
        %s328 = smul.u32 %s23, 8
        %s329 = ssub.s32 %s328, 1
        %p330 = scmp.gt.s32.totalorder %s329, 0
        %s331 = scalar_select %p330, %s329, 0
      $region40: #{dehaze_generator.4} parent=31 // pred_fallthru
        _
      // Predicated region
      $region41: #{dehaze_generator.4} parent=31 // pred_check
        %p332 = pneg %p121
      $region42: #{dehaze_generator.4} parent=31 // pred_check_branch
        %334 = sbr.rel (%p332) target = $region44
      $region43: #{dehaze_generator.4} parent=31 // pred_region
        %s335 = sadd.s32 %s23, 1
        %s336 = smul.u32 %s335, 8
        %p337 = scmp.lt.s32.totalorder %s336, 15
        %s338 = scalar_select %p337, %s336, 15
        %p339 = scmp.lt.s32.totalorder %s22, 1
        %s340 = scalar_select %p339, %s22, 1
        %p341 = scmp.lt.s32.totalorder %s338, 15
        %s342 = scalar_select %p341, %s338, 15
        %s343 = smul.addr %s342, 2
        %s344 = smul.addr %s340, 32
        %s345 = sadd.s32 %s343, %s344
        %s346 = smul.addr %s345, 8
        %s347 = scalar_lea.vmem %s2, %s346
        %s348 = sadd.s32 %s23, 1
        %s349 = smul.u32 %s348, 8
        %p350 = scmp.lt.s32.totalorder %s349, 15
        %s351 = scalar_select %p350, %s349, 15
      $region44: #{dehaze_generator.4} parent=31 // pred_fallthru
        _
    $region32: #{dehaze_generator.4} parent=5 // pred_fallthru
      _
    %p352 = scmp.le.s32.totalorder 1, %s15
    %p353 = scmp.lt.s32.totalorder %s15, 5
    %p354 = pnand %p352, %p353
    %p355 = pneg %p354
    // Predicated region
    $region45: #{dehaze_generator.4} parent=5 // pred_check
      _
    $region46: #{dehaze_generator.4} parent=5 // pred_check_branch
      %357 = sbr.rel (%p354) target = $region48
    $region47: #{dehaze_generator.4} parent=5 // pred_region
      %s358 = ssub.s32 %s15, 1
      %s359 = smul.u32 8, %s25
      %p360 = scmp.lt.s32.totalorder %s24, 1
      %s361 = scalar_select %p360, %s24, 1
      %p362 = scmp.lt.s32.totalorder %s359, 15
      %s363 = scalar_select %p362, %s359, 15
      %s364 = smul.addr %s363, 2
      %s365 = smul.addr %s361, 32
      %s366 = sadd.s32 %s364, %s365
      %s367 = smul.addr %s366, 8
      %s368 = scalar_lea.vmem %s0, %s367
      %p369 = pneg %p55
      %p370 = pneg %p52
      %s371 = smul.u32 %s25, 8
      %s372 = ssub.s32 %s371, 1
      %p373 = scmp.gt.s32.totalorder %s372, 0
      %s374 = scalar_select %p373, %s372, 0
      %p375 = scmp.lt.s32.totalorder %s24, 1
      %s376 = scalar_select %p375, %s24, 1
      %p377 = scmp.lt.s32.totalorder %s374, 15
      %s378 = scalar_select %p377, %s374, 15
      %s379 = smul.addr %s378, 2
      %s380 = smul.addr %s376, 32
      %s381 = sadd.s32 %s379, %s380
      %s382 = smul.addr %s381, 8
      %s383 = scalar_lea.vmem %s1, %s382
      %p384 = pneg %p91
      %p385 = pneg %p88
      %s386 = sadd.s32 %s25, 1
      %s387 = smul.u32 %s386, 8
      %p388 = scmp.lt.s32.totalorder %s387, 15
      %s389 = scalar_select %p388, %s387, 15
      %p390 = scmp.lt.s32.totalorder %s24, 1
      %s391 = scalar_select %p390, %s24, 1
      %p392 = scmp.lt.s32.totalorder %s389, 15
      %s393 = scalar_select %p392, %s389, 15
      %s394 = smul.addr %s393, 2
      %s395 = smul.addr %s391, 32
      %s396 = sadd.s32 %s394, %s395
      %s397 = smul.addr %s396, 8
      %s398 = scalar_lea.vmem %s2, %s397
      %p399 = pneg %p127
      %p400 = pneg %p124
      %p401 = pneg %p148
      %p402 = pneg %p145
      %p403 = pneg %p169
      %p404 = pneg %p166
      %p405 = pneg %p190
      %p406 = pneg %p187
      %p407 = pneg %p211
      %p408 = pneg %p208
      %p409 = pneg %p239
      %p410 = pneg %p236
      %s411 = smul.u32 8, %s25
      %p412 = scmp.lt.s32.totalorder %s24, 1
      %s413 = scalar_select %p412, %s24, 1
      %p414 = scmp.lt.s32.totalorder %s411, 15
      %s415 = scalar_select %p414, %s411, 15
      %s416 = smul.addr %s415, 2
      %s417 = smul.addr %s413, 32
      %s418 = sadd.s32 %s416, %s417
      %s419 = smul.addr %s418, 4
      %s420 = scalar_lea.vmem %s7, %s419
      %p421 = pneg %p267
      %p422 = pneg %p264
      %p423 = scmp.lt.s32.totalorder %s24, 1
      %s424 = scalar_select %p423, %s24, 1
      %p425 = scmp.lt.s32.totalorder %s25, 1
      %s426 = scalar_select %p425, %s25, 1
      %s427 = smul.addr %s424, 2
      %s428 = sadd.s32 %s426, %s427
      %s429 = smul.addr %s428, 2
      %s430 = scalar_lea.vmem %s8, %s429
      %s431 = smul.u32 8, %s25
      %p432 = scmp.lt.s32.totalorder %s24, 1
      %s433 = scalar_select %p432, %s24, 1
      %p434 = scmp.lt.s32.totalorder %s431, 15
      %s435 = scalar_select %p434, %s431, 15
      %s436 = smul.addr %s435, 2
      %s437 = smul.addr %s433, 32
      %s438 = sadd.s32 %s436, %s437
      %s439 = smul.addr %s438, 8
      %s440 = scalar_lea.vmem %s0, %s439
      %s441 = smul.u32 8, %s25
      %s442 = smul.u32 %s25, 8
      %s443 = ssub.s32 %s442, 1
      %p444 = scmp.gt.s32.totalorder %s443, 0
      %s445 = scalar_select %p444, %s443, 0
      %p446 = scmp.lt.s32.totalorder %s24, 1
      %s447 = scalar_select %p446, %s24, 1
      %p448 = scmp.lt.s32.totalorder %s445, 15
      %s449 = scalar_select %p448, %s445, 15
      %s450 = smul.addr %s449, 2
      %s451 = smul.addr %s447, 32
      %s452 = sadd.s32 %s450, %s451
      %s453 = smul.addr %s452, 8
      %s454 = scalar_lea.vmem %s1, %s453
      %s455 = smul.u32 %s25, 8
      %s456 = ssub.s32 %s455, 1
      %p457 = scmp.gt.s32.totalorder %s456, 0
      %s458 = scalar_select %p457, %s456, 0
      %s459 = sadd.s32 %s25, 1
      %s460 = smul.u32 %s459, 8
      %p461 = scmp.lt.s32.totalorder %s460, 15
      %s462 = scalar_select %p461, %s460, 15
      %p463 = scmp.lt.s32.totalorder %s24, 1
      %s464 = scalar_select %p463, %s24, 1
      %p465 = scmp.lt.s32.totalorder %s462, 15
      %s466 = scalar_select %p465, %s462, 15
      %s467 = smul.addr %s466, 2
      %s468 = smul.addr %s464, 32
      %s469 = sadd.s32 %s467, %s468
      %s470 = smul.addr %s469, 8
      %s471 = scalar_lea.vmem %s2, %s470
      %s472 = sadd.s32 %s25, 1
      %s473 = smul.u32 %s472, 8
      %p474 = scmp.lt.s32.totalorder %s473, 15
      %s475 = scalar_select %p474, %s473, 15
      %s476 = smul.u32 8, %s25
      %p477 = scmp.lt.s32.totalorder %s24, 1
      %s478 = scalar_select %p477, %s24, 1
      %p479 = scmp.lt.s32.totalorder %s476, 15
      %s480 = scalar_select %p479, %s476, 15
      %s481 = smul.addr %s480, 2
      %s482 = smul.addr %s478, 32
      %s483 = sadd.s32 %s481, %s482
      %s484 = smul.addr %s483, 4
      %s485 = scalar_lea.vmem %s7, %s484
      %s486 = smul.u32 8, %s25
      %p487 = scmp.lt.s32.totalorder %s24, 1
      %s488 = scalar_select %p487, %s24, 1
      %p489 = scmp.lt.s32.totalorder %s25, 1
      %s490 = scalar_select %p489, %s25, 1
      %s491 = smul.addr %s488, 2
      %s492 = sadd.s32 %s490, %s491
      %s493 = smul.addr %s492, 2
      %s494 = scalar_lea.vmem %s8, %s493
      %v496 = vld [vmem:[%s440] sm:$0xff]
      %v497 = vld [vmem:[%s440 + $0x8] sm:$0xff]
      %v498 = vld [vmem:[%s440 + $0x10] sm:$0xff]
      %v499 = vld [vmem:[%s440 + $0x18] sm:$0xff]
      %v500 = vld [vmem:[%s440 + $0x20] sm:$0xff]
      %v501 = vld [vmem:[%s440 + $0x28] sm:$0xff]
      %v502 = vld [vmem:[%s440 + $0x30] sm:$0xff]
      %v503 = vld [vmem:[%s440 + $0x38] sm:$0xff]
      %v504 = vld [vmem:[%s440 + $0x40] sm:$0xff]
      %v505 = vld [vmem:[%s440 + $0x48] sm:$0xff]
      %v506 = vld [vmem:[%s440 + $0x50] sm:$0xff]
      %v507 = vld [vmem:[%s440 + $0x58] sm:$0xff]
      %v508 = vld [vmem:[%s440 + $0x60] sm:$0xff]
      %v509 = vld [vmem:[%s440 + $0x68] sm:$0xff]
      %v510 = vld [vmem:[%s440 + $0x70] sm:$0xff]
      %v511 = vld [vmem:[%s440 + $0x78] sm:$0xff]
      %v512 = vld [vmem:[%s454] sm:$0xff]
      %v513 = vld [vmem:[%s454 + $0x8] sm:$0xff]
      %v514 = vld [vmem:[%s471] sm:$0xff]
      %v515 = vld [vmem:[%s471 + $0x8] sm:$0xff]
      %p516 = scmp.eq.s32.totalorder %s25, 0
      %s517 = scalar_select %p516, 0.0, 1.0
      %v518 = vstv %s517
      %v519 = vmul.f32 %v512, %v518
      %v520 = vmul.f32 %v513, %v518
      %p521 = scmp.eq.s32.totalorder %s25, 1
      %s522 = scalar_select %p521, 0.0, 1.0
      %v523 = vstv %s522
      %v524 = vmul.f32 %v514, %v523
      %v525 = vmul.f32 %v515, %v523
      %v526 = vpack.c.bf16 %v520, %v519
      %v527 = vpack.c.bf16 %v497, %v496
      %v528 = vpack.c.bf16 %v499, %v498
      %v529 = vpack.c.bf16 %v501, %v500
      %v530 = vpack.c.bf16 %v503, %v502
      %v531 = vpack.c.bf16 %v505, %v504
      %v532 = vpack.c.bf16 %v507, %v506
      %v533 = vpack.c.bf16 %v509, %v508
      %v534 = vpack.c.bf16 %v511, %v510
      %v535 = vpack.c.bf16 %v525, %v524
      %vm536 = vcmask 23552
      %v539 = vsel %vm536, %v526, 0
      %v541 = vsel %vm536, %v527, 0
      %v543 = vsel %vm536, %v528, 0
      %v545 = vsel %vm536, %v529, 0
      %v547 = vsel %vm536, %v530, 0
      %v549 = vsel %vm536, %v531, 0
      %v551 = vsel %vm536, %v532, 0
      %v553 = vsel %vm536, %v533, 0
      %v555 = vsel %vm536, %v534, 0
      %v557 = vsel %vm536, %v535, 0
      %v558 = vld [vmem:[%s3] sm:$0xff]
      %v560 = vunpack.c.l.b16 %v558
      %v561 = vunpack.c.h.b16 %v558
      %v562 = vpack.c.b16 %v560, %v560
      %v563 = vpack.c.b16 %v561, %v561
      %vm564 = vcmask 64512
      %v565 = vsel %vm564, %v539, 0
      %v567 = vsel %vm564, %v541, 0
      %v569 = vsel %vm564, %v543, 0
      %v571 = vsel %vm564, %v545, 0
      %v573 = vsel %vm564, %v547, 0
      %v575 = vsel %vm564, %v549, 0
      %v577 = vsel %vm564, %v551, 0
      %v579 = vsel %vm564, %v553, 0
      %vm581 = vcmask 1043456
      %v583 = vsel %vm581, %v562, 0
      %v586 = vsel %vm581, %v563, 0
      %588 = vmatprep.subr.bf16.mxu0 0
      %589 = vmatpush1.bf16.msra.mxu0 0
      %590 = vmatprep.subr.bf16.mxu0 0
      %591 = vmatpush1.bf16.msra.mxu0 0
      %592 = vmatprep.subr.bf16.mxu0 0
      %593 = vmatpush1.bf16.msra.mxu0 0
      %594 = vmatprep.subr.bf16.mxu0 0
      %595 = vmatpush1.bf16.msra.mxu0 0
      %596 = vmatprep.subr.bf16.mxu0 0
      %597 = vmatpush1.bf16.msra.mxu0 0
      %598 = vmatprep.subr.bf16.mxu0 0
      %599 = vmatpush1.bf16.msra.mxu0 0
      %600 = vmatprep.subr.bf16.mxu0 0
      %601 = vmatpush1.bf16.msra.mxu0 0
      %602 = vmatprep.subr.bf16.mxu0 %v586
      %603 = vmatpush1.bf16.msra.mxu0 %v583
      %604 = vmatprep.subr.bf16.mxu0 0
      %605 = vmatpush2.bf16.msra.mxu0 0
      %606 = vmatprep.subr.bf16.mxu0 0
      %607 = vmatpush2.bf16.msra.mxu0 0
      %608 = vmatprep.subr.bf16.mxu0 0
      %609 = vmatpush2.bf16.msra.mxu0 0
      %610 = vmatprep.subr.bf16.mxu0 0
      %611 = vmatpush2.bf16.msra.mxu0 0
      %612 = vmatprep.subr.bf16.mxu0 0
      %613 = vmatpush2.bf16.msra.mxu0 0
      %614 = vmatprep.subr.bf16.mxu0 0
      %615 = vmatpush2.bf16.msra.mxu0 0
      %616 = vmatprep.subr.bf16.mxu0 0
      %617 = vmatpush2.bf16.msra.mxu0 0
      %618 = vmatprep.subr.bf16.mxu0 0
      %619 = vmatpush2.bf16.msra.mxu0 0
      %620 = vmatprep.mubr.bf16.mxu0 0
      %621 = vmatmul.mubr.bf16.gmra.mxu0 %v565
      %v622 = vpop.f32.mrf.mxu0
      %v623 = vadd.f32 0.0, %v622
      %v624 = vpop.f32.mrf.mxu0
      %v625 = vadd.f32 0.0, %v624
      %v626 = vpop.f32.mrf.mxu0
      %v627 = vadd.f32 0.0, %v626
      %v628 = vpop.f32.mrf.mxu0
      %v629 = vadd.f32 0.0, %v628
      %630 = vmatprep.mubr.bf16.mxu0 0
      %631 = vmatmul.mubr.bf16.gmra.mxu0 %v567
      %v632 = vpop.f32.mrf.mxu0
      %v633 = vadd.f32 0.0, %v632
      %v634 = vpop.f32.mrf.mxu0
      %v635 = vadd.f32 0.0, %v634
      %v636 = vpop.f32.mrf.mxu0
      %v637 = vadd.f32 0.0, %v636
      %v638 = vpop.f32.mrf.mxu0
      %v639 = vadd.f32 0.0, %v638
      %640 = vmatprep.mubr.bf16.mxu0 0
      %641 = vmatmul.mubr.bf16.gmra.mxu0 %v569
      %v642 = vpop.f32.mrf.mxu0
      %v643 = vadd.f32 0.0, %v642
      %v644 = vpop.f32.mrf.mxu0
      %v645 = vadd.f32 0.0, %v644
      %v646 = vpop.f32.mrf.mxu0
      %v647 = vadd.f32 0.0, %v646
      %v648 = vpop.f32.mrf.mxu0
      %v649 = vadd.f32 0.0, %v648
      %650 = vmatprep.mubr.bf16.mxu0 0
      %651 = vmatmul.mubr.bf16.gmra.mxu0 %v571
      %v652 = vpop.f32.mrf.mxu0
      %v653 = vadd.f32 0.0, %v652
      %v654 = vpop.f32.mrf.mxu0
      %v655 = vadd.f32 0.0, %v654
      %v656 = vpop.f32.mrf.mxu0
      %v657 = vadd.f32 0.0, %v656
      %v658 = vpop.f32.mrf.mxu0
      %v659 = vadd.f32 0.0, %v658
      %660 = vmatprep.mubr.bf16.mxu0 0
      %661 = vmatmul.mubr.bf16.gmra.mxu0 %v573
      %v662 = vpop.f32.mrf.mxu0
      %v663 = vadd.f32 0.0, %v662
      %v664 = vpop.f32.mrf.mxu0
      %v665 = vadd.f32 0.0, %v664
      %v666 = vpop.f32.mrf.mxu0
      %v667 = vadd.f32 0.0, %v666
      %v668 = vpop.f32.mrf.mxu0
      %v669 = vadd.f32 0.0, %v668
      %670 = vmatprep.mubr.bf16.mxu0 0
      %671 = vmatmul.mubr.bf16.gmra.mxu0 %v575
      %v672 = vpop.f32.mrf.mxu0
      %v673 = vadd.f32 0.0, %v672
      %v674 = vpop.f32.mrf.mxu0
      %v675 = vadd.f32 0.0, %v674
      %v676 = vpop.f32.mrf.mxu0
      %v677 = vadd.f32 0.0, %v676
      %v678 = vpop.f32.mrf.mxu0
      %v679 = vadd.f32 0.0, %v678
      %680 = vmatprep.mubr.bf16.mxu0 0
      %681 = vmatmul.mubr.bf16.gmra.mxu0 %v577
      %v682 = vpop.f32.mrf.mxu0
      %v683 = vadd.f32 0.0, %v682
      %v684 = vpop.f32.mrf.mxu0
      %v685 = vadd.f32 0.0, %v684
      %v686 = vpop.f32.mrf.mxu0
      %v687 = vadd.f32 0.0, %v686
      %v688 = vpop.f32.mrf.mxu0
      %v689 = vadd.f32 0.0, %v688
      %690 = vmatprep.mubr.bf16.mxu0 0
      %691 = vmatmul.mubr.bf16.gmra.mxu0 %v579
      %v692 = vpop.f32.mrf.mxu0
      %v693 = vadd.f32 0.0, %v692
      %v694 = vpop.f32.mrf.mxu0
      %v695 = vadd.f32 0.0, %v694
      %v696 = vpop.f32.mrf.mxu0
      %v697 = vadd.f32 0.0, %v696
      %v698 = vpop.f32.mrf.mxu0
      %v699 = vadd.f32 0.0, %v698
      %700 = vdwg.mxu0
      %vm717 = vcmask 1040384
      %v718 = vrot.slane %v623, 7
      %v719 = vrot.slane %v627, 7
      %v720 = vsel %vm717, %v718, %v719
      %v721 = vrot.slane %v633, 7
      %v722 = vrot.slane %v637, 7
      %v723 = vsel %vm717, %v721, %v722
      %v724 = vrot.slane %v643, 7
      %v725 = vrot.slane %v647, 7
      %v726 = vsel %vm717, %v724, %v725
      %v727 = vrot.slane %v653, 7
      %v728 = vrot.slane %v657, 7
      %v729 = vsel %vm717, %v727, %v728
      %v730 = vrot.slane %v663, 7
      %v731 = vrot.slane %v667, 7
      %v732 = vsel %vm717, %v730, %v731
      %v733 = vrot.slane %v673, 7
      %v734 = vrot.slane %v677, 7
      %v735 = vsel %vm717, %v733, %v734
      %v736 = vrot.slane %v683, 7
      %v737 = vrot.slane %v687, 7
      %v738 = vsel %vm717, %v736, %v737
      %v739 = vrot.slane %v693, 7
      %v740 = vrot.slane %v697, 7
      %v741 = vsel %vm717, %v739, %v740
      %v758 = vsel %vm717, 0.0, %v718
      %v759 = vsel %vm717, 0.0, %v721
      %v760 = vsel %vm717, 0.0, %v724
      %v761 = vsel %vm717, 0.0, %v727
      %v762 = vsel %vm717, 0.0, %v730
      %v763 = vsel %vm717, 0.0, %v733
      %v764 = vsel %vm717, 0.0, %v736
      %v765 = vsel %vm717, 0.0, %v739
      %v766 = vadd.f32 %v758, 0.0
      %v767 = vadd.f32 %v720, 0.0
      %v768 = vadd.f32 %v759, 0.0
      %v769 = vadd.f32 %v723, 0.0
      %v770 = vadd.f32 %v760, 0.0
      %v771 = vadd.f32 %v726, 0.0
      %v772 = vadd.f32 %v761, 0.0
      %v773 = vadd.f32 %v729, 0.0
      %v774 = vadd.f32 %v762, 0.0
      %v775 = vadd.f32 %v732, 0.0
      %v776 = vadd.f32 %v763, 0.0
      %v777 = vadd.f32 %v735, 0.0
      %v778 = vadd.f32 %v764, 0.0
      %v779 = vadd.f32 %v738, 0.0
      %v780 = vadd.f32 %v765, 0.0
      %v781 = vadd.f32 %v741, 0.0
      %782 = vrot.lane.b32.xlu0 %v623, 64
      %v783 = vpop.permute.xlu0 %782
      %784 = vrot.lane.b32.xlu0 %v627, 64
      %v785 = vpop.permute.xlu0 %784
      %786 = vrot.lane.b32.xlu0 %v633, 64
      %v787 = vpop.permute.xlu0 %786
      %788 = vrot.lane.b32.xlu0 %v637, 64
      %v789 = vpop.permute.xlu0 %788
      %790 = vrot.lane.b32.xlu0 %v643, 64
      %v791 = vpop.permute.xlu0 %790
      %792 = vrot.lane.b32.xlu0 %v647, 64
      %v793 = vpop.permute.xlu0 %792
      %794 = vrot.lane.b32.xlu0 %v653, 64
      %v795 = vpop.permute.xlu0 %794
      %796 = vrot.lane.b32.xlu0 %v657, 64
      %v797 = vpop.permute.xlu0 %796
      %798 = vrot.lane.b32.xlu0 %v663, 64
      %v799 = vpop.permute.xlu0 %798
      %800 = vrot.lane.b32.xlu0 %v667, 64
      %v801 = vpop.permute.xlu0 %800
      %802 = vrot.lane.b32.xlu0 %v673, 64
      %v803 = vpop.permute.xlu0 %802
      %804 = vrot.lane.b32.xlu0 %v677, 64
      %v805 = vpop.permute.xlu0 %804
      %806 = vrot.lane.b32.xlu0 %v683, 64
      %v807 = vpop.permute.xlu0 %806
      %808 = vrot.lane.b32.xlu0 %v687, 64
      %v809 = vpop.permute.xlu0 %808
      %810 = vrot.lane.b32.xlu0 %v693, 64
      %v811 = vpop.permute.xlu0 %810
      %812 = vrot.lane.b32.xlu0 %v697, 64
      %v813 = vpop.permute.xlu0 %812
      %v830 = vadd.f32 %v766, %v783
      %v831 = vadd.f32 %v767, %v785
      %v832 = vadd.f32 %v768, %v787
      %v833 = vadd.f32 %v769, %v789
      %v834 = vadd.f32 %v770, %v791
      %v835 = vadd.f32 %v771, %v793
      %v836 = vadd.f32 %v772, %v795
      %v837 = vadd.f32 %v773, %v797
      %v838 = vadd.f32 %v774, %v799
      %v839 = vadd.f32 %v775, %v801
      %v840 = vadd.f32 %v776, %v803
      %v841 = vadd.f32 %v777, %v805
      %v842 = vadd.f32 %v778, %v807
      %v843 = vadd.f32 %v779, %v809
      %v844 = vadd.f32 %v780, %v811
      %v845 = vadd.f32 %v781, %v813
      %vm862 = vcmask 1046528
      %v863 = vrot.slane %v625, 1
      %v864 = vrot.slane %v629, 1
      %v865 = vsel %vm862, %v863, %v864
      %v866 = vrot.slane %v635, 1
      %v867 = vrot.slane %v639, 1
      %v868 = vsel %vm862, %v866, %v867
      %v869 = vrot.slane %v645, 1
      %v870 = vrot.slane %v649, 1
      %v871 = vsel %vm862, %v869, %v870
      %v872 = vrot.slane %v655, 1
      %v873 = vrot.slane %v659, 1
      %v874 = vsel %vm862, %v872, %v873
      %v875 = vrot.slane %v665, 1
      %v876 = vrot.slane %v669, 1
      %v877 = vsel %vm862, %v875, %v876
      %v878 = vrot.slane %v675, 1
      %v879 = vrot.slane %v679, 1
      %v880 = vsel %vm862, %v878, %v879
      %v881 = vrot.slane %v685, 1
      %v882 = vrot.slane %v689, 1
      %v883 = vsel %vm862, %v881, %v882
      %v884 = vrot.slane %v695, 1
      %v885 = vrot.slane %v699, 1
      %v886 = vsel %vm862, %v884, %v885
      %v903 = vsel %vm862, %v864, 0.0
      %v904 = vsel %vm862, %v867, 0.0
      %v905 = vsel %vm862, %v870, 0.0
      %v906 = vsel %vm862, %v873, 0.0
      %v907 = vsel %vm862, %v876, 0.0
      %v908 = vsel %vm862, %v879, 0.0
      %v909 = vsel %vm862, %v882, 0.0
      %v910 = vsel %vm862, %v885, 0.0
      %v911 = vadd.f32 %v830, %v865
      %v912 = vadd.f32 %v831, %v903
      %v913 = vadd.f32 %v832, %v868
      %v914 = vadd.f32 %v833, %v904
      %v915 = vadd.f32 %v834, %v871
      %v916 = vadd.f32 %v835, %v905
      %v917 = vadd.f32 %v836, %v874
      %v918 = vadd.f32 %v837, %v906
      %v919 = vadd.f32 %v838, %v877
      %v920 = vadd.f32 %v839, %v907
      %v921 = vadd.f32 %v840, %v880
      %v922 = vadd.f32 %v841, %v908
      %v923 = vadd.f32 %v842, %v883
      %v924 = vadd.f32 %v843, %v909
      %v925 = vadd.f32 %v844, %v886
      %v926 = vadd.f32 %v845, %v910
      %s927 = scalar_lea.vmem %s3, 8
      %v928 = vld [vmem:[%s927] sm:$0xff]
      %v930 = vunpack.c.l.b16 %v928
      %v931 = vunpack.c.h.b16 %v928
      %v932 = vpack.c.b16 %v930, %v930
      %v933 = vpack.c.b16 %v931, %v931
      %v934 = vsel %vm564, %v555, 0
      %v937 = vsel %vm581, %v932, 0
      %v940 = vsel %vm581, %v933, 0
      %942 = vmatprep.subr.bf16.mxu0 0
      %943 = vmatpush1.bf16.msra.mxu0 0
      %944 = vmatprep.subr.bf16.mxu0 0
      %945 = vmatpush1.bf16.msra.mxu0 0
      %946 = vmatprep.subr.bf16.mxu0 0
      %947 = vmatpush1.bf16.msra.mxu0 0
      %948 = vmatprep.subr.bf16.mxu0 0
      %949 = vmatpush1.bf16.msra.mxu0 0
      %950 = vmatprep.subr.bf16.mxu0 0
      %951 = vmatpush1.bf16.msra.mxu0 0
      %952 = vmatprep.subr.bf16.mxu0 0
      %953 = vmatpush1.bf16.msra.mxu0 0
      %954 = vmatprep.subr.bf16.mxu0 0
      %955 = vmatpush1.bf16.msra.mxu0 0
      %956 = vmatprep.subr.bf16.mxu0 %v940
      %957 = vmatpush1.bf16.msra.mxu0 %v937
      %958 = vmatprep.subr.bf16.mxu0 0
      %959 = vmatpush2.bf16.msra.mxu0 0
      %960 = vmatprep.subr.bf16.mxu0 0
      %961 = vmatpush2.bf16.msra.mxu0 0
      %962 = vmatprep.subr.bf16.mxu0 0
      %963 = vmatpush2.bf16.msra.mxu0 0
      %964 = vmatprep.subr.bf16.mxu0 0
      %965 = vmatpush2.bf16.msra.mxu0 0
      %966 = vmatprep.subr.bf16.mxu0 0
      %967 = vmatpush2.bf16.msra.mxu0 0
      %968 = vmatprep.subr.bf16.mxu0 0
      %969 = vmatpush2.bf16.msra.mxu0 0
      %970 = vmatprep.subr.bf16.mxu0 0
      %971 = vmatpush2.bf16.msra.mxu0 0
      %972 = vmatprep.subr.bf16.mxu0 0
      %973 = vmatpush2.bf16.msra.mxu0 0
      %974 = vmatprep.mubr.bf16.mxu0 0
      %975 = vmatmul.mubr.bf16.gmra.mxu0 %v567
      %v976 = vpop.f32.mrf.mxu0
      %v977 = vadd.f32 0.0, %v976
      %v978 = vpop.f32.mrf.mxu0
      %v979 = vadd.f32 0.0, %v978
      %v980 = vpop.f32.mrf.mxu0
      %v981 = vadd.f32 0.0, %v980
      %v982 = vpop.f32.mrf.mxu0
      %v983 = vadd.f32 0.0, %v982
      %984 = vmatprep.mubr.bf16.mxu0 0
      %985 = vmatmul.mubr.bf16.gmra.mxu0 %v569
      %v986 = vpop.f32.mrf.mxu0
      %v987 = vadd.f32 0.0, %v986
      %v988 = vpop.f32.mrf.mxu0
      %v989 = vadd.f32 0.0, %v988
      %v990 = vpop.f32.mrf.mxu0
      %v991 = vadd.f32 0.0, %v990
      %v992 = vpop.f32.mrf.mxu0
      %v993 = vadd.f32 0.0, %v992
      %994 = vmatprep.mubr.bf16.mxu0 0
      %995 = vmatmul.mubr.bf16.gmra.mxu0 %v571
      %v996 = vpop.f32.mrf.mxu0
      %v997 = vadd.f32 0.0, %v996
      %v998 = vpop.f32.mrf.mxu0
      %v999 = vadd.f32 0.0, %v998
      %v1000 = vpop.f32.mrf.mxu0
      %v1001 = vadd.f32 0.0, %v1000
      %v1002 = vpop.f32.mrf.mxu0
      %v1003 = vadd.f32 0.0, %v1002
      %1004 = vmatprep.mubr.bf16.mxu0 0
      %1005 = vmatmul.mubr.bf16.gmra.mxu0 %v573
      %v1006 = vpop.f32.mrf.mxu0
      %v1007 = vadd.f32 0.0, %v1006
      %v1008 = vpop.f32.mrf.mxu0
      %v1009 = vadd.f32 0.0, %v1008
      %v1010 = vpop.f32.mrf.mxu0
      %v1011 = vadd.f32 0.0, %v1010
      %v1012 = vpop.f32.mrf.mxu0
      %v1013 = vadd.f32 0.0, %v1012
      %1014 = vmatprep.mubr.bf16.mxu0 0
      %1015 = vmatmul.mubr.bf16.gmra.mxu0 %v575
      %v1016 = vpop.f32.mrf.mxu0
      %v1017 = vadd.f32 0.0, %v1016
      %v1018 = vpop.f32.mrf.mxu0
      %v1019 = vadd.f32 0.0, %v1018
      %v1020 = vpop.f32.mrf.mxu0
      %v1021 = vadd.f32 0.0, %v1020
      %v1022 = vpop.f32.mrf.mxu0
      %v1023 = vadd.f32 0.0, %v1022
      %1024 = vmatprep.mubr.bf16.mxu0 0
      %1025 = vmatmul.mubr.bf16.gmra.mxu0 %v577
      %v1026 = vpop.f32.mrf.mxu0
      %v1027 = vadd.f32 0.0, %v1026
      %v1028 = vpop.f32.mrf.mxu0
      %v1029 = vadd.f32 0.0, %v1028
      %v1030 = vpop.f32.mrf.mxu0
      %v1031 = vadd.f32 0.0, %v1030
      %v1032 = vpop.f32.mrf.mxu0
      %v1033 = vadd.f32 0.0, %v1032
      %1034 = vmatprep.mubr.bf16.mxu0 0
      %1035 = vmatmul.mubr.bf16.gmra.mxu0 %v579
      %v1036 = vpop.f32.mrf.mxu0
      %v1037 = vadd.f32 0.0, %v1036
      %v1038 = vpop.f32.mrf.mxu0
      %v1039 = vadd.f32 0.0, %v1038
      %v1040 = vpop.f32.mrf.mxu0
      %v1041 = vadd.f32 0.0, %v1040
      %v1042 = vpop.f32.mrf.mxu0
      %v1043 = vadd.f32 0.0, %v1042
      %1044 = vmatprep.mubr.bf16.mxu0 0
      %1045 = vmatmul.mubr.bf16.gmra.mxu0 %v934
      %v1046 = vpop.f32.mrf.mxu0
      %v1047 = vadd.f32 0.0, %v1046
      %v1048 = vpop.f32.mrf.mxu0
      %v1049 = vadd.f32 0.0, %v1048
      %v1050 = vpop.f32.mrf.mxu0
      %v1051 = vadd.f32 0.0, %v1050
      %v1052 = vpop.f32.mrf.mxu0
      %v1053 = vadd.f32 0.0, %v1052
      %1054 = vdwg.mxu0
      %v1071 = vrot.slane %v977, 7
      %v1072 = vrot.slane %v981, 7
      %v1073 = vsel %vm717, %v1071, %v1072
      %v1074 = vrot.slane %v987, 7
      %v1075 = vrot.slane %v991, 7
      %v1076 = vsel %vm717, %v1074, %v1075
      %v1077 = vrot.slane %v997, 7
      %v1078 = vrot.slane %v1001, 7
      %v1079 = vsel %vm717, %v1077, %v1078
      %v1080 = vrot.slane %v1007, 7
      %v1081 = vrot.slane %v1011, 7
      %v1082 = vsel %vm717, %v1080, %v1081
      %v1083 = vrot.slane %v1017, 7
      %v1084 = vrot.slane %v1021, 7
      %v1085 = vsel %vm717, %v1083, %v1084
      %v1086 = vrot.slane %v1027, 7
      %v1087 = vrot.slane %v1031, 7
      %v1088 = vsel %vm717, %v1086, %v1087
      %v1089 = vrot.slane %v1037, 7
      %v1090 = vrot.slane %v1041, 7
      %v1091 = vsel %vm717, %v1089, %v1090
      %v1092 = vrot.slane %v1047, 7
      %v1093 = vrot.slane %v1051, 7
      %v1094 = vsel %vm717, %v1092, %v1093
      %v1111 = vsel %vm717, 0.0, %v1071
      %v1112 = vsel %vm717, 0.0, %v1074
      %v1113 = vsel %vm717, 0.0, %v1077
      %v1114 = vsel %vm717, 0.0, %v1080
      %v1115 = vsel %vm717, 0.0, %v1083
      %v1116 = vsel %vm717, 0.0, %v1086
      %v1117 = vsel %vm717, 0.0, %v1089
      %v1118 = vsel %vm717, 0.0, %v1092
      %v1119 = vadd.f32 %v911, %v1111
      %v1120 = vadd.f32 %v912, %v1073
      %v1121 = vadd.f32 %v913, %v1112
      %v1122 = vadd.f32 %v914, %v1076
      %v1123 = vadd.f32 %v915, %v1113
      %v1124 = vadd.f32 %v916, %v1079
      %v1125 = vadd.f32 %v917, %v1114
      %v1126 = vadd.f32 %v918, %v1082
      %v1127 = vadd.f32 %v919, %v1115
      %v1128 = vadd.f32 %v920, %v1085
      %v1129 = vadd.f32 %v921, %v1116
      %v1130 = vadd.f32 %v922, %v1088
      %v1131 = vadd.f32 %v923, %v1117
      %v1132 = vadd.f32 %v924, %v1091
      %v1133 = vadd.f32 %v925, %v1118
      %v1134 = vadd.f32 %v926, %v1094
      %1135 = vrot.lane.b32.xlu0 %v977, 64
      %v1136 = vpop.permute.xlu0 %1135
      %1137 = vrot.lane.b32.xlu0 %v981, 64
      %v1138 = vpop.permute.xlu0 %1137
      %1139 = vrot.lane.b32.xlu0 %v987, 64
      %v1140 = vpop.permute.xlu0 %1139
      %1141 = vrot.lane.b32.xlu0 %v991, 64
      %v1142 = vpop.permute.xlu0 %1141
      %1143 = vrot.lane.b32.xlu0 %v997, 64
      %v1144 = vpop.permute.xlu0 %1143
      %1145 = vrot.lane.b32.xlu0 %v1001, 64
      %v1146 = vpop.permute.xlu0 %1145
      %1147 = vrot.lane.b32.xlu0 %v1007, 64
      %v1148 = vpop.permute.xlu0 %1147
      %1149 = vrot.lane.b32.xlu0 %v1011, 64
      %v1150 = vpop.permute.xlu0 %1149
      %1151 = vrot.lane.b32.xlu0 %v1017, 64
      %v1152 = vpop.permute.xlu0 %1151
      %1153 = vrot.lane.b32.xlu0 %v1021, 64
      %v1154 = vpop.permute.xlu0 %1153
      %1155 = vrot.lane.b32.xlu0 %v1027, 64
      %v1156 = vpop.permute.xlu0 %1155
      %1157 = vrot.lane.b32.xlu0 %v1031, 64
      %v1158 = vpop.permute.xlu0 %1157
      %1159 = vrot.lane.b32.xlu0 %v1037, 64
      %v1160 = vpop.permute.xlu0 %1159
      %1161 = vrot.lane.b32.xlu0 %v1041, 64
      %v1162 = vpop.permute.xlu0 %1161
      %1163 = vrot.lane.b32.xlu0 %v1047, 64
      %v1164 = vpop.permute.xlu0 %1163
      %1165 = vrot.lane.b32.xlu0 %v1051, 64
      %v1166 = vpop.permute.xlu0 %1165
      %v1183 = vadd.f32 %v1119, %v1136
      %v1184 = vadd.f32 %v1120, %v1138
      %v1185 = vadd.f32 %v1121, %v1140
      %v1186 = vadd.f32 %v1122, %v1142
      %v1187 = vadd.f32 %v1123, %v1144
      %v1188 = vadd.f32 %v1124, %v1146
      %v1189 = vadd.f32 %v1125, %v1148
      %v1190 = vadd.f32 %v1126, %v1150
      %v1191 = vadd.f32 %v1127, %v1152
      %v1192 = vadd.f32 %v1128, %v1154
      %v1193 = vadd.f32 %v1129, %v1156
      %v1194 = vadd.f32 %v1130, %v1158
      %v1195 = vadd.f32 %v1131, %v1160
      %v1196 = vadd.f32 %v1132, %v1162
      %v1197 = vadd.f32 %v1133, %v1164
      %v1198 = vadd.f32 %v1134, %v1166
      %v1215 = vrot.slane %v979, 1
      %v1216 = vrot.slane %v983, 1
      %v1217 = vsel %vm862, %v1215, %v1216
      %v1218 = vrot.slane %v989, 1
      %v1219 = vrot.slane %v993, 1
      %v1220 = vsel %vm862, %v1218, %v1219
      %v1221 = vrot.slane %v999, 1
      %v1222 = vrot.slane %v1003, 1
      %v1223 = vsel %vm862, %v1221, %v1222
      %v1224 = vrot.slane %v1009, 1
      %v1225 = vrot.slane %v1013, 1
      %v1226 = vsel %vm862, %v1224, %v1225
      %v1227 = vrot.slane %v1019, 1
      %v1228 = vrot.slane %v1023, 1
      %v1229 = vsel %vm862, %v1227, %v1228
      %v1230 = vrot.slane %v1029, 1
      %v1231 = vrot.slane %v1033, 1
      %v1232 = vsel %vm862, %v1230, %v1231
      %v1233 = vrot.slane %v1039, 1
      %v1234 = vrot.slane %v1043, 1
      %v1235 = vsel %vm862, %v1233, %v1234
      %v1236 = vrot.slane %v1049, 1
      %v1237 = vrot.slane %v1053, 1
      %v1238 = vsel %vm862, %v1236, %v1237
      %v1255 = vsel %vm862, %v1216, 0.0
      %v1256 = vsel %vm862, %v1219, 0.0
      %v1257 = vsel %vm862, %v1222, 0.0
      %v1258 = vsel %vm862, %v1225, 0.0
      %v1259 = vsel %vm862, %v1228, 0.0
      %v1260 = vsel %vm862, %v1231, 0.0
      %v1261 = vsel %vm862, %v1234, 0.0
      %v1262 = vsel %vm862, %v1237, 0.0
      %v1263 = vadd.f32 %v1183, %v1217
      %v1264 = vadd.f32 %v1184, %v1255
      %v1265 = vadd.f32 %v1185, %v1220
      %v1266 = vadd.f32 %v1186, %v1256
      %v1267 = vadd.f32 %v1187, %v1223
      %v1268 = vadd.f32 %v1188, %v1257
      %v1269 = vadd.f32 %v1189, %v1226
      %v1270 = vadd.f32 %v1190, %v1258
      %v1271 = vadd.f32 %v1191, %v1229
      %v1272 = vadd.f32 %v1192, %v1259
      %v1273 = vadd.f32 %v1193, %v1232
      %v1274 = vadd.f32 %v1194, %v1260
      %v1275 = vadd.f32 %v1195, %v1235
      %v1276 = vadd.f32 %v1196, %v1261
      %v1277 = vadd.f32 %v1197, %v1238
      %v1278 = vadd.f32 %v1198, %v1262
      %s1279 = scalar_lea.vmem %s3, 16
      %v1280 = vld [vmem:[%s1279] sm:$0xff]
      %v1282 = vunpack.c.l.b16 %v1280
      %v1283 = vunpack.c.h.b16 %v1280
      %v1284 = vpack.c.b16 %v1282, %v1282
      %v1285 = vpack.c.b16 %v1283, %v1283
      %v1286 = vsel %vm564, %v557, 0
      %v1289 = vsel %vm581, %v1284, 0
      %v1292 = vsel %vm581, %v1285, 0
      %1294 = vmatprep.subr.bf16.mxu0 0
      %1295 = vmatpush1.bf16.msra.mxu0 0
      %1296 = vmatprep.subr.bf16.mxu0 0
      %1297 = vmatpush1.bf16.msra.mxu0 0
      %1298 = vmatprep.subr.bf16.mxu0 0
      %1299 = vmatpush1.bf16.msra.mxu0 0
      %1300 = vmatprep.subr.bf16.mxu0 0
      %1301 = vmatpush1.bf16.msra.mxu0 0
      %1302 = vmatprep.subr.bf16.mxu0 0
      %1303 = vmatpush1.bf16.msra.mxu0 0
      %1304 = vmatprep.subr.bf16.mxu0 0
      %1305 = vmatpush1.bf16.msra.mxu0 0
      %1306 = vmatprep.subr.bf16.mxu0 0
      %1307 = vmatpush1.bf16.msra.mxu0 0
      %1308 = vmatprep.subr.bf16.mxu0 %v1292
      %1309 = vmatpush1.bf16.msra.mxu0 %v1289
      %1310 = vmatprep.subr.bf16.mxu0 0
      %1311 = vmatpush2.bf16.msra.mxu0 0
      %1312 = vmatprep.subr.bf16.mxu0 0
      %1313 = vmatpush2.bf16.msra.mxu0 0
      %1314 = vmatprep.subr.bf16.mxu0 0
      %1315 = vmatpush2.bf16.msra.mxu0 0
      %1316 = vmatprep.subr.bf16.mxu0 0
      %1317 = vmatpush2.bf16.msra.mxu0 0
      %1318 = vmatprep.subr.bf16.mxu0 0
      %1319 = vmatpush2.bf16.msra.mxu0 0
      %1320 = vmatprep.subr.bf16.mxu0 0
      %1321 = vmatpush2.bf16.msra.mxu0 0
      %1322 = vmatprep.subr.bf16.mxu0 0
      %1323 = vmatpush2.bf16.msra.mxu0 0
      %1324 = vmatprep.subr.bf16.mxu0 0
      %1325 = vmatpush2.bf16.msra.mxu0 0
      %1326 = vmatprep.mubr.bf16.mxu0 0
      %1327 = vmatmul.mubr.bf16.gmra.mxu0 %v569
      %v1328 = vpop.f32.mrf.mxu0
      %v1329 = vadd.f32 0.0, %v1328
      %v1330 = vpop.f32.mrf.mxu0
      %v1331 = vadd.f32 0.0, %v1330
      %v1332 = vpop.f32.mrf.mxu0
      %v1333 = vadd.f32 0.0, %v1332
      %v1334 = vpop.f32.mrf.mxu0
      %v1335 = vadd.f32 0.0, %v1334
      %1336 = vmatprep.mubr.bf16.mxu0 0
      %1337 = vmatmul.mubr.bf16.gmra.mxu0 %v571
      %v1338 = vpop.f32.mrf.mxu0
      %v1339 = vadd.f32 0.0, %v1338
      %v1340 = vpop.f32.mrf.mxu0
      %v1341 = vadd.f32 0.0, %v1340
      %v1342 = vpop.f32.mrf.mxu0
      %v1343 = vadd.f32 0.0, %v1342
      %v1344 = vpop.f32.mrf.mxu0
      %v1345 = vadd.f32 0.0, %v1344
      %1346 = vmatprep.mubr.bf16.mxu0 0
      %1347 = vmatmul.mubr.bf16.gmra.mxu0 %v573
      %v1348 = vpop.f32.mrf.mxu0
      %v1349 = vadd.f32 0.0, %v1348
      %v1350 = vpop.f32.mrf.mxu0
      %v1351 = vadd.f32 0.0, %v1350
      %v1352 = vpop.f32.mrf.mxu0
      %v1353 = vadd.f32 0.0, %v1352
      %v1354 = vpop.f32.mrf.mxu0
      %v1355 = vadd.f32 0.0, %v1354
      %1356 = vmatprep.mubr.bf16.mxu0 0
      %1357 = vmatmul.mubr.bf16.gmra.mxu0 %v575
      %v1358 = vpop.f32.mrf.mxu0
      %v1359 = vadd.f32 0.0, %v1358
      %v1360 = vpop.f32.mrf.mxu0
      %v1361 = vadd.f32 0.0, %v1360
      %v1362 = vpop.f32.mrf.mxu0
      %v1363 = vadd.f32 0.0, %v1362
      %v1364 = vpop.f32.mrf.mxu0
      %v1365 = vadd.f32 0.0, %v1364
      %1366 = vmatprep.mubr.bf16.mxu0 0
      %1367 = vmatmul.mubr.bf16.gmra.mxu0 %v577
      %v1368 = vpop.f32.mrf.mxu0
      %v1369 = vadd.f32 0.0, %v1368
      %v1370 = vpop.f32.mrf.mxu0
      %v1371 = vadd.f32 0.0, %v1370
      %v1372 = vpop.f32.mrf.mxu0
      %v1373 = vadd.f32 0.0, %v1372
      %v1374 = vpop.f32.mrf.mxu0
      %v1375 = vadd.f32 0.0, %v1374
      %1376 = vmatprep.mubr.bf16.mxu0 0
      %1377 = vmatmul.mubr.bf16.gmra.mxu0 %v579
      %v1378 = vpop.f32.mrf.mxu0
      %v1379 = vadd.f32 0.0, %v1378
      %v1380 = vpop.f32.mrf.mxu0
      %v1381 = vadd.f32 0.0, %v1380
      %v1382 = vpop.f32.mrf.mxu0
      %v1383 = vadd.f32 0.0, %v1382
      %v1384 = vpop.f32.mrf.mxu0
      %v1385 = vadd.f32 0.0, %v1384
      %1386 = vmatprep.mubr.bf16.mxu0 0
      %1387 = vmatmul.mubr.bf16.gmra.mxu0 %v934
      %v1388 = vpop.f32.mrf.mxu0
      %v1389 = vadd.f32 0.0, %v1388
      %v1390 = vpop.f32.mrf.mxu0
      %v1391 = vadd.f32 0.0, %v1390
      %v1392 = vpop.f32.mrf.mxu0
      %v1393 = vadd.f32 0.0, %v1392
      %v1394 = vpop.f32.mrf.mxu0
      %v1395 = vadd.f32 0.0, %v1394
      %1396 = vmatprep.mubr.bf16.mxu0 0
      %1397 = vmatmul.mubr.bf16.gmra.mxu0 %v1286
      %v1398 = vpop.f32.mrf.mxu0
      %v1399 = vadd.f32 0.0, %v1398
      %v1400 = vpop.f32.mrf.mxu0
      %v1401 = vadd.f32 0.0, %v1400
      %v1402 = vpop.f32.mrf.mxu0
      %v1403 = vadd.f32 0.0, %v1402
      %v1404 = vpop.f32.mrf.mxu0
      %v1405 = vadd.f32 0.0, %v1404
      %1406 = vdwg.mxu0
      %v1423 = vrot.slane %v1329, 7
      %v1424 = vrot.slane %v1333, 7
      %v1425 = vsel %vm717, %v1423, %v1424
      %v1426 = vrot.slane %v1339, 7
      %v1427 = vrot.slane %v1343, 7
      %v1428 = vsel %vm717, %v1426, %v1427
      %v1429 = vrot.slane %v1349, 7
      %v1430 = vrot.slane %v1353, 7
      %v1431 = vsel %vm717, %v1429, %v1430
      %v1432 = vrot.slane %v1359, 7
      %v1433 = vrot.slane %v1363, 7
      %v1434 = vsel %vm717, %v1432, %v1433
      %v1435 = vrot.slane %v1369, 7
      %v1436 = vrot.slane %v1373, 7
      %v1437 = vsel %vm717, %v1435, %v1436
      %v1438 = vrot.slane %v1379, 7
      %v1439 = vrot.slane %v1383, 7
      %v1440 = vsel %vm717, %v1438, %v1439
      %v1441 = vrot.slane %v1389, 7
      %v1442 = vrot.slane %v1393, 7
      %v1443 = vsel %vm717, %v1441, %v1442
      %v1444 = vrot.slane %v1399, 7
      %v1445 = vrot.slane %v1403, 7
      %v1446 = vsel %vm717, %v1444, %v1445
      %v1463 = vsel %vm717, 0.0, %v1423
      %v1464 = vsel %vm717, 0.0, %v1426
      %v1465 = vsel %vm717, 0.0, %v1429
      %v1466 = vsel %vm717, 0.0, %v1432
      %v1467 = vsel %vm717, 0.0, %v1435
      %v1468 = vsel %vm717, 0.0, %v1438
      %v1469 = vsel %vm717, 0.0, %v1441
      %v1470 = vsel %vm717, 0.0, %v1444
      %v1471 = vadd.f32 %v1263, %v1463
      %v1472 = vadd.f32 %v1264, %v1425
      %v1473 = vadd.f32 %v1265, %v1464
      %v1474 = vadd.f32 %v1266, %v1428
      %v1475 = vadd.f32 %v1267, %v1465
      %v1476 = vadd.f32 %v1268, %v1431
      %v1477 = vadd.f32 %v1269, %v1466
      %v1478 = vadd.f32 %v1270, %v1434
      %v1479 = vadd.f32 %v1271, %v1467
      %v1480 = vadd.f32 %v1272, %v1437
      %v1481 = vadd.f32 %v1273, %v1468
      %v1482 = vadd.f32 %v1274, %v1440
      %v1483 = vadd.f32 %v1275, %v1469
      %v1484 = vadd.f32 %v1276, %v1443
      %v1485 = vadd.f32 %v1277, %v1470
      %v1486 = vadd.f32 %v1278, %v1446
      %1487 = vrot.lane.b32.xlu0 %v1329, 64
      %v1488 = vpop.permute.xlu0 %1487
      %1489 = vrot.lane.b32.xlu0 %v1333, 64
      %v1490 = vpop.permute.xlu0 %1489
      %1491 = vrot.lane.b32.xlu0 %v1339, 64
      %v1492 = vpop.permute.xlu0 %1491
      %1493 = vrot.lane.b32.xlu0 %v1343, 64
      %v1494 = vpop.permute.xlu0 %1493
      %1495 = vrot.lane.b32.xlu0 %v1349, 64
      %v1496 = vpop.permute.xlu0 %1495
      %1497 = vrot.lane.b32.xlu0 %v1353, 64
      %v1498 = vpop.permute.xlu0 %1497
      %1499 = vrot.lane.b32.xlu0 %v1359, 64
      %v1500 = vpop.permute.xlu0 %1499
      %1501 = vrot.lane.b32.xlu0 %v1363, 64
      %v1502 = vpop.permute.xlu0 %1501
      %1503 = vrot.lane.b32.xlu0 %v1369, 64
      %v1504 = vpop.permute.xlu0 %1503
      %1505 = vrot.lane.b32.xlu0 %v1373, 64
      %v1506 = vpop.permute.xlu0 %1505
      %1507 = vrot.lane.b32.xlu0 %v1379, 64
      %v1508 = vpop.permute.xlu0 %1507
      %1509 = vrot.lane.b32.xlu0 %v1383, 64
      %v1510 = vpop.permute.xlu0 %1509
      %1511 = vrot.lane.b32.xlu0 %v1389, 64
      %v1512 = vpop.permute.xlu0 %1511
      %1513 = vrot.lane.b32.xlu0 %v1393, 64
      %v1514 = vpop.permute.xlu0 %1513
      %1515 = vrot.lane.b32.xlu0 %v1399, 64
      %v1516 = vpop.permute.xlu0 %1515
      %1517 = vrot.lane.b32.xlu0 %v1403, 64
      %v1518 = vpop.permute.xlu0 %1517
      %v1535 = vadd.f32 %v1471, %v1488
      %v1536 = vadd.f32 %v1472, %v1490
      %v1537 = vadd.f32 %v1473, %v1492
      %v1538 = vadd.f32 %v1474, %v1494
      %v1539 = vadd.f32 %v1475, %v1496
      %v1540 = vadd.f32 %v1476, %v1498
      %v1541 = vadd.f32 %v1477, %v1500
      %v1542 = vadd.f32 %v1478, %v1502
      %v1543 = vadd.f32 %v1479, %v1504
      %v1544 = vadd.f32 %v1480, %v1506
      %v1545 = vadd.f32 %v1481, %v1508
      %v1546 = vadd.f32 %v1482, %v1510
      %v1547 = vadd.f32 %v1483, %v1512
      %v1548 = vadd.f32 %v1484, %v1514
      %v1549 = vadd.f32 %v1485, %v1516
      %v1550 = vadd.f32 %v1486, %v1518
      %v1567 = vrot.slane %v1331, 1
      %v1568 = vrot.slane %v1335, 1
      %v1569 = vsel %vm862, %v1567, %v1568
      %v1570 = vrot.slane %v1341, 1
      %v1571 = vrot.slane %v1345, 1
      %v1572 = vsel %vm862, %v1570, %v1571
      %v1573 = vrot.slane %v1351, 1
      %v1574 = vrot.slane %v1355, 1
      %v1575 = vsel %vm862, %v1573, %v1574
      %v1576 = vrot.slane %v1361, 1
      %v1577 = vrot.slane %v1365, 1
      %v1578 = vsel %vm862, %v1576, %v1577
      %v1579 = vrot.slane %v1371, 1
      %v1580 = vrot.slane %v1375, 1
      %v1581 = vsel %vm862, %v1579, %v1580
      %v1582 = vrot.slane %v1381, 1
      %v1583 = vrot.slane %v1385, 1
      %v1584 = vsel %vm862, %v1582, %v1583
      %v1585 = vrot.slane %v1391, 1
      %v1586 = vrot.slane %v1395, 1
      %v1587 = vsel %vm862, %v1585, %v1586
      %v1588 = vrot.slane %v1401, 1
      %v1589 = vrot.slane %v1405, 1
      %v1590 = vsel %vm862, %v1588, %v1589
      %v1607 = vsel %vm862, %v1568, 0.0
      %v1608 = vsel %vm862, %v1571, 0.0
      %v1609 = vsel %vm862, %v1574, 0.0
      %v1610 = vsel %vm862, %v1577, 0.0
      %v1611 = vsel %vm862, %v1580, 0.0
      %v1612 = vsel %vm862, %v1583, 0.0
      %v1613 = vsel %vm862, %v1586, 0.0
      %v1614 = vsel %vm862, %v1589, 0.0
      %v1615 = vadd.f32 %v1535, %v1569
      %v1616 = vadd.f32 %v1536, %v1607
      %v1617 = vadd.f32 %v1537, %v1572
      %v1618 = vadd.f32 %v1538, %v1608
      %v1619 = vadd.f32 %v1539, %v1575
      %v1620 = vadd.f32 %v1540, %v1609
      %v1621 = vadd.f32 %v1541, %v1578
      %v1622 = vadd.f32 %v1542, %v1610
      %v1623 = vadd.f32 %v1543, %v1581
      %v1624 = vadd.f32 %v1544, %v1611
      %v1625 = vadd.f32 %v1545, %v1584
      %v1626 = vadd.f32 %v1546, %v1612
      %v1627 = vadd.f32 %v1547, %v1587
      %v1628 = vadd.f32 %v1548, %v1613
      %v1629 = vadd.f32 %v1549, %v1590
      %v1630 = vadd.f32 %v1550, %v1614
      %v1631 = vld [vmem:[%s4] sm:$0x1]
      %v1633 = vlaneseq
      %v1634 = vshrl.u32 %v1633, 7
      %v1635 = vsub.s32 0, %v1634
      %v1636 = vrot.slane %v1631, %v1635
      %v1638 = vadd.f32 %v1615, %v1636
      %v1639 = vadd.f32 %v1616, %v1636
      %v1640 = vadd.f32 %v1617, %v1636
      %v1641 = vadd.f32 %v1618, %v1636
      %v1642 = vadd.f32 %v1619, %v1636
      %v1643 = vadd.f32 %v1620, %v1636
      %v1644 = vadd.f32 %v1621, %v1636
      %v1645 = vadd.f32 %v1622, %v1636
      %v1646 = vadd.f32 %v1623, %v1636
      %v1647 = vadd.f32 %v1624, %v1636
      %v1648 = vadd.f32 %v1625, %v1636
      %v1649 = vadd.f32 %v1626, %v1636
      %v1650 = vadd.f32 %v1627, %v1636
      %v1651 = vadd.f32 %v1628, %v1636
      %v1652 = vadd.f32 %v1629, %v1636
      %v1653 = vadd.f32 %v1630, %v1636
      %v1654 = vpack.c.bf16 %v1639, %v1638
      %v1655 = vpack.c.bf16 %v1641, %v1640
      %v1656 = vpack.c.bf16 %v1643, %v1642
      %v1657 = vpack.c.bf16 %v1645, %v1644
      %v1658 = vpack.c.bf16 %v1647, %v1646
      %v1659 = vpack.c.bf16 %v1649, %v1648
      %v1660 = vpack.c.bf16 %v1651, %v1650
      %v1661 = vpack.c.bf16 %v1653, %v1652
      %v1670 = vunpack.c.l.b16 %v1654
      %v1671 = vunpack.c.h.b16 %v1654
      %v1672 = vunpack.c.l.b16 %v1655
      %v1673 = vunpack.c.h.b16 %v1655
      %v1674 = vunpack.c.l.b16 %v1656
      %v1675 = vunpack.c.h.b16 %v1656
      %v1676 = vunpack.c.l.b16 %v1657
      %v1677 = vunpack.c.h.b16 %v1657
      %v1678 = vunpack.c.l.b16 %v1658
      %v1679 = vunpack.c.h.b16 %v1658
      %v1680 = vunpack.c.l.b16 %v1659
      %v1681 = vunpack.c.h.b16 %v1659
      %v1682 = vunpack.c.l.b16 %v1660
      %v1683 = vunpack.c.h.b16 %v1660
      %v1684 = vunpack.c.l.b16 %v1661
      %v1685 = vunpack.c.h.b16 %v1661
      %v1686 = vpack.c.b16 %v1670, %v1670
      %v1687 = vpack.c.b16 %v1671, %v1671
      %v1688 = vpack.c.b16 %v1672, %v1672
      %v1689 = vpack.c.b16 %v1673, %v1673
      %v1690 = vpack.c.b16 %v1674, %v1674
      %v1691 = vpack.c.b16 %v1675, %v1675
      %v1692 = vpack.c.b16 %v1676, %v1676
      %v1693 = vpack.c.b16 %v1677, %v1677
      %v1694 = vpack.c.b16 %v1678, %v1678
      %v1695 = vpack.c.b16 %v1679, %v1679
      %v1696 = vpack.c.b16 %v1680, %v1680
      %v1697 = vpack.c.b16 %v1681, %v1681
      %v1698 = vpack.c.b16 %v1682, %v1682
      %v1699 = vpack.c.b16 %v1683, %v1683
      %v1700 = vpack.c.b16 %v1684, %v1684
      %v1701 = vpack.c.b16 %v1685, %v1685
      %vm1718 = vcmask 519168
      %1719 = vst.msk [vmem:[%s485] sm:$0xf] %vm1718, %v1686
      %1720 = vst.msk [vmem:[%s485 + $0x4] sm:$0xf] %vm1718, %v1687
      %1721 = vst.msk [vmem:[%s485 + $0x8] sm:$0xf] %vm1718, %v1688
      %1722 = vst.msk [vmem:[%s485 + $0xc] sm:$0xf] %vm1718, %v1689
      %1723 = vst.msk [vmem:[%s485 + $0x10] sm:$0xf] %vm1718, %v1690
      %1724 = vst.msk [vmem:[%s485 + $0x14] sm:$0xf] %vm1718, %v1691
      %1725 = vst.msk [vmem:[%s485 + $0x18] sm:$0xf] %vm1718, %v1692
      %1726 = vst.msk [vmem:[%s485 + $0x1c] sm:$0xf] %vm1718, %v1693
      %1727 = vst.msk [vmem:[%s485 + $0x20] sm:$0xf] %vm1718, %v1694
      %1728 = vst.msk [vmem:[%s485 + $0x24] sm:$0xf] %vm1718, %v1695
      %1729 = vst.msk [vmem:[%s485 + $0x28] sm:$0xf] %vm1718, %v1696
      %1730 = vst.msk [vmem:[%s485 + $0x2c] sm:$0xf] %vm1718, %v1697
      %1731 = vst.msk [vmem:[%s485 + $0x30] sm:$0xf] %vm1718, %v1698
      %1732 = vst.msk [vmem:[%s485 + $0x34] sm:$0xf] %vm1718, %v1699
      %1733 = vst.msk [vmem:[%s485 + $0x38] sm:$0xf] %vm1718, %v1700
      %1734 = vst.msk [vmem:[%s485 + $0x3c] sm:$0xf] %vm1718, %v1701
      %vm1735 = vcmask 523264
      %v1736 = vsel %vm1735, %v1638, 0.0
      %v1737 = vsel %vm1735, %v1639, 0.0
      %v1738 = vadd.f32 %v1736, %v1737
      %v1739 = vsel %vm1735, %v1640, 0.0
      %v1740 = vadd.f32 %v1738, %v1739
      %v1741 = vsel %vm1735, %v1641, 0.0
      %v1742 = vadd.f32 %v1740, %v1741
      %v1743 = vsel %vm1735, %v1642, 0.0
      %v1744 = vadd.f32 %v1742, %v1743
      %v1745 = vsel %vm1735, %v1643, 0.0
      %v1746 = vadd.f32 %v1744, %v1745
      %v1747 = vsel %vm1735, %v1644, 0.0
      %v1748 = vadd.f32 %v1746, %v1747
      %v1749 = vsel %vm1735, %v1645, 0.0
      %v1750 = vadd.f32 %v1748, %v1749
      %v1751 = vsel %vm1735, %v1646, 0.0
      %v1752 = vadd.f32 %v1750, %v1751
      %v1753 = vsel %vm1735, %v1647, 0.0
      %v1754 = vadd.f32 %v1752, %v1753
      %v1755 = vsel %vm1735, %v1648, 0.0
      %v1756 = vadd.f32 %v1754, %v1755
      %v1757 = vsel %vm1735, %v1649, 0.0
      %v1758 = vadd.f32 %v1756, %v1757
      %v1759 = vsel %vm1735, %v1650, 0.0
      %v1760 = vadd.f32 %v1758, %v1759
      %v1761 = vsel %vm1735, %v1651, 0.0
      %v1762 = vadd.f32 %v1760, %v1761
      %v1763 = vsel %vm1735, %v1652, 0.0
      %v1764 = vadd.f32 %v1762, %v1763
      %v1765 = vsel %vm1735, %v1653, 0.0
      %v1766 = vadd.f32 %v1764, %v1765
      %v1767 = vrot.slane %v1766, 4
      %v1768 = vadd.f32 %v1766, %v1767
      %v1769 = vrot.slane %v1768, 2
      %v1770 = vadd.f32 %v1768, %v1769
      %v1771 = vrot.slane %v1770, 1
      %v1772 = vadd.f32 %v1770, %v1771
      %v1773 = vmul.f32 %v1638, %v1638
      %v1774 = vmul.f32 %v1639, %v1639
      %v1775 = vmul.f32 %v1640, %v1640
      %v1776 = vmul.f32 %v1641, %v1641
      %v1777 = vmul.f32 %v1642, %v1642
      %v1778 = vmul.f32 %v1643, %v1643
      %v1779 = vmul.f32 %v1644, %v1644
      %v1780 = vmul.f32 %v1645, %v1645
      %v1781 = vmul.f32 %v1646, %v1646
      %v1782 = vmul.f32 %v1647, %v1647
      %v1783 = vmul.f32 %v1648, %v1648
      %v1784 = vmul.f32 %v1649, %v1649
      %v1785 = vmul.f32 %v1650, %v1650
      %v1786 = vmul.f32 %v1651, %v1651
      %v1787 = vmul.f32 %v1652, %v1652
      %v1788 = vmul.f32 %v1653, %v1653
      %v1789 = vsel %vm1735, %v1773, 0.0
      %v1790 = vsel %vm1735, %v1774, 0.0
      %v1791 = vadd.f32 %v1789, %v1790
      %v1792 = vsel %vm1735, %v1775, 0.0
      %v1793 = vadd.f32 %v1791, %v1792
      %v1794 = vsel %vm1735, %v1776, 0.0
      %v1795 = vadd.f32 %v1793, %v1794
      %v1796 = vsel %vm1735, %v1777, 0.0
      %v1797 = vadd.f32 %v1795, %v1796
      %v1798 = vsel %vm1735, %v1778, 0.0
      %v1799 = vadd.f32 %v1797, %v1798
      %v1800 = vsel %vm1735, %v1779, 0.0
      %v1801 = vadd.f32 %v1799, %v1800
      %v1802 = vsel %vm1735, %v1780, 0.0
      %v1803 = vadd.f32 %v1801, %v1802
      %v1804 = vsel %vm1735, %v1781, 0.0
      %v1805 = vadd.f32 %v1803, %v1804
      %v1806 = vsel %vm1735, %v1782, 0.0
      %v1807 = vadd.f32 %v1805, %v1806
      %v1808 = vsel %vm1735, %v1783, 0.0
      %v1809 = vadd.f32 %v1807, %v1808
      %v1810 = vsel %vm1735, %v1784, 0.0
      %v1811 = vadd.f32 %v1809, %v1810
      %v1812 = vsel %vm1735, %v1785, 0.0
      %v1813 = vadd.f32 %v1811, %v1812
      %v1814 = vsel %vm1735, %v1786, 0.0
      %v1815 = vadd.f32 %v1813, %v1814
      %v1816 = vsel %vm1735, %v1787, 0.0
      %v1817 = vadd.f32 %v1815, %v1816
      %v1818 = vsel %vm1735, %v1788, 0.0
      %v1819 = vadd.f32 %v1817, %v1818
      %v1820 = vrot.slane %v1819, 4
      %v1821 = vadd.f32 %v1819, %v1820
      %v1822 = vrot.slane %v1821, 2
      %v1823 = vadd.f32 %v1821, %v1822
      %v1824 = vrot.slane %v1823, 1
      %v1825 = vadd.f32 %v1823, %v1824
      %v1826 = vsel %vm717, %v1772, %v1825
      %vm1827 = vcmask 517120
      %1828 = vst.msk [vmem:[%s494] sm:$0x3] %vm1827, %v1826
      %s1829 = smul.u32 8, %s25
      %p1830 = scmp.lt.s32.totalorder %s24, 1
      %s1831 = scalar_select %p1830, %s24, 1
      %p1832 = scmp.lt.s32.totalorder %s1829, 15
      %s1833 = scalar_select %p1832, %s1829, 15
      %s1834 = smul.addr %s1833, 2
      %s1835 = smul.addr %s1831, 32
      %s1836 = sadd.s32 %s1834, %s1835
      %s1837 = smul.addr %s1836, 4
      %s1838 = scalar_lea.vmem %s7, %s1837
      %p1839 = scmp.lt.s32.totalorder %s24, 1
      %s1840 = scalar_select %p1839, %s24, 1
      %p1841 = scmp.lt.s32.totalorder %s25, 1
      %s1842 = scalar_select %p1841, %s25, 1
      %s1843 = smul.addr %s1840, 2
      %s1844 = sadd.s32 %s1842, %s1843
      %s1845 = smul.addr %s1844, 2
      %s1846 = scalar_lea.vmem %s8, %s1845
      // Predicated region
      $region49: #{dehaze_generator.4} parent=47 // pred_check
        %p1847 = pneg %p236
      $region50: #{dehaze_generator.4} parent=47 // pred_check_branch
        %1849 = sbr.rel (%p1847) target = $region52
      $region51: #{dehaze_generator.4} parent=47 // pred_region
        %s1850 = smul.u32 8, %s25
      $region52: #{dehaze_generator.4} parent=47 // pred_fallthru
        _
      // Predicated region
      $region53: #{dehaze_generator.4} parent=47 // pred_check
        %p1851 = pneg %p264
      $region54: #{dehaze_generator.4} parent=47 // pred_check_branch
        %1853 = sbr.rel (%p1851) target = $region56
      $region55: #{dehaze_generator.4} parent=47 // pred_region
        _
      $region56: #{dehaze_generator.4} parent=47 // pred_fallthru
        _
    $region48: #{dehaze_generator.4} parent=5 // pred_fallthru
      _
    %p1854 = scmp.le.s32.totalorder 2, %s15
    // Predicated region
    $region57: #{dehaze_generator.4} parent=5 // pred_check
      %p1855 = pneg %p1854
    $region58: #{dehaze_generator.4} parent=5 // pred_check_branch
      %1857 = sbr.rel (%p1855) target = $region60
    $region59: #{dehaze_generator.4} parent=5 // pred_region
      %s1858 = ssub.s32 %s15, 2
      // Predicated region
      $region61: #{dehaze_generator.4} parent=59 // pred_check
        %p1859 = pneg %p242
      $region62: #{dehaze_generator.4} parent=59 // pred_check_branch
        %1861 = sbr.rel (%p1859) target = $region64
      $region63: #{dehaze_generator.4} parent=59 // pred_region
        %s1862 = smul.u32 8, %s27
        %p1863 = scmp.lt.s32.totalorder %s26, 1
        %s1864 = scalar_select %p1863, %s26, 1
        %p1865 = scmp.lt.s32.totalorder %s1862, 15
        %s1866 = scalar_select %p1865, %s1862, 15
        %s1867 = smul.addr %s1866, 2
        %s1868 = smul.addr %s1864, 32
        %s1869 = sadd.s32 %s1867, %s1868
        %s1870 = smul.addr %s1869, 4
        %s1871 = scalar_lea.vmem %s7, %s1870
      $region64: #{dehaze_generator.4} parent=59 // pred_fallthru
        _
      // Predicated region
      $region65: #{dehaze_generator.4} parent=59 // pred_check
        %p1872 = pneg %p270
      $region66: #{dehaze_generator.4} parent=59 // pred_check_branch
        %1874 = sbr.rel (%p1872) target = $region68
      $region67: #{dehaze_generator.4} parent=59 // pred_region
        %p1875 = scmp.lt.s32.totalorder %s26, 1
        %s1876 = scalar_select %p1875, %s26, 1
        %p1877 = scmp.lt.s32.totalorder %s27, 1
        %s1878 = scalar_select %p1877, %s27, 1
        %s1879 = smul.addr %s1876, 2
        %s1880 = sadd.s32 %s1878, %s1879
        %s1881 = smul.addr %s1880, 2
        %s1882 = scalar_lea.vmem %s8, %s1881
      $region68: #{dehaze_generator.4} parent=59 // pred_fallthru
        _
    $region60: #{dehaze_generator.4} parent=5 // pred_fallthru
      _
  $region6: #{dehaze_generator.4} parent=0 // loop_footer
    %s19 = sadd.s32 1, %s15
  $region7: #{dehaze_generator.4} parent=0 // loop_footer_branch
    %14 = sbr.rel target = $region3
  $region8: #{dehaze_generator.4} parent=0 // loop_exit
    _

// kernel: dehaze_generator.5
$region0: #{dehaze_generator.5}
  #allocation0 [shape = 'u32[]', space=smem, size = 0x4, offset = 0x4, fixed_abs, tag = 'smem constant byte address 0x4 - core index']
  #allocation1 [shape = 'u32[144,128]{1,0:T(1,128)}', space=vmem, size = 0x12000, scoped, tag = 'internal scratch']
  %s0 = inlined_call_operand.vmem [shape: bf16[2,16,16,64], index: 0, kind: input, shape index: {}, may-alias: {0,1,2}]
  %s1 = inlined_call_operand.vmem [shape: bf16[2,16,16,64], index: 1, kind: input, shape index: {}, may-alias: {0,1,2}]
  %s2 = inlined_call_operand.vmem [shape: bf16[2,16,16,64], index: 2, kind: input, shape index: {}, may-alias: {0,1,2}]
  %s3 = inlined_call_operand.vmem [shape: bf16[3,64,384], index: 3, kind: input, shape index: {}]
  %s4 = inlined_call_operand.vmem [shape: f32[1,128], index: 4, kind: input, shape index: {}]
  %s5 = inlined_call_operand.vmem [shape: f32[1,64], index: 5, kind: input, shape index: {}]
  %s6 = inlined_call_operand.vmem [shape: f32[1,64], index: 6, kind: input, shape index: {}]
  %s7 = inlined_call_operand.vmem [shape: bf16[2,16,16,128], index: 7, kind: output, shape index: {0}]
  %s8 = inlined_call_operand.vmem [shape: f32[2,2,2,128], index: 8, kind: output, shape index: {1}]
  %9 = xla_tuple %s7, %s8
  %s10 = sld [smem:[#allocation0]]
  $region69: #{dehaze_generator.5} parent=0
    _
  %s12 = ssub.s32 1, %s10
  %s13 = scalar_select 0, %s12, %s10
  loop: start=0, step=1, limit=6
  $region2: #{dehaze_generator.5} parent=0 // loop_pre_header
    _
  $region3: #{dehaze_generator.5} parent=0 // loop_header
    %s15 = sphi 0, %s19
    %p16 = scmp.ge.s32.totalorder %s15, 6
    %s22 = sphi 0, %s34
    %s23 = sphi 0, %s30
    %s24 = sphi 0, %s22
    %s25 = sphi 0, %s23
    %s26 = sphi 0, %s24
    %s27 = sphi 0, %s25
    %s39 = sphi 0, %s41
    %s42 = sphi 0, %s39
    %s43 = sphi 0, %s42
    %s59 = sphi 0, %s43
    %s75 = sphi 0, %s77
    %s78 = sphi 0, %s75
    %s79 = sphi 0, %s78
    %s95 = sphi 0, %s79
    %s111 = sphi 0, %s113
    %s114 = sphi 0, %s111
    %s115 = sphi 0, %s114
    %s131 = sphi 0, %s115
    %s135 = sphi 0, %s135
    %s137 = sphi 0, %s135
    %s138 = sphi 0, %s137
    %s152 = sphi 0, %s138
    %s156 = sphi 0, %s156
    %s158 = sphi 0, %s156
    %s159 = sphi 0, %s158
    %s173 = sphi 0, %s159
    %s177 = sphi 0, %s177
    %s179 = sphi 0, %s177
    %s180 = sphi 0, %s179
    %s194 = sphi 0, %s180
    %s198 = sphi 0, %s198
    %s200 = sphi 0, %s198
    %s201 = sphi 0, %s200
    %s215 = sphi 0, %s201
    %s223 = sphi 0, %s225
    %s226 = sphi 0, %s223
    %s227 = sphi 0, %s226
    %s243 = sphi 0, %s227
    %s251 = sphi 0, %s253
    %s254 = sphi 0, %s251
    %s255 = sphi 0, %s254
    %s271 = sphi 0, %s255
  $region4: #{dehaze_generator.5} parent=0 // loop_header_branch
    %18 = sbr.rel (%p16) target = $region8
  $region5: #{dehaze_generator.5} parent=0 // loop_body
    %s20 = ssub.s32 %s15, 1
    %s21 = ssub.s32 %s15, 2
    %s28 = sadd.s32 1, %s23
    %p29 = scmp.ge.s32.totalorder %s28, 2
    %s30 = scalar_select %p29, 0, %s28
    %s31 = sadd.s32 1, %s22
    %s32 = scalar_select %p29, %s31, %s22
    %p33 = scmp.ge.s32.totalorder %s32, 2
    %s34 = scalar_select %p33, 0, %s32
    %s35 = ssub.s32 %s22, %s34
    %s36 = ssub.s32 %s23, %s30
    %s37 = sor.u32 %s35, %s36
    %p38 = scmp.eq.s32.totalorder %s37, 0
    %s40 = sadd.s32 %s39, 1
    %s41 = scalar_select %p38, %s39, %s40
    %p44 = pneg %p38
    %p45 = scmp.eq.s32.totalorder %s15, 3
    %p46 = por %p44, %p45
    %p47 = scmp.ne.s32.totalorder %s39, %s42
    %p48 = scmp.eq.s32.totalorder %s15, 0
    %p49 = por %p47, %p48
    %p50 = scmp.ne.s32.totalorder %s39, %s42
    %p51 = scmp.eq.s32.totalorder %s20, 3
    %p52 = por %p50, %p51
    %p53 = scmp.ne.s32.totalorder %s42, %s43
    %p54 = scmp.eq.s32.totalorder %s20, 0
    %p55 = por %p53, %p54
    %p56 = scmp.ne.s32.totalorder %s42, %s43
    %p57 = scmp.eq.s32.totalorder %s21, 3
    %p58 = por %p56, %p57
    %p60 = scmp.ne.s32.totalorder %s43, %s59
    %p61 = scmp.eq.s32.totalorder %s21, 0
    %p62 = por %p60, %p61
    %s63 = smul.u32 %s23, 8
    %s64 = ssub.s32 %s63, 1
    %p65 = scmp.gt.s32.totalorder %s64, 0
    %s66 = scalar_select %p65, %s64, 0
    %s67 = smul.u32 %s30, 8
    %s68 = ssub.s32 %s67, 1
    %p69 = scmp.gt.s32.totalorder %s68, 0
    %s70 = scalar_select %p69, %s68, 0
    %s71 = ssub.s32 %s22, %s34
    %s72 = ssub.s32 %s66, %s70
    %s73 = sor.u32 %s71, %s72
    %p74 = scmp.eq.s32.totalorder %s73, 0
    %s76 = sadd.s32 %s75, 1
    %s77 = scalar_select %p74, %s75, %s76
    %p80 = pneg %p74
    %p81 = scmp.eq.s32.totalorder %s15, 3
    %p82 = por %p80, %p81
    %p83 = scmp.ne.s32.totalorder %s75, %s78
    %p84 = scmp.eq.s32.totalorder %s15, 0
    %p85 = por %p83, %p84
    %p86 = scmp.ne.s32.totalorder %s75, %s78
    %p87 = scmp.eq.s32.totalorder %s20, 3
    %p88 = por %p86, %p87
    %p89 = scmp.ne.s32.totalorder %s78, %s79
    %p90 = scmp.eq.s32.totalorder %s20, 0
    %p91 = por %p89, %p90
    %p92 = scmp.ne.s32.totalorder %s78, %s79
    %p93 = scmp.eq.s32.totalorder %s21, 3
    %p94 = por %p92, %p93
    %p96 = scmp.ne.s32.totalorder %s79, %s95
    %p97 = scmp.eq.s32.totalorder %s21, 0
    %p98 = por %p96, %p97
    %s99 = sadd.s32 %s23, 1
    %s100 = smul.u32 %s99, 8
    %p101 = scmp.lt.s32.totalorder %s100, 15
    %s102 = scalar_select %p101, %s100, 15
    %s103 = sadd.s32 %s30, 1
    %s104 = smul.u32 %s103, 8
    %p105 = scmp.lt.s32.totalorder %s104, 15
    %s106 = scalar_select %p105, %s104, 15
    %s107 = ssub.s32 %s22, %s34
    %s108 = ssub.s32 %s102, %s106
    %s109 = sor.u32 %s107, %s108
    %p110 = scmp.eq.s32.totalorder %s109, 0
    %s112 = sadd.s32 %s111, 1
    %s113 = scalar_select %p110, %s111, %s112
    %p116 = pneg %p110
    %p117 = scmp.eq.s32.totalorder %s15, 3
    %p118 = por %p116, %p117
    %p119 = scmp.ne.s32.totalorder %s111, %s114
    %p120 = scmp.eq.s32.totalorder %s15, 0
    %p121 = por %p119, %p120
    %p122 = scmp.ne.s32.totalorder %s111, %s114
    %p123 = scmp.eq.s32.totalorder %s20, 3
    %p124 = por %p122, %p123
    %p125 = scmp.ne.s32.totalorder %s114, %s115
    %p126 = scmp.eq.s32.totalorder %s20, 0
    %p127 = por %p125, %p126
    %p128 = scmp.ne.s32.totalorder %s114, %s115
    %p129 = scmp.eq.s32.totalorder %s21, 3
    %p130 = por %p128, %p129
    %p132 = scmp.ne.s32.totalorder %s115, %s131
    %p133 = scmp.eq.s32.totalorder %s21, 0
    %p134 = por %p132, %p133
    %s136 = sadd.s32 %s135, 1
    %p139 = scmp.eq.s32.totalorder %s15, 3
    %p140 = scmp.ne.s32.totalorder %s135, %s137
    %p141 = scmp.eq.s32.totalorder %s15, 0
    %p142 = por %p140, %p141
    %p143 = scmp.ne.s32.totalorder %s135, %s137
    %p144 = scmp.eq.s32.totalorder %s20, 3
    %p145 = por %p143, %p144
    %p146 = scmp.ne.s32.totalorder %s137, %s138
    %p147 = scmp.eq.s32.totalorder %s20, 0
    %p148 = por %p146, %p147
    %p149 = scmp.ne.s32.totalorder %s137, %s138
    %p150 = scmp.eq.s32.totalorder %s21, 3
    %p151 = por %p149, %p150
    %p153 = scmp.ne.s32.totalorder %s138, %s152
    %p154 = scmp.eq.s32.totalorder %s21, 0
    %p155 = por %p153, %p154
    %s157 = sadd.s32 %s156, 1
    %p160 = scmp.eq.s32.totalorder %s15, 3
    %p161 = scmp.ne.s32.totalorder %s156, %s158
    %p162 = scmp.eq.s32.totalorder %s15, 0
    %p163 = por %p161, %p162
    %p164 = scmp.ne.s32.totalorder %s156, %s158
    %p165 = scmp.eq.s32.totalorder %s20, 3
    %p166 = por %p164, %p165
    %p167 = scmp.ne.s32.totalorder %s158, %s159
    %p168 = scmp.eq.s32.totalorder %s20, 0
    %p169 = por %p167, %p168
    %p170 = scmp.ne.s32.totalorder %s158, %s159
    %p171 = scmp.eq.s32.totalorder %s21, 3
    %p172 = por %p170, %p171
    %p174 = scmp.ne.s32.totalorder %s159, %s173
    %p175 = scmp.eq.s32.totalorder %s21, 0
    %p176 = por %p174, %p175
    %s178 = sadd.s32 %s177, 1
    %p181 = scmp.eq.s32.totalorder %s15, 3
    %p182 = scmp.ne.s32.totalorder %s177, %s179
    %p183 = scmp.eq.s32.totalorder %s15, 0
    %p184 = por %p182, %p183
    %p185 = scmp.ne.s32.totalorder %s177, %s179
    %p186 = scmp.eq.s32.totalorder %s20, 3
    %p187 = por %p185, %p186
    %p188 = scmp.ne.s32.totalorder %s179, %s180
    %p189 = scmp.eq.s32.totalorder %s20, 0
    %p190 = por %p188, %p189
    %p191 = scmp.ne.s32.totalorder %s179, %s180
    %p192 = scmp.eq.s32.totalorder %s21, 3
    %p193 = por %p191, %p192
    %p195 = scmp.ne.s32.totalorder %s180, %s194
    %p196 = scmp.eq.s32.totalorder %s21, 0
    %p197 = por %p195, %p196
    %s199 = sadd.s32 %s198, 1
    %p202 = scmp.eq.s32.totalorder %s15, 3
    %p203 = scmp.ne.s32.totalorder %s198, %s200
    %p204 = scmp.eq.s32.totalorder %s15, 0
    %p205 = por %p203, %p204
    %p206 = scmp.ne.s32.totalorder %s198, %s200
    %p207 = scmp.eq.s32.totalorder %s20, 3
    %p208 = por %p206, %p207
    %p209 = scmp.ne.s32.totalorder %s200, %s201
    %p210 = scmp.eq.s32.totalorder %s20, 0
    %p211 = por %p209, %p210
    %p212 = scmp.ne.s32.totalorder %s200, %s201
    %p213 = scmp.eq.s32.totalorder %s21, 3
    %p214 = por %p212, %p213
    %p216 = scmp.ne.s32.totalorder %s201, %s215
    %p217 = scmp.eq.s32.totalorder %s21, 0
    %p218 = por %p216, %p217
    %s219 = ssub.s32 %s22, %s34
    %s220 = ssub.s32 %s23, %s30
    %s221 = sor.u32 %s219, %s220
    %p222 = scmp.eq.s32.totalorder %s221, 0
    %s224 = sadd.s32 %s223, 1
    %s225 = scalar_select %p222, %s223, %s224
    %p228 = pneg %p222
    %p229 = scmp.eq.s32.totalorder %s15, 3
    %p230 = por %p228, %p229
    %p231 = scmp.ne.s32.totalorder %s223, %s226
    %p232 = scmp.eq.s32.totalorder %s15, 0
    %p233 = por %p231, %p232
    %p234 = scmp.ne.s32.totalorder %s223, %s226
    %p235 = scmp.eq.s32.totalorder %s20, 3
    %p236 = por %p234, %p235
    %p237 = scmp.ne.s32.totalorder %s226, %s227
    %p238 = scmp.eq.s32.totalorder %s20, 0
    %p239 = por %p237, %p238
    %p240 = scmp.ne.s32.totalorder %s226, %s227
    %p241 = scmp.eq.s32.totalorder %s21, 3
    %p242 = por %p240, %p241
    %p244 = scmp.ne.s32.totalorder %s227, %s243
    %p245 = scmp.eq.s32.totalorder %s21, 0
    %p246 = por %p244, %p245
    %s247 = ssub.s32 %s22, %s34
    %s248 = ssub.s32 %s23, %s30
    %s249 = sor.u32 %s247, %s248
    %p250 = scmp.eq.s32.totalorder %s249, 0
    %s252 = sadd.s32 %s251, 1
    %s253 = scalar_select %p250, %s251, %s252
    %p256 = pneg %p250
    %p257 = scmp.eq.s32.totalorder %s15, 3
    %p258 = por %p256, %p257
    %p259 = scmp.ne.s32.totalorder %s251, %s254
    %p260 = scmp.eq.s32.totalorder %s15, 0
    %p261 = por %p259, %p260
    %p262 = scmp.ne.s32.totalorder %s251, %s254
    %p263 = scmp.eq.s32.totalorder %s20, 3
    %p264 = por %p262, %p263
    %p265 = scmp.ne.s32.totalorder %s254, %s255
    %p266 = scmp.eq.s32.totalorder %s20, 0
    %p267 = por %p265, %p266
    %p268 = scmp.ne.s32.totalorder %s254, %s255
    %p269 = scmp.eq.s32.totalorder %s21, 3
    %p270 = por %p268, %p269
    %p272 = scmp.ne.s32.totalorder %s255, %s271
    %p273 = scmp.eq.s32.totalorder %s21, 0
    %p274 = por %p272, %p273
    %p275 = scmp.le.s32.totalorder 1, %s15
    %p276 = scmp.lt.s32.totalorder %s15, 5
    %p277 = pnand %p275, %p276
    %p278 = pneg %p277
    // Predicated region
    $region9: #{dehaze_generator.5} parent=5 // pred_check
      _
    $region10: #{dehaze_generator.5} parent=5 // pred_check_branch
      %280 = sbr.rel (%p277) target = $region12
    $region11: #{dehaze_generator.5} parent=5 // pred_region
      %s281 = ssub.s32 %s15, 1
      // Predicated region
      $region13: #{dehaze_generator.5} parent=11 // pred_check
        %p282 = pneg %p148
      $region14: #{dehaze_generator.5} parent=11 // pred_check_branch
        %284 = sbr.rel (%p282) target = $region16
      $region15: #{dehaze_generator.5} parent=11 // pred_region
        _
      $region16: #{dehaze_generator.5} parent=11 // pred_fallthru
        _
      // Predicated region
      $region17: #{dehaze_generator.5} parent=11 // pred_check
        %p285 = pneg %p169
      $region18: #{dehaze_generator.5} parent=11 // pred_check_branch
        %287 = sbr.rel (%p285) target = $region20
      $region19: #{dehaze_generator.5} parent=11 // pred_region
        _
      $region20: #{dehaze_generator.5} parent=11 // pred_fallthru
        _
      // Predicated region
      $region21: #{dehaze_generator.5} parent=11 // pred_check
        %p288 = pneg %p190
      $region22: #{dehaze_generator.5} parent=11 // pred_check_branch
        %290 = sbr.rel (%p288) target = $region24
      $region23: #{dehaze_generator.5} parent=11 // pred_region
        _
      $region24: #{dehaze_generator.5} parent=11 // pred_fallthru
        _
      // Predicated region
      $region25: #{dehaze_generator.5} parent=11 // pred_check
        %p291 = pneg %p211
      $region26: #{dehaze_generator.5} parent=11 // pred_check_branch
        %293 = sbr.rel (%p291) target = $region28
      $region27: #{dehaze_generator.5} parent=11 // pred_region
        _
      $region28: #{dehaze_generator.5} parent=11 // pred_fallthru
        _
    $region12: #{dehaze_generator.5} parent=5 // pred_fallthru
      _
    %p294 = scmp.lt.s32.totalorder %s15, 4
    // Predicated region
    $region29: #{dehaze_generator.5} parent=5 // pred_check
      %p295 = pneg %p294
    $region30: #{dehaze_generator.5} parent=5 // pred_check_branch
      %297 = sbr.rel (%p295) target = $region32
    $region31: #{dehaze_generator.5} parent=5 // pred_region
      // Predicated region
      $region33: #{dehaze_generator.5} parent=31 // pred_check
        %p298 = pneg %p49
      $region34: #{dehaze_generator.5} parent=31 // pred_check_branch
        %300 = sbr.rel (%p298) target = $region36
      $region35: #{dehaze_generator.5} parent=31 // pred_region
        %s301 = smul.u32 8, %s23
        %p302 = scmp.lt.s32.totalorder %s22, 1
        %s303 = scalar_select %p302, %s22, 1
        %p304 = scmp.lt.s32.totalorder %s301, 15
        %s305 = scalar_select %p304, %s301, 15
        %s306 = smul.addr %s305, 2
        %s307 = smul.addr %s303, 32
        %s308 = sadd.s32 %s306, %s307
        %s309 = smul.addr %s308, 4
        %s310 = scalar_lea.vmem %s0, %s309
        %s311 = smul.u32 8, %s23
      $region36: #{dehaze_generator.5} parent=31 // pred_fallthru
        _
      // Predicated region
      $region37: #{dehaze_generator.5} parent=31 // pred_check
        %p312 = pneg %p85
      $region38: #{dehaze_generator.5} parent=31 // pred_check_branch
        %314 = sbr.rel (%p312) target = $region40
      $region39: #{dehaze_generator.5} parent=31 // pred_region
        %s315 = smul.u32 %s23, 8
        %s316 = ssub.s32 %s315, 1
        %p317 = scmp.gt.s32.totalorder %s316, 0
        %s318 = scalar_select %p317, %s316, 0
        %p319 = scmp.lt.s32.totalorder %s22, 1
        %s320 = scalar_select %p319, %s22, 1
        %p321 = scmp.lt.s32.totalorder %s318, 15
        %s322 = scalar_select %p321, %s318, 15
        %s323 = smul.addr %s322, 2
        %s324 = smul.addr %s320, 32
        %s325 = sadd.s32 %s323, %s324
        %s326 = smul.addr %s325, 4
        %s327 = scalar_lea.vmem %s1, %s326
        %s328 = smul.u32 %s23, 8
        %s329 = ssub.s32 %s328, 1
        %p330 = scmp.gt.s32.totalorder %s329, 0
        %s331 = scalar_select %p330, %s329, 0
      $region40: #{dehaze_generator.5} parent=31 // pred_fallthru
        _
      // Predicated region
      $region41: #{dehaze_generator.5} parent=31 // pred_check
        %p332 = pneg %p121
      $region42: #{dehaze_generator.5} parent=31 // pred_check_branch
        %334 = sbr.rel (%p332) target = $region44
      $region43: #{dehaze_generator.5} parent=31 // pred_region
        %s335 = sadd.s32 %s23, 1
        %s336 = smul.u32 %s335, 8
        %p337 = scmp.lt.s32.totalorder %s336, 15
        %s338 = scalar_select %p337, %s336, 15
        %p339 = scmp.lt.s32.totalorder %s22, 1
        %s340 = scalar_select %p339, %s22, 1
        %p341 = scmp.lt.s32.totalorder %s338, 15
        %s342 = scalar_select %p341, %s338, 15
        %s343 = smul.addr %s342, 2
        %s344 = smul.addr %s340, 32
        %s345 = sadd.s32 %s343, %s344
        %s346 = smul.addr %s345, 4
        %s347 = scalar_lea.vmem %s2, %s346
        %s348 = sadd.s32 %s23, 1
        %s349 = smul.u32 %s348, 8
        %p350 = scmp.lt.s32.totalorder %s349, 15
        %s351 = scalar_select %p350, %s349, 15
      $region44: #{dehaze_generator.5} parent=31 // pred_fallthru
        _
    $region32: #{dehaze_generator.5} parent=5 // pred_fallthru
      _
    %p352 = scmp.le.s32.totalorder 1, %s15
    %p353 = scmp.lt.s32.totalorder %s15, 5
    %p354 = pnand %p352, %p353
    %p355 = pneg %p354
    // Predicated region
    $region45: #{dehaze_generator.5} parent=5 // pred_check
      _
    $region46: #{dehaze_generator.5} parent=5 // pred_check_branch
      %357 = sbr.rel (%p354) target = $region48
    $region47: #{dehaze_generator.5} parent=5 // pred_region
      %s358 = ssub.s32 %s15, 1
      %s359 = smul.u32 8, %s25
      %p360 = scmp.lt.s32.totalorder %s24, 1
      %s361 = scalar_select %p360, %s24, 1
      %p362 = scmp.lt.s32.totalorder %s359, 15
      %s363 = scalar_select %p362, %s359, 15
      %s364 = smul.addr %s363, 2
      %s365 = smul.addr %s361, 32
      %s366 = sadd.s32 %s364, %s365
      %s367 = smul.addr %s366, 4
      %s368 = scalar_lea.vmem %s0, %s367
      %p369 = pneg %p55
      %p370 = pneg %p52
      %s371 = smul.u32 %s25, 8
      %s372 = ssub.s32 %s371, 1
      %p373 = scmp.gt.s32.totalorder %s372, 0
      %s374 = scalar_select %p373, %s372, 0
      %p375 = scmp.lt.s32.totalorder %s24, 1
      %s376 = scalar_select %p375, %s24, 1
      %p377 = scmp.lt.s32.totalorder %s374, 15
      %s378 = scalar_select %p377, %s374, 15
      %s379 = smul.addr %s378, 2
      %s380 = smul.addr %s376, 32
      %s381 = sadd.s32 %s379, %s380
      %s382 = smul.addr %s381, 4
      %s383 = scalar_lea.vmem %s1, %s382
      %p384 = pneg %p91
      %p385 = pneg %p88
      %s386 = sadd.s32 %s25, 1
      %s387 = smul.u32 %s386, 8
      %p388 = scmp.lt.s32.totalorder %s387, 15
      %s389 = scalar_select %p388, %s387, 15
      %p390 = scmp.lt.s32.totalorder %s24, 1
      %s391 = scalar_select %p390, %s24, 1
      %p392 = scmp.lt.s32.totalorder %s389, 15
      %s393 = scalar_select %p392, %s389, 15
      %s394 = smul.addr %s393, 2
      %s395 = smul.addr %s391, 32
      %s396 = sadd.s32 %s394, %s395
      %s397 = smul.addr %s396, 4
      %s398 = scalar_lea.vmem %s2, %s397
      %p399 = pneg %p127
      %p400 = pneg %p124
      %p401 = pneg %p148
      %p402 = pneg %p145
      %p403 = pneg %p169
      %p404 = pneg %p166
      %p405 = pneg %p190
      %p406 = pneg %p187
      %p407 = pneg %p211
      %p408 = pneg %p208
      %p409 = pneg %p239
      %p410 = pneg %p236
      %s411 = smul.u32 8, %s25
      %p412 = scmp.lt.s32.totalorder %s24, 1
      %s413 = scalar_select %p412, %s24, 1
      %p414 = scmp.lt.s32.totalorder %s411, 15
      %s415 = scalar_select %p414, %s411, 15
      %s416 = smul.addr %s415, 2
      %s417 = smul.addr %s413, 32
      %s418 = sadd.s32 %s416, %s417
      %s419 = smul.addr %s418, 4
      %s420 = scalar_lea.vmem %s7, %s419
      %p421 = pneg %p267
      %p422 = pneg %p264
      %p423 = scmp.lt.s32.totalorder %s24, 1
      %s424 = scalar_select %p423, %s24, 1
      %p425 = scmp.lt.s32.totalorder %s25, 1
      %s426 = scalar_select %p425, %s25, 1
      %s427 = smul.addr %s424, 2
      %s428 = sadd.s32 %s426, %s427
      %s429 = smul.addr %s428, 2
      %s430 = scalar_lea.vmem %s8, %s429
      %s431 = smul.u32 8, %s25
      %p432 = scmp.lt.s32.totalorder %s24, 1
      %s433 = scalar_select %p432, %s24, 1
      %p434 = scmp.lt.s32.totalorder %s431, 15
      %s435 = scalar_select %p434, %s431, 15
      %s436 = smul.addr %s435, 2
      %s437 = smul.addr %s433, 32
      %s438 = sadd.s32 %s436, %s437
      %s439 = smul.addr %s438, 4
      %s440 = scalar_lea.vmem %s0, %s439
      %s441 = smul.u32 8, %s25
      %s442 = smul.u32 %s25, 8
      %s443 = ssub.s32 %s442, 1
      %p444 = scmp.gt.s32.totalorder %s443, 0
      %s445 = scalar_select %p444, %s443, 0
      %p446 = scmp.lt.s32.totalorder %s24, 1
      %s447 = scalar_select %p446, %s24, 1
      %p448 = scmp.lt.s32.totalorder %s445, 15
      %s449 = scalar_select %p448, %s445, 15
      %s450 = smul.addr %s449, 2
      %s451 = smul.addr %s447, 32
      %s452 = sadd.s32 %s450, %s451
      %s453 = smul.addr %s452, 4
      %s454 = scalar_lea.vmem %s1, %s453
      %s455 = smul.u32 %s25, 8
      %s456 = ssub.s32 %s455, 1
      %p457 = scmp.gt.s32.totalorder %s456, 0
      %s458 = scalar_select %p457, %s456, 0
      %s459 = sadd.s32 %s25, 1
      %s460 = smul.u32 %s459, 8
      %p461 = scmp.lt.s32.totalorder %s460, 15
      %s462 = scalar_select %p461, %s460, 15
      %p463 = scmp.lt.s32.totalorder %s24, 1
      %s464 = scalar_select %p463, %s24, 1
      %p465 = scmp.lt.s32.totalorder %s462, 15
      %s466 = scalar_select %p465, %s462, 15
      %s467 = smul.addr %s466, 2
      %s468 = smul.addr %s464, 32
      %s469 = sadd.s32 %s467, %s468
      %s470 = smul.addr %s469, 4
      %s471 = scalar_lea.vmem %s2, %s470
      %s472 = sadd.s32 %s25, 1
      %s473 = smul.u32 %s472, 8
      %p474 = scmp.lt.s32.totalorder %s473, 15
      %s475 = scalar_select %p474, %s473, 15
      %s476 = smul.u32 8, %s25
      %p477 = scmp.lt.s32.totalorder %s24, 1
      %s478 = scalar_select %p477, %s24, 1
      %p479 = scmp.lt.s32.totalorder %s476, 15
      %s480 = scalar_select %p479, %s476, 15
      %s481 = smul.addr %s480, 2
      %s482 = smul.addr %s478, 32
      %s483 = sadd.s32 %s481, %s482
      %s484 = smul.addr %s483, 4
      %s485 = scalar_lea.vmem %s7, %s484
      %s486 = smul.u32 8, %s25
      %p487 = scmp.lt.s32.totalorder %s24, 1
      %s488 = scalar_select %p487, %s24, 1
      %p489 = scmp.lt.s32.totalorder %s25, 1
      %s490 = scalar_select %p489, %s25, 1
      %s491 = smul.addr %s488, 2
      %s492 = sadd.s32 %s490, %s491
      %s493 = smul.addr %s492, 2
      %s494 = scalar_lea.vmem %s8, %s493
      %v496 = vld [vmem:[%s440] sm:$0xf]
      %v497 = vld [vmem:[%s440 + $0x4] sm:$0xf]
      %v498 = vld [vmem:[%s440 + $0x8] sm:$0xf]
      %v499 = vld [vmem:[%s440 + $0xc] sm:$0xf]
      %v500 = vld [vmem:[%s440 + $0x10] sm:$0xf]
      %v501 = vld [vmem:[%s440 + $0x14] sm:$0xf]
      %v502 = vld [vmem:[%s440 + $0x18] sm:$0xf]
      %v503 = vld [vmem:[%s440 + $0x1c] sm:$0xf]
      %v504 = vld [vmem:[%s440 + $0x20] sm:$0xf]
      %v505 = vld [vmem:[%s440 + $0x24] sm:$0xf]
      %v506 = vld [vmem:[%s440 + $0x28] sm:$0xf]
      %v507 = vld [vmem:[%s440 + $0x2c] sm:$0xf]
      %v508 = vld [vmem:[%s440 + $0x30] sm:$0xf]
      %v509 = vld [vmem:[%s440 + $0x34] sm:$0xf]
      %v510 = vld [vmem:[%s440 + $0x38] sm:$0xf]
      %v511 = vld [vmem:[%s440 + $0x3c] sm:$0xf]
      %v512 = vunpack.c.l.bf16 %v496
      %v513 = vunpack.c.l.bf16 %v497
      %v514 = vunpack.c.l.bf16 %v498
      %v515 = vunpack.c.l.bf16 %v499
      %v516 = vunpack.c.l.bf16 %v500
      %v517 = vunpack.c.l.bf16 %v501
      %v518 = vunpack.c.l.bf16 %v502
      %v519 = vunpack.c.l.bf16 %v503
      %v520 = vunpack.c.l.bf16 %v504
      %v521 = vunpack.c.l.bf16 %v505
      %v522 = vunpack.c.l.bf16 %v506
      %v523 = vunpack.c.l.bf16 %v507
      %v524 = vunpack.c.l.bf16 %v508
      %v525 = vunpack.c.l.bf16 %v509
      %v526 = vunpack.c.l.bf16 %v510
      %v527 = vunpack.c.l.bf16 %v511
      %v528 = vld [vmem:[%s454] sm:$0xf]
      %v529 = vld [vmem:[%s454 + $0x4] sm:$0xf]
      %v530 = vunpack.c.l.bf16 %v528
      %v531 = vunpack.c.l.bf16 %v529
      %v532 = vld [vmem:[%s471] sm:$0xf]
      %v533 = vld [vmem:[%s471 + $0x4] sm:$0xf]
      %v534 = vunpack.c.l.bf16 %v532
      %v535 = vunpack.c.l.bf16 %v533
      %v536 = vld [vmem:[%s5] sm:$0x1]
      %v537 = vld [vmem:[%s6] sm:$0x1]
      %v539 = vlaneseq
      %v540 = vshrl.u32 %v539, 7
      %v541 = vsub.s32 0, %v540
      %v542 = vrot.slane %v536, %v541
      %v544 = vmul.f32 %v512, %v542
      %v545 = vmul.f32 %v513, %v542
      %v546 = vmul.f32 %v514, %v542
      %v547 = vmul.f32 %v515, %v542
      %v548 = vmul.f32 %v516, %v542
      %v549 = vmul.f32 %v517, %v542
      %v550 = vmul.f32 %v518, %v542
      %v551 = vmul.f32 %v519, %v542
      %v552 = vmul.f32 %v520, %v542
      %v553 = vmul.f32 %v521, %v542
      %v554 = vmul.f32 %v522, %v542
      %v555 = vmul.f32 %v523, %v542
      %v556 = vmul.f32 %v524, %v542
      %v557 = vmul.f32 %v525, %v542
      %v558 = vmul.f32 %v526, %v542
      %v559 = vmul.f32 %v527, %v542
      %v561 = vlaneseq
      %v562 = vshrl.u32 %v561, 7
      %v563 = vsub.s32 0, %v562
      %v564 = vrot.slane %v537, %v563
      %v566 = vadd.f32 %v544, %v564
      %v567 = vadd.f32 %v545, %v564
      %v568 = vadd.f32 %v546, %v564
      %v569 = vadd.f32 %v547, %v564
      %v570 = vadd.f32 %v548, %v564
      %v571 = vadd.f32 %v549, %v564
      %v572 = vadd.f32 %v550, %v564
      %v573 = vadd.f32 %v551, %v564
      %v574 = vadd.f32 %v552, %v564
      %v575 = vadd.f32 %v553, %v564
      %v576 = vadd.f32 %v554, %v564
      %v577 = vadd.f32 %v555, %v564
      %v578 = vadd.f32 %v556, %v564
      %v579 = vadd.f32 %v557, %v564
      %v580 = vadd.f32 %v558, %v564
      %v581 = vadd.f32 %v559, %v564
      %v582 = vmax.f32 %v566, 0.0
      %v583 = vmax.f32 %v567, 0.0
      %v584 = vmax.f32 %v568, 0.0
      %v585 = vmax.f32 %v569, 0.0
      %v586 = vmax.f32 %v570, 0.0
      %v587 = vmax.f32 %v571, 0.0
      %v588 = vmax.f32 %v572, 0.0
      %v589 = vmax.f32 %v573, 0.0
      %v590 = vmax.f32 %v574, 0.0
      %v591 = vmax.f32 %v575, 0.0
      %v592 = vmax.f32 %v576, 0.0
      %v593 = vmax.f32 %v577, 0.0
      %v594 = vmax.f32 %v578, 0.0
      %v595 = vmax.f32 %v579, 0.0
      %v596 = vmax.f32 %v580, 0.0
      %v597 = vmax.f32 %v581, 0.0
      %v598 = vmul.f32 %v530, %v542
      %v599 = vmul.f32 %v531, %v542
      %v600 = vadd.f32 %v598, %v564
      %v601 = vadd.f32 %v599, %v564
      %v602 = vmax.f32 %v600, 0.0
      %v603 = vmax.f32 %v601, 0.0
      %v604 = vmul.f32 %v534, %v542
      %v605 = vmul.f32 %v535, %v542
      %v606 = vadd.f32 %v604, %v564
      %v607 = vadd.f32 %v605, %v564
      %v608 = vmax.f32 %v606, 0.0
      %v609 = vmax.f32 %v607, 0.0
      %p610 = scmp.eq.s32.totalorder %s25, 0
      %s611 = scalar_select %p610, 0.0, 1.0
      %v612 = vstv %s611
      %v613 = vmul.f32 %v602, %v612
      %v614 = vmul.f32 %v603, %v612
      %p615 = scmp.eq.s32.totalorder %s25, 1
      %s616 = scalar_select %p615, 0.0, 1.0
      %v617 = vstv %s616
      %v618 = vmul.f32 %v608, %v617
      %v619 = vmul.f32 %v609, %v617
      %v620 = vpack.c.bf16 %v614, %v613
      %v621 = vpack.c.bf16 %v583, %v582
      %v622 = vpack.c.bf16 %v585, %v584
      %v623 = vpack.c.bf16 %v587, %v586
      %v624 = vpack.c.bf16 %v589, %v588
      %v625 = vpack.c.bf16 %v591, %v590
      %v626 = vpack.c.bf16 %v593, %v592
      %v627 = vpack.c.bf16 %v595, %v594
      %v628 = vpack.c.bf16 %v597, %v596
      %v629 = vpack.c.bf16 %v619, %v618
      %v630 = vld [vmem:[%s3] sm:$0xff]
      %v631 = vld [vmem:[%s3 + $0x8] sm:$0xf]
      %v632 = vld [vmem:[%s3 + $0xc] sm:$0xff]
      %v633 = vld [vmem:[%s3 + $0x14] sm:$0xf]
      %v634 = vld [vmem:[%s3 + $0x18] sm:$0xff]
      %v635 = vld [vmem:[%s3 + $0x20] sm:$0xf]
      %v636 = vld [vmem:[%s3 + $0x24] sm:$0xff]
      %v637 = vld [vmem:[%s3 + $0x2c] sm:$0xf]
      %v638 = vld [vmem:[%s3 + $0x30] sm:$0xff]
      %v639 = vld [vmem:[%s3 + $0x38] sm:$0xf]
      %v640 = vld [vmem:[%s3 + $0x3c] sm:$0xff]
      %v641 = vld [vmem:[%s3 + $0x44] sm:$0xf]
      %v642 = vld [vmem:[%s3 + $0x48] sm:$0xff]
      %v643 = vld [vmem:[%s3 + $0x50] sm:$0xf]
      %v644 = vld [vmem:[%s3 + $0x54] sm:$0xff]
      %v645 = vld [vmem:[%s3 + $0x5c] sm:$0xf]
      %v662 = vunpack.c.l.b16 %v630
      %v663 = vunpack.c.h.b16 %v630
      %v664 = vunpack.c.l.b16 %v631
      %v665 = vunpack.c.l.b16 %v632
      %v666 = vunpack.c.h.b16 %v632
      %v667 = vunpack.c.l.b16 %v633
      %v668 = vunpack.c.l.b16 %v634
      %v669 = vunpack.c.h.b16 %v634
      %v670 = vunpack.c.l.b16 %v635
      %v671 = vunpack.c.l.b16 %v636
      %v672 = vunpack.c.h.b16 %v636
      %v673 = vunpack.c.l.b16 %v637
      %v674 = vunpack.c.l.b16 %v638
      %v675 = vunpack.c.h.b16 %v638
      %v676 = vunpack.c.l.b16 %v639
      %v677 = vunpack.c.l.b16 %v640
      %v678 = vunpack.c.h.b16 %v640
      %v679 = vunpack.c.l.b16 %v641
      %v680 = vunpack.c.l.b16 %v642
      %v681 = vunpack.c.h.b16 %v642
      %v682 = vunpack.c.l.b16 %v643
      %v683 = vunpack.c.l.b16 %v644
      %v684 = vunpack.c.h.b16 %v644
      %v685 = vunpack.c.l.b16 %v645
      %v686 = vpack.c.b16 %v665, %v662
      %v687 = vpack.c.b16 %v666, %v663
      %v688 = vpack.c.b16 %v667, %v664
      %v689 = vpack.c.b16 %v671, %v668
      %v690 = vpack.c.b16 %v672, %v669
      %v691 = vpack.c.b16 %v673, %v670
      %v692 = vpack.c.b16 %v677, %v674
      %v693 = vpack.c.b16 %v678, %v675
      %v694 = vpack.c.b16 %v679, %v676
      %v695 = vpack.c.b16 %v683, %v680
      %v696 = vpack.c.b16 %v684, %v681
      %v697 = vpack.c.b16 %v685, %v682
      %vm710 = vcmask 523264
      %v712 = vsel %vm710, %v620, 0
      %v715 = vsel %vm710, %v621, 0
      %v718 = vsel %vm710, %v622, 0
      %v721 = vsel %vm710, %v623, 0
      %v724 = vsel %vm710, %v624, 0
      %v727 = vsel %vm710, %v625, 0
      %v730 = vsel %vm710, %v626, 0
      %v733 = vsel %vm710, %v627, 0
      %735 = vmatprep.subr.bf16.mxu0 0
      %736 = vmatpush1.bf16.msra.mxu0 0
      %737 = vmatprep.subr.bf16.mxu0 0
      %738 = vmatpush1.bf16.msra.mxu0 0
      %739 = vmatprep.subr.bf16.mxu0 0
      %740 = vmatpush1.bf16.msra.mxu0 0
      %741 = vmatprep.subr.bf16.mxu0 0
      %742 = vmatpush1.bf16.msra.mxu0 0
      %743 = vmatprep.subr.bf16.mxu0 %v696
      %744 = vmatpush1.bf16.msra.mxu0 %v695
      %745 = vmatprep.subr.bf16.mxu0 %v693
      %746 = vmatpush1.bf16.msra.mxu0 %v692
      %747 = vmatprep.subr.bf16.mxu0 %v690
      %748 = vmatpush1.bf16.msra.mxu0 %v689
      %749 = vmatprep.subr.bf16.mxu0 %v687
      %750 = vmatpush1.bf16.msra.mxu0 %v686
      %751 = vmatprep.subr.bf16.mxu0 0
      %752 = vmatpush2.bf16.msra.mxu0 0
      %753 = vmatprep.subr.bf16.mxu0 0
      %754 = vmatpush2.bf16.msra.mxu0 0
      %755 = vmatprep.subr.bf16.mxu0 0
      %756 = vmatpush2.bf16.msra.mxu0 0
      %757 = vmatprep.subr.bf16.mxu0 0
      %758 = vmatpush2.bf16.msra.mxu0 0
      %759 = vmatprep.subr.bf16.mxu0 0
      %760 = vmatpush2.bf16.msra.mxu0 0
      %761 = vmatprep.subr.bf16.mxu0 0
      %762 = vmatpush2.bf16.msra.mxu0 0
      %763 = vmatprep.subr.bf16.mxu0 0
      %764 = vmatpush2.bf16.msra.mxu0 0
      %765 = vmatprep.subr.bf16.mxu0 0
      %766 = vmatpush2.bf16.msra.mxu0 0
      %767 = vmatprep.mubr.bf16.mxu0 0
      %768 = vmatmul.mubr.bf16.gmra.mxu0 %v712
      %v769 = vpop.f32.mrf.mxu0
      %v770 = vadd.f32 0.0, %v769
      %v771 = vpop.f32.mrf.mxu0
      %v772 = vadd.f32 0.0, %v771
      %v773 = vpop.f32.mrf.mxu0
      %v774 = vadd.f32 0.0, %v773
      %v775 = vpop.f32.mrf.mxu0
      %v776 = vadd.f32 0.0, %v775
      %777 = vmatprep.mubr.bf16.mxu0 0
      %778 = vmatmul.mubr.bf16.gmra.mxu0 %v715
      %v779 = vpop.f32.mrf.mxu0
      %v780 = vadd.f32 0.0, %v779
      %v781 = vpop.f32.mrf.mxu0
      %v782 = vadd.f32 0.0, %v781
      %v783 = vpop.f32.mrf.mxu0
      %v784 = vadd.f32 0.0, %v783
      %v785 = vpop.f32.mrf.mxu0
      %v786 = vadd.f32 0.0, %v785
      %787 = vmatprep.mubr.bf16.mxu0 0
      %788 = vmatmul.mubr.bf16.gmra.mxu0 %v718
      %v789 = vpop.f32.mrf.mxu0
      %v790 = vadd.f32 0.0, %v789
      %v791 = vpop.f32.mrf.mxu0
      %v792 = vadd.f32 0.0, %v791
      %v793 = vpop.f32.mrf.mxu0
      %v794 = vadd.f32 0.0, %v793
      %v795 = vpop.f32.mrf.mxu0
      %v796 = vadd.f32 0.0, %v795
      %797 = vmatprep.mubr.bf16.mxu0 0
      %798 = vmatmul.mubr.bf16.gmra.mxu0 %v721
      %v799 = vpop.f32.mrf.mxu0
      %v800 = vadd.f32 0.0, %v799
      %v801 = vpop.f32.mrf.mxu0
      %v802 = vadd.f32 0.0, %v801
      %v803 = vpop.f32.mrf.mxu0
      %v804 = vadd.f32 0.0, %v803
      %v805 = vpop.f32.mrf.mxu0
      %v806 = vadd.f32 0.0, %v805
      %807 = vmatprep.mubr.bf16.mxu0 0
      %808 = vmatmul.mubr.bf16.gmra.mxu0 %v724
      %v809 = vpop.f32.mrf.mxu0
      %v810 = vadd.f32 0.0, %v809
      %v811 = vpop.f32.mrf.mxu0
      %v812 = vadd.f32 0.0, %v811
      %v813 = vpop.f32.mrf.mxu0
      %v814 = vadd.f32 0.0, %v813
      %v815 = vpop.f32.mrf.mxu0
      %v816 = vadd.f32 0.0, %v815
      %817 = vmatprep.mubr.bf16.mxu0 0
      %818 = vmatmul.mubr.bf16.gmra.mxu0 %v727
      %v819 = vpop.f32.mrf.mxu0
      %v820 = vadd.f32 0.0, %v819
      %v821 = vpop.f32.mrf.mxu0
      %v822 = vadd.f32 0.0, %v821
      %v823 = vpop.f32.mrf.mxu0
      %v824 = vadd.f32 0.0, %v823
      %v825 = vpop.f32.mrf.mxu0
      %v826 = vadd.f32 0.0, %v825
      %827 = vmatprep.mubr.bf16.mxu0 0
      %828 = vmatmul.mubr.bf16.gmra.mxu0 %v730
      %v829 = vpop.f32.mrf.mxu0
      %v830 = vadd.f32 0.0, %v829
      %v831 = vpop.f32.mrf.mxu0
      %v832 = vadd.f32 0.0, %v831
      %v833 = vpop.f32.mrf.mxu0
      %v834 = vadd.f32 0.0, %v833
      %v835 = vpop.f32.mrf.mxu0
      %v836 = vadd.f32 0.0, %v835
      %837 = vmatprep.mubr.bf16.mxu0 0
      %838 = vmatmul.mubr.bf16.gmra.mxu0 %v733
      %v839 = vpop.f32.mrf.mxu0
      %v840 = vadd.f32 0.0, %v839
      %v841 = vpop.f32.mrf.mxu0
      %v842 = vadd.f32 0.0, %v841
      %v843 = vpop.f32.mrf.mxu0
      %v844 = vadd.f32 0.0, %v843
      %v845 = vpop.f32.mrf.mxu0
      %v846 = vadd.f32 0.0, %v845
      %847 = vdwg.mxu0
      %848 = vmatprep.subr.bf16.mxu0 0
      %849 = vmatpush1.bf16.msra.mxu0 0
      %850 = vmatprep.subr.bf16.mxu0 0
      %851 = vmatpush1.bf16.msra.mxu0 0
      %852 = vmatprep.subr.bf16.mxu0 0
      %853 = vmatpush1.bf16.msra.mxu0 0
      %854 = vmatprep.subr.bf16.mxu0 0
      %855 = vmatpush1.bf16.msra.mxu0 0
      %856 = vmatprep.subr.bf16.mxu0 0
      %857 = vmatpush1.bf16.msra.mxu0 %v697
      %858 = vmatprep.subr.bf16.mxu0 0
      %859 = vmatpush1.bf16.msra.mxu0 %v694
      %860 = vmatprep.subr.bf16.mxu0 0
      %861 = vmatpush1.bf16.msra.mxu0 %v691
      %862 = vmatprep.subr.bf16.mxu0 0
      %863 = vmatpush1.bf16.msra.mxu0 %v688
      %864 = vmatprep.subr.bf16.mxu0 0
      %865 = vmatpush2.bf16.msra.mxu0 0
      %866 = vmatprep.subr.bf16.mxu0 0
      %867 = vmatpush2.bf16.msra.mxu0 0
      %868 = vmatprep.subr.bf16.mxu0 0
      %869 = vmatpush2.bf16.msra.mxu0 0
      %870 = vmatprep.subr.bf16.mxu0 0
      %871 = vmatpush2.bf16.msra.mxu0 0
      %872 = vmatprep.subr.bf16.mxu0 0
      %873 = vmatpush2.bf16.msra.mxu0 0
      %874 = vmatprep.subr.bf16.mxu0 0
      %875 = vmatpush2.bf16.msra.mxu0 0
      %876 = vmatprep.subr.bf16.mxu0 0
      %877 = vmatpush2.bf16.msra.mxu0 0
      %878 = vmatprep.subr.bf16.mxu0 0
      %879 = vmatpush2.bf16.msra.mxu0 0
      %880 = vmatprep.mubr.bf16.mxu0 0
      %881 = vmatmul.mubr.bf16.gmra.mxu0 %v712
      %v882 = vpop.f32.mrf.mxu0
      %v883 = vadd.f32 0.0, %v882
      %v884 = vpop.f32.mrf.mxu0
      %v885 = vpop.f32.mrf.mxu0
      %v886 = vadd.f32 0.0, %v885
      %v887 = vpop.f32.mrf.mxu0
      %888 = vmatprep.mubr.bf16.mxu0 0
      %889 = vmatmul.mubr.bf16.gmra.mxu0 %v715
      %v890 = vpop.f32.mrf.mxu0
      %v891 = vadd.f32 0.0, %v890
      %v892 = vpop.f32.mrf.mxu0
      %v893 = vpop.f32.mrf.mxu0
      %v894 = vadd.f32 0.0, %v893
      %v895 = vpop.f32.mrf.mxu0
      %896 = vmatprep.mubr.bf16.mxu0 0
      %897 = vmatmul.mubr.bf16.gmra.mxu0 %v718
      %v898 = vpop.f32.mrf.mxu0
      %v899 = vadd.f32 0.0, %v898
      %v900 = vpop.f32.mrf.mxu0
      %v901 = vpop.f32.mrf.mxu0
      %v902 = vadd.f32 0.0, %v901
      %v903 = vpop.f32.mrf.mxu0
      %904 = vmatprep.mubr.bf16.mxu0 0
      %905 = vmatmul.mubr.bf16.gmra.mxu0 %v721
      %v906 = vpop.f32.mrf.mxu0
      %v907 = vadd.f32 0.0, %v906
      %v908 = vpop.f32.mrf.mxu0
      %v909 = vpop.f32.mrf.mxu0
      %v910 = vadd.f32 0.0, %v909
      %v911 = vpop.f32.mrf.mxu0
      %912 = vmatprep.mubr.bf16.mxu0 0
      %913 = vmatmul.mubr.bf16.gmra.mxu0 %v724
      %v914 = vpop.f32.mrf.mxu0
      %v915 = vadd.f32 0.0, %v914
      %v916 = vpop.f32.mrf.mxu0
      %v917 = vpop.f32.mrf.mxu0
      %v918 = vadd.f32 0.0, %v917
      %v919 = vpop.f32.mrf.mxu0
      %920 = vmatprep.mubr.bf16.mxu0 0
      %921 = vmatmul.mubr.bf16.gmra.mxu0 %v727
      %v922 = vpop.f32.mrf.mxu0
      %v923 = vadd.f32 0.0, %v922
      %v924 = vpop.f32.mrf.mxu0
      %v925 = vpop.f32.mrf.mxu0
      %v926 = vadd.f32 0.0, %v925
      %v927 = vpop.f32.mrf.mxu0
      %928 = vmatprep.mubr.bf16.mxu0 0
      %929 = vmatmul.mubr.bf16.gmra.mxu0 %v730
      %v930 = vpop.f32.mrf.mxu0
      %v931 = vadd.f32 0.0, %v930
      %v932 = vpop.f32.mrf.mxu0
      %v933 = vpop.f32.mrf.mxu0
      %v934 = vadd.f32 0.0, %v933
      %v935 = vpop.f32.mrf.mxu0
      %936 = vmatprep.mubr.bf16.mxu0 0
      %937 = vmatmul.mubr.bf16.gmra.mxu0 %v733
      %v938 = vpop.f32.mrf.mxu0
      %v939 = vadd.f32 0.0, %v938
      %v940 = vpop.f32.mrf.mxu0
      %v941 = vpop.f32.mrf.mxu0
      %v942 = vadd.f32 0.0, %v941
      %v943 = vpop.f32.mrf.mxu0
      %944 = vdwg.mxu0
      %vm961 = vcmask 1040384
      %v962 = vrot.slane %v770, 7
      %v963 = vrot.slane %v774, 7
      %v964 = vsel %vm961, %v962, %v963
      %v965 = vrot.slane %v780, 7
      %v966 = vrot.slane %v784, 7
      %v967 = vsel %vm961, %v965, %v966
      %v968 = vrot.slane %v790, 7
      %v969 = vrot.slane %v794, 7
      %v970 = vsel %vm961, %v968, %v969
      %v971 = vrot.slane %v800, 7
      %v972 = vrot.slane %v804, 7
      %v973 = vsel %vm961, %v971, %v972
      %v974 = vrot.slane %v810, 7
      %v975 = vrot.slane %v814, 7
      %v976 = vsel %vm961, %v974, %v975
      %v977 = vrot.slane %v820, 7
      %v978 = vrot.slane %v824, 7
      %v979 = vsel %vm961, %v977, %v978
      %v980 = vrot.slane %v830, 7
      %v981 = vrot.slane %v834, 7
      %v982 = vsel %vm961, %v980, %v981
      %v983 = vrot.slane %v840, 7
      %v984 = vrot.slane %v844, 7
      %v985 = vsel %vm961, %v983, %v984
      %v1002 = vsel %vm961, 0.0, %v962
      %v1003 = vsel %vm961, 0.0, %v965
      %v1004 = vsel %vm961, 0.0, %v968
      %v1005 = vsel %vm961, 0.0, %v971
      %v1006 = vsel %vm961, 0.0, %v974
      %v1007 = vsel %vm961, 0.0, %v977
      %v1008 = vsel %vm961, 0.0, %v980
      %v1009 = vsel %vm961, 0.0, %v983
      %v1010 = vadd.f32 %v1002, 0.0
      %v1011 = vadd.f32 %v964, 0.0
      %v1012 = vadd.f32 %v1003, 0.0
      %v1013 = vadd.f32 %v967, 0.0
      %v1014 = vadd.f32 %v1004, 0.0
      %v1015 = vadd.f32 %v970, 0.0
      %v1016 = vadd.f32 %v1005, 0.0
      %v1017 = vadd.f32 %v973, 0.0
      %v1018 = vadd.f32 %v1006, 0.0
      %v1019 = vadd.f32 %v976, 0.0
      %v1020 = vadd.f32 %v1007, 0.0
      %v1021 = vadd.f32 %v979, 0.0
      %v1022 = vadd.f32 %v1008, 0.0
      %v1023 = vadd.f32 %v982, 0.0
      %v1024 = vadd.f32 %v1009, 0.0
      %v1025 = vadd.f32 %v985, 0.0
      %v1026 = vadd.f32 %v1010, %v772
      %v1027 = vadd.f32 %v1011, %v776
      %v1028 = vadd.f32 %v1012, %v782
      %v1029 = vadd.f32 %v1013, %v786
      %v1030 = vadd.f32 %v1014, %v792
      %v1031 = vadd.f32 %v1015, %v796
      %v1032 = vadd.f32 %v1016, %v802
      %v1033 = vadd.f32 %v1017, %v806
      %v1034 = vadd.f32 %v1018, %v812
      %v1035 = vadd.f32 %v1019, %v816
      %v1036 = vadd.f32 %v1020, %v822
      %v1037 = vadd.f32 %v1021, %v826
      %v1038 = vadd.f32 %v1022, %v832
      %v1039 = vadd.f32 %v1023, %v836
      %v1040 = vadd.f32 %v1024, %v842
      %v1041 = vadd.f32 %v1025, %v846
      %vm1058 = vcmask 1046528
      %v1059 = vrot.slane %v883, 1
      %v1060 = vrot.slane %v886, 1
      %v1061 = vsel %vm1058, %v1059, %v1060
      %v1062 = vrot.slane %v891, 1
      %v1063 = vrot.slane %v894, 1
      %v1064 = vsel %vm1058, %v1062, %v1063
      %v1065 = vrot.slane %v899, 1
      %v1066 = vrot.slane %v902, 1
      %v1067 = vsel %vm1058, %v1065, %v1066
      %v1068 = vrot.slane %v907, 1
      %v1069 = vrot.slane %v910, 1
      %v1070 = vsel %vm1058, %v1068, %v1069
      %v1071 = vrot.slane %v915, 1
      %v1072 = vrot.slane %v918, 1
      %v1073 = vsel %vm1058, %v1071, %v1072
      %v1074 = vrot.slane %v923, 1
      %v1075 = vrot.slane %v926, 1
      %v1076 = vsel %vm1058, %v1074, %v1075
      %v1077 = vrot.slane %v931, 1
      %v1078 = vrot.slane %v934, 1
      %v1079 = vsel %vm1058, %v1077, %v1078
      %v1080 = vrot.slane %v939, 1
      %v1081 = vrot.slane %v942, 1
      %v1082 = vsel %vm1058, %v1080, %v1081
      %v1099 = vsel %vm1058, %v1060, 0.0
      %v1100 = vsel %vm1058, %v1063, 0.0
      %v1101 = vsel %vm1058, %v1066, 0.0
      %v1102 = vsel %vm1058, %v1069, 0.0
      %v1103 = vsel %vm1058, %v1072, 0.0
      %v1104 = vsel %vm1058, %v1075, 0.0
      %v1105 = vsel %vm1058, %v1078, 0.0
      %v1106 = vsel %vm1058, %v1081, 0.0
      %v1107 = vadd.f32 %v1026, %v1061
      %v1108 = vadd.f32 %v1027, %v1099
      %v1109 = vadd.f32 %v1028, %v1064
      %v1110 = vadd.f32 %v1029, %v1100
      %v1111 = vadd.f32 %v1030, %v1067
      %v1112 = vadd.f32 %v1031, %v1101
      %v1113 = vadd.f32 %v1032, %v1070
      %v1114 = vadd.f32 %v1033, %v1102
      %v1115 = vadd.f32 %v1034, %v1073
      %v1116 = vadd.f32 %v1035, %v1103
      %v1117 = vadd.f32 %v1036, %v1076
      %v1118 = vadd.f32 %v1037, %v1104
      %v1119 = vadd.f32 %v1038, %v1079
      %v1120 = vadd.f32 %v1039, %v1105
      %v1121 = vadd.f32 %v1040, %v1082
      %v1122 = vadd.f32 %v1041, %v1106
      %s1123 = scalar_lea.vmem %s3, 96
      %v1124 = vld [vmem:[%s1123] sm:$0xff]
      %v1125 = vld [vmem:[%s1123 + $0x8] sm:$0xf]
      %v1126 = vld [vmem:[%s1123 + $0xc] sm:$0xff]
      %v1127 = vld [vmem:[%s1123 + $0x14] sm:$0xf]
      %v1128 = vld [vmem:[%s1123 + $0x18] sm:$0xff]
      %v1129 = vld [vmem:[%s1123 + $0x20] sm:$0xf]
      %v1130 = vld [vmem:[%s1123 + $0x24] sm:$0xff]
      %v1131 = vld [vmem:[%s1123 + $0x2c] sm:$0xf]
      %v1132 = vld [vmem:[%s1123 + $0x30] sm:$0xff]
      %v1133 = vld [vmem:[%s1123 + $0x38] sm:$0xf]
      %v1134 = vld [vmem:[%s1123 + $0x3c] sm:$0xff]
      %v1135 = vld [vmem:[%s1123 + $0x44] sm:$0xf]
      %v1136 = vld [vmem:[%s1123 + $0x48] sm:$0xff]
      %v1137 = vld [vmem:[%s1123 + $0x50] sm:$0xf]
      %v1138 = vld [vmem:[%s1123 + $0x54] sm:$0xff]
      %v1139 = vld [vmem:[%s1123 + $0x5c] sm:$0xf]
      %v1156 = vunpack.c.l.b16 %v1124
      %v1157 = vunpack.c.h.b16 %v1124
      %v1158 = vunpack.c.l.b16 %v1125
      %v1159 = vunpack.c.l.b16 %v1126
      %v1160 = vunpack.c.h.b16 %v1126
      %v1161 = vunpack.c.l.b16 %v1127
      %v1162 = vunpack.c.l.b16 %v1128
      %v1163 = vunpack.c.h.b16 %v1128
      %v1164 = vunpack.c.l.b16 %v1129
      %v1165 = vunpack.c.l.b16 %v1130
      %v1166 = vunpack.c.h.b16 %v1130
      %v1167 = vunpack.c.l.b16 %v1131
      %v1168 = vunpack.c.l.b16 %v1132
      %v1169 = vunpack.c.h.b16 %v1132
      %v1170 = vunpack.c.l.b16 %v1133
      %v1171 = vunpack.c.l.b16 %v1134
      %v1172 = vunpack.c.h.b16 %v1134
      %v1173 = vunpack.c.l.b16 %v1135
      %v1174 = vunpack.c.l.b16 %v1136
      %v1175 = vunpack.c.h.b16 %v1136
      %v1176 = vunpack.c.l.b16 %v1137
      %v1177 = vunpack.c.l.b16 %v1138
      %v1178 = vunpack.c.h.b16 %v1138
      %v1179 = vunpack.c.l.b16 %v1139
      %v1180 = vpack.c.b16 %v1159, %v1156
      %v1181 = vpack.c.b16 %v1160, %v1157
      %v1182 = vpack.c.b16 %v1161, %v1158
      %v1183 = vpack.c.b16 %v1165, %v1162
      %v1184 = vpack.c.b16 %v1166, %v1163
      %v1185 = vpack.c.b16 %v1167, %v1164
      %v1186 = vpack.c.b16 %v1171, %v1168
      %v1187 = vpack.c.b16 %v1172, %v1169
      %v1188 = vpack.c.b16 %v1173, %v1170
      %v1189 = vpack.c.b16 %v1177, %v1174
      %v1190 = vpack.c.b16 %v1178, %v1175
      %v1191 = vpack.c.b16 %v1179, %v1176
      %v1205 = vsel %vm710, %v628, 0
      %1207 = vmatprep.subr.bf16.mxu0 0
      %1208 = vmatpush1.bf16.msra.mxu0 0
      %1209 = vmatprep.subr.bf16.mxu0 0
      %1210 = vmatpush1.bf16.msra.mxu0 0
      %1211 = vmatprep.subr.bf16.mxu0 0
      %1212 = vmatpush1.bf16.msra.mxu0 0
      %1213 = vmatprep.subr.bf16.mxu0 0
      %1214 = vmatpush1.bf16.msra.mxu0 0
      %1215 = vmatprep.subr.bf16.mxu0 %v1190
      %1216 = vmatpush1.bf16.msra.mxu0 %v1189
      %1217 = vmatprep.subr.bf16.mxu0 %v1187
      %1218 = vmatpush1.bf16.msra.mxu0 %v1186
      %1219 = vmatprep.subr.bf16.mxu0 %v1184
      %1220 = vmatpush1.bf16.msra.mxu0 %v1183
      %1221 = vmatprep.subr.bf16.mxu0 %v1181
      %1222 = vmatpush1.bf16.msra.mxu0 %v1180
      %1223 = vmatprep.subr.bf16.mxu0 0
      %1224 = vmatpush2.bf16.msra.mxu0 0
      %1225 = vmatprep.subr.bf16.mxu0 0
      %1226 = vmatpush2.bf16.msra.mxu0 0
      %1227 = vmatprep.subr.bf16.mxu0 0
      %1228 = vmatpush2.bf16.msra.mxu0 0
      %1229 = vmatprep.subr.bf16.mxu0 0
      %1230 = vmatpush2.bf16.msra.mxu0 0
      %1231 = vmatprep.subr.bf16.mxu0 0
      %1232 = vmatpush2.bf16.msra.mxu0 0
      %1233 = vmatprep.subr.bf16.mxu0 0
      %1234 = vmatpush2.bf16.msra.mxu0 0
      %1235 = vmatprep.subr.bf16.mxu0 0
      %1236 = vmatpush2.bf16.msra.mxu0 0
      %1237 = vmatprep.subr.bf16.mxu0 0
      %1238 = vmatpush2.bf16.msra.mxu0 0
      %1239 = vmatprep.mubr.bf16.mxu0 0
      %1240 = vmatmul.mubr.bf16.gmra.mxu0 %v715
      %v1241 = vpop.f32.mrf.mxu0
      %v1242 = vadd.f32 0.0, %v1241
      %v1243 = vpop.f32.mrf.mxu0
      %v1244 = vadd.f32 0.0, %v1243
      %v1245 = vpop.f32.mrf.mxu0
      %v1246 = vadd.f32 0.0, %v1245
      %v1247 = vpop.f32.mrf.mxu0
      %v1248 = vadd.f32 0.0, %v1247
      %1249 = vmatprep.mubr.bf16.mxu0 0
      %1250 = vmatmul.mubr.bf16.gmra.mxu0 %v718
      %v1251 = vpop.f32.mrf.mxu0
      %v1252 = vadd.f32 0.0, %v1251
      %v1253 = vpop.f32.mrf.mxu0
      %v1254 = vadd.f32 0.0, %v1253
      %v1255 = vpop.f32.mrf.mxu0
      %v1256 = vadd.f32 0.0, %v1255
      %v1257 = vpop.f32.mrf.mxu0
      %v1258 = vadd.f32 0.0, %v1257
      %1259 = vmatprep.mubr.bf16.mxu0 0
      %1260 = vmatmul.mubr.bf16.gmra.mxu0 %v721
      %v1261 = vpop.f32.mrf.mxu0
      %v1262 = vadd.f32 0.0, %v1261
      %v1263 = vpop.f32.mrf.mxu0
      %v1264 = vadd.f32 0.0, %v1263
      %v1265 = vpop.f32.mrf.mxu0
      %v1266 = vadd.f32 0.0, %v1265
      %v1267 = vpop.f32.mrf.mxu0
      %v1268 = vadd.f32 0.0, %v1267
      %1269 = vmatprep.mubr.bf16.mxu0 0
      %1270 = vmatmul.mubr.bf16.gmra.mxu0 %v724
      %v1271 = vpop.f32.mrf.mxu0
      %v1272 = vadd.f32 0.0, %v1271
      %v1273 = vpop.f32.mrf.mxu0
      %v1274 = vadd.f32 0.0, %v1273
      %v1275 = vpop.f32.mrf.mxu0
      %v1276 = vadd.f32 0.0, %v1275
      %v1277 = vpop.f32.mrf.mxu0
      %v1278 = vadd.f32 0.0, %v1277
      %1279 = vmatprep.mubr.bf16.mxu0 0
      %1280 = vmatmul.mubr.bf16.gmra.mxu0 %v727
      %v1281 = vpop.f32.mrf.mxu0
      %v1282 = vadd.f32 0.0, %v1281
      %v1283 = vpop.f32.mrf.mxu0
      %v1284 = vadd.f32 0.0, %v1283
      %v1285 = vpop.f32.mrf.mxu0
      %v1286 = vadd.f32 0.0, %v1285
      %v1287 = vpop.f32.mrf.mxu0
      %v1288 = vadd.f32 0.0, %v1287
      %1289 = vmatprep.mubr.bf16.mxu0 0
      %1290 = vmatmul.mubr.bf16.gmra.mxu0 %v730
      %v1291 = vpop.f32.mrf.mxu0
      %v1292 = vadd.f32 0.0, %v1291
      %v1293 = vpop.f32.mrf.mxu0
      %v1294 = vadd.f32 0.0, %v1293
      %v1295 = vpop.f32.mrf.mxu0
      %v1296 = vadd.f32 0.0, %v1295
      %v1297 = vpop.f32.mrf.mxu0
      %v1298 = vadd.f32 0.0, %v1297
      %1299 = vmatprep.mubr.bf16.mxu0 0
      %1300 = vmatmul.mubr.bf16.gmra.mxu0 %v733
      %v1301 = vpop.f32.mrf.mxu0
      %v1302 = vadd.f32 0.0, %v1301
      %v1303 = vpop.f32.mrf.mxu0
      %v1304 = vadd.f32 0.0, %v1303
      %v1305 = vpop.f32.mrf.mxu0
      %v1306 = vadd.f32 0.0, %v1305
      %v1307 = vpop.f32.mrf.mxu0
      %v1308 = vadd.f32 0.0, %v1307
      %1309 = vmatprep.mubr.bf16.mxu0 0
      %1310 = vmatmul.mubr.bf16.gmra.mxu0 %v1205
      %v1311 = vpop.f32.mrf.mxu0
      %v1312 = vadd.f32 0.0, %v1311
      %v1313 = vpop.f32.mrf.mxu0
      %v1314 = vadd.f32 0.0, %v1313
      %v1315 = vpop.f32.mrf.mxu0
      %v1316 = vadd.f32 0.0, %v1315
      %v1317 = vpop.f32.mrf.mxu0
      %v1318 = vadd.f32 0.0, %v1317
      %1319 = vdwg.mxu0
      %1320 = vmatprep.subr.bf16.mxu0 0
      %1321 = vmatpush1.bf16.msra.mxu0 0
      %1322 = vmatprep.subr.bf16.mxu0 0
      %1323 = vmatpush1.bf16.msra.mxu0 0
      %1324 = vmatprep.subr.bf16.mxu0 0
      %1325 = vmatpush1.bf16.msra.mxu0 0
      %1326 = vmatprep.subr.bf16.mxu0 0
      %1327 = vmatpush1.bf16.msra.mxu0 0
      %1328 = vmatprep.subr.bf16.mxu0 0
      %1329 = vmatpush1.bf16.msra.mxu0 %v1191
      %1330 = vmatprep.subr.bf16.mxu0 0
      %1331 = vmatpush1.bf16.msra.mxu0 %v1188
      %1332 = vmatprep.subr.bf16.mxu0 0
      %1333 = vmatpush1.bf16.msra.mxu0 %v1185
      %1334 = vmatprep.subr.bf16.mxu0 0
      %1335 = vmatpush1.bf16.msra.mxu0 %v1182
      %1336 = vmatprep.subr.bf16.mxu0 0
      %1337 = vmatpush2.bf16.msra.mxu0 0
      %1338 = vmatprep.subr.bf16.mxu0 0
      %1339 = vmatpush2.bf16.msra.mxu0 0
      %1340 = vmatprep.subr.bf16.mxu0 0
      %1341 = vmatpush2.bf16.msra.mxu0 0
      %1342 = vmatprep.subr.bf16.mxu0 0
      %1343 = vmatpush2.bf16.msra.mxu0 0
      %1344 = vmatprep.subr.bf16.mxu0 0
      %1345 = vmatpush2.bf16.msra.mxu0 0
      %1346 = vmatprep.subr.bf16.mxu0 0
      %1347 = vmatpush2.bf16.msra.mxu0 0
      %1348 = vmatprep.subr.bf16.mxu0 0
      %1349 = vmatpush2.bf16.msra.mxu0 0
      %1350 = vmatprep.subr.bf16.mxu0 0
      %1351 = vmatpush2.bf16.msra.mxu0 0
      %1352 = vmatprep.mubr.bf16.mxu0 0
      %1353 = vmatmul.mubr.bf16.gmra.mxu0 %v715
      %v1354 = vpop.f32.mrf.mxu0
      %v1355 = vadd.f32 0.0, %v1354
      %v1356 = vpop.f32.mrf.mxu0
      %v1357 = vpop.f32.mrf.mxu0
      %v1358 = vadd.f32 0.0, %v1357
      %v1359 = vpop.f32.mrf.mxu0
      %1360 = vmatprep.mubr.bf16.mxu0 0
      %1361 = vmatmul.mubr.bf16.gmra.mxu0 %v718
      %v1362 = vpop.f32.mrf.mxu0
      %v1363 = vadd.f32 0.0, %v1362
      %v1364 = vpop.f32.mrf.mxu0
      %v1365 = vpop.f32.mrf.mxu0
      %v1366 = vadd.f32 0.0, %v1365
      %v1367 = vpop.f32.mrf.mxu0
      %1368 = vmatprep.mubr.bf16.mxu0 0
      %1369 = vmatmul.mubr.bf16.gmra.mxu0 %v721
      %v1370 = vpop.f32.mrf.mxu0
      %v1371 = vadd.f32 0.0, %v1370
      %v1372 = vpop.f32.mrf.mxu0
      %v1373 = vpop.f32.mrf.mxu0
      %v1374 = vadd.f32 0.0, %v1373
      %v1375 = vpop.f32.mrf.mxu0
      %1376 = vmatprep.mubr.bf16.mxu0 0
      %1377 = vmatmul.mubr.bf16.gmra.mxu0 %v724
      %v1378 = vpop.f32.mrf.mxu0
      %v1379 = vadd.f32 0.0, %v1378
      %v1380 = vpop.f32.mrf.mxu0
      %v1381 = vpop.f32.mrf.mxu0
      %v1382 = vadd.f32 0.0, %v1381
      %v1383 = vpop.f32.mrf.mxu0
      %1384 = vmatprep.mubr.bf16.mxu0 0
      %1385 = vmatmul.mubr.bf16.gmra.mxu0 %v727
      %v1386 = vpop.f32.mrf.mxu0
      %v1387 = vadd.f32 0.0, %v1386
      %v1388 = vpop.f32.mrf.mxu0
      %v1389 = vpop.f32.mrf.mxu0
      %v1390 = vadd.f32 0.0, %v1389
      %v1391 = vpop.f32.mrf.mxu0
      %1392 = vmatprep.mubr.bf16.mxu0 0
      %1393 = vmatmul.mubr.bf16.gmra.mxu0 %v730
      %v1394 = vpop.f32.mrf.mxu0
      %v1395 = vadd.f32 0.0, %v1394
      %v1396 = vpop.f32.mrf.mxu0
      %v1397 = vpop.f32.mrf.mxu0
      %v1398 = vadd.f32 0.0, %v1397
      %v1399 = vpop.f32.mrf.mxu0
      %1400 = vmatprep.mubr.bf16.mxu0 0
      %1401 = vmatmul.mubr.bf16.gmra.mxu0 %v733
      %v1402 = vpop.f32.mrf.mxu0
      %v1403 = vadd.f32 0.0, %v1402
      %v1404 = vpop.f32.mrf.mxu0
      %v1405 = vpop.f32.mrf.mxu0
      %v1406 = vadd.f32 0.0, %v1405
      %v1407 = vpop.f32.mrf.mxu0
      %1408 = vmatprep.mubr.bf16.mxu0 0
      %1409 = vmatmul.mubr.bf16.gmra.mxu0 %v1205
      %v1410 = vpop.f32.mrf.mxu0
      %v1411 = vadd.f32 0.0, %v1410
      %v1412 = vpop.f32.mrf.mxu0
      %v1413 = vpop.f32.mrf.mxu0
      %v1414 = vadd.f32 0.0, %v1413
      %v1415 = vpop.f32.mrf.mxu0
      %1416 = vdwg.mxu0
      %v1433 = vrot.slane %v1242, 7
      %v1434 = vrot.slane %v1246, 7
      %v1435 = vsel %vm961, %v1433, %v1434
      %v1436 = vrot.slane %v1252, 7
      %v1437 = vrot.slane %v1256, 7
      %v1438 = vsel %vm961, %v1436, %v1437
      %v1439 = vrot.slane %v1262, 7
      %v1440 = vrot.slane %v1266, 7
      %v1441 = vsel %vm961, %v1439, %v1440
      %v1442 = vrot.slane %v1272, 7
      %v1443 = vrot.slane %v1276, 7
      %v1444 = vsel %vm961, %v1442, %v1443
      %v1445 = vrot.slane %v1282, 7
      %v1446 = vrot.slane %v1286, 7
      %v1447 = vsel %vm961, %v1445, %v1446
      %v1448 = vrot.slane %v1292, 7
      %v1449 = vrot.slane %v1296, 7
      %v1450 = vsel %vm961, %v1448, %v1449
      %v1451 = vrot.slane %v1302, 7
      %v1452 = vrot.slane %v1306, 7
      %v1453 = vsel %vm961, %v1451, %v1452
      %v1454 = vrot.slane %v1312, 7
      %v1455 = vrot.slane %v1316, 7
      %v1456 = vsel %vm961, %v1454, %v1455
      %v1473 = vsel %vm961, 0.0, %v1433
      %v1474 = vsel %vm961, 0.0, %v1436
      %v1475 = vsel %vm961, 0.0, %v1439
      %v1476 = vsel %vm961, 0.0, %v1442
      %v1477 = vsel %vm961, 0.0, %v1445
      %v1478 = vsel %vm961, 0.0, %v1448
      %v1479 = vsel %vm961, 0.0, %v1451
      %v1480 = vsel %vm961, 0.0, %v1454
      %v1481 = vadd.f32 %v1107, %v1473
      %v1482 = vadd.f32 %v1108, %v1435
      %v1483 = vadd.f32 %v1109, %v1474
      %v1484 = vadd.f32 %v1110, %v1438
      %v1485 = vadd.f32 %v1111, %v1475
      %v1486 = vadd.f32 %v1112, %v1441
      %v1487 = vadd.f32 %v1113, %v1476
      %v1488 = vadd.f32 %v1114, %v1444
      %v1489 = vadd.f32 %v1115, %v1477
      %v1490 = vadd.f32 %v1116, %v1447
      %v1491 = vadd.f32 %v1117, %v1478
      %v1492 = vadd.f32 %v1118, %v1450
      %v1493 = vadd.f32 %v1119, %v1479
      %v1494 = vadd.f32 %v1120, %v1453
      %v1495 = vadd.f32 %v1121, %v1480
      %v1496 = vadd.f32 %v1122, %v1456
      %v1497 = vadd.f32 %v1481, %v1244
      %v1498 = vadd.f32 %v1482, %v1248
      %v1499 = vadd.f32 %v1483, %v1254
      %v1500 = vadd.f32 %v1484, %v1258
      %v1501 = vadd.f32 %v1485, %v1264
      %v1502 = vadd.f32 %v1486, %v1268
      %v1503 = vadd.f32 %v1487, %v1274
      %v1504 = vadd.f32 %v1488, %v1278
      %v1505 = vadd.f32 %v1489, %v1284
      %v1506 = vadd.f32 %v1490, %v1288
      %v1507 = vadd.f32 %v1491, %v1294
      %v1508 = vadd.f32 %v1492, %v1298
      %v1509 = vadd.f32 %v1493, %v1304
      %v1510 = vadd.f32 %v1494, %v1308
      %v1511 = vadd.f32 %v1495, %v1314
      %v1512 = vadd.f32 %v1496, %v1318
      %v1529 = vrot.slane %v1355, 1
      %v1530 = vrot.slane %v1358, 1
      %v1531 = vsel %vm1058, %v1529, %v1530
      %v1532 = vrot.slane %v1363, 1
      %v1533 = vrot.slane %v1366, 1
      %v1534 = vsel %vm1058, %v1532, %v1533
      %v1535 = vrot.slane %v1371, 1
      %v1536 = vrot.slane %v1374, 1
      %v1537 = vsel %vm1058, %v1535, %v1536
      %v1538 = vrot.slane %v1379, 1
      %v1539 = vrot.slane %v1382, 1
      %v1540 = vsel %vm1058, %v1538, %v1539
      %v1541 = vrot.slane %v1387, 1
      %v1542 = vrot.slane %v1390, 1
      %v1543 = vsel %vm1058, %v1541, %v1542
      %v1544 = vrot.slane %v1395, 1
      %v1545 = vrot.slane %v1398, 1
      %v1546 = vsel %vm1058, %v1544, %v1545
      %v1547 = vrot.slane %v1403, 1
      %v1548 = vrot.slane %v1406, 1
      %v1549 = vsel %vm1058, %v1547, %v1548
      %v1550 = vrot.slane %v1411, 1
      %v1551 = vrot.slane %v1414, 1
      %v1552 = vsel %vm1058, %v1550, %v1551
      %v1569 = vsel %vm1058, %v1530, 0.0
      %v1570 = vsel %vm1058, %v1533, 0.0
      %v1571 = vsel %vm1058, %v1536, 0.0
      %v1572 = vsel %vm1058, %v1539, 0.0
      %v1573 = vsel %vm1058, %v1542, 0.0
      %v1574 = vsel %vm1058, %v1545, 0.0
      %v1575 = vsel %vm1058, %v1548, 0.0
      %v1576 = vsel %vm1058, %v1551, 0.0
      %v1577 = vadd.f32 %v1497, %v1531
      %v1578 = vadd.f32 %v1498, %v1569
      %v1579 = vadd.f32 %v1499, %v1534
      %v1580 = vadd.f32 %v1500, %v1570
      %v1581 = vadd.f32 %v1501, %v1537
      %v1582 = vadd.f32 %v1502, %v1571
      %v1583 = vadd.f32 %v1503, %v1540
      %v1584 = vadd.f32 %v1504, %v1572
      %v1585 = vadd.f32 %v1505, %v1543
      %v1586 = vadd.f32 %v1506, %v1573
      %v1587 = vadd.f32 %v1507, %v1546
      %v1588 = vadd.f32 %v1508, %v1574
      %v1589 = vadd.f32 %v1509, %v1549
      %v1590 = vadd.f32 %v1510, %v1575
      %v1591 = vadd.f32 %v1511, %v1552
      %v1592 = vadd.f32 %v1512, %v1576
      %s1593 = scalar_lea.vmem %s3, 192
      %v1594 = vld [vmem:[%s1593] sm:$0xff]
      %v1595 = vld [vmem:[%s1593 + $0x8] sm:$0xf]
      %v1596 = vld [vmem:[%s1593 + $0xc] sm:$0xff]
      %v1597 = vld [vmem:[%s1593 + $0x14] sm:$0xf]
      %v1598 = vld [vmem:[%s1593 + $0x18] sm:$0xff]
      %v1599 = vld [vmem:[%s1593 + $0x20] sm:$0xf]
      %v1600 = vld [vmem:[%s1593 + $0x24] sm:$0xff]
      %v1601 = vld [vmem:[%s1593 + $0x2c] sm:$0xf]
      %v1602 = vld [vmem:[%s1593 + $0x30] sm:$0xff]
      %v1603 = vld [vmem:[%s1593 + $0x38] sm:$0xf]
      %v1604 = vld [vmem:[%s1593 + $0x3c] sm:$0xff]
      %v1605 = vld [vmem:[%s1593 + $0x44] sm:$0xf]
      %v1606 = vld [vmem:[%s1593 + $0x48] sm:$0xff]
      %v1607 = vld [vmem:[%s1593 + $0x50] sm:$0xf]
      %v1608 = vld [vmem:[%s1593 + $0x54] sm:$0xff]
      %v1609 = vld [vmem:[%s1593 + $0x5c] sm:$0xf]
      %v1626 = vunpack.c.l.b16 %v1594
      %v1627 = vunpack.c.h.b16 %v1594
      %v1628 = vunpack.c.l.b16 %v1595
      %v1629 = vunpack.c.l.b16 %v1596
      %v1630 = vunpack.c.h.b16 %v1596
      %v1631 = vunpack.c.l.b16 %v1597
      %v1632 = vunpack.c.l.b16 %v1598
      %v1633 = vunpack.c.h.b16 %v1598
      %v1634 = vunpack.c.l.b16 %v1599
      %v1635 = vunpack.c.l.b16 %v1600
      %v1636 = vunpack.c.h.b16 %v1600
      %v1637 = vunpack.c.l.b16 %v1601
      %v1638 = vunpack.c.l.b16 %v1602
      %v1639 = vunpack.c.h.b16 %v1602
      %v1640 = vunpack.c.l.b16 %v1603
      %v1641 = vunpack.c.l.b16 %v1604
      %v1642 = vunpack.c.h.b16 %v1604
      %v1643 = vunpack.c.l.b16 %v1605
      %v1644 = vunpack.c.l.b16 %v1606
      %v1645 = vunpack.c.h.b16 %v1606
      %v1646 = vunpack.c.l.b16 %v1607
      %v1647 = vunpack.c.l.b16 %v1608
      %v1648 = vunpack.c.h.b16 %v1608
      %v1649 = vunpack.c.l.b16 %v1609
      %v1650 = vpack.c.b16 %v1629, %v1626
      %v1651 = vpack.c.b16 %v1630, %v1627
      %v1652 = vpack.c.b16 %v1631, %v1628
      %v1653 = vpack.c.b16 %v1635, %v1632
      %v1654 = vpack.c.b16 %v1636, %v1633
      %v1655 = vpack.c.b16 %v1637, %v1634
      %v1656 = vpack.c.b16 %v1641, %v1638
      %v1657 = vpack.c.b16 %v1642, %v1639
      %v1658 = vpack.c.b16 %v1643, %v1640
      %v1659 = vpack.c.b16 %v1647, %v1644
      %v1660 = vpack.c.b16 %v1648, %v1645
      %v1661 = vpack.c.b16 %v1649, %v1646
      %v1675 = vsel %vm710, %v629, 0
      %1677 = vmatprep.subr.bf16.mxu0 0
      %1678 = vmatpush1.bf16.msra.mxu0 0
      %1679 = vmatprep.subr.bf16.mxu0 0
      %1680 = vmatpush1.bf16.msra.mxu0 0
      %1681 = vmatprep.subr.bf16.mxu0 0
      %1682 = vmatpush1.bf16.msra.mxu0 0
      %1683 = vmatprep.subr.bf16.mxu0 0
      %1684 = vmatpush1.bf16.msra.mxu0 0
      %1685 = vmatprep.subr.bf16.mxu0 %v1660
      %1686 = vmatpush1.bf16.msra.mxu0 %v1659
      %1687 = vmatprep.subr.bf16.mxu0 %v1657
      %1688 = vmatpush1.bf16.msra.mxu0 %v1656
      %1689 = vmatprep.subr.bf16.mxu0 %v1654
      %1690 = vmatpush1.bf16.msra.mxu0 %v1653
      %1691 = vmatprep.subr.bf16.mxu0 %v1651
      %1692 = vmatpush1.bf16.msra.mxu0 %v1650
      %1693 = vmatprep.subr.bf16.mxu0 0
      %1694 = vmatpush2.bf16.msra.mxu0 0
      %1695 = vmatprep.subr.bf16.mxu0 0
      %1696 = vmatpush2.bf16.msra.mxu0 0
      %1697 = vmatprep.subr.bf16.mxu0 0
      %1698 = vmatpush2.bf16.msra.mxu0 0
      %1699 = vmatprep.subr.bf16.mxu0 0
      %1700 = vmatpush2.bf16.msra.mxu0 0
      %1701 = vmatprep.subr.bf16.mxu0 0
      %1702 = vmatpush2.bf16.msra.mxu0 0
      %1703 = vmatprep.subr.bf16.mxu0 0
      %1704 = vmatpush2.bf16.msra.mxu0 0
      %1705 = vmatprep.subr.bf16.mxu0 0
      %1706 = vmatpush2.bf16.msra.mxu0 0
      %1707 = vmatprep.subr.bf16.mxu0 0
      %1708 = vmatpush2.bf16.msra.mxu0 0
      %1709 = vmatprep.mubr.bf16.mxu0 0
      %1710 = vmatmul.mubr.bf16.gmra.mxu0 %v718
      %v1711 = vpop.f32.mrf.mxu0
      %v1712 = vadd.f32 0.0, %v1711
      %v1713 = vpop.f32.mrf.mxu0
      %v1714 = vadd.f32 0.0, %v1713
      %v1715 = vpop.f32.mrf.mxu0
      %v1716 = vadd.f32 0.0, %v1715
      %v1717 = vpop.f32.mrf.mxu0
      %v1718 = vadd.f32 0.0, %v1717
      %1719 = vmatprep.mubr.bf16.mxu0 0
      %1720 = vmatmul.mubr.bf16.gmra.mxu0 %v721
      %v1721 = vpop.f32.mrf.mxu0
      %v1722 = vadd.f32 0.0, %v1721
      %v1723 = vpop.f32.mrf.mxu0
      %v1724 = vadd.f32 0.0, %v1723
      %v1725 = vpop.f32.mrf.mxu0
      %v1726 = vadd.f32 0.0, %v1725
      %v1727 = vpop.f32.mrf.mxu0
      %v1728 = vadd.f32 0.0, %v1727
      %1729 = vmatprep.mubr.bf16.mxu0 0
      %1730 = vmatmul.mubr.bf16.gmra.mxu0 %v724
      %v1731 = vpop.f32.mrf.mxu0
      %v1732 = vadd.f32 0.0, %v1731
      %v1733 = vpop.f32.mrf.mxu0
      %v1734 = vadd.f32 0.0, %v1733
      %v1735 = vpop.f32.mrf.mxu0
      %v1736 = vadd.f32 0.0, %v1735
      %v1737 = vpop.f32.mrf.mxu0
      %v1738 = vadd.f32 0.0, %v1737
      %1739 = vmatprep.mubr.bf16.mxu0 0
      %1740 = vmatmul.mubr.bf16.gmra.mxu0 %v727
      %v1741 = vpop.f32.mrf.mxu0
      %v1742 = vadd.f32 0.0, %v1741
      %v1743 = vpop.f32.mrf.mxu0
      %v1744 = vadd.f32 0.0, %v1743
      %v1745 = vpop.f32.mrf.mxu0
      %v1746 = vadd.f32 0.0, %v1745
      %v1747 = vpop.f32.mrf.mxu0
      %v1748 = vadd.f32 0.0, %v1747
      %1749 = vmatprep.mubr.bf16.mxu0 0
      %1750 = vmatmul.mubr.bf16.gmra.mxu0 %v730
      %v1751 = vpop.f32.mrf.mxu0
      %v1752 = vadd.f32 0.0, %v1751
      %v1753 = vpop.f32.mrf.mxu0
      %v1754 = vadd.f32 0.0, %v1753
      %v1755 = vpop.f32.mrf.mxu0
      %v1756 = vadd.f32 0.0, %v1755
      %v1757 = vpop.f32.mrf.mxu0
      %v1758 = vadd.f32 0.0, %v1757
      %1759 = vmatprep.mubr.bf16.mxu0 0
      %1760 = vmatmul.mubr.bf16.gmra.mxu0 %v733
      %v1761 = vpop.f32.mrf.mxu0
      %v1762 = vadd.f32 0.0, %v1761
      %v1763 = vpop.f32.mrf.mxu0
      %v1764 = vadd.f32 0.0, %v1763
      %v1765 = vpop.f32.mrf.mxu0
      %v1766 = vadd.f32 0.0, %v1765
      %v1767 = vpop.f32.mrf.mxu0
      %v1768 = vadd.f32 0.0, %v1767
      %1769 = vmatprep.mubr.bf16.mxu0 0
      %1770 = vmatmul.mubr.bf16.gmra.mxu0 %v1205
      %v1771 = vpop.f32.mrf.mxu0
      %v1772 = vadd.f32 0.0, %v1771
      %v1773 = vpop.f32.mrf.mxu0
      %v1774 = vadd.f32 0.0, %v1773
      %v1775 = vpop.f32.mrf.mxu0
      %v1776 = vadd.f32 0.0, %v1775
      %v1777 = vpop.f32.mrf.mxu0
      %v1778 = vadd.f32 0.0, %v1777
      %1779 = vmatprep.mubr.bf16.mxu0 0
      %1780 = vmatmul.mubr.bf16.gmra.mxu0 %v1675
      %v1781 = vpop.f32.mrf.mxu0
      %v1782 = vadd.f32 0.0, %v1781
      %v1783 = vpop.f32.mrf.mxu0
      %v1784 = vadd.f32 0.0, %v1783
      %v1785 = vpop.f32.mrf.mxu0
      %v1786 = vadd.f32 0.0, %v1785
      %v1787 = vpop.f32.mrf.mxu0
      %v1788 = vadd.f32 0.0, %v1787
      %1789 = vdwg.mxu0
      %1790 = vmatprep.subr.bf16.mxu0 0
      %1791 = vmatpush1.bf16.msra.mxu0 0
      %1792 = vmatprep.subr.bf16.mxu0 0
      %1793 = vmatpush1.bf16.msra.mxu0 0
      %1794 = vmatprep.subr.bf16.mxu0 0
      %1795 = vmatpush1.bf16.msra.mxu0 0
      %1796 = vmatprep.subr.bf16.mxu0 0
      %1797 = vmatpush1.bf16.msra.mxu0 0
      %1798 = vmatprep.subr.bf16.mxu0 0
      %1799 = vmatpush1.bf16.msra.mxu0 %v1661
      %1800 = vmatprep.subr.bf16.mxu0 0
      %1801 = vmatpush1.bf16.msra.mxu0 %v1658
      %1802 = vmatprep.subr.bf16.mxu0 0
      %1803 = vmatpush1.bf16.msra.mxu0 %v1655
      %1804 = vmatprep.subr.bf16.mxu0 0
      %1805 = vmatpush1.bf16.msra.mxu0 %v1652
      %1806 = vmatprep.subr.bf16.mxu0 0
      %1807 = vmatpush2.bf16.msra.mxu0 0
      %1808 = vmatprep.subr.bf16.mxu0 0
      %1809 = vmatpush2.bf16.msra.mxu0 0
      %1810 = vmatprep.subr.bf16.mxu0 0
      %1811 = vmatpush2.bf16.msra.mxu0 0
      %1812 = vmatprep.subr.bf16.mxu0 0
      %1813 = vmatpush2.bf16.msra.mxu0 0
      %1814 = vmatprep.subr.bf16.mxu0 0
      %1815 = vmatpush2.bf16.msra.mxu0 0
      %1816 = vmatprep.subr.bf16.mxu0 0
      %1817 = vmatpush2.bf16.msra.mxu0 0
      %1818 = vmatprep.subr.bf16.mxu0 0
      %1819 = vmatpush2.bf16.msra.mxu0 0
      %1820 = vmatprep.subr.bf16.mxu0 0
      %1821 = vmatpush2.bf16.msra.mxu0 0
      %1822 = vmatprep.mubr.bf16.mxu0 0
      %1823 = vmatmul.mubr.bf16.gmra.mxu0 %v718
      %v1824 = vpop.f32.mrf.mxu0
      %v1825 = vadd.f32 0.0, %v1824
      %v1826 = vpop.f32.mrf.mxu0
      %v1827 = vpop.f32.mrf.mxu0
      %v1828 = vadd.f32 0.0, %v1827
      %v1829 = vpop.f32.mrf.mxu0
      %1830 = vmatprep.mubr.bf16.mxu0 0
      %1831 = vmatmul.mubr.bf16.gmra.mxu0 %v721
      %v1832 = vpop.f32.mrf.mxu0
      %v1833 = vadd.f32 0.0, %v1832
      %v1834 = vpop.f32.mrf.mxu0
      %v1835 = vpop.f32.mrf.mxu0
      %v1836 = vadd.f32 0.0, %v1835
      %v1837 = vpop.f32.mrf.mxu0
      %1838 = vmatprep.mubr.bf16.mxu0 0
      %1839 = vmatmul.mubr.bf16.gmra.mxu0 %v724
      %v1840 = vpop.f32.mrf.mxu0
      %v1841 = vadd.f32 0.0, %v1840
      %v1842 = vpop.f32.mrf.mxu0
      %v1843 = vpop.f32.mrf.mxu0
      %v1844 = vadd.f32 0.0, %v1843
      %v1845 = vpop.f32.mrf.mxu0
      %1846 = vmatprep.mubr.bf16.mxu0 0
      %1847 = vmatmul.mubr.bf16.gmra.mxu0 %v727
      %v1848 = vpop.f32.mrf.mxu0
      %v1849 = vadd.f32 0.0, %v1848
      %v1850 = vpop.f32.mrf.mxu0
      %v1851 = vpop.f32.mrf.mxu0
      %v1852 = vadd.f32 0.0, %v1851
      %v1853 = vpop.f32.mrf.mxu0
      %1854 = vmatprep.mubr.bf16.mxu0 0
      %1855 = vmatmul.mubr.bf16.gmra.mxu0 %v730
      %v1856 = vpop.f32.mrf.mxu0
      %v1857 = vadd.f32 0.0, %v1856
      %v1858 = vpop.f32.mrf.mxu0
      %v1859 = vpop.f32.mrf.mxu0
      %v1860 = vadd.f32 0.0, %v1859
      %v1861 = vpop.f32.mrf.mxu0
      %1862 = vmatprep.mubr.bf16.mxu0 0
      %1863 = vmatmul.mubr.bf16.gmra.mxu0 %v733
      %v1864 = vpop.f32.mrf.mxu0
      %v1865 = vadd.f32 0.0, %v1864
      %v1866 = vpop.f32.mrf.mxu0
      %v1867 = vpop.f32.mrf.mxu0
      %v1868 = vadd.f32 0.0, %v1867
      %v1869 = vpop.f32.mrf.mxu0
      %1870 = vmatprep.mubr.bf16.mxu0 0
      %1871 = vmatmul.mubr.bf16.gmra.mxu0 %v1205
      %v1872 = vpop.f32.mrf.mxu0
      %v1873 = vadd.f32 0.0, %v1872
      %v1874 = vpop.f32.mrf.mxu0
      %v1875 = vpop.f32.mrf.mxu0
      %v1876 = vadd.f32 0.0, %v1875
      %v1877 = vpop.f32.mrf.mxu0
      %1878 = vmatprep.mubr.bf16.mxu0 0
      %1879 = vmatmul.mubr.bf16.gmra.mxu0 %v1675
      %v1880 = vpop.f32.mrf.mxu0
      %v1881 = vadd.f32 0.0, %v1880
      %v1882 = vpop.f32.mrf.mxu0
      %v1883 = vpop.f32.mrf.mxu0
      %v1884 = vadd.f32 0.0, %v1883
      %v1885 = vpop.f32.mrf.mxu0
      %1886 = vdwg.mxu0
      %v1903 = vrot.slane %v1712, 7
      %v1904 = vrot.slane %v1716, 7
      %v1905 = vsel %vm961, %v1903, %v1904
      %v1906 = vrot.slane %v1722, 7
      %v1907 = vrot.slane %v1726, 7
      %v1908 = vsel %vm961, %v1906, %v1907
      %v1909 = vrot.slane %v1732, 7
      %v1910 = vrot.slane %v1736, 7
      %v1911 = vsel %vm961, %v1909, %v1910
      %v1912 = vrot.slane %v1742, 7
      %v1913 = vrot.slane %v1746, 7
      %v1914 = vsel %vm961, %v1912, %v1913
      %v1915 = vrot.slane %v1752, 7
      %v1916 = vrot.slane %v1756, 7
      %v1917 = vsel %vm961, %v1915, %v1916
      %v1918 = vrot.slane %v1762, 7
      %v1919 = vrot.slane %v1766, 7
      %v1920 = vsel %vm961, %v1918, %v1919
      %v1921 = vrot.slane %v1772, 7
      %v1922 = vrot.slane %v1776, 7
      %v1923 = vsel %vm961, %v1921, %v1922
      %v1924 = vrot.slane %v1782, 7
      %v1925 = vrot.slane %v1786, 7
      %v1926 = vsel %vm961, %v1924, %v1925
      %v1943 = vsel %vm961, 0.0, %v1903
      %v1944 = vsel %vm961, 0.0, %v1906
      %v1945 = vsel %vm961, 0.0, %v1909
      %v1946 = vsel %vm961, 0.0, %v1912
      %v1947 = vsel %vm961, 0.0, %v1915
      %v1948 = vsel %vm961, 0.0, %v1918
      %v1949 = vsel %vm961, 0.0, %v1921
      %v1950 = vsel %vm961, 0.0, %v1924
      %v1951 = vadd.f32 %v1577, %v1943
      %v1952 = vadd.f32 %v1578, %v1905
      %v1953 = vadd.f32 %v1579, %v1944
      %v1954 = vadd.f32 %v1580, %v1908
      %v1955 = vadd.f32 %v1581, %v1945
      %v1956 = vadd.f32 %v1582, %v1911
      %v1957 = vadd.f32 %v1583, %v1946
      %v1958 = vadd.f32 %v1584, %v1914
      %v1959 = vadd.f32 %v1585, %v1947
      %v1960 = vadd.f32 %v1586, %v1917
      %v1961 = vadd.f32 %v1587, %v1948
      %v1962 = vadd.f32 %v1588, %v1920
      %v1963 = vadd.f32 %v1589, %v1949
      %v1964 = vadd.f32 %v1590, %v1923
      %v1965 = vadd.f32 %v1591, %v1950
      %v1966 = vadd.f32 %v1592, %v1926
      %v1967 = vadd.f32 %v1951, %v1714
      %v1968 = vadd.f32 %v1952, %v1718
      %v1969 = vadd.f32 %v1953, %v1724
      %v1970 = vadd.f32 %v1954, %v1728
      %v1971 = vadd.f32 %v1955, %v1734
      %v1972 = vadd.f32 %v1956, %v1738
      %v1973 = vadd.f32 %v1957, %v1744
      %v1974 = vadd.f32 %v1958, %v1748
      %v1975 = vadd.f32 %v1959, %v1754
      %v1976 = vadd.f32 %v1960, %v1758
      %v1977 = vadd.f32 %v1961, %v1764
      %v1978 = vadd.f32 %v1962, %v1768
      %v1979 = vadd.f32 %v1963, %v1774
      %v1980 = vadd.f32 %v1964, %v1778
      %v1981 = vadd.f32 %v1965, %v1784
      %v1982 = vadd.f32 %v1966, %v1788
      %v1999 = vrot.slane %v1825, 1
      %v2000 = vrot.slane %v1828, 1
      %v2001 = vsel %vm1058, %v1999, %v2000
      %v2002 = vrot.slane %v1833, 1
      %v2003 = vrot.slane %v1836, 1
      %v2004 = vsel %vm1058, %v2002, %v2003
      %v2005 = vrot.slane %v1841, 1
      %v2006 = vrot.slane %v1844, 1
      %v2007 = vsel %vm1058, %v2005, %v2006
      %v2008 = vrot.slane %v1849, 1
      %v2009 = vrot.slane %v1852, 1
      %v2010 = vsel %vm1058, %v2008, %v2009
      %v2011 = vrot.slane %v1857, 1
      %v2012 = vrot.slane %v1860, 1
      %v2013 = vsel %vm1058, %v2011, %v2012
      %v2014 = vrot.slane %v1865, 1
      %v2015 = vrot.slane %v1868, 1
      %v2016 = vsel %vm1058, %v2014, %v2015
      %v2017 = vrot.slane %v1873, 1
      %v2018 = vrot.slane %v1876, 1
      %v2019 = vsel %vm1058, %v2017, %v2018
      %v2020 = vrot.slane %v1881, 1
      %v2021 = vrot.slane %v1884, 1
      %v2022 = vsel %vm1058, %v2020, %v2021
      %v2039 = vsel %vm1058, %v2000, 0.0
      %v2040 = vsel %vm1058, %v2003, 0.0
      %v2041 = vsel %vm1058, %v2006, 0.0
      %v2042 = vsel %vm1058, %v2009, 0.0
      %v2043 = vsel %vm1058, %v2012, 0.0
      %v2044 = vsel %vm1058, %v2015, 0.0
      %v2045 = vsel %vm1058, %v2018, 0.0
      %v2046 = vsel %vm1058, %v2021, 0.0
      %v2047 = vadd.f32 %v1967, %v2001
      %v2048 = vadd.f32 %v1968, %v2039
      %v2049 = vadd.f32 %v1969, %v2004
      %v2050 = vadd.f32 %v1970, %v2040
      %v2051 = vadd.f32 %v1971, %v2007
      %v2052 = vadd.f32 %v1972, %v2041
      %v2053 = vadd.f32 %v1973, %v2010
      %v2054 = vadd.f32 %v1974, %v2042
      %v2055 = vadd.f32 %v1975, %v2013
      %v2056 = vadd.f32 %v1976, %v2043
      %v2057 = vadd.f32 %v1977, %v2016
      %v2058 = vadd.f32 %v1978, %v2044
      %v2059 = vadd.f32 %v1979, %v2019
      %v2060 = vadd.f32 %v1980, %v2045
      %v2061 = vadd.f32 %v1981, %v2022
      %v2062 = vadd.f32 %v1982, %v2046
      %v2063 = vld [vmem:[%s4] sm:$0x1]
      %v2065 = vlaneseq
      %v2066 = vshrl.u32 %v2065, 7
      %v2067 = vsub.s32 0, %v2066
      %v2068 = vrot.slane %v2063, %v2067
      %v2070 = vadd.f32 %v2047, %v2068
      %v2071 = vadd.f32 %v2048, %v2068
      %v2072 = vadd.f32 %v2049, %v2068
      %v2073 = vadd.f32 %v2050, %v2068
      %v2074 = vadd.f32 %v2051, %v2068
      %v2075 = vadd.f32 %v2052, %v2068
      %v2076 = vadd.f32 %v2053, %v2068
      %v2077 = vadd.f32 %v2054, %v2068
      %v2078 = vadd.f32 %v2055, %v2068
      %v2079 = vadd.f32 %v2056, %v2068
      %v2080 = vadd.f32 %v2057, %v2068
      %v2081 = vadd.f32 %v2058, %v2068
      %v2082 = vadd.f32 %v2059, %v2068
      %v2083 = vadd.f32 %v2060, %v2068
      %v2084 = vadd.f32 %v2061, %v2068
      %v2085 = vadd.f32 %v2062, %v2068
      %v2086 = vpack.c.bf16 %v2071, %v2070
      %v2087 = vpack.c.bf16 %v2073, %v2072
      %v2088 = vpack.c.bf16 %v2075, %v2074
      %v2089 = vpack.c.bf16 %v2077, %v2076
      %v2090 = vpack.c.bf16 %v2079, %v2078
      %v2091 = vpack.c.bf16 %v2081, %v2080
      %v2092 = vpack.c.bf16 %v2083, %v2082
      %v2093 = vpack.c.bf16 %v2085, %v2084
      %v2102 = vunpack.c.l.b16 %v2086
      %v2103 = vunpack.c.h.b16 %v2086
      %v2104 = vunpack.c.l.b16 %v2087
      %v2105 = vunpack.c.h.b16 %v2087
      %v2106 = vunpack.c.l.b16 %v2088
      %v2107 = vunpack.c.h.b16 %v2088
      %v2108 = vunpack.c.l.b16 %v2089
      %v2109 = vunpack.c.h.b16 %v2089
      %v2110 = vunpack.c.l.b16 %v2090
      %v2111 = vunpack.c.h.b16 %v2090
      %v2112 = vunpack.c.l.b16 %v2091
      %v2113 = vunpack.c.h.b16 %v2091
      %v2114 = vunpack.c.l.b16 %v2092
      %v2115 = vunpack.c.h.b16 %v2092
      %v2116 = vunpack.c.l.b16 %v2093
      %v2117 = vunpack.c.h.b16 %v2093
      %v2118 = vpack.c.b16 %v2102, %v2102
      %v2119 = vpack.c.b16 %v2103, %v2103
      %v2120 = vpack.c.b16 %v2104, %v2104
      %v2121 = vpack.c.b16 %v2105, %v2105
      %v2122 = vpack.c.b16 %v2106, %v2106
      %v2123 = vpack.c.b16 %v2107, %v2107
      %v2124 = vpack.c.b16 %v2108, %v2108
      %v2125 = vpack.c.b16 %v2109, %v2109
      %v2126 = vpack.c.b16 %v2110, %v2110
      %v2127 = vpack.c.b16 %v2111, %v2111
      %v2128 = vpack.c.b16 %v2112, %v2112
      %v2129 = vpack.c.b16 %v2113, %v2113
      %v2130 = vpack.c.b16 %v2114, %v2114
      %v2131 = vpack.c.b16 %v2115, %v2115
      %v2132 = vpack.c.b16 %v2116, %v2116
      %v2133 = vpack.c.b16 %v2117, %v2117
      %2150 = vst [vmem:[%s485] sm:$0xf] %v2118
      %2151 = vst [vmem:[%s485 + $0x4] sm:$0xf] %v2119
      %2152 = vst [vmem:[%s485 + $0x8] sm:$0xf] %v2120
      %2153 = vst [vmem:[%s485 + $0xc] sm:$0xf] %v2121
      %2154 = vst [vmem:[%s485 + $0x10] sm:$0xf] %v2122
      %2155 = vst [vmem:[%s485 + $0x14] sm:$0xf] %v2123
      %2156 = vst [vmem:[%s485 + $0x18] sm:$0xf] %v2124
      %2157 = vst [vmem:[%s485 + $0x1c] sm:$0xf] %v2125
      %2158 = vst [vmem:[%s485 + $0x20] sm:$0xf] %v2126
      %2159 = vst [vmem:[%s485 + $0x24] sm:$0xf] %v2127
      %2160 = vst [vmem:[%s485 + $0x28] sm:$0xf] %v2128
      %2161 = vst [vmem:[%s485 + $0x2c] sm:$0xf] %v2129
      %2162 = vst [vmem:[%s485 + $0x30] sm:$0xf] %v2130
      %2163 = vst [vmem:[%s485 + $0x34] sm:$0xf] %v2131
      %2164 = vst [vmem:[%s485 + $0x38] sm:$0xf] %v2132
      %2165 = vst [vmem:[%s485 + $0x3c] sm:$0xf] %v2133
      %v2166 = vadd.f32 %v2070, %v2071
      %v2167 = vadd.f32 %v2166, %v2072
      %v2168 = vadd.f32 %v2167, %v2073
      %v2169 = vadd.f32 %v2168, %v2074
      %v2170 = vadd.f32 %v2169, %v2075
      %v2171 = vadd.f32 %v2170, %v2076
      %v2172 = vadd.f32 %v2171, %v2077
      %v2173 = vadd.f32 %v2172, %v2078
      %v2174 = vadd.f32 %v2173, %v2079
      %v2175 = vadd.f32 %v2174, %v2080
      %v2176 = vadd.f32 %v2175, %v2081
      %v2177 = vadd.f32 %v2176, %v2082
      %v2178 = vadd.f32 %v2177, %v2083
      %v2179 = vadd.f32 %v2178, %v2084
      %v2180 = vadd.f32 %v2179, %v2085
      %v2181 = vrot.slane %v2180, 4
      %v2182 = vadd.f32 %v2180, %v2181
      %v2183 = vrot.slane %v2182, 2
      %v2184 = vadd.f32 %v2182, %v2183
      %v2185 = vrot.slane %v2184, 1
      %v2186 = vadd.f32 %v2184, %v2185
      %v2187 = vmul.f32 %v2070, %v2070
      %v2188 = vmul.f32 %v2071, %v2071
      %v2189 = vmul.f32 %v2072, %v2072
      %v2190 = vmul.f32 %v2073, %v2073
      %v2191 = vmul.f32 %v2074, %v2074
      %v2192 = vmul.f32 %v2075, %v2075
      %v2193 = vmul.f32 %v2076, %v2076
      %v2194 = vmul.f32 %v2077, %v2077
      %v2195 = vmul.f32 %v2078, %v2078
      %v2196 = vmul.f32 %v2079, %v2079
      %v2197 = vmul.f32 %v2080, %v2080
      %v2198 = vmul.f32 %v2081, %v2081
      %v2199 = vmul.f32 %v2082, %v2082
      %v2200 = vmul.f32 %v2083, %v2083
      %v2201 = vmul.f32 %v2084, %v2084
      %v2202 = vmul.f32 %v2085, %v2085
      %v2203 = vadd.f32 %v2187, %v2188
      %v2204 = vadd.f32 %v2203, %v2189
      %v2205 = vadd.f32 %v2204, %v2190
      %v2206 = vadd.f32 %v2205, %v2191
      %v2207 = vadd.f32 %v2206, %v2192
      %v2208 = vadd.f32 %v2207, %v2193
      %v2209 = vadd.f32 %v2208, %v2194
      %v2210 = vadd.f32 %v2209, %v2195
      %v2211 = vadd.f32 %v2210, %v2196
      %v2212 = vadd.f32 %v2211, %v2197
      %v2213 = vadd.f32 %v2212, %v2198
      %v2214 = vadd.f32 %v2213, %v2199
      %v2215 = vadd.f32 %v2214, %v2200
      %v2216 = vadd.f32 %v2215, %v2201
      %v2217 = vadd.f32 %v2216, %v2202
      %v2218 = vrot.slane %v2217, 4
      %v2219 = vadd.f32 %v2217, %v2218
      %v2220 = vrot.slane %v2219, 2
      %v2221 = vadd.f32 %v2219, %v2220
      %v2222 = vrot.slane %v2221, 1
      %v2223 = vadd.f32 %v2221, %v2222
      %v2224 = vsel %vm961, %v2186, %v2223
      %2225 = vst [vmem:[%s494] sm:$0x3] %v2224
      %s2226 = smul.u32 8, %s25
      %p2227 = scmp.lt.s32.totalorder %s24, 1
      %s2228 = scalar_select %p2227, %s24, 1
      %p2229 = scmp.lt.s32.totalorder %s2226, 15
      %s2230 = scalar_select %p2229, %s2226, 15
      %s2231 = smul.addr %s2230, 2
      %s2232 = smul.addr %s2228, 32
      %s2233 = sadd.s32 %s2231, %s2232
      %s2234 = smul.addr %s2233, 4
      %s2235 = scalar_lea.vmem %s7, %s2234
      %p2236 = scmp.lt.s32.totalorder %s24, 1
      %s2237 = scalar_select %p2236, %s24, 1
      %p2238 = scmp.lt.s32.totalorder %s25, 1
      %s2239 = scalar_select %p2238, %s25, 1
      %s2240 = smul.addr %s2237, 2
      %s2241 = sadd.s32 %s2239, %s2240
      %s2242 = smul.addr %s2241, 2
      %s2243 = scalar_lea.vmem %s8, %s2242
      // Predicated region
      $region49: #{dehaze_generator.5} parent=47 // pred_check
        %p2244 = pneg %p236
      $region50: #{dehaze_generator.5} parent=47 // pred_check_branch
        %2246 = sbr.rel (%p2244) target = $region52
      $region51: #{dehaze_generator.5} parent=47 // pred_region
        %s2247 = smul.u32 8, %s25
      $region52: #{dehaze_generator.5} parent=47 // pred_fallthru
        _
      // Predicated region
      $region53: #{dehaze_generator.5} parent=47 // pred_check
        %p2248 = pneg %p264
      $region54: #{dehaze_generator.5} parent=47 // pred_check_branch
        %2250 = sbr.rel (%p2248) target = $region56
      $region55: #{dehaze_generator.5} parent=47 // pred_region
        _
      $region56: #{dehaze_generator.5} parent=47 // pred_fallthru
        _
    $region48: #{dehaze_generator.5} parent=5 // pred_fallthru
      _
    %p2251 = scmp.le.s32.totalorder 2, %s15
    // Predicated region
    $region57: #{dehaze_generator.5} parent=5 // pred_check
      %p2252 = pneg %p2251
    $region58: #{dehaze_generator.5} parent=5 // pred_check_branch
      %2254 = sbr.rel (%p2252) target = $region60
    $region59: #{dehaze_generator.5} parent=5 // pred_region
      %s2255 = ssub.s32 %s15, 2
      // Predicated region
      $region61: #{dehaze_generator.5} parent=59 // pred_check
        %p2256 = pneg %p242
      $region62: #{dehaze_generator.5} parent=59 // pred_check_branch
        %2258 = sbr.rel (%p2256) target = $region64
      $region63: #{dehaze_generator.5} parent=59 // pred_region
        %s2259 = smul.u32 8, %s27
        %p2260 = scmp.lt.s32.totalorder %s26, 1
        %s2261 = scalar_select %p2260, %s26, 1
        %p2262 = scmp.lt.s32.totalorder %s2259, 15
        %s2263 = scalar_select %p2262, %s2259, 15
        %s2264 = smul.addr %s2263, 2
        %s2265 = smul.addr %s2261, 32
        %s2266 = sadd.s32 %s2264, %s2265
        %s2267 = smul.addr %s2266, 4
        %s2268 = scalar_lea.vmem %s7, %s2267
      $region64: #{dehaze_generator.5} parent=59 // pred_fallthru
        _
      // Predicated region
      $region65: #{dehaze_generator.5} parent=59 // pred_check
        %p2269 = pneg %p270
      $region66: #{dehaze_generator.5} parent=59 // pred_check_branch
        %2271 = sbr.rel (%p2269) target = $region68
      $region67: #{dehaze_generator.5} parent=59 // pred_region
        %p2272 = scmp.lt.s32.totalorder %s26, 1
        %s2273 = scalar_select %p2272, %s26, 1
        %p2274 = scmp.lt.s32.totalorder %s27, 1
        %s2275 = scalar_select %p2274, %s27, 1
        %s2276 = smul.addr %s2273, 2
        %s2277 = sadd.s32 %s2275, %s2276
        %s2278 = smul.addr %s2277, 2
        %s2279 = scalar_lea.vmem %s8, %s2278
      $region68: #{dehaze_generator.5} parent=59 // pred_fallthru
        _
    $region60: #{dehaze_generator.5} parent=5 // pred_fallthru
      _
  $region6: #{dehaze_generator.5} parent=0 // loop_footer
    %s19 = sadd.s32 1, %s15
  $region7: #{dehaze_generator.5} parent=0 // loop_footer_branch
    %14 = sbr.rel target = $region3
  $region8: #{dehaze_generator.5} parent=0 // loop_exit
    _

// kernel: dehaze_generator.6
$region0: #{dehaze_generator.6}
  #allocation0 [shape = 'u32[]', space=smem, size = 0x4, offset = 0x4, fixed_abs, tag = 'smem constant byte address 0x4 - core index']
  #allocation1 [shape = 'u32[144,128]{1,0:T(1,128)}', space=vmem, size = 0x12000, scoped, tag = 'internal scratch']
  %s0 = inlined_call_operand.vmem [shape: bf16[2,16,16,128], index: 0, kind: input, shape index: {}, may-alias: {0,1,2}]
  %s1 = inlined_call_operand.vmem [shape: bf16[2,16,16,128], index: 1, kind: input, shape index: {}, may-alias: {0,1,2}]
  %s2 = inlined_call_operand.vmem [shape: bf16[2,16,16,128], index: 2, kind: input, shape index: {}, may-alias: {0,1,2}]
  %s3 = inlined_call_operand.vmem [shape: bf16[3,128,192], index: 3, kind: input, shape index: {}]
  %s4 = inlined_call_operand.vmem [shape: f32[1,64], index: 4, kind: input, shape index: {}]
  %s5 = inlined_call_operand.vmem [shape: f32[1,128], index: 5, kind: input, shape index: {}]
  %s6 = inlined_call_operand.vmem [shape: f32[1,128], index: 6, kind: input, shape index: {}]
  %s7 = inlined_call_operand.vmem [shape: bf16[2,16,16,64], index: 7, kind: output, shape index: {0}]
  %s8 = inlined_call_operand.vmem [shape: f32[2,2,2,64], index: 8, kind: output, shape index: {1}]
  %9 = xla_tuple %s7, %s8
  %s10 = sld [smem:[#allocation0]]
  $region69: #{dehaze_generator.6} parent=0
    _
  %s12 = ssub.s32 1, %s10
  %s13 = scalar_select 0, %s12, %s10
  loop: start=0, step=1, limit=6
  $region2: #{dehaze_generator.6} parent=0 // loop_pre_header
    _
  $region3: #{dehaze_generator.6} parent=0 // loop_header
    %s15 = sphi 0, %s19
    %p16 = scmp.ge.s32.totalorder %s15, 6
    %s22 = sphi 0, %s34
    %s23 = sphi 0, %s30
    %s24 = sphi 0, %s22
    %s25 = sphi 0, %s23
    %s26 = sphi 0, %s24
    %s27 = sphi 0, %s25
    %s39 = sphi 0, %s41
    %s42 = sphi 0, %s39
    %s43 = sphi 0, %s42
    %s59 = sphi 0, %s43
    %s75 = sphi 0, %s77
    %s78 = sphi 0, %s75
    %s79 = sphi 0, %s78
    %s95 = sphi 0, %s79
    %s111 = sphi 0, %s113
    %s114 = sphi 0, %s111
    %s115 = sphi 0, %s114
    %s131 = sphi 0, %s115
    %s135 = sphi 0, %s135
    %s137 = sphi 0, %s135
    %s138 = sphi 0, %s137
    %s152 = sphi 0, %s138
    %s156 = sphi 0, %s156
    %s158 = sphi 0, %s156
    %s159 = sphi 0, %s158
    %s173 = sphi 0, %s159
    %s177 = sphi 0, %s177
    %s179 = sphi 0, %s177
    %s180 = sphi 0, %s179
    %s194 = sphi 0, %s180
    %s198 = sphi 0, %s198
    %s200 = sphi 0, %s198
    %s201 = sphi 0, %s200
    %s215 = sphi 0, %s201
    %s223 = sphi 0, %s225
    %s226 = sphi 0, %s223
    %s227 = sphi 0, %s226
    %s243 = sphi 0, %s227
    %s251 = sphi 0, %s253
    %s254 = sphi 0, %s251
    %s255 = sphi 0, %s254
    %s271 = sphi 0, %s255
  $region4: #{dehaze_generator.6} parent=0 // loop_header_branch
    %18 = sbr.rel (%p16) target = $region8
  $region5: #{dehaze_generator.6} parent=0 // loop_body
    %s20 = ssub.s32 %s15, 1
    %s21 = ssub.s32 %s15, 2
    %s28 = sadd.s32 1, %s23
    %p29 = scmp.ge.s32.totalorder %s28, 2
    %s30 = scalar_select %p29, 0, %s28
    %s31 = sadd.s32 1, %s22
    %s32 = scalar_select %p29, %s31, %s22
    %p33 = scmp.ge.s32.totalorder %s32, 2
    %s34 = scalar_select %p33, 0, %s32
    %s35 = ssub.s32 %s22, %s34
    %s36 = ssub.s32 %s23, %s30
    %s37 = sor.u32 %s35, %s36
    %p38 = scmp.eq.s32.totalorder %s37, 0
    %s40 = sadd.s32 %s39, 1
    %s41 = scalar_select %p38, %s39, %s40
    %p44 = pneg %p38
    %p45 = scmp.eq.s32.totalorder %s15, 3
    %p46 = por %p44, %p45
    %p47 = scmp.ne.s32.totalorder %s39, %s42
    %p48 = scmp.eq.s32.totalorder %s15, 0
    %p49 = por %p47, %p48
    %p50 = scmp.ne.s32.totalorder %s39, %s42
    %p51 = scmp.eq.s32.totalorder %s20, 3
    %p52 = por %p50, %p51
    %p53 = scmp.ne.s32.totalorder %s42, %s43
    %p54 = scmp.eq.s32.totalorder %s20, 0
    %p55 = por %p53, %p54
    %p56 = scmp.ne.s32.totalorder %s42, %s43
    %p57 = scmp.eq.s32.totalorder %s21, 3
    %p58 = por %p56, %p57
    %p60 = scmp.ne.s32.totalorder %s43, %s59
    %p61 = scmp.eq.s32.totalorder %s21, 0
    %p62 = por %p60, %p61
    %s63 = smul.u32 %s23, 8
    %s64 = ssub.s32 %s63, 1
    %p65 = scmp.gt.s32.totalorder %s64, 0
    %s66 = scalar_select %p65, %s64, 0
    %s67 = smul.u32 %s30, 8
    %s68 = ssub.s32 %s67, 1
    %p69 = scmp.gt.s32.totalorder %s68, 0
    %s70 = scalar_select %p69, %s68, 0
    %s71 = ssub.s32 %s22, %s34
    %s72 = ssub.s32 %s66, %s70
    %s73 = sor.u32 %s71, %s72
    %p74 = scmp.eq.s32.totalorder %s73, 0
    %s76 = sadd.s32 %s75, 1
    %s77 = scalar_select %p74, %s75, %s76
    %p80 = pneg %p74
    %p81 = scmp.eq.s32.totalorder %s15, 3
    %p82 = por %p80, %p81
    %p83 = scmp.ne.s32.totalorder %s75, %s78
    %p84 = scmp.eq.s32.totalorder %s15, 0
    %p85 = por %p83, %p84
    %p86 = scmp.ne.s32.totalorder %s75, %s78
    %p87 = scmp.eq.s32.totalorder %s20, 3
    %p88 = por %p86, %p87
    %p89 = scmp.ne.s32.totalorder %s78, %s79
    %p90 = scmp.eq.s32.totalorder %s20, 0
    %p91 = por %p89, %p90
    %p92 = scmp.ne.s32.totalorder %s78, %s79
    %p93 = scmp.eq.s32.totalorder %s21, 3
    %p94 = por %p92, %p93
    %p96 = scmp.ne.s32.totalorder %s79, %s95
    %p97 = scmp.eq.s32.totalorder %s21, 0
    %p98 = por %p96, %p97
    %s99 = sadd.s32 %s23, 1
    %s100 = smul.u32 %s99, 8
    %p101 = scmp.lt.s32.totalorder %s100, 15
    %s102 = scalar_select %p101, %s100, 15
    %s103 = sadd.s32 %s30, 1
    %s104 = smul.u32 %s103, 8
    %p105 = scmp.lt.s32.totalorder %s104, 15
    %s106 = scalar_select %p105, %s104, 15
    %s107 = ssub.s32 %s22, %s34
    %s108 = ssub.s32 %s102, %s106
    %s109 = sor.u32 %s107, %s108
    %p110 = scmp.eq.s32.totalorder %s109, 0
    %s112 = sadd.s32 %s111, 1
    %s113 = scalar_select %p110, %s111, %s112
    %p116 = pneg %p110
    %p117 = scmp.eq.s32.totalorder %s15, 3
    %p118 = por %p116, %p117
    %p119 = scmp.ne.s32.totalorder %s111, %s114
    %p120 = scmp.eq.s32.totalorder %s15, 0
    %p121 = por %p119, %p120
    %p122 = scmp.ne.s32.totalorder %s111, %s114
    %p123 = scmp.eq.s32.totalorder %s20, 3
    %p124 = por %p122, %p123
    %p125 = scmp.ne.s32.totalorder %s114, %s115
    %p126 = scmp.eq.s32.totalorder %s20, 0
    %p127 = por %p125, %p126
    %p128 = scmp.ne.s32.totalorder %s114, %s115
    %p129 = scmp.eq.s32.totalorder %s21, 3
    %p130 = por %p128, %p129
    %p132 = scmp.ne.s32.totalorder %s115, %s131
    %p133 = scmp.eq.s32.totalorder %s21, 0
    %p134 = por %p132, %p133
    %s136 = sadd.s32 %s135, 1
    %p139 = scmp.eq.s32.totalorder %s15, 3
    %p140 = scmp.ne.s32.totalorder %s135, %s137
    %p141 = scmp.eq.s32.totalorder %s15, 0
    %p142 = por %p140, %p141
    %p143 = scmp.ne.s32.totalorder %s135, %s137
    %p144 = scmp.eq.s32.totalorder %s20, 3
    %p145 = por %p143, %p144
    %p146 = scmp.ne.s32.totalorder %s137, %s138
    %p147 = scmp.eq.s32.totalorder %s20, 0
    %p148 = por %p146, %p147
    %p149 = scmp.ne.s32.totalorder %s137, %s138
    %p150 = scmp.eq.s32.totalorder %s21, 3
    %p151 = por %p149, %p150
    %p153 = scmp.ne.s32.totalorder %s138, %s152
    %p154 = scmp.eq.s32.totalorder %s21, 0
    %p155 = por %p153, %p154
    %s157 = sadd.s32 %s156, 1
    %p160 = scmp.eq.s32.totalorder %s15, 3
    %p161 = scmp.ne.s32.totalorder %s156, %s158
    %p162 = scmp.eq.s32.totalorder %s15, 0
    %p163 = por %p161, %p162
    %p164 = scmp.ne.s32.totalorder %s156, %s158
    %p165 = scmp.eq.s32.totalorder %s20, 3
    %p166 = por %p164, %p165
    %p167 = scmp.ne.s32.totalorder %s158, %s159
    %p168 = scmp.eq.s32.totalorder %s20, 0
    %p169 = por %p167, %p168
    %p170 = scmp.ne.s32.totalorder %s158, %s159
    %p171 = scmp.eq.s32.totalorder %s21, 3
    %p172 = por %p170, %p171
    %p174 = scmp.ne.s32.totalorder %s159, %s173
    %p175 = scmp.eq.s32.totalorder %s21, 0
    %p176 = por %p174, %p175
    %s178 = sadd.s32 %s177, 1
    %p181 = scmp.eq.s32.totalorder %s15, 3
    %p182 = scmp.ne.s32.totalorder %s177, %s179
    %p183 = scmp.eq.s32.totalorder %s15, 0
    %p184 = por %p182, %p183
    %p185 = scmp.ne.s32.totalorder %s177, %s179
    %p186 = scmp.eq.s32.totalorder %s20, 3
    %p187 = por %p185, %p186
    %p188 = scmp.ne.s32.totalorder %s179, %s180
    %p189 = scmp.eq.s32.totalorder %s20, 0
    %p190 = por %p188, %p189
    %p191 = scmp.ne.s32.totalorder %s179, %s180
    %p192 = scmp.eq.s32.totalorder %s21, 3
    %p193 = por %p191, %p192
    %p195 = scmp.ne.s32.totalorder %s180, %s194
    %p196 = scmp.eq.s32.totalorder %s21, 0
    %p197 = por %p195, %p196
    %s199 = sadd.s32 %s198, 1
    %p202 = scmp.eq.s32.totalorder %s15, 3
    %p203 = scmp.ne.s32.totalorder %s198, %s200
    %p204 = scmp.eq.s32.totalorder %s15, 0
    %p205 = por %p203, %p204
    %p206 = scmp.ne.s32.totalorder %s198, %s200
    %p207 = scmp.eq.s32.totalorder %s20, 3
    %p208 = por %p206, %p207
    %p209 = scmp.ne.s32.totalorder %s200, %s201
    %p210 = scmp.eq.s32.totalorder %s20, 0
    %p211 = por %p209, %p210
    %p212 = scmp.ne.s32.totalorder %s200, %s201
    %p213 = scmp.eq.s32.totalorder %s21, 3
    %p214 = por %p212, %p213
    %p216 = scmp.ne.s32.totalorder %s201, %s215
    %p217 = scmp.eq.s32.totalorder %s21, 0
    %p218 = por %p216, %p217
    %s219 = ssub.s32 %s22, %s34
    %s220 = ssub.s32 %s23, %s30
    %s221 = sor.u32 %s219, %s220
    %p222 = scmp.eq.s32.totalorder %s221, 0
    %s224 = sadd.s32 %s223, 1
    %s225 = scalar_select %p222, %s223, %s224
    %p228 = pneg %p222
    %p229 = scmp.eq.s32.totalorder %s15, 3
    %p230 = por %p228, %p229
    %p231 = scmp.ne.s32.totalorder %s223, %s226
    %p232 = scmp.eq.s32.totalorder %s15, 0
    %p233 = por %p231, %p232
    %p234 = scmp.ne.s32.totalorder %s223, %s226
    %p235 = scmp.eq.s32.totalorder %s20, 3
    %p236 = por %p234, %p235
    %p237 = scmp.ne.s32.totalorder %s226, %s227
    %p238 = scmp.eq.s32.totalorder %s20, 0
    %p239 = por %p237, %p238
    %p240 = scmp.ne.s32.totalorder %s226, %s227
    %p241 = scmp.eq.s32.totalorder %s21, 3
    %p242 = por %p240, %p241
    %p244 = scmp.ne.s32.totalorder %s227, %s243
    %p245 = scmp.eq.s32.totalorder %s21, 0
    %p246 = por %p244, %p245
    %s247 = ssub.s32 %s22, %s34
    %s248 = ssub.s32 %s23, %s30
    %s249 = sor.u32 %s247, %s248
    %p250 = scmp.eq.s32.totalorder %s249, 0
    %s252 = sadd.s32 %s251, 1
    %s253 = scalar_select %p250, %s251, %s252
    %p256 = pneg %p250
    %p257 = scmp.eq.s32.totalorder %s15, 3
    %p258 = por %p256, %p257
    %p259 = scmp.ne.s32.totalorder %s251, %s254
    %p260 = scmp.eq.s32.totalorder %s15, 0
    %p261 = por %p259, %p260
    %p262 = scmp.ne.s32.totalorder %s251, %s254
    %p263 = scmp.eq.s32.totalorder %s20, 3
    %p264 = por %p262, %p263
    %p265 = scmp.ne.s32.totalorder %s254, %s255
    %p266 = scmp.eq.s32.totalorder %s20, 0
    %p267 = por %p265, %p266
    %p268 = scmp.ne.s32.totalorder %s254, %s255
    %p269 = scmp.eq.s32.totalorder %s21, 3
    %p270 = por %p268, %p269
    %p272 = scmp.ne.s32.totalorder %s255, %s271
    %p273 = scmp.eq.s32.totalorder %s21, 0
    %p274 = por %p272, %p273
    %p275 = scmp.le.s32.totalorder 1, %s15
    %p276 = scmp.lt.s32.totalorder %s15, 5
    %p277 = pnand %p275, %p276
    %p278 = pneg %p277
    // Predicated region
    $region9: #{dehaze_generator.6} parent=5 // pred_check
      _
    $region10: #{dehaze_generator.6} parent=5 // pred_check_branch
      %280 = sbr.rel (%p277) target = $region12
    $region11: #{dehaze_generator.6} parent=5 // pred_region
      %s281 = ssub.s32 %s15, 1
      // Predicated region
      $region13: #{dehaze_generator.6} parent=11 // pred_check
        %p282 = pneg %p148
      $region14: #{dehaze_generator.6} parent=11 // pred_check_branch
        %284 = sbr.rel (%p282) target = $region16
      $region15: #{dehaze_generator.6} parent=11 // pred_region
        _
      $region16: #{dehaze_generator.6} parent=11 // pred_fallthru
        _
      // Predicated region
      $region17: #{dehaze_generator.6} parent=11 // pred_check
        %p285 = pneg %p169
      $region18: #{dehaze_generator.6} parent=11 // pred_check_branch
        %287 = sbr.rel (%p285) target = $region20
      $region19: #{dehaze_generator.6} parent=11 // pred_region
        _
      $region20: #{dehaze_generator.6} parent=11 // pred_fallthru
        _
      // Predicated region
      $region21: #{dehaze_generator.6} parent=11 // pred_check
        %p288 = pneg %p190
      $region22: #{dehaze_generator.6} parent=11 // pred_check_branch
        %290 = sbr.rel (%p288) target = $region24
      $region23: #{dehaze_generator.6} parent=11 // pred_region
        _
      $region24: #{dehaze_generator.6} parent=11 // pred_fallthru
        _
      // Predicated region
      $region25: #{dehaze_generator.6} parent=11 // pred_check
        %p291 = pneg %p211
      $region26: #{dehaze_generator.6} parent=11 // pred_check_branch
        %293 = sbr.rel (%p291) target = $region28
      $region27: #{dehaze_generator.6} parent=11 // pred_region
        _
      $region28: #{dehaze_generator.6} parent=11 // pred_fallthru
        _
    $region12: #{dehaze_generator.6} parent=5 // pred_fallthru
      _
    %p294 = scmp.lt.s32.totalorder %s15, 4
    // Predicated region
    $region29: #{dehaze_generator.6} parent=5 // pred_check
      %p295 = pneg %p294
    $region30: #{dehaze_generator.6} parent=5 // pred_check_branch
      %297 = sbr.rel (%p295) target = $region32
    $region31: #{dehaze_generator.6} parent=5 // pred_region
      // Predicated region
      $region33: #{dehaze_generator.6} parent=31 // pred_check
        %p298 = pneg %p49
      $region34: #{dehaze_generator.6} parent=31 // pred_check_branch
        %300 = sbr.rel (%p298) target = $region36
      $region35: #{dehaze_generator.6} parent=31 // pred_region
        %s301 = smul.u32 8, %s23
        %p302 = scmp.lt.s32.totalorder %s22, 1
        %s303 = scalar_select %p302, %s22, 1
        %p304 = scmp.lt.s32.totalorder %s301, 15
        %s305 = scalar_select %p304, %s301, 15
        %s306 = smul.addr %s305, 2
        %s307 = smul.addr %s303, 32
        %s308 = sadd.s32 %s306, %s307
        %s309 = smul.addr %s308, 4
        %s310 = scalar_lea.vmem %s0, %s309
        %s311 = smul.u32 8, %s23
      $region36: #{dehaze_generator.6} parent=31 // pred_fallthru
        _
      // Predicated region
      $region37: #{dehaze_generator.6} parent=31 // pred_check
        %p312 = pneg %p85
      $region38: #{dehaze_generator.6} parent=31 // pred_check_branch
        %314 = sbr.rel (%p312) target = $region40
      $region39: #{dehaze_generator.6} parent=31 // pred_region
        %s315 = smul.u32 %s23, 8
        %s316 = ssub.s32 %s315, 1
        %p317 = scmp.gt.s32.totalorder %s316, 0
        %s318 = scalar_select %p317, %s316, 0
        %p319 = scmp.lt.s32.totalorder %s22, 1
        %s320 = scalar_select %p319, %s22, 1
        %p321 = scmp.lt.s32.totalorder %s318, 15
        %s322 = scalar_select %p321, %s318, 15
        %s323 = smul.addr %s322, 2
        %s324 = smul.addr %s320, 32
        %s325 = sadd.s32 %s323, %s324
        %s326 = smul.addr %s325, 4
        %s327 = scalar_lea.vmem %s1, %s326
        %s328 = smul.u32 %s23, 8
        %s329 = ssub.s32 %s328, 1
        %p330 = scmp.gt.s32.totalorder %s329, 0
        %s331 = scalar_select %p330, %s329, 0
      $region40: #{dehaze_generator.6} parent=31 // pred_fallthru
        _
      // Predicated region
      $region41: #{dehaze_generator.6} parent=31 // pred_check
        %p332 = pneg %p121
      $region42: #{dehaze_generator.6} parent=31 // pred_check_branch
        %334 = sbr.rel (%p332) target = $region44
      $region43: #{dehaze_generator.6} parent=31 // pred_region
        %s335 = sadd.s32 %s23, 1
        %s336 = smul.u32 %s335, 8
        %p337 = scmp.lt.s32.totalorder %s336, 15
        %s338 = scalar_select %p337, %s336, 15
        %p339 = scmp.lt.s32.totalorder %s22, 1
        %s340 = scalar_select %p339, %s22, 1
        %p341 = scmp.lt.s32.totalorder %s338, 15
        %s342 = scalar_select %p341, %s338, 15
        %s343 = smul.addr %s342, 2
        %s344 = smul.addr %s340, 32
        %s345 = sadd.s32 %s343, %s344
        %s346 = smul.addr %s345, 4
        %s347 = scalar_lea.vmem %s2, %s346
        %s348 = sadd.s32 %s23, 1
        %s349 = smul.u32 %s348, 8
        %p350 = scmp.lt.s32.totalorder %s349, 15
        %s351 = scalar_select %p350, %s349, 15
      $region44: #{dehaze_generator.6} parent=31 // pred_fallthru
        _
    $region32: #{dehaze_generator.6} parent=5 // pred_fallthru
      _
    %p352 = scmp.le.s32.totalorder 1, %s15
    %p353 = scmp.lt.s32.totalorder %s15, 5
    %p354 = pnand %p352, %p353
    %p355 = pneg %p354
    // Predicated region
    $region45: #{dehaze_generator.6} parent=5 // pred_check
      _
    $region46: #{dehaze_generator.6} parent=5 // pred_check_branch
      %357 = sbr.rel (%p354) target = $region48
    $region47: #{dehaze_generator.6} parent=5 // pred_region
      %s358 = ssub.s32 %s15, 1
      %s359 = smul.u32 8, %s25
      %p360 = scmp.lt.s32.totalorder %s24, 1
      %s361 = scalar_select %p360, %s24, 1
      %p362 = scmp.lt.s32.totalorder %s359, 15
      %s363 = scalar_select %p362, %s359, 15
      %s364 = smul.addr %s363, 2
      %s365 = smul.addr %s361, 32
      %s366 = sadd.s32 %s364, %s365
      %s367 = smul.addr %s366, 4
      %s368 = scalar_lea.vmem %s0, %s367
      %p369 = pneg %p55
      %p370 = pneg %p52
      %s371 = smul.u32 %s25, 8
      %s372 = ssub.s32 %s371, 1
      %p373 = scmp.gt.s32.totalorder %s372, 0
      %s374 = scalar_select %p373, %s372, 0
      %p375 = scmp.lt.s32.totalorder %s24, 1
      %s376 = scalar_select %p375, %s24, 1
      %p377 = scmp.lt.s32.totalorder %s374, 15
      %s378 = scalar_select %p377, %s374, 15
      %s379 = smul.addr %s378, 2
      %s380 = smul.addr %s376, 32
      %s381 = sadd.s32 %s379, %s380
      %s382 = smul.addr %s381, 4
      %s383 = scalar_lea.vmem %s1, %s382
      %p384 = pneg %p91
      %p385 = pneg %p88
      %s386 = sadd.s32 %s25, 1
      %s387 = smul.u32 %s386, 8
      %p388 = scmp.lt.s32.totalorder %s387, 15
      %s389 = scalar_select %p388, %s387, 15
      %p390 = scmp.lt.s32.totalorder %s24, 1
      %s391 = scalar_select %p390, %s24, 1
      %p392 = scmp.lt.s32.totalorder %s389, 15
      %s393 = scalar_select %p392, %s389, 15
      %s394 = smul.addr %s393, 2
      %s395 = smul.addr %s391, 32
      %s396 = sadd.s32 %s394, %s395
      %s397 = smul.addr %s396, 4
      %s398 = scalar_lea.vmem %s2, %s397
      %p399 = pneg %p127
      %p400 = pneg %p124
      %p401 = pneg %p148
      %p402 = pneg %p145
      %p403 = pneg %p169
      %p404 = pneg %p166
      %p405 = pneg %p190
      %p406 = pneg %p187
      %p407 = pneg %p211
      %p408 = pneg %p208
      %p409 = pneg %p239
      %p410 = pneg %p236
      %s411 = smul.u32 8, %s25
      %p412 = scmp.lt.s32.totalorder %s24, 1
      %s413 = scalar_select %p412, %s24, 1
      %p414 = scmp.lt.s32.totalorder %s411, 15
      %s415 = scalar_select %p414, %s411, 15
      %s416 = smul.addr %s415, 2
      %s417 = smul.addr %s413, 32
      %s418 = sadd.s32 %s416, %s417
      %s419 = smul.addr %s418, 4
      %s420 = scalar_lea.vmem %s7, %s419
      %p421 = pneg %p267
      %p422 = pneg %p264
      %p423 = scmp.lt.s32.totalorder %s24, 1
      %s424 = scalar_select %p423, %s24, 1
      %p425 = scmp.lt.s32.totalorder %s25, 1
      %s426 = scalar_select %p425, %s25, 1
      %s427 = smul.addr %s424, 2
      %s428 = sadd.s32 %s426, %s427
      %s429 = smul.addr %s428, 2
      %s430 = scalar_lea.vmem %s8, %s429
      %s431 = smul.u32 8, %s25
      %p432 = scmp.lt.s32.totalorder %s24, 1
      %s433 = scalar_select %p432, %s24, 1
      %p434 = scmp.lt.s32.totalorder %s431, 15
      %s435 = scalar_select %p434, %s431, 15
      %s436 = smul.addr %s435, 2
      %s437 = smul.addr %s433, 32
      %s438 = sadd.s32 %s436, %s437
      %s439 = smul.addr %s438, 4
      %s440 = scalar_lea.vmem %s0, %s439
      %s441 = smul.u32 8, %s25
      %s442 = smul.u32 %s25, 8
      %s443 = ssub.s32 %s442, 1
      %p444 = scmp.gt.s32.totalorder %s443, 0
      %s445 = scalar_select %p444, %s443, 0
      %p446 = scmp.lt.s32.totalorder %s24, 1
      %s447 = scalar_select %p446, %s24, 1
      %p448 = scmp.lt.s32.totalorder %s445, 15
      %s449 = scalar_select %p448, %s445, 15
      %s450 = smul.addr %s449, 2
      %s451 = smul.addr %s447, 32
      %s452 = sadd.s32 %s450, %s451
      %s453 = smul.addr %s452, 4
      %s454 = scalar_lea.vmem %s1, %s453
      %s455 = smul.u32 %s25, 8
      %s456 = ssub.s32 %s455, 1
      %p457 = scmp.gt.s32.totalorder %s456, 0
      %s458 = scalar_select %p457, %s456, 0
      %s459 = sadd.s32 %s25, 1
      %s460 = smul.u32 %s459, 8
      %p461 = scmp.lt.s32.totalorder %s460, 15
      %s462 = scalar_select %p461, %s460, 15
      %p463 = scmp.lt.s32.totalorder %s24, 1
      %s464 = scalar_select %p463, %s24, 1
      %p465 = scmp.lt.s32.totalorder %s462, 15
      %s466 = scalar_select %p465, %s462, 15
      %s467 = smul.addr %s466, 2
      %s468 = smul.addr %s464, 32
      %s469 = sadd.s32 %s467, %s468
      %s470 = smul.addr %s469, 4
      %s471 = scalar_lea.vmem %s2, %s470
      %s472 = sadd.s32 %s25, 1
      %s473 = smul.u32 %s472, 8
      %p474 = scmp.lt.s32.totalorder %s473, 15
      %s475 = scalar_select %p474, %s473, 15
      %s476 = smul.u32 8, %s25
      %p477 = scmp.lt.s32.totalorder %s24, 1
      %s478 = scalar_select %p477, %s24, 1
      %p479 = scmp.lt.s32.totalorder %s476, 15
      %s480 = scalar_select %p479, %s476, 15
      %s481 = smul.addr %s480, 2
      %s482 = smul.addr %s478, 32
      %s483 = sadd.s32 %s481, %s482
      %s484 = smul.addr %s483, 4
      %s485 = scalar_lea.vmem %s7, %s484
      %s486 = smul.u32 8, %s25
      %p487 = scmp.lt.s32.totalorder %s24, 1
      %s488 = scalar_select %p487, %s24, 1
      %p489 = scmp.lt.s32.totalorder %s25, 1
      %s490 = scalar_select %p489, %s25, 1
      %s491 = smul.addr %s488, 2
      %s492 = sadd.s32 %s490, %s491
      %s493 = smul.addr %s492, 2
      %s494 = scalar_lea.vmem %s8, %s493
      %v496 = vld [vmem:[%s440] sm:$0xf]
      %v497 = vld [vmem:[%s440 + $0x4] sm:$0xf]
      %v498 = vld [vmem:[%s440 + $0x8] sm:$0xf]
      %v499 = vld [vmem:[%s440 + $0xc] sm:$0xf]
      %v500 = vld [vmem:[%s440 + $0x10] sm:$0xf]
      %v501 = vld [vmem:[%s440 + $0x14] sm:$0xf]
      %v502 = vld [vmem:[%s440 + $0x18] sm:$0xf]
      %v503 = vld [vmem:[%s440 + $0x1c] sm:$0xf]
      %v504 = vld [vmem:[%s440 + $0x20] sm:$0xf]
      %v505 = vld [vmem:[%s440 + $0x24] sm:$0xf]
      %v506 = vld [vmem:[%s440 + $0x28] sm:$0xf]
      %v507 = vld [vmem:[%s440 + $0x2c] sm:$0xf]
      %v508 = vld [vmem:[%s440 + $0x30] sm:$0xf]
      %v509 = vld [vmem:[%s440 + $0x34] sm:$0xf]
      %v510 = vld [vmem:[%s440 + $0x38] sm:$0xf]
      %v511 = vld [vmem:[%s440 + $0x3c] sm:$0xf]
      %v512 = vunpack.c.l.bf16 %v496
      %v513 = vunpack.c.l.bf16 %v497
      %v514 = vunpack.c.l.bf16 %v498
      %v515 = vunpack.c.l.bf16 %v499
      %v516 = vunpack.c.l.bf16 %v500
      %v517 = vunpack.c.l.bf16 %v501
      %v518 = vunpack.c.l.bf16 %v502
      %v519 = vunpack.c.l.bf16 %v503
      %v520 = vunpack.c.l.bf16 %v504
      %v521 = vunpack.c.l.bf16 %v505
      %v522 = vunpack.c.l.bf16 %v506
      %v523 = vunpack.c.l.bf16 %v507
      %v524 = vunpack.c.l.bf16 %v508
      %v525 = vunpack.c.l.bf16 %v509
      %v526 = vunpack.c.l.bf16 %v510
      %v527 = vunpack.c.l.bf16 %v511
      %v528 = vld [vmem:[%s454] sm:$0xf]
      %v529 = vld [vmem:[%s454 + $0x4] sm:$0xf]
      %v530 = vunpack.c.l.bf16 %v528
      %v531 = vunpack.c.l.bf16 %v529
      %v532 = vld [vmem:[%s471] sm:$0xf]
      %v533 = vld [vmem:[%s471 + $0x4] sm:$0xf]
      %v534 = vunpack.c.l.bf16 %v532
      %v535 = vunpack.c.l.bf16 %v533
      %v536 = vld [vmem:[%s5] sm:$0x1]
      %v537 = vld [vmem:[%s6] sm:$0x1]
      %v539 = vlaneseq
      %v540 = vshrl.u32 %v539, 7
      %v541 = vsub.s32 0, %v540
      %v542 = vrot.slane %v536, %v541
      %v544 = vmul.f32 %v512, %v542
      %v545 = vmul.f32 %v513, %v542
      %v546 = vmul.f32 %v514, %v542
      %v547 = vmul.f32 %v515, %v542
      %v548 = vmul.f32 %v516, %v542
      %v549 = vmul.f32 %v517, %v542
      %v550 = vmul.f32 %v518, %v542
      %v551 = vmul.f32 %v519, %v542
      %v552 = vmul.f32 %v520, %v542
      %v553 = vmul.f32 %v521, %v542
      %v554 = vmul.f32 %v522, %v542
      %v555 = vmul.f32 %v523, %v542
      %v556 = vmul.f32 %v524, %v542
      %v557 = vmul.f32 %v525, %v542
      %v558 = vmul.f32 %v526, %v542
      %v559 = vmul.f32 %v527, %v542
      %v561 = vlaneseq
      %v562 = vshrl.u32 %v561, 7
      %v563 = vsub.s32 0, %v562
      %v564 = vrot.slane %v537, %v563
      %v566 = vadd.f32 %v544, %v564
      %v567 = vadd.f32 %v545, %v564
      %v568 = vadd.f32 %v546, %v564
      %v569 = vadd.f32 %v547, %v564
      %v570 = vadd.f32 %v548, %v564
      %v571 = vadd.f32 %v549, %v564
      %v572 = vadd.f32 %v550, %v564
      %v573 = vadd.f32 %v551, %v564
      %v574 = vadd.f32 %v552, %v564
      %v575 = vadd.f32 %v553, %v564
      %v576 = vadd.f32 %v554, %v564
      %v577 = vadd.f32 %v555, %v564
      %v578 = vadd.f32 %v556, %v564
      %v579 = vadd.f32 %v557, %v564
      %v580 = vadd.f32 %v558, %v564
      %v581 = vadd.f32 %v559, %v564
      %v582 = vmax.f32 %v566, 0.0
      %v583 = vmax.f32 %v567, 0.0
      %v584 = vmax.f32 %v568, 0.0
      %v585 = vmax.f32 %v569, 0.0
      %v586 = vmax.f32 %v570, 0.0
      %v587 = vmax.f32 %v571, 0.0
      %v588 = vmax.f32 %v572, 0.0
      %v589 = vmax.f32 %v573, 0.0
      %v590 = vmax.f32 %v574, 0.0
      %v591 = vmax.f32 %v575, 0.0
      %v592 = vmax.f32 %v576, 0.0
      %v593 = vmax.f32 %v577, 0.0
      %v594 = vmax.f32 %v578, 0.0
      %v595 = vmax.f32 %v579, 0.0
      %v596 = vmax.f32 %v580, 0.0
      %v597 = vmax.f32 %v581, 0.0
      %v598 = vmul.f32 %v530, %v542
      %v599 = vmul.f32 %v531, %v542
      %v600 = vadd.f32 %v598, %v564
      %v601 = vadd.f32 %v599, %v564
      %v602 = vmax.f32 %v600, 0.0
      %v603 = vmax.f32 %v601, 0.0
      %v604 = vmul.f32 %v534, %v542
      %v605 = vmul.f32 %v535, %v542
      %v606 = vadd.f32 %v604, %v564
      %v607 = vadd.f32 %v605, %v564
      %v608 = vmax.f32 %v606, 0.0
      %v609 = vmax.f32 %v607, 0.0
      %p610 = scmp.eq.s32.totalorder %s25, 0
      %s611 = scalar_select %p610, 0.0, 1.0
      %v612 = vstv %s611
      %v613 = vmul.f32 %v602, %v612
      %v614 = vmul.f32 %v603, %v612
      %p615 = scmp.eq.s32.totalorder %s25, 1
      %s616 = scalar_select %p615, 0.0, 1.0
      %v617 = vstv %s616
      %v618 = vmul.f32 %v608, %v617
      %v619 = vmul.f32 %v609, %v617
      %v620 = vpack.c.bf16 %v614, %v613
      %v621 = vpack.c.bf16 %v583, %v582
      %v622 = vpack.c.bf16 %v585, %v584
      %v623 = vpack.c.bf16 %v587, %v586
      %v624 = vpack.c.bf16 %v589, %v588
      %v625 = vpack.c.bf16 %v591, %v590
      %v626 = vpack.c.bf16 %v593, %v592
      %v627 = vpack.c.bf16 %v595, %v594
      %v628 = vpack.c.bf16 %v597, %v596
      %v629 = vpack.c.bf16 %v619, %v618
      %v630 = vld [vmem:[%s3] sm:$0xff]
      %v631 = vld [vmem:[%s3 + $0x8] sm:$0xff]
      %v632 = vld [vmem:[%s3 + $0x10] sm:$0xff]
      %v633 = vld [vmem:[%s3 + $0x18] sm:$0xff]
      %v634 = vld [vmem:[%s3 + $0x20] sm:$0xff]
      %v635 = vld [vmem:[%s3 + $0x28] sm:$0xff]
      %v636 = vld [vmem:[%s3 + $0x30] sm:$0xff]
      %v637 = vld [vmem:[%s3 + $0x38] sm:$0xff]
      %v638 = vld [vmem:[%s3 + $0x40] sm:$0xff]
      %v639 = vld [vmem:[%s3 + $0x48] sm:$0xff]
      %v640 = vld [vmem:[%s3 + $0x50] sm:$0xff]
      %v641 = vld [vmem:[%s3 + $0x58] sm:$0xff]
      %v642 = vld [vmem:[%s3 + $0x60] sm:$0xff]
      %v643 = vld [vmem:[%s3 + $0x68] sm:$0xff]
      %v644 = vld [vmem:[%s3 + $0x70] sm:$0xff]
      %v645 = vld [vmem:[%s3 + $0x78] sm:$0xff]
      %v662 = vunpack.c.l.b16 %v630
      %v663 = vunpack.c.h.b16 %v630
      %v664 = vunpack.c.l.b16 %v631
      %v665 = vunpack.c.h.b16 %v631
      %v666 = vunpack.c.l.b16 %v632
      %v667 = vunpack.c.h.b16 %v632
      %v668 = vunpack.c.l.b16 %v633
      %v669 = vunpack.c.h.b16 %v633
      %v670 = vunpack.c.l.b16 %v634
      %v671 = vunpack.c.h.b16 %v634
      %v672 = vunpack.c.l.b16 %v635
      %v673 = vunpack.c.h.b16 %v635
      %v674 = vunpack.c.l.b16 %v636
      %v675 = vunpack.c.h.b16 %v636
      %v676 = vunpack.c.l.b16 %v637
      %v677 = vunpack.c.h.b16 %v637
      %v678 = vunpack.c.l.b16 %v638
      %v679 = vunpack.c.h.b16 %v638
      %v680 = vunpack.c.l.b16 %v639
      %v681 = vunpack.c.h.b16 %v639
      %v682 = vunpack.c.l.b16 %v640
      %v683 = vunpack.c.h.b16 %v640
      %v684 = vunpack.c.l.b16 %v641
      %v685 = vunpack.c.h.b16 %v641
      %v686 = vunpack.c.l.b16 %v642
      %v687 = vunpack.c.h.b16 %v642
      %v688 = vunpack.c.l.b16 %v643
      %v689 = vunpack.c.h.b16 %v643
      %v690 = vunpack.c.l.b16 %v644
      %v691 = vunpack.c.h.b16 %v644
      %v692 = vunpack.c.l.b16 %v645
      %v693 = vunpack.c.h.b16 %v645
      %v694 = vpack.c.b16 %v664, %v662
      %v695 = vpack.c.b16 %v665, %v663
      %v696 = vpack.c.b16 %v668, %v666
      %v697 = vpack.c.b16 %v669, %v667
      %v698 = vpack.c.b16 %v672, %v670
      %v699 = vpack.c.b16 %v673, %v671
      %v700 = vpack.c.b16 %v676, %v674
      %v701 = vpack.c.b16 %v677, %v675
      %v702 = vpack.c.b16 %v680, %v678
      %v703 = vpack.c.b16 %v681, %v679
      %v704 = vpack.c.b16 %v684, %v682
      %v705 = vpack.c.b16 %v685, %v683
      %v706 = vpack.c.b16 %v688, %v686
      %v707 = vpack.c.b16 %v689, %v687
      %v708 = vpack.c.b16 %v692, %v690
      %v709 = vpack.c.b16 %v693, %v691
      %726 = vmatprep.subr.bf16.mxu0 %v709
      %727 = vmatpush1.bf16.msra.mxu0 %v708
      %728 = vmatprep.subr.bf16.mxu0 %v707
      %729 = vmatpush1.bf16.msra.mxu0 %v706
      %730 = vmatprep.subr.bf16.mxu0 %v705
      %731 = vmatpush1.bf16.msra.mxu0 %v704
      %732 = vmatprep.subr.bf16.mxu0 %v703
      %733 = vmatpush1.bf16.msra.mxu0 %v702
      %734 = vmatprep.subr.bf16.mxu0 %v701
      %735 = vmatpush1.bf16.msra.mxu0 %v700
      %736 = vmatprep.subr.bf16.mxu0 %v699
      %737 = vmatpush1.bf16.msra.mxu0 %v698
      %738 = vmatprep.subr.bf16.mxu0 %v697
      %739 = vmatpush1.bf16.msra.mxu0 %v696
      %740 = vmatprep.subr.bf16.mxu0 %v695
      %741 = vmatpush1.bf16.msra.mxu0 %v694
      %742 = vmatprep.subr.bf16.mxu0 0
      %743 = vmatpush2.bf16.msra.mxu0 0
      %744 = vmatprep.subr.bf16.mxu0 0
      %745 = vmatpush2.bf16.msra.mxu0 0
      %746 = vmatprep.subr.bf16.mxu0 0
      %747 = vmatpush2.bf16.msra.mxu0 0
      %748 = vmatprep.subr.bf16.mxu0 0
      %749 = vmatpush2.bf16.msra.mxu0 0
      %750 = vmatprep.subr.bf16.mxu0 0
      %751 = vmatpush2.bf16.msra.mxu0 0
      %752 = vmatprep.subr.bf16.mxu0 0
      %753 = vmatpush2.bf16.msra.mxu0 0
      %754 = vmatprep.subr.bf16.mxu0 0
      %755 = vmatpush2.bf16.msra.mxu0 0
      %756 = vmatprep.subr.bf16.mxu0 0
      %757 = vmatpush2.bf16.msra.mxu0 0
      %758 = vmatprep.mubr.bf16.mxu0 0
      %759 = vmatmul.mubr.bf16.gmra.mxu0 %v620
      %v760 = vpop.f32.mrf.mxu0
      %v761 = vadd.f32 0.0, %v760
      %v762 = vpop.f32.mrf.mxu0
      %v763 = vadd.f32 0.0, %v762
      %v764 = vpop.f32.mrf.mxu0
      %v765 = vadd.f32 0.0, %v764
      %v766 = vpop.f32.mrf.mxu0
      %v767 = vadd.f32 0.0, %v766
      %768 = vmatprep.mubr.bf16.mxu0 0
      %769 = vmatmul.mubr.bf16.gmra.mxu0 %v621
      %v770 = vpop.f32.mrf.mxu0
      %v771 = vadd.f32 0.0, %v770
      %v772 = vpop.f32.mrf.mxu0
      %v773 = vadd.f32 0.0, %v772
      %v774 = vpop.f32.mrf.mxu0
      %v775 = vadd.f32 0.0, %v774
      %v776 = vpop.f32.mrf.mxu0
      %v777 = vadd.f32 0.0, %v776
      %778 = vmatprep.mubr.bf16.mxu0 0
      %779 = vmatmul.mubr.bf16.gmra.mxu0 %v622
      %v780 = vpop.f32.mrf.mxu0
      %v781 = vadd.f32 0.0, %v780
      %v782 = vpop.f32.mrf.mxu0
      %v783 = vadd.f32 0.0, %v782
      %v784 = vpop.f32.mrf.mxu0
      %v785 = vadd.f32 0.0, %v784
      %v786 = vpop.f32.mrf.mxu0
      %v787 = vadd.f32 0.0, %v786
      %788 = vmatprep.mubr.bf16.mxu0 0
      %789 = vmatmul.mubr.bf16.gmra.mxu0 %v623
      %v790 = vpop.f32.mrf.mxu0
      %v791 = vadd.f32 0.0, %v790
      %v792 = vpop.f32.mrf.mxu0
      %v793 = vadd.f32 0.0, %v792
      %v794 = vpop.f32.mrf.mxu0
      %v795 = vadd.f32 0.0, %v794
      %v796 = vpop.f32.mrf.mxu0
      %v797 = vadd.f32 0.0, %v796
      %798 = vmatprep.mubr.bf16.mxu0 0
      %799 = vmatmul.mubr.bf16.gmra.mxu0 %v624
      %v800 = vpop.f32.mrf.mxu0
      %v801 = vadd.f32 0.0, %v800
      %v802 = vpop.f32.mrf.mxu0
      %v803 = vadd.f32 0.0, %v802
      %v804 = vpop.f32.mrf.mxu0
      %v805 = vadd.f32 0.0, %v804
      %v806 = vpop.f32.mrf.mxu0
      %v807 = vadd.f32 0.0, %v806
      %808 = vmatprep.mubr.bf16.mxu0 0
      %809 = vmatmul.mubr.bf16.gmra.mxu0 %v625
      %v810 = vpop.f32.mrf.mxu0
      %v811 = vadd.f32 0.0, %v810
      %v812 = vpop.f32.mrf.mxu0
      %v813 = vadd.f32 0.0, %v812
      %v814 = vpop.f32.mrf.mxu0
      %v815 = vadd.f32 0.0, %v814
      %v816 = vpop.f32.mrf.mxu0
      %v817 = vadd.f32 0.0, %v816
      %818 = vmatprep.mubr.bf16.mxu0 0
      %819 = vmatmul.mubr.bf16.gmra.mxu0 %v626
      %v820 = vpop.f32.mrf.mxu0
      %v821 = vadd.f32 0.0, %v820
      %v822 = vpop.f32.mrf.mxu0
      %v823 = vadd.f32 0.0, %v822
      %v824 = vpop.f32.mrf.mxu0
      %v825 = vadd.f32 0.0, %v824
      %v826 = vpop.f32.mrf.mxu0
      %v827 = vadd.f32 0.0, %v826
      %828 = vmatprep.mubr.bf16.mxu0 0
      %829 = vmatmul.mubr.bf16.gmra.mxu0 %v627
      %v830 = vpop.f32.mrf.mxu0
      %v831 = vadd.f32 0.0, %v830
      %v832 = vpop.f32.mrf.mxu0
      %v833 = vadd.f32 0.0, %v832
      %v834 = vpop.f32.mrf.mxu0
      %v835 = vadd.f32 0.0, %v834
      %v836 = vpop.f32.mrf.mxu0
      %v837 = vadd.f32 0.0, %v836
      %838 = vdwg.mxu0
      %vm855 = vcmask 1040384
      %v856 = vrot.slane %v761, 7
      %v857 = vrot.slane %v765, 7
      %v858 = vsel %vm855, %v856, %v857
      %v859 = vrot.slane %v771, 7
      %v860 = vrot.slane %v775, 7
      %v861 = vsel %vm855, %v859, %v860
      %v862 = vrot.slane %v781, 7
      %v863 = vrot.slane %v785, 7
      %v864 = vsel %vm855, %v862, %v863
      %v865 = vrot.slane %v791, 7
      %v866 = vrot.slane %v795, 7
      %v867 = vsel %vm855, %v865, %v866
      %v868 = vrot.slane %v801, 7
      %v869 = vrot.slane %v805, 7
      %v870 = vsel %vm855, %v868, %v869
      %v871 = vrot.slane %v811, 7
      %v872 = vrot.slane %v815, 7
      %v873 = vsel %vm855, %v871, %v872
      %v874 = vrot.slane %v821, 7
      %v875 = vrot.slane %v825, 7
      %v876 = vsel %vm855, %v874, %v875
      %v877 = vrot.slane %v831, 7
      %v878 = vrot.slane %v835, 7
      %v879 = vsel %vm855, %v877, %v878
      %v896 = vsel %vm855, 0.0, %v856
      %v897 = vsel %vm855, 0.0, %v859
      %v898 = vsel %vm855, 0.0, %v862
      %v899 = vsel %vm855, 0.0, %v865
      %v900 = vsel %vm855, 0.0, %v868
      %v901 = vsel %vm855, 0.0, %v871
      %v902 = vsel %vm855, 0.0, %v874
      %v903 = vsel %vm855, 0.0, %v877
      %v904 = vadd.f32 %v896, 0.0
      %v905 = vadd.f32 %v858, 0.0
      %v906 = vadd.f32 %v897, 0.0
      %v907 = vadd.f32 %v861, 0.0
      %v908 = vadd.f32 %v898, 0.0
      %v909 = vadd.f32 %v864, 0.0
      %v910 = vadd.f32 %v899, 0.0
      %v911 = vadd.f32 %v867, 0.0
      %v912 = vadd.f32 %v900, 0.0
      %v913 = vadd.f32 %v870, 0.0
      %v914 = vadd.f32 %v901, 0.0
      %v915 = vadd.f32 %v873, 0.0
      %v916 = vadd.f32 %v902, 0.0
      %v917 = vadd.f32 %v876, 0.0
      %v918 = vadd.f32 %v903, 0.0
      %v919 = vadd.f32 %v879, 0.0
      %920 = vrot.lane.b32.xlu0 %v761, 64
      %v921 = vpop.permute.xlu0 %920
      %922 = vrot.lane.b32.xlu0 %v765, 64
      %v923 = vpop.permute.xlu0 %922
      %924 = vrot.lane.b32.xlu0 %v771, 64
      %v925 = vpop.permute.xlu0 %924
      %926 = vrot.lane.b32.xlu0 %v775, 64
      %v927 = vpop.permute.xlu0 %926
      %928 = vrot.lane.b32.xlu0 %v781, 64
      %v929 = vpop.permute.xlu0 %928
      %930 = vrot.lane.b32.xlu0 %v785, 64
      %v931 = vpop.permute.xlu0 %930
      %932 = vrot.lane.b32.xlu0 %v791, 64
      %v933 = vpop.permute.xlu0 %932
      %934 = vrot.lane.b32.xlu0 %v795, 64
      %v935 = vpop.permute.xlu0 %934
      %936 = vrot.lane.b32.xlu0 %v801, 64
      %v937 = vpop.permute.xlu0 %936
      %938 = vrot.lane.b32.xlu0 %v805, 64
      %v939 = vpop.permute.xlu0 %938
      %940 = vrot.lane.b32.xlu0 %v811, 64
      %v941 = vpop.permute.xlu0 %940
      %942 = vrot.lane.b32.xlu0 %v815, 64
      %v943 = vpop.permute.xlu0 %942
      %944 = vrot.lane.b32.xlu0 %v821, 64
      %v945 = vpop.permute.xlu0 %944
      %946 = vrot.lane.b32.xlu0 %v825, 64
      %v947 = vpop.permute.xlu0 %946
      %948 = vrot.lane.b32.xlu0 %v831, 64
      %v949 = vpop.permute.xlu0 %948
      %950 = vrot.lane.b32.xlu0 %v835, 64
      %v951 = vpop.permute.xlu0 %950
      %v968 = vadd.f32 %v904, %v921
      %v969 = vadd.f32 %v905, %v923
      %v970 = vadd.f32 %v906, %v925
      %v971 = vadd.f32 %v907, %v927
      %v972 = vadd.f32 %v908, %v929
      %v973 = vadd.f32 %v909, %v931
      %v974 = vadd.f32 %v910, %v933
      %v975 = vadd.f32 %v911, %v935
      %v976 = vadd.f32 %v912, %v937
      %v977 = vadd.f32 %v913, %v939
      %v978 = vadd.f32 %v914, %v941
      %v979 = vadd.f32 %v915, %v943
      %v980 = vadd.f32 %v916, %v945
      %v981 = vadd.f32 %v917, %v947
      %v982 = vadd.f32 %v918, %v949
      %v983 = vadd.f32 %v919, %v951
      %vm1000 = vcmask 1046528
      %v1001 = vrot.slane %v763, 1
      %v1002 = vrot.slane %v767, 1
      %v1003 = vsel %vm1000, %v1001, %v1002
      %v1004 = vrot.slane %v773, 1
      %v1005 = vrot.slane %v777, 1
      %v1006 = vsel %vm1000, %v1004, %v1005
      %v1007 = vrot.slane %v783, 1
      %v1008 = vrot.slane %v787, 1
      %v1009 = vsel %vm1000, %v1007, %v1008
      %v1010 = vrot.slane %v793, 1
      %v1011 = vrot.slane %v797, 1
      %v1012 = vsel %vm1000, %v1010, %v1011
      %v1013 = vrot.slane %v803, 1
      %v1014 = vrot.slane %v807, 1
      %v1015 = vsel %vm1000, %v1013, %v1014
      %v1016 = vrot.slane %v813, 1
      %v1017 = vrot.slane %v817, 1
      %v1018 = vsel %vm1000, %v1016, %v1017
      %v1019 = vrot.slane %v823, 1
      %v1020 = vrot.slane %v827, 1
      %v1021 = vsel %vm1000, %v1019, %v1020
      %v1022 = vrot.slane %v833, 1
      %v1023 = vrot.slane %v837, 1
      %v1024 = vsel %vm1000, %v1022, %v1023
      %v1041 = vsel %vm1000, %v1002, 0.0
      %v1042 = vsel %vm1000, %v1005, 0.0
      %v1043 = vsel %vm1000, %v1008, 0.0
      %v1044 = vsel %vm1000, %v1011, 0.0
      %v1045 = vsel %vm1000, %v1014, 0.0
      %v1046 = vsel %vm1000, %v1017, 0.0
      %v1047 = vsel %vm1000, %v1020, 0.0
      %v1048 = vsel %vm1000, %v1023, 0.0
      %v1049 = vadd.f32 %v968, %v1003
      %v1050 = vadd.f32 %v969, %v1041
      %v1051 = vadd.f32 %v970, %v1006
      %v1052 = vadd.f32 %v971, %v1042
      %v1053 = vadd.f32 %v972, %v1009
      %v1054 = vadd.f32 %v973, %v1043
      %v1055 = vadd.f32 %v974, %v1012
      %v1056 = vadd.f32 %v975, %v1044
      %v1057 = vadd.f32 %v976, %v1015
      %v1058 = vadd.f32 %v977, %v1045
      %v1059 = vadd.f32 %v978, %v1018
      %v1060 = vadd.f32 %v979, %v1046
      %v1061 = vadd.f32 %v980, %v1021
      %v1062 = vadd.f32 %v981, %v1047
      %v1063 = vadd.f32 %v982, %v1024
      %v1064 = vadd.f32 %v983, %v1048
      %s1065 = scalar_lea.vmem %s3, 128
      %v1066 = vld [vmem:[%s1065] sm:$0xff]
      %v1067 = vld [vmem:[%s1065 + $0x8] sm:$0xff]
      %v1068 = vld [vmem:[%s1065 + $0x10] sm:$0xff]
      %v1069 = vld [vmem:[%s1065 + $0x18] sm:$0xff]
      %v1070 = vld [vmem:[%s1065 + $0x20] sm:$0xff]
      %v1071 = vld [vmem:[%s1065 + $0x28] sm:$0xff]
      %v1072 = vld [vmem:[%s1065 + $0x30] sm:$0xff]
      %v1073 = vld [vmem:[%s1065 + $0x38] sm:$0xff]
      %v1074 = vld [vmem:[%s1065 + $0x40] sm:$0xff]
      %v1075 = vld [vmem:[%s1065 + $0x48] sm:$0xff]
      %v1076 = vld [vmem:[%s1065 + $0x50] sm:$0xff]
      %v1077 = vld [vmem:[%s1065 + $0x58] sm:$0xff]
      %v1078 = vld [vmem:[%s1065 + $0x60] sm:$0xff]
      %v1079 = vld [vmem:[%s1065 + $0x68] sm:$0xff]
      %v1080 = vld [vmem:[%s1065 + $0x70] sm:$0xff]
      %v1081 = vld [vmem:[%s1065 + $0x78] sm:$0xff]
      %v1098 = vunpack.c.l.b16 %v1066
      %v1099 = vunpack.c.h.b16 %v1066
      %v1100 = vunpack.c.l.b16 %v1067
      %v1101 = vunpack.c.h.b16 %v1067
      %v1102 = vunpack.c.l.b16 %v1068
      %v1103 = vunpack.c.h.b16 %v1068
      %v1104 = vunpack.c.l.b16 %v1069
      %v1105 = vunpack.c.h.b16 %v1069
      %v1106 = vunpack.c.l.b16 %v1070
      %v1107 = vunpack.c.h.b16 %v1070
      %v1108 = vunpack.c.l.b16 %v1071
      %v1109 = vunpack.c.h.b16 %v1071
      %v1110 = vunpack.c.l.b16 %v1072
      %v1111 = vunpack.c.h.b16 %v1072
      %v1112 = vunpack.c.l.b16 %v1073
      %v1113 = vunpack.c.h.b16 %v1073
      %v1114 = vunpack.c.l.b16 %v1074
      %v1115 = vunpack.c.h.b16 %v1074
      %v1116 = vunpack.c.l.b16 %v1075
      %v1117 = vunpack.c.h.b16 %v1075
      %v1118 = vunpack.c.l.b16 %v1076
      %v1119 = vunpack.c.h.b16 %v1076
      %v1120 = vunpack.c.l.b16 %v1077
      %v1121 = vunpack.c.h.b16 %v1077
      %v1122 = vunpack.c.l.b16 %v1078
      %v1123 = vunpack.c.h.b16 %v1078
      %v1124 = vunpack.c.l.b16 %v1079
      %v1125 = vunpack.c.h.b16 %v1079
      %v1126 = vunpack.c.l.b16 %v1080
      %v1127 = vunpack.c.h.b16 %v1080
      %v1128 = vunpack.c.l.b16 %v1081
      %v1129 = vunpack.c.h.b16 %v1081
      %v1130 = vpack.c.b16 %v1100, %v1098
      %v1131 = vpack.c.b16 %v1101, %v1099
      %v1132 = vpack.c.b16 %v1104, %v1102
      %v1133 = vpack.c.b16 %v1105, %v1103
      %v1134 = vpack.c.b16 %v1108, %v1106
      %v1135 = vpack.c.b16 %v1109, %v1107
      %v1136 = vpack.c.b16 %v1112, %v1110
      %v1137 = vpack.c.b16 %v1113, %v1111
      %v1138 = vpack.c.b16 %v1116, %v1114
      %v1139 = vpack.c.b16 %v1117, %v1115
      %v1140 = vpack.c.b16 %v1120, %v1118
      %v1141 = vpack.c.b16 %v1121, %v1119
      %v1142 = vpack.c.b16 %v1124, %v1122
      %v1143 = vpack.c.b16 %v1125, %v1123
      %v1144 = vpack.c.b16 %v1128, %v1126
      %v1145 = vpack.c.b16 %v1129, %v1127
      %1162 = vmatprep.subr.bf16.mxu0 %v1145
      %1163 = vmatpush1.bf16.msra.mxu0 %v1144
      %1164 = vmatprep.subr.bf16.mxu0 %v1143
      %1165 = vmatpush1.bf16.msra.mxu0 %v1142
      %1166 = vmatprep.subr.bf16.mxu0 %v1141
      %1167 = vmatpush1.bf16.msra.mxu0 %v1140
      %1168 = vmatprep.subr.bf16.mxu0 %v1139
      %1169 = vmatpush1.bf16.msra.mxu0 %v1138
      %1170 = vmatprep.subr.bf16.mxu0 %v1137
      %1171 = vmatpush1.bf16.msra.mxu0 %v1136
      %1172 = vmatprep.subr.bf16.mxu0 %v1135
      %1173 = vmatpush1.bf16.msra.mxu0 %v1134
      %1174 = vmatprep.subr.bf16.mxu0 %v1133
      %1175 = vmatpush1.bf16.msra.mxu0 %v1132
      %1176 = vmatprep.subr.bf16.mxu0 %v1131
      %1177 = vmatpush1.bf16.msra.mxu0 %v1130
      %1178 = vmatprep.subr.bf16.mxu0 0
      %1179 = vmatpush2.bf16.msra.mxu0 0
      %1180 = vmatprep.subr.bf16.mxu0 0
      %1181 = vmatpush2.bf16.msra.mxu0 0
      %1182 = vmatprep.subr.bf16.mxu0 0
      %1183 = vmatpush2.bf16.msra.mxu0 0
      %1184 = vmatprep.subr.bf16.mxu0 0
      %1185 = vmatpush2.bf16.msra.mxu0 0
      %1186 = vmatprep.subr.bf16.mxu0 0
      %1187 = vmatpush2.bf16.msra.mxu0 0
      %1188 = vmatprep.subr.bf16.mxu0 0
      %1189 = vmatpush2.bf16.msra.mxu0 0
      %1190 = vmatprep.subr.bf16.mxu0 0
      %1191 = vmatpush2.bf16.msra.mxu0 0
      %1192 = vmatprep.subr.bf16.mxu0 0
      %1193 = vmatpush2.bf16.msra.mxu0 0
      %1194 = vmatprep.mubr.bf16.mxu0 0
      %1195 = vmatmul.mubr.bf16.gmra.mxu0 %v621
      %v1196 = vpop.f32.mrf.mxu0
      %v1197 = vadd.f32 0.0, %v1196
      %v1198 = vpop.f32.mrf.mxu0
      %v1199 = vadd.f32 0.0, %v1198
      %v1200 = vpop.f32.mrf.mxu0
      %v1201 = vadd.f32 0.0, %v1200
      %v1202 = vpop.f32.mrf.mxu0
      %v1203 = vadd.f32 0.0, %v1202
      %1204 = vmatprep.mubr.bf16.mxu0 0
      %1205 = vmatmul.mubr.bf16.gmra.mxu0 %v622
      %v1206 = vpop.f32.mrf.mxu0
      %v1207 = vadd.f32 0.0, %v1206
      %v1208 = vpop.f32.mrf.mxu0
      %v1209 = vadd.f32 0.0, %v1208
      %v1210 = vpop.f32.mrf.mxu0
      %v1211 = vadd.f32 0.0, %v1210
      %v1212 = vpop.f32.mrf.mxu0
      %v1213 = vadd.f32 0.0, %v1212
      %1214 = vmatprep.mubr.bf16.mxu0 0
      %1215 = vmatmul.mubr.bf16.gmra.mxu0 %v623
      %v1216 = vpop.f32.mrf.mxu0
      %v1217 = vadd.f32 0.0, %v1216
      %v1218 = vpop.f32.mrf.mxu0
      %v1219 = vadd.f32 0.0, %v1218
      %v1220 = vpop.f32.mrf.mxu0
      %v1221 = vadd.f32 0.0, %v1220
      %v1222 = vpop.f32.mrf.mxu0
      %v1223 = vadd.f32 0.0, %v1222
      %1224 = vmatprep.mubr.bf16.mxu0 0
      %1225 = vmatmul.mubr.bf16.gmra.mxu0 %v624
      %v1226 = vpop.f32.mrf.mxu0
      %v1227 = vadd.f32 0.0, %v1226
      %v1228 = vpop.f32.mrf.mxu0
      %v1229 = vadd.f32 0.0, %v1228
      %v1230 = vpop.f32.mrf.mxu0
      %v1231 = vadd.f32 0.0, %v1230
      %v1232 = vpop.f32.mrf.mxu0
      %v1233 = vadd.f32 0.0, %v1232
      %1234 = vmatprep.mubr.bf16.mxu0 0
      %1235 = vmatmul.mubr.bf16.gmra.mxu0 %v625
      %v1236 = vpop.f32.mrf.mxu0
      %v1237 = vadd.f32 0.0, %v1236
      %v1238 = vpop.f32.mrf.mxu0
      %v1239 = vadd.f32 0.0, %v1238
      %v1240 = vpop.f32.mrf.mxu0
      %v1241 = vadd.f32 0.0, %v1240
      %v1242 = vpop.f32.mrf.mxu0
      %v1243 = vadd.f32 0.0, %v1242
      %1244 = vmatprep.mubr.bf16.mxu0 0
      %1245 = vmatmul.mubr.bf16.gmra.mxu0 %v626
      %v1246 = vpop.f32.mrf.mxu0
      %v1247 = vadd.f32 0.0, %v1246
      %v1248 = vpop.f32.mrf.mxu0
      %v1249 = vadd.f32 0.0, %v1248
      %v1250 = vpop.f32.mrf.mxu0
      %v1251 = vadd.f32 0.0, %v1250
      %v1252 = vpop.f32.mrf.mxu0
      %v1253 = vadd.f32 0.0, %v1252
      %1254 = vmatprep.mubr.bf16.mxu0 0
      %1255 = vmatmul.mubr.bf16.gmra.mxu0 %v627
      %v1256 = vpop.f32.mrf.mxu0
      %v1257 = vadd.f32 0.0, %v1256
      %v1258 = vpop.f32.mrf.mxu0
      %v1259 = vadd.f32 0.0, %v1258
      %v1260 = vpop.f32.mrf.mxu0
      %v1261 = vadd.f32 0.0, %v1260
      %v1262 = vpop.f32.mrf.mxu0
      %v1263 = vadd.f32 0.0, %v1262
      %1264 = vmatprep.mubr.bf16.mxu0 0
      %1265 = vmatmul.mubr.bf16.gmra.mxu0 %v628
      %v1266 = vpop.f32.mrf.mxu0
      %v1267 = vadd.f32 0.0, %v1266
      %v1268 = vpop.f32.mrf.mxu0
      %v1269 = vadd.f32 0.0, %v1268
      %v1270 = vpop.f32.mrf.mxu0
      %v1271 = vadd.f32 0.0, %v1270
      %v1272 = vpop.f32.mrf.mxu0
      %v1273 = vadd.f32 0.0, %v1272
      %1274 = vdwg.mxu0
      %v1291 = vrot.slane %v1197, 7
      %v1292 = vrot.slane %v1201, 7
      %v1293 = vsel %vm855, %v1291, %v1292
      %v1294 = vrot.slane %v1207, 7
      %v1295 = vrot.slane %v1211, 7
      %v1296 = vsel %vm855, %v1294, %v1295
      %v1297 = vrot.slane %v1217, 7
      %v1298 = vrot.slane %v1221, 7
      %v1299 = vsel %vm855, %v1297, %v1298
      %v1300 = vrot.slane %v1227, 7
      %v1301 = vrot.slane %v1231, 7
      %v1302 = vsel %vm855, %v1300, %v1301
      %v1303 = vrot.slane %v1237, 7
      %v1304 = vrot.slane %v1241, 7
      %v1305 = vsel %vm855, %v1303, %v1304
      %v1306 = vrot.slane %v1247, 7
      %v1307 = vrot.slane %v1251, 7
      %v1308 = vsel %vm855, %v1306, %v1307
      %v1309 = vrot.slane %v1257, 7
      %v1310 = vrot.slane %v1261, 7
      %v1311 = vsel %vm855, %v1309, %v1310
      %v1312 = vrot.slane %v1267, 7
      %v1313 = vrot.slane %v1271, 7
      %v1314 = vsel %vm855, %v1312, %v1313
      %v1331 = vsel %vm855, 0.0, %v1291
      %v1332 = vsel %vm855, 0.0, %v1294
      %v1333 = vsel %vm855, 0.0, %v1297
      %v1334 = vsel %vm855, 0.0, %v1300
      %v1335 = vsel %vm855, 0.0, %v1303
      %v1336 = vsel %vm855, 0.0, %v1306
      %v1337 = vsel %vm855, 0.0, %v1309
      %v1338 = vsel %vm855, 0.0, %v1312
      %v1339 = vadd.f32 %v1049, %v1331
      %v1340 = vadd.f32 %v1050, %v1293
      %v1341 = vadd.f32 %v1051, %v1332
      %v1342 = vadd.f32 %v1052, %v1296
      %v1343 = vadd.f32 %v1053, %v1333
      %v1344 = vadd.f32 %v1054, %v1299
      %v1345 = vadd.f32 %v1055, %v1334
      %v1346 = vadd.f32 %v1056, %v1302
      %v1347 = vadd.f32 %v1057, %v1335
      %v1348 = vadd.f32 %v1058, %v1305
      %v1349 = vadd.f32 %v1059, %v1336
      %v1350 = vadd.f32 %v1060, %v1308
      %v1351 = vadd.f32 %v1061, %v1337
      %v1352 = vadd.f32 %v1062, %v1311
      %v1353 = vadd.f32 %v1063, %v1338
      %v1354 = vadd.f32 %v1064, %v1314
      %1355 = vrot.lane.b32.xlu0 %v1197, 64
      %v1356 = vpop.permute.xlu0 %1355
      %1357 = vrot.lane.b32.xlu0 %v1201, 64
      %v1358 = vpop.permute.xlu0 %1357
      %1359 = vrot.lane.b32.xlu0 %v1207, 64
      %v1360 = vpop.permute.xlu0 %1359
      %1361 = vrot.lane.b32.xlu0 %v1211, 64
      %v1362 = vpop.permute.xlu0 %1361
      %1363 = vrot.lane.b32.xlu0 %v1217, 64
      %v1364 = vpop.permute.xlu0 %1363
      %1365 = vrot.lane.b32.xlu0 %v1221, 64
      %v1366 = vpop.permute.xlu0 %1365
      %1367 = vrot.lane.b32.xlu0 %v1227, 64
      %v1368 = vpop.permute.xlu0 %1367
      %1369 = vrot.lane.b32.xlu0 %v1231, 64
      %v1370 = vpop.permute.xlu0 %1369
      %1371 = vrot.lane.b32.xlu0 %v1237, 64
      %v1372 = vpop.permute.xlu0 %1371
      %1373 = vrot.lane.b32.xlu0 %v1241, 64
      %v1374 = vpop.permute.xlu0 %1373
      %1375 = vrot.lane.b32.xlu0 %v1247, 64
      %v1376 = vpop.permute.xlu0 %1375
      %1377 = vrot.lane.b32.xlu0 %v1251, 64
      %v1378 = vpop.permute.xlu0 %1377
      %1379 = vrot.lane.b32.xlu0 %v1257, 64
      %v1380 = vpop.permute.xlu0 %1379
      %1381 = vrot.lane.b32.xlu0 %v1261, 64
      %v1382 = vpop.permute.xlu0 %1381
      %1383 = vrot.lane.b32.xlu0 %v1267, 64
      %v1384 = vpop.permute.xlu0 %1383
      %1385 = vrot.lane.b32.xlu0 %v1271, 64
      %v1386 = vpop.permute.xlu0 %1385
      %v1403 = vadd.f32 %v1339, %v1356
      %v1404 = vadd.f32 %v1340, %v1358
      %v1405 = vadd.f32 %v1341, %v1360
      %v1406 = vadd.f32 %v1342, %v1362
      %v1407 = vadd.f32 %v1343, %v1364
      %v1408 = vadd.f32 %v1344, %v1366
      %v1409 = vadd.f32 %v1345, %v1368
      %v1410 = vadd.f32 %v1346, %v1370
      %v1411 = vadd.f32 %v1347, %v1372
      %v1412 = vadd.f32 %v1348, %v1374
      %v1413 = vadd.f32 %v1349, %v1376
      %v1414 = vadd.f32 %v1350, %v1378
      %v1415 = vadd.f32 %v1351, %v1380
      %v1416 = vadd.f32 %v1352, %v1382
      %v1417 = vadd.f32 %v1353, %v1384
      %v1418 = vadd.f32 %v1354, %v1386
      %v1435 = vrot.slane %v1199, 1
      %v1436 = vrot.slane %v1203, 1
      %v1437 = vsel %vm1000, %v1435, %v1436
      %v1438 = vrot.slane %v1209, 1
      %v1439 = vrot.slane %v1213, 1
      %v1440 = vsel %vm1000, %v1438, %v1439
      %v1441 = vrot.slane %v1219, 1
      %v1442 = vrot.slane %v1223, 1
      %v1443 = vsel %vm1000, %v1441, %v1442
      %v1444 = vrot.slane %v1229, 1
      %v1445 = vrot.slane %v1233, 1
      %v1446 = vsel %vm1000, %v1444, %v1445
      %v1447 = vrot.slane %v1239, 1
      %v1448 = vrot.slane %v1243, 1
      %v1449 = vsel %vm1000, %v1447, %v1448
      %v1450 = vrot.slane %v1249, 1
      %v1451 = vrot.slane %v1253, 1
      %v1452 = vsel %vm1000, %v1450, %v1451
      %v1453 = vrot.slane %v1259, 1
      %v1454 = vrot.slane %v1263, 1
      %v1455 = vsel %vm1000, %v1453, %v1454
      %v1456 = vrot.slane %v1269, 1
      %v1457 = vrot.slane %v1273, 1
      %v1458 = vsel %vm1000, %v1456, %v1457
      %v1475 = vsel %vm1000, %v1436, 0.0
      %v1476 = vsel %vm1000, %v1439, 0.0
      %v1477 = vsel %vm1000, %v1442, 0.0
      %v1478 = vsel %vm1000, %v1445, 0.0
      %v1479 = vsel %vm1000, %v1448, 0.0
      %v1480 = vsel %vm1000, %v1451, 0.0
      %v1481 = vsel %vm1000, %v1454, 0.0
      %v1482 = vsel %vm1000, %v1457, 0.0
      %v1483 = vadd.f32 %v1403, %v1437
      %v1484 = vadd.f32 %v1404, %v1475
      %v1485 = vadd.f32 %v1405, %v1440
      %v1486 = vadd.f32 %v1406, %v1476
      %v1487 = vadd.f32 %v1407, %v1443
      %v1488 = vadd.f32 %v1408, %v1477
      %v1489 = vadd.f32 %v1409, %v1446
      %v1490 = vadd.f32 %v1410, %v1478
      %v1491 = vadd.f32 %v1411, %v1449
      %v1492 = vadd.f32 %v1412, %v1479
      %v1493 = vadd.f32 %v1413, %v1452
      %v1494 = vadd.f32 %v1414, %v1480
      %v1495 = vadd.f32 %v1415, %v1455
      %v1496 = vadd.f32 %v1416, %v1481
      %v1497 = vadd.f32 %v1417, %v1458
      %v1498 = vadd.f32 %v1418, %v1482
      %s1499 = scalar_lea.vmem %s3, 256
      %v1500 = vld [vmem:[%s1499] sm:$0xff]
      %v1501 = vld [vmem:[%s1499 + $0x8] sm:$0xff]
      %v1502 = vld [vmem:[%s1499 + $0x10] sm:$0xff]
      %v1503 = vld [vmem:[%s1499 + $0x18] sm:$0xff]
      %v1504 = vld [vmem:[%s1499 + $0x20] sm:$0xff]
      %v1505 = vld [vmem:[%s1499 + $0x28] sm:$0xff]
      %v1506 = vld [vmem:[%s1499 + $0x30] sm:$0xff]
      %v1507 = vld [vmem:[%s1499 + $0x38] sm:$0xff]
      %v1508 = vld [vmem:[%s1499 + $0x40] sm:$0xff]
      %v1509 = vld [vmem:[%s1499 + $0x48] sm:$0xff]
      %v1510 = vld [vmem:[%s1499 + $0x50] sm:$0xff]
      %v1511 = vld [vmem:[%s1499 + $0x58] sm:$0xff]
      %v1512 = vld [vmem:[%s1499 + $0x60] sm:$0xff]
      %v1513 = vld [vmem:[%s1499 + $0x68] sm:$0xff]
      %v1514 = vld [vmem:[%s1499 + $0x70] sm:$0xff]
      %v1515 = vld [vmem:[%s1499 + $0x78] sm:$0xff]
      %v1532 = vunpack.c.l.b16 %v1500
      %v1533 = vunpack.c.h.b16 %v1500
      %v1534 = vunpack.c.l.b16 %v1501
      %v1535 = vunpack.c.h.b16 %v1501
      %v1536 = vunpack.c.l.b16 %v1502
      %v1537 = vunpack.c.h.b16 %v1502
      %v1538 = vunpack.c.l.b16 %v1503
      %v1539 = vunpack.c.h.b16 %v1503
      %v1540 = vunpack.c.l.b16 %v1504
      %v1541 = vunpack.c.h.b16 %v1504
      %v1542 = vunpack.c.l.b16 %v1505
      %v1543 = vunpack.c.h.b16 %v1505
      %v1544 = vunpack.c.l.b16 %v1506
      %v1545 = vunpack.c.h.b16 %v1506
      %v1546 = vunpack.c.l.b16 %v1507
      %v1547 = vunpack.c.h.b16 %v1507
      %v1548 = vunpack.c.l.b16 %v1508
      %v1549 = vunpack.c.h.b16 %v1508
      %v1550 = vunpack.c.l.b16 %v1509
      %v1551 = vunpack.c.h.b16 %v1509
      %v1552 = vunpack.c.l.b16 %v1510
      %v1553 = vunpack.c.h.b16 %v1510
      %v1554 = vunpack.c.l.b16 %v1511
      %v1555 = vunpack.c.h.b16 %v1511
      %v1556 = vunpack.c.l.b16 %v1512
      %v1557 = vunpack.c.h.b16 %v1512
      %v1558 = vunpack.c.l.b16 %v1513
      %v1559 = vunpack.c.h.b16 %v1513
      %v1560 = vunpack.c.l.b16 %v1514
      %v1561 = vunpack.c.h.b16 %v1514
      %v1562 = vunpack.c.l.b16 %v1515
      %v1563 = vunpack.c.h.b16 %v1515
      %v1564 = vpack.c.b16 %v1534, %v1532
      %v1565 = vpack.c.b16 %v1535, %v1533
      %v1566 = vpack.c.b16 %v1538, %v1536
      %v1567 = vpack.c.b16 %v1539, %v1537
      %v1568 = vpack.c.b16 %v1542, %v1540
      %v1569 = vpack.c.b16 %v1543, %v1541
      %v1570 = vpack.c.b16 %v1546, %v1544
      %v1571 = vpack.c.b16 %v1547, %v1545
      %v1572 = vpack.c.b16 %v1550, %v1548
      %v1573 = vpack.c.b16 %v1551, %v1549
      %v1574 = vpack.c.b16 %v1554, %v1552
      %v1575 = vpack.c.b16 %v1555, %v1553
      %v1576 = vpack.c.b16 %v1558, %v1556
      %v1577 = vpack.c.b16 %v1559, %v1557
      %v1578 = vpack.c.b16 %v1562, %v1560
      %v1579 = vpack.c.b16 %v1563, %v1561
      %1596 = vmatprep.subr.bf16.mxu0 %v1579
      %1597 = vmatpush1.bf16.msra.mxu0 %v1578
      %1598 = vmatprep.subr.bf16.mxu0 %v1577
      %1599 = vmatpush1.bf16.msra.mxu0 %v1576
      %1600 = vmatprep.subr.bf16.mxu0 %v1575
      %1601 = vmatpush1.bf16.msra.mxu0 %v1574
      %1602 = vmatprep.subr.bf16.mxu0 %v1573
      %1603 = vmatpush1.bf16.msra.mxu0 %v1572
      %1604 = vmatprep.subr.bf16.mxu0 %v1571
      %1605 = vmatpush1.bf16.msra.mxu0 %v1570
      %1606 = vmatprep.subr.bf16.mxu0 %v1569
      %1607 = vmatpush1.bf16.msra.mxu0 %v1568
      %1608 = vmatprep.subr.bf16.mxu0 %v1567
      %1609 = vmatpush1.bf16.msra.mxu0 %v1566
      %1610 = vmatprep.subr.bf16.mxu0 %v1565
      %1611 = vmatpush1.bf16.msra.mxu0 %v1564
      %1612 = vmatprep.subr.bf16.mxu0 0
      %1613 = vmatpush2.bf16.msra.mxu0 0
      %1614 = vmatprep.subr.bf16.mxu0 0
      %1615 = vmatpush2.bf16.msra.mxu0 0
      %1616 = vmatprep.subr.bf16.mxu0 0
      %1617 = vmatpush2.bf16.msra.mxu0 0
      %1618 = vmatprep.subr.bf16.mxu0 0
      %1619 = vmatpush2.bf16.msra.mxu0 0
      %1620 = vmatprep.subr.bf16.mxu0 0
      %1621 = vmatpush2.bf16.msra.mxu0 0
      %1622 = vmatprep.subr.bf16.mxu0 0
      %1623 = vmatpush2.bf16.msra.mxu0 0
      %1624 = vmatprep.subr.bf16.mxu0 0
      %1625 = vmatpush2.bf16.msra.mxu0 0
      %1626 = vmatprep.subr.bf16.mxu0 0
      %1627 = vmatpush2.bf16.msra.mxu0 0
      %1628 = vmatprep.mubr.bf16.mxu0 0
      %1629 = vmatmul.mubr.bf16.gmra.mxu0 %v622
      %v1630 = vpop.f32.mrf.mxu0
      %v1631 = vadd.f32 0.0, %v1630
      %v1632 = vpop.f32.mrf.mxu0
      %v1633 = vadd.f32 0.0, %v1632
      %v1634 = vpop.f32.mrf.mxu0
      %v1635 = vadd.f32 0.0, %v1634
      %v1636 = vpop.f32.mrf.mxu0
      %v1637 = vadd.f32 0.0, %v1636
      %1638 = vmatprep.mubr.bf16.mxu0 0
      %1639 = vmatmul.mubr.bf16.gmra.mxu0 %v623
      %v1640 = vpop.f32.mrf.mxu0
      %v1641 = vadd.f32 0.0, %v1640
      %v1642 = vpop.f32.mrf.mxu0
      %v1643 = vadd.f32 0.0, %v1642
      %v1644 = vpop.f32.mrf.mxu0
      %v1645 = vadd.f32 0.0, %v1644
      %v1646 = vpop.f32.mrf.mxu0
      %v1647 = vadd.f32 0.0, %v1646
      %1648 = vmatprep.mubr.bf16.mxu0 0
      %1649 = vmatmul.mubr.bf16.gmra.mxu0 %v624
      %v1650 = vpop.f32.mrf.mxu0
      %v1651 = vadd.f32 0.0, %v1650
      %v1652 = vpop.f32.mrf.mxu0
      %v1653 = vadd.f32 0.0, %v1652
      %v1654 = vpop.f32.mrf.mxu0
      %v1655 = vadd.f32 0.0, %v1654
      %v1656 = vpop.f32.mrf.mxu0
      %v1657 = vadd.f32 0.0, %v1656
      %1658 = vmatprep.mubr.bf16.mxu0 0
      %1659 = vmatmul.mubr.bf16.gmra.mxu0 %v625
      %v1660 = vpop.f32.mrf.mxu0
      %v1661 = vadd.f32 0.0, %v1660
      %v1662 = vpop.f32.mrf.mxu0
      %v1663 = vadd.f32 0.0, %v1662
      %v1664 = vpop.f32.mrf.mxu0
      %v1665 = vadd.f32 0.0, %v1664
      %v1666 = vpop.f32.mrf.mxu0
      %v1667 = vadd.f32 0.0, %v1666
      %1668 = vmatprep.mubr.bf16.mxu0 0
      %1669 = vmatmul.mubr.bf16.gmra.mxu0 %v626
      %v1670 = vpop.f32.mrf.mxu0
      %v1671 = vadd.f32 0.0, %v1670
      %v1672 = vpop.f32.mrf.mxu0
      %v1673 = vadd.f32 0.0, %v1672
      %v1674 = vpop.f32.mrf.mxu0
      %v1675 = vadd.f32 0.0, %v1674
      %v1676 = vpop.f32.mrf.mxu0
      %v1677 = vadd.f32 0.0, %v1676
      %1678 = vmatprep.mubr.bf16.mxu0 0
      %1679 = vmatmul.mubr.bf16.gmra.mxu0 %v627
      %v1680 = vpop.f32.mrf.mxu0
      %v1681 = vadd.f32 0.0, %v1680
      %v1682 = vpop.f32.mrf.mxu0
      %v1683 = vadd.f32 0.0, %v1682
      %v1684 = vpop.f32.mrf.mxu0
      %v1685 = vadd.f32 0.0, %v1684
      %v1686 = vpop.f32.mrf.mxu0
      %v1687 = vadd.f32 0.0, %v1686
      %1688 = vmatprep.mubr.bf16.mxu0 0
      %1689 = vmatmul.mubr.bf16.gmra.mxu0 %v628
      %v1690 = vpop.f32.mrf.mxu0
      %v1691 = vadd.f32 0.0, %v1690
      %v1692 = vpop.f32.mrf.mxu0
      %v1693 = vadd.f32 0.0, %v1692
      %v1694 = vpop.f32.mrf.mxu0
      %v1695 = vadd.f32 0.0, %v1694
      %v1696 = vpop.f32.mrf.mxu0
      %v1697 = vadd.f32 0.0, %v1696
      %1698 = vmatprep.mubr.bf16.mxu0 0
      %1699 = vmatmul.mubr.bf16.gmra.mxu0 %v629
      %v1700 = vpop.f32.mrf.mxu0
      %v1701 = vadd.f32 0.0, %v1700
      %v1702 = vpop.f32.mrf.mxu0
      %v1703 = vadd.f32 0.0, %v1702
      %v1704 = vpop.f32.mrf.mxu0
      %v1705 = vadd.f32 0.0, %v1704
      %v1706 = vpop.f32.mrf.mxu0
      %v1707 = vadd.f32 0.0, %v1706
      %1708 = vdwg.mxu0
      %v1725 = vrot.slane %v1631, 7
      %v1726 = vrot.slane %v1635, 7
      %v1727 = vsel %vm855, %v1725, %v1726
      %v1728 = vrot.slane %v1641, 7
      %v1729 = vrot.slane %v1645, 7
      %v1730 = vsel %vm855, %v1728, %v1729
      %v1731 = vrot.slane %v1651, 7
      %v1732 = vrot.slane %v1655, 7
      %v1733 = vsel %vm855, %v1731, %v1732
      %v1734 = vrot.slane %v1661, 7
      %v1735 = vrot.slane %v1665, 7
      %v1736 = vsel %vm855, %v1734, %v1735
      %v1737 = vrot.slane %v1671, 7
      %v1738 = vrot.slane %v1675, 7
      %v1739 = vsel %vm855, %v1737, %v1738
      %v1740 = vrot.slane %v1681, 7
      %v1741 = vrot.slane %v1685, 7
      %v1742 = vsel %vm855, %v1740, %v1741
      %v1743 = vrot.slane %v1691, 7
      %v1744 = vrot.slane %v1695, 7
      %v1745 = vsel %vm855, %v1743, %v1744
      %v1746 = vrot.slane %v1701, 7
      %v1747 = vrot.slane %v1705, 7
      %v1748 = vsel %vm855, %v1746, %v1747
      %v1765 = vsel %vm855, 0.0, %v1725
      %v1766 = vsel %vm855, 0.0, %v1728
      %v1767 = vsel %vm855, 0.0, %v1731
      %v1768 = vsel %vm855, 0.0, %v1734
      %v1769 = vsel %vm855, 0.0, %v1737
      %v1770 = vsel %vm855, 0.0, %v1740
      %v1771 = vsel %vm855, 0.0, %v1743
      %v1772 = vsel %vm855, 0.0, %v1746
      %v1773 = vadd.f32 %v1483, %v1765
      %v1774 = vadd.f32 %v1484, %v1727
      %v1775 = vadd.f32 %v1485, %v1766
      %v1776 = vadd.f32 %v1486, %v1730
      %v1777 = vadd.f32 %v1487, %v1767
      %v1778 = vadd.f32 %v1488, %v1733
      %v1779 = vadd.f32 %v1489, %v1768
      %v1780 = vadd.f32 %v1490, %v1736
      %v1781 = vadd.f32 %v1491, %v1769
      %v1782 = vadd.f32 %v1492, %v1739
      %v1783 = vadd.f32 %v1493, %v1770
      %v1784 = vadd.f32 %v1494, %v1742
      %v1785 = vadd.f32 %v1495, %v1771
      %v1786 = vadd.f32 %v1496, %v1745
      %v1787 = vadd.f32 %v1497, %v1772
      %v1788 = vadd.f32 %v1498, %v1748
      %1789 = vrot.lane.b32.xlu0 %v1631, 64
      %v1790 = vpop.permute.xlu0 %1789
      %1791 = vrot.lane.b32.xlu0 %v1635, 64
      %v1792 = vpop.permute.xlu0 %1791
      %1793 = vrot.lane.b32.xlu0 %v1641, 64
      %v1794 = vpop.permute.xlu0 %1793
      %1795 = vrot.lane.b32.xlu0 %v1645, 64
      %v1796 = vpop.permute.xlu0 %1795
      %1797 = vrot.lane.b32.xlu0 %v1651, 64
      %v1798 = vpop.permute.xlu0 %1797
      %1799 = vrot.lane.b32.xlu0 %v1655, 64
      %v1800 = vpop.permute.xlu0 %1799
      %1801 = vrot.lane.b32.xlu0 %v1661, 64
      %v1802 = vpop.permute.xlu0 %1801
      %1803 = vrot.lane.b32.xlu0 %v1665, 64
      %v1804 = vpop.permute.xlu0 %1803
      %1805 = vrot.lane.b32.xlu0 %v1671, 64
      %v1806 = vpop.permute.xlu0 %1805
      %1807 = vrot.lane.b32.xlu0 %v1675, 64
      %v1808 = vpop.permute.xlu0 %1807
      %1809 = vrot.lane.b32.xlu0 %v1681, 64
      %v1810 = vpop.permute.xlu0 %1809
      %1811 = vrot.lane.b32.xlu0 %v1685, 64
      %v1812 = vpop.permute.xlu0 %1811
      %1813 = vrot.lane.b32.xlu0 %v1691, 64
      %v1814 = vpop.permute.xlu0 %1813
      %1815 = vrot.lane.b32.xlu0 %v1695, 64
      %v1816 = vpop.permute.xlu0 %1815
      %1817 = vrot.lane.b32.xlu0 %v1701, 64
      %v1818 = vpop.permute.xlu0 %1817
      %1819 = vrot.lane.b32.xlu0 %v1705, 64
      %v1820 = vpop.permute.xlu0 %1819
      %v1837 = vadd.f32 %v1773, %v1790
      %v1838 = vadd.f32 %v1774, %v1792
      %v1839 = vadd.f32 %v1775, %v1794
      %v1840 = vadd.f32 %v1776, %v1796
      %v1841 = vadd.f32 %v1777, %v1798
      %v1842 = vadd.f32 %v1778, %v1800
      %v1843 = vadd.f32 %v1779, %v1802
      %v1844 = vadd.f32 %v1780, %v1804
      %v1845 = vadd.f32 %v1781, %v1806
      %v1846 = vadd.f32 %v1782, %v1808
      %v1847 = vadd.f32 %v1783, %v1810
      %v1848 = vadd.f32 %v1784, %v1812
      %v1849 = vadd.f32 %v1785, %v1814
      %v1850 = vadd.f32 %v1786, %v1816
      %v1851 = vadd.f32 %v1787, %v1818
      %v1852 = vadd.f32 %v1788, %v1820
      %v1869 = vrot.slane %v1633, 1
      %v1870 = vrot.slane %v1637, 1
      %v1871 = vsel %vm1000, %v1869, %v1870
      %v1872 = vrot.slane %v1643, 1
      %v1873 = vrot.slane %v1647, 1
      %v1874 = vsel %vm1000, %v1872, %v1873
      %v1875 = vrot.slane %v1653, 1
      %v1876 = vrot.slane %v1657, 1
      %v1877 = vsel %vm1000, %v1875, %v1876
      %v1878 = vrot.slane %v1663, 1
      %v1879 = vrot.slane %v1667, 1
      %v1880 = vsel %vm1000, %v1878, %v1879
      %v1881 = vrot.slane %v1673, 1
      %v1882 = vrot.slane %v1677, 1
      %v1883 = vsel %vm1000, %v1881, %v1882
      %v1884 = vrot.slane %v1683, 1
      %v1885 = vrot.slane %v1687, 1
      %v1886 = vsel %vm1000, %v1884, %v1885
      %v1887 = vrot.slane %v1693, 1
      %v1888 = vrot.slane %v1697, 1
      %v1889 = vsel %vm1000, %v1887, %v1888
      %v1890 = vrot.slane %v1703, 1
      %v1891 = vrot.slane %v1707, 1
      %v1892 = vsel %vm1000, %v1890, %v1891
      %v1909 = vsel %vm1000, %v1870, 0.0
      %v1910 = vsel %vm1000, %v1873, 0.0
      %v1911 = vsel %vm1000, %v1876, 0.0
      %v1912 = vsel %vm1000, %v1879, 0.0
      %v1913 = vsel %vm1000, %v1882, 0.0
      %v1914 = vsel %vm1000, %v1885, 0.0
      %v1915 = vsel %vm1000, %v1888, 0.0
      %v1916 = vsel %vm1000, %v1891, 0.0
      %v1917 = vadd.f32 %v1837, %v1871
      %v1918 = vadd.f32 %v1838, %v1909
      %v1919 = vadd.f32 %v1839, %v1874
      %v1920 = vadd.f32 %v1840, %v1910
      %v1921 = vadd.f32 %v1841, %v1877
      %v1922 = vadd.f32 %v1842, %v1911
      %v1923 = vadd.f32 %v1843, %v1880
      %v1924 = vadd.f32 %v1844, %v1912
      %v1925 = vadd.f32 %v1845, %v1883
      %v1926 = vadd.f32 %v1846, %v1913
      %v1927 = vadd.f32 %v1847, %v1886
      %v1928 = vadd.f32 %v1848, %v1914
      %v1929 = vadd.f32 %v1849, %v1889
      %v1930 = vadd.f32 %v1850, %v1915
      %v1931 = vadd.f32 %v1851, %v1892
      %v1932 = vadd.f32 %v1852, %v1916
      %v1933 = vld [vmem:[%s4] sm:$0x1]
      %v1935 = vlaneseq
      %v1936 = vshrl.u32 %v1935, 7
      %v1937 = vsub.s32 0, %v1936
      %v1938 = vrot.slane %v1933, %v1937
      %v1940 = vadd.f32 %v1917, %v1938
      %v1941 = vadd.f32 %v1918, %v1938
      %v1942 = vadd.f32 %v1919, %v1938
      %v1943 = vadd.f32 %v1920, %v1938
      %v1944 = vadd.f32 %v1921, %v1938
      %v1945 = vadd.f32 %v1922, %v1938
      %v1946 = vadd.f32 %v1923, %v1938
      %v1947 = vadd.f32 %v1924, %v1938
      %v1948 = vadd.f32 %v1925, %v1938
      %v1949 = vadd.f32 %v1926, %v1938
      %v1950 = vadd.f32 %v1927, %v1938
      %v1951 = vadd.f32 %v1928, %v1938
      %v1952 = vadd.f32 %v1929, %v1938
      %v1953 = vadd.f32 %v1930, %v1938
      %v1954 = vadd.f32 %v1931, %v1938
      %v1955 = vadd.f32 %v1932, %v1938
      %v1956 = vpack.c.bf16 %v1941, %v1940
      %v1957 = vpack.c.bf16 %v1943, %v1942
      %v1958 = vpack.c.bf16 %v1945, %v1944
      %v1959 = vpack.c.bf16 %v1947, %v1946
      %v1960 = vpack.c.bf16 %v1949, %v1948
      %v1961 = vpack.c.bf16 %v1951, %v1950
      %v1962 = vpack.c.bf16 %v1953, %v1952
      %v1963 = vpack.c.bf16 %v1955, %v1954
      %v1972 = vunpack.c.l.b16 %v1956
      %v1973 = vunpack.c.h.b16 %v1956
      %v1974 = vunpack.c.l.b16 %v1957
      %v1975 = vunpack.c.h.b16 %v1957
      %v1976 = vunpack.c.l.b16 %v1958
      %v1977 = vunpack.c.h.b16 %v1958
      %v1978 = vunpack.c.l.b16 %v1959
      %v1979 = vunpack.c.h.b16 %v1959
      %v1980 = vunpack.c.l.b16 %v1960
      %v1981 = vunpack.c.h.b16 %v1960
      %v1982 = vunpack.c.l.b16 %v1961
      %v1983 = vunpack.c.h.b16 %v1961
      %v1984 = vunpack.c.l.b16 %v1962
      %v1985 = vunpack.c.h.b16 %v1962
      %v1986 = vunpack.c.l.b16 %v1963
      %v1987 = vunpack.c.h.b16 %v1963
      %v1988 = vpack.c.b16 %v1972, %v1972
      %v1989 = vpack.c.b16 %v1973, %v1973
      %v1990 = vpack.c.b16 %v1974, %v1974
      %v1991 = vpack.c.b16 %v1975, %v1975
      %v1992 = vpack.c.b16 %v1976, %v1976
      %v1993 = vpack.c.b16 %v1977, %v1977
      %v1994 = vpack.c.b16 %v1978, %v1978
      %v1995 = vpack.c.b16 %v1979, %v1979
      %v1996 = vpack.c.b16 %v1980, %v1980
      %v1997 = vpack.c.b16 %v1981, %v1981
      %v1998 = vpack.c.b16 %v1982, %v1982
      %v1999 = vpack.c.b16 %v1983, %v1983
      %v2000 = vpack.c.b16 %v1984, %v1984
      %v2001 = vpack.c.b16 %v1985, %v1985
      %v2002 = vpack.c.b16 %v1986, %v1986
      %v2003 = vpack.c.b16 %v1987, %v1987
      %vm2020 = vcmask 519168
      %2021 = vst.msk [vmem:[%s485] sm:$0xf] %vm2020, %v1988
      %2022 = vst.msk [vmem:[%s485 + $0x4] sm:$0xf] %vm2020, %v1989
      %2023 = vst.msk [vmem:[%s485 + $0x8] sm:$0xf] %vm2020, %v1990
      %2024 = vst.msk [vmem:[%s485 + $0xc] sm:$0xf] %vm2020, %v1991
      %2025 = vst.msk [vmem:[%s485 + $0x10] sm:$0xf] %vm2020, %v1992
      %2026 = vst.msk [vmem:[%s485 + $0x14] sm:$0xf] %vm2020, %v1993
      %2027 = vst.msk [vmem:[%s485 + $0x18] sm:$0xf] %vm2020, %v1994
      %2028 = vst.msk [vmem:[%s485 + $0x1c] sm:$0xf] %vm2020, %v1995
      %2029 = vst.msk [vmem:[%s485 + $0x20] sm:$0xf] %vm2020, %v1996
      %2030 = vst.msk [vmem:[%s485 + $0x24] sm:$0xf] %vm2020, %v1997
      %2031 = vst.msk [vmem:[%s485 + $0x28] sm:$0xf] %vm2020, %v1998
      %2032 = vst.msk [vmem:[%s485 + $0x2c] sm:$0xf] %vm2020, %v1999
      %2033 = vst.msk [vmem:[%s485 + $0x30] sm:$0xf] %vm2020, %v2000
      %2034 = vst.msk [vmem:[%s485 + $0x34] sm:$0xf] %vm2020, %v2001
      %2035 = vst.msk [vmem:[%s485 + $0x38] sm:$0xf] %vm2020, %v2002
      %2036 = vst.msk [vmem:[%s485 + $0x3c] sm:$0xf] %vm2020, %v2003
      %vm2037 = vcmask 523264
      %v2038 = vsel %vm2037, %v1940, 0.0
      %v2039 = vsel %vm2037, %v1941, 0.0
      %v2040 = vadd.f32 %v2038, %v2039
      %v2041 = vsel %vm2037, %v1942, 0.0
      %v2042 = vadd.f32 %v2040, %v2041
      %v2043 = vsel %vm2037, %v1943, 0.0
      %v2044 = vadd.f32 %v2042, %v2043
      %v2045 = vsel %vm2037, %v1944, 0.0
      %v2046 = vadd.f32 %v2044, %v2045
      %v2047 = vsel %vm2037, %v1945, 0.0
      %v2048 = vadd.f32 %v2046, %v2047
      %v2049 = vsel %vm2037, %v1946, 0.0
      %v2050 = vadd.f32 %v2048, %v2049
      %v2051 = vsel %vm2037, %v1947, 0.0
      %v2052 = vadd.f32 %v2050, %v2051
      %v2053 = vsel %vm2037, %v1948, 0.0
      %v2054 = vadd.f32 %v2052, %v2053
      %v2055 = vsel %vm2037, %v1949, 0.0
      %v2056 = vadd.f32 %v2054, %v2055
      %v2057 = vsel %vm2037, %v1950, 0.0
      %v2058 = vadd.f32 %v2056, %v2057
      %v2059 = vsel %vm2037, %v1951, 0.0
      %v2060 = vadd.f32 %v2058, %v2059
      %v2061 = vsel %vm2037, %v1952, 0.0
      %v2062 = vadd.f32 %v2060, %v2061
      %v2063 = vsel %vm2037, %v1953, 0.0
      %v2064 = vadd.f32 %v2062, %v2063
      %v2065 = vsel %vm2037, %v1954, 0.0
      %v2066 = vadd.f32 %v2064, %v2065
      %v2067 = vsel %vm2037, %v1955, 0.0
      %v2068 = vadd.f32 %v2066, %v2067
      %v2069 = vrot.slane %v2068, 4
      %v2070 = vadd.f32 %v2068, %v2069
      %v2071 = vrot.slane %v2070, 2
      %v2072 = vadd.f32 %v2070, %v2071
      %v2073 = vrot.slane %v2072, 1
      %v2074 = vadd.f32 %v2072, %v2073
      %v2075 = vmul.f32 %v1940, %v1940
      %v2076 = vmul.f32 %v1941, %v1941
      %v2077 = vmul.f32 %v1942, %v1942
      %v2078 = vmul.f32 %v1943, %v1943
      %v2079 = vmul.f32 %v1944, %v1944
      %v2080 = vmul.f32 %v1945, %v1945
      %v2081 = vmul.f32 %v1946, %v1946
      %v2082 = vmul.f32 %v1947, %v1947
      %v2083 = vmul.f32 %v1948, %v1948
      %v2084 = vmul.f32 %v1949, %v1949
      %v2085 = vmul.f32 %v1950, %v1950
      %v2086 = vmul.f32 %v1951, %v1951
      %v2087 = vmul.f32 %v1952, %v1952
      %v2088 = vmul.f32 %v1953, %v1953
      %v2089 = vmul.f32 %v1954, %v1954
      %v2090 = vmul.f32 %v1955, %v1955
      %v2091 = vsel %vm2037, %v2075, 0.0
      %v2092 = vsel %vm2037, %v2076, 0.0
      %v2093 = vadd.f32 %v2091, %v2092
      %v2094 = vsel %vm2037, %v2077, 0.0
      %v2095 = vadd.f32 %v2093, %v2094
      %v2096 = vsel %vm2037, %v2078, 0.0
      %v2097 = vadd.f32 %v2095, %v2096
      %v2098 = vsel %vm2037, %v2079, 0.0
      %v2099 = vadd.f32 %v2097, %v2098
      %v2100 = vsel %vm2037, %v2080, 0.0
      %v2101 = vadd.f32 %v2099, %v2100
      %v2102 = vsel %vm2037, %v2081, 0.0
      %v2103 = vadd.f32 %v2101, %v2102
      %v2104 = vsel %vm2037, %v2082, 0.0
      %v2105 = vadd.f32 %v2103, %v2104
      %v2106 = vsel %vm2037, %v2083, 0.0
      %v2107 = vadd.f32 %v2105, %v2106
      %v2108 = vsel %vm2037, %v2084, 0.0
      %v2109 = vadd.f32 %v2107, %v2108
      %v2110 = vsel %vm2037, %v2085, 0.0
      %v2111 = vadd.f32 %v2109, %v2110
      %v2112 = vsel %vm2037, %v2086, 0.0
      %v2113 = vadd.f32 %v2111, %v2112
      %v2114 = vsel %vm2037, %v2087, 0.0
      %v2115 = vadd.f32 %v2113, %v2114
      %v2116 = vsel %vm2037, %v2088, 0.0
      %v2117 = vadd.f32 %v2115, %v2116
      %v2118 = vsel %vm2037, %v2089, 0.0
      %v2119 = vadd.f32 %v2117, %v2118
      %v2120 = vsel %vm2037, %v2090, 0.0
      %v2121 = vadd.f32 %v2119, %v2120
      %v2122 = vrot.slane %v2121, 4
      %v2123 = vadd.f32 %v2121, %v2122
      %v2124 = vrot.slane %v2123, 2
      %v2125 = vadd.f32 %v2123, %v2124
      %v2126 = vrot.slane %v2125, 1
      %v2127 = vadd.f32 %v2125, %v2126
      %v2128 = vsel %vm855, %v2074, %v2127
      %vm2129 = vcmask 517120
      %2130 = vst.msk [vmem:[%s494] sm:$0x3] %vm2129, %v2128
      %s2131 = smul.u32 8, %s25
      %p2132 = scmp.lt.s32.totalorder %s24, 1
      %s2133 = scalar_select %p2132, %s24, 1
      %p2134 = scmp.lt.s32.totalorder %s2131, 15
      %s2135 = scalar_select %p2134, %s2131, 15
      %s2136 = smul.addr %s2135, 2
      %s2137 = smul.addr %s2133, 32
      %s2138 = sadd.s32 %s2136, %s2137
      %s2139 = smul.addr %s2138, 4
      %s2140 = scalar_lea.vmem %s7, %s2139
      %p2141 = scmp.lt.s32.totalorder %s24, 1
      %s2142 = scalar_select %p2141, %s24, 1
      %p2143 = scmp.lt.s32.totalorder %s25, 1
      %s2144 = scalar_select %p2143, %s25, 1
      %s2145 = smul.addr %s2142, 2
      %s2146 = sadd.s32 %s2144, %s2145
      %s2147 = smul.addr %s2146, 2
      %s2148 = scalar_lea.vmem %s8, %s2147
      // Predicated region
      $region49: #{dehaze_generator.6} parent=47 // pred_check
        %p2149 = pneg %p236
      $region50: #{dehaze_generator.6} parent=47 // pred_check_branch
        %2151 = sbr.rel (%p2149) target = $region52
      $region51: #{dehaze_generator.6} parent=47 // pred_region
        %s2152 = smul.u32 8, %s25
      $region52: #{dehaze_generator.6} parent=47 // pred_fallthru
        _
      // Predicated region
      $region53: #{dehaze_generator.6} parent=47 // pred_check
        %p2153 = pneg %p264
      $region54: #{dehaze_generator.6} parent=47 // pred_check_branch
        %2155 = sbr.rel (%p2153) target = $region56
      $region55: #{dehaze_generator.6} parent=47 // pred_region
        _
      $region56: #{dehaze_generator.6} parent=47 // pred_fallthru
        _
    $region48: #{dehaze_generator.6} parent=5 // pred_fallthru
      _
    %p2156 = scmp.le.s32.totalorder 2, %s15
    // Predicated region
    $region57: #{dehaze_generator.6} parent=5 // pred_check
      %p2157 = pneg %p2156
    $region58: #{dehaze_generator.6} parent=5 // pred_check_branch
      %2159 = sbr.rel (%p2157) target = $region60
    $region59: #{dehaze_generator.6} parent=5 // pred_region
      %s2160 = ssub.s32 %s15, 2
      // Predicated region
      $region61: #{dehaze_generator.6} parent=59 // pred_check
        %p2161 = pneg %p242
      $region62: #{dehaze_generator.6} parent=59 // pred_check_branch
        %2163 = sbr.rel (%p2161) target = $region64
      $region63: #{dehaze_generator.6} parent=59 // pred_region
        %s2164 = smul.u32 8, %s27
        %p2165 = scmp.lt.s32.totalorder %s26, 1
        %s2166 = scalar_select %p2165, %s26, 1
        %p2167 = scmp.lt.s32.totalorder %s2164, 15
        %s2168 = scalar_select %p2167, %s2164, 15
        %s2169 = smul.addr %s2168, 2
        %s2170 = smul.addr %s2166, 32
        %s2171 = sadd.s32 %s2169, %s2170
        %s2172 = smul.addr %s2171, 4
        %s2173 = scalar_lea.vmem %s7, %s2172
      $region64: #{dehaze_generator.6} parent=59 // pred_fallthru
        _
      // Predicated region
      $region65: #{dehaze_generator.6} parent=59 // pred_check
        %p2174 = pneg %p270
      $region66: #{dehaze_generator.6} parent=59 // pred_check_branch
        %2176 = sbr.rel (%p2174) target = $region68
      $region67: #{dehaze_generator.6} parent=59 // pred_region
        %p2177 = scmp.lt.s32.totalorder %s26, 1
        %s2178 = scalar_select %p2177, %s26, 1
        %p2179 = scmp.lt.s32.totalorder %s27, 1
        %s2180 = scalar_select %p2179, %s27, 1
        %s2181 = smul.addr %s2178, 2
        %s2182 = sadd.s32 %s2180, %s2181
        %s2183 = smul.addr %s2182, 2
        %s2184 = scalar_lea.vmem %s8, %s2183
      $region68: #{dehaze_generator.6} parent=59 // pred_fallthru
        _
    $region60: #{dehaze_generator.6} parent=5 // pred_fallthru
      _
  $region6: #{dehaze_generator.6} parent=0 // loop_footer
    %s19 = sadd.s32 1, %s15
  $region7: #{dehaze_generator.6} parent=0 // loop_footer_branch
    %14 = sbr.rel target = $region3
  $region8: #{dehaze_generator.6} parent=0 // loop_exit
    _

// kernel: dehaze_generator.7
$region0: #{dehaze_generator.7}
  #allocation0 [shape = 'u32[]', space=smem, size = 0x4, offset = 0x4, fixed_abs, tag = 'smem constant byte address 0x4 - core index']
  #allocation1 [shape = 'u32[144,128]{1,0:T(1,128)}', space=vmem, size = 0x12000, scoped, tag = 'internal scratch']
  %s0 = inlined_call_operand.vmem [shape: bf16[2,16,16,64], index: 0, kind: input, shape index: {}, may-alias: {0,1,2}]
  %s1 = inlined_call_operand.vmem [shape: bf16[2,16,16,64], index: 1, kind: input, shape index: {}, may-alias: {0,1,2}]
  %s2 = inlined_call_operand.vmem [shape: bf16[2,16,16,64], index: 2, kind: input, shape index: {}, may-alias: {0,1,2}]
  %s3 = inlined_call_operand.vmem [shape: bf16[3,64,24], index: 3, kind: input, shape index: {}]
  %s4 = inlined_call_operand.vmem [shape: f32[1,8], index: 4, kind: input, shape index: {}]
  %s5 = inlined_call_operand.vmem [shape: f32[1,64], index: 5, kind: input, shape index: {}]
  %s6 = inlined_call_operand.vmem [shape: f32[1,64], index: 6, kind: input, shape index: {}]
  %s7 = inlined_call_operand.vmem [shape: f32[2,16,16,8], index: 7, kind: output, shape index: {0}]
  %s8 = inlined_call_operand.hbm [shape: f32[2,2,2,8], index: 8, kind: output, shape index: {1}]
  %9 = xla_tuple %s7, %s8
  %s10 = sld [smem:[#allocation0]]
  $region69: #{dehaze_generator.7} parent=0
    _
  %s12 = ssub.s32 1, %s10
  %s13 = scalar_select 0, %s12, %s10
  $region1: #{dehaze_generator.7} parent=0
    #allocation2 [shape = 'u8[2048]{0}', space=vmem, size = 0x800, scoped, tag = 'output window, operand 1']
    #allocation3 [shape = 's32[2]{0}', space=sflag, size = 0x8, scoped, tag = 'scoped memory for dehaze_generator.7']
    %14 = vsyncpa [#allocation3], 0
    %s15 = scalar_lea.sflag [#allocation3], 1
    %16 = vsyncpa %s15, 0
    loop: start=0, step=1, limit=6
    $region2: #{dehaze_generator.7} parent=1 // loop_pre_header
      _
    $region3: #{dehaze_generator.7} parent=1 // loop_header
      %s18 = sphi 0, %s22
      %p19 = scmp.ge.s32.totalorder %s18, 6
      %s25 = sphi 0, %s37
      %s26 = sphi 0, %s33
      %s27 = sphi 0, %s25
      %s28 = sphi 0, %s26
      %s29 = sphi 0, %s27
      %s30 = sphi 0, %s28
      %s42 = sphi 0, %s44
      %s45 = sphi 0, %s42
      %s46 = sphi 0, %s45
      %s62 = sphi 0, %s46
      %s78 = sphi 0, %s80
      %s81 = sphi 0, %s78
      %s82 = sphi 0, %s81
      %s98 = sphi 0, %s82
      %s114 = sphi 0, %s116
      %s117 = sphi 0, %s114
      %s118 = sphi 0, %s117
      %s134 = sphi 0, %s118
      %s138 = sphi 0, %s138
      %s140 = sphi 0, %s138
      %s141 = sphi 0, %s140
      %s155 = sphi 0, %s141
      %s159 = sphi 0, %s159
      %s161 = sphi 0, %s159
      %s162 = sphi 0, %s161
      %s176 = sphi 0, %s162
      %s180 = sphi 0, %s180
      %s182 = sphi 0, %s180
      %s183 = sphi 0, %s182
      %s197 = sphi 0, %s183
      %s201 = sphi 0, %s201
      %s203 = sphi 0, %s201
      %s204 = sphi 0, %s203
      %s218 = sphi 0, %s204
      %s226 = sphi 0, %s228
      %s229 = sphi 0, %s226
      %s230 = sphi 0, %s229
      %s246 = sphi 0, %s230
      %s254 = sphi 0, %s256
      %s257 = sphi 0, %s254
      %s258 = sphi 0, %s257
      %s274 = sphi 0, %s258
    $region4: #{dehaze_generator.7} parent=1 // loop_header_branch
      %21 = sbr.rel (%p19) target = $region8
    $region5: #{dehaze_generator.7} parent=1 // loop_body
      %s23 = ssub.s32 %s18, 1
      %s24 = ssub.s32 %s18, 2
      %s31 = sadd.s32 1, %s26
      %p32 = scmp.ge.s32.totalorder %s31, 2
      %s33 = scalar_select %p32, 0, %s31
      %s34 = sadd.s32 1, %s25
      %s35 = scalar_select %p32, %s34, %s25
      %p36 = scmp.ge.s32.totalorder %s35, 2
      %s37 = scalar_select %p36, 0, %s35
      %s38 = ssub.s32 %s25, %s37
      %s39 = ssub.s32 %s26, %s33
      %s40 = sor.u32 %s38, %s39
      %p41 = scmp.eq.s32.totalorder %s40, 0
      %s43 = sadd.s32 %s42, 1
      %s44 = scalar_select %p41, %s42, %s43
      %p47 = pneg %p41
      %p48 = scmp.eq.s32.totalorder %s18, 3
      %p49 = por %p47, %p48
      %p50 = scmp.ne.s32.totalorder %s42, %s45
      %p51 = scmp.eq.s32.totalorder %s18, 0
      %p52 = por %p50, %p51
      %p53 = scmp.ne.s32.totalorder %s42, %s45
      %p54 = scmp.eq.s32.totalorder %s23, 3
      %p55 = por %p53, %p54
      %p56 = scmp.ne.s32.totalorder %s45, %s46
      %p57 = scmp.eq.s32.totalorder %s23, 0
      %p58 = por %p56, %p57
      %p59 = scmp.ne.s32.totalorder %s45, %s46
      %p60 = scmp.eq.s32.totalorder %s24, 3
      %p61 = por %p59, %p60
      %p63 = scmp.ne.s32.totalorder %s46, %s62
      %p64 = scmp.eq.s32.totalorder %s24, 0
      %p65 = por %p63, %p64
      %s66 = smul.u32 %s26, 8
      %s67 = ssub.s32 %s66, 1
      %p68 = scmp.gt.s32.totalorder %s67, 0
      %s69 = scalar_select %p68, %s67, 0
      %s70 = smul.u32 %s33, 8
      %s71 = ssub.s32 %s70, 1
      %p72 = scmp.gt.s32.totalorder %s71, 0
      %s73 = scalar_select %p72, %s71, 0
      %s74 = ssub.s32 %s25, %s37
      %s75 = ssub.s32 %s69, %s73
      %s76 = sor.u32 %s74, %s75
      %p77 = scmp.eq.s32.totalorder %s76, 0
      %s79 = sadd.s32 %s78, 1
      %s80 = scalar_select %p77, %s78, %s79
      %p83 = pneg %p77
      %p84 = scmp.eq.s32.totalorder %s18, 3
      %p85 = por %p83, %p84
      %p86 = scmp.ne.s32.totalorder %s78, %s81
      %p87 = scmp.eq.s32.totalorder %s18, 0
      %p88 = por %p86, %p87
      %p89 = scmp.ne.s32.totalorder %s78, %s81
      %p90 = scmp.eq.s32.totalorder %s23, 3
      %p91 = por %p89, %p90
      %p92 = scmp.ne.s32.totalorder %s81, %s82
      %p93 = scmp.eq.s32.totalorder %s23, 0
      %p94 = por %p92, %p93
      %p95 = scmp.ne.s32.totalorder %s81, %s82
      %p96 = scmp.eq.s32.totalorder %s24, 3
      %p97 = por %p95, %p96
      %p99 = scmp.ne.s32.totalorder %s82, %s98
      %p100 = scmp.eq.s32.totalorder %s24, 0
      %p101 = por %p99, %p100
      %s102 = sadd.s32 %s26, 1
      %s103 = smul.u32 %s102, 8
      %p104 = scmp.lt.s32.totalorder %s103, 15
      %s105 = scalar_select %p104, %s103, 15
      %s106 = sadd.s32 %s33, 1
      %s107 = smul.u32 %s106, 8
      %p108 = scmp.lt.s32.totalorder %s107, 15
      %s109 = scalar_select %p108, %s107, 15
      %s110 = ssub.s32 %s25, %s37
      %s111 = ssub.s32 %s105, %s109
      %s112 = sor.u32 %s110, %s111
      %p113 = scmp.eq.s32.totalorder %s112, 0
      %s115 = sadd.s32 %s114, 1
      %s116 = scalar_select %p113, %s114, %s115
      %p119 = pneg %p113
      %p120 = scmp.eq.s32.totalorder %s18, 3
      %p121 = por %p119, %p120
      %p122 = scmp.ne.s32.totalorder %s114, %s117
      %p123 = scmp.eq.s32.totalorder %s18, 0
      %p124 = por %p122, %p123
      %p125 = scmp.ne.s32.totalorder %s114, %s117
      %p126 = scmp.eq.s32.totalorder %s23, 3
      %p127 = por %p125, %p126
      %p128 = scmp.ne.s32.totalorder %s117, %s118
      %p129 = scmp.eq.s32.totalorder %s23, 0
      %p130 = por %p128, %p129
      %p131 = scmp.ne.s32.totalorder %s117, %s118
      %p132 = scmp.eq.s32.totalorder %s24, 3
      %p133 = por %p131, %p132
      %p135 = scmp.ne.s32.totalorder %s118, %s134
      %p136 = scmp.eq.s32.totalorder %s24, 0
      %p137 = por %p135, %p136
      %s139 = sadd.s32 %s138, 1
      %p142 = scmp.eq.s32.totalorder %s18, 3
      %p143 = scmp.ne.s32.totalorder %s138, %s140
      %p144 = scmp.eq.s32.totalorder %s18, 0
      %p145 = por %p143, %p144
      %p146 = scmp.ne.s32.totalorder %s138, %s140
      %p147 = scmp.eq.s32.totalorder %s23, 3
      %p148 = por %p146, %p147
      %p149 = scmp.ne.s32.totalorder %s140, %s141
      %p150 = scmp.eq.s32.totalorder %s23, 0
      %p151 = por %p149, %p150
      %p152 = scmp.ne.s32.totalorder %s140, %s141
      %p153 = scmp.eq.s32.totalorder %s24, 3
      %p154 = por %p152, %p153
      %p156 = scmp.ne.s32.totalorder %s141, %s155
      %p157 = scmp.eq.s32.totalorder %s24, 0
      %p158 = por %p156, %p157
      %s160 = sadd.s32 %s159, 1
      %p163 = scmp.eq.s32.totalorder %s18, 3
      %p164 = scmp.ne.s32.totalorder %s159, %s161
      %p165 = scmp.eq.s32.totalorder %s18, 0
      %p166 = por %p164, %p165
      %p167 = scmp.ne.s32.totalorder %s159, %s161
      %p168 = scmp.eq.s32.totalorder %s23, 3
      %p169 = por %p167, %p168
      %p170 = scmp.ne.s32.totalorder %s161, %s162
      %p171 = scmp.eq.s32.totalorder %s23, 0
      %p172 = por %p170, %p171
      %p173 = scmp.ne.s32.totalorder %s161, %s162
      %p174 = scmp.eq.s32.totalorder %s24, 3
      %p175 = por %p173, %p174
      %p177 = scmp.ne.s32.totalorder %s162, %s176
      %p178 = scmp.eq.s32.totalorder %s24, 0
      %p179 = por %p177, %p178
      %s181 = sadd.s32 %s180, 1
      %p184 = scmp.eq.s32.totalorder %s18, 3
      %p185 = scmp.ne.s32.totalorder %s180, %s182
      %p186 = scmp.eq.s32.totalorder %s18, 0
      %p187 = por %p185, %p186
      %p188 = scmp.ne.s32.totalorder %s180, %s182
      %p189 = scmp.eq.s32.totalorder %s23, 3
      %p190 = por %p188, %p189
      %p191 = scmp.ne.s32.totalorder %s182, %s183
      %p192 = scmp.eq.s32.totalorder %s23, 0
      %p193 = por %p191, %p192
      %p194 = scmp.ne.s32.totalorder %s182, %s183
      %p195 = scmp.eq.s32.totalorder %s24, 3
      %p196 = por %p194, %p195
      %p198 = scmp.ne.s32.totalorder %s183, %s197
      %p199 = scmp.eq.s32.totalorder %s24, 0
      %p200 = por %p198, %p199
      %s202 = sadd.s32 %s201, 1
      %p205 = scmp.eq.s32.totalorder %s18, 3
      %p206 = scmp.ne.s32.totalorder %s201, %s203
      %p207 = scmp.eq.s32.totalorder %s18, 0
      %p208 = por %p206, %p207
      %p209 = scmp.ne.s32.totalorder %s201, %s203
      %p210 = scmp.eq.s32.totalorder %s23, 3
      %p211 = por %p209, %p210
      %p212 = scmp.ne.s32.totalorder %s203, %s204
      %p213 = scmp.eq.s32.totalorder %s23, 0
      %p214 = por %p212, %p213
      %p215 = scmp.ne.s32.totalorder %s203, %s204
      %p216 = scmp.eq.s32.totalorder %s24, 3
      %p217 = por %p215, %p216
      %p219 = scmp.ne.s32.totalorder %s204, %s218
      %p220 = scmp.eq.s32.totalorder %s24, 0
      %p221 = por %p219, %p220
      %s222 = ssub.s32 %s25, %s37
      %s223 = ssub.s32 %s26, %s33
      %s224 = sor.u32 %s222, %s223
      %p225 = scmp.eq.s32.totalorder %s224, 0
      %s227 = sadd.s32 %s226, 1
      %s228 = scalar_select %p225, %s226, %s227
      %p231 = pneg %p225
      %p232 = scmp.eq.s32.totalorder %s18, 3
      %p233 = por %p231, %p232
      %p234 = scmp.ne.s32.totalorder %s226, %s229
      %p235 = scmp.eq.s32.totalorder %s18, 0
      %p236 = por %p234, %p235
      %p237 = scmp.ne.s32.totalorder %s226, %s229
      %p238 = scmp.eq.s32.totalorder %s23, 3
      %p239 = por %p237, %p238
      %p240 = scmp.ne.s32.totalorder %s229, %s230
      %p241 = scmp.eq.s32.totalorder %s23, 0
      %p242 = por %p240, %p241
      %p243 = scmp.ne.s32.totalorder %s229, %s230
      %p244 = scmp.eq.s32.totalorder %s24, 3
      %p245 = por %p243, %p244
      %p247 = scmp.ne.s32.totalorder %s230, %s246
      %p248 = scmp.eq.s32.totalorder %s24, 0
      %p249 = por %p247, %p248
      %s250 = ssub.s32 %s25, %s37
      %s251 = ssub.s32 %s26, %s33
      %s252 = sor.u32 %s250, %s251
      %p253 = scmp.eq.s32.totalorder %s252, 0
      %s255 = sadd.s32 %s254, 1
      %s256 = scalar_select %p253, %s254, %s255
      %p259 = pneg %p253
      %p260 = scmp.eq.s32.totalorder %s18, 3
      %p261 = por %p259, %p260
      %p262 = scmp.ne.s32.totalorder %s254, %s257
      %p263 = scmp.eq.s32.totalorder %s18, 0
      %p264 = por %p262, %p263
      %p265 = scmp.ne.s32.totalorder %s254, %s257
      %p266 = scmp.eq.s32.totalorder %s23, 3
      %p267 = por %p265, %p266
      %p268 = scmp.ne.s32.totalorder %s257, %s258
      %p269 = scmp.eq.s32.totalorder %s23, 0
      %p270 = por %p268, %p269
      %p271 = scmp.ne.s32.totalorder %s257, %s258
      %p272 = scmp.eq.s32.totalorder %s24, 3
      %p273 = por %p271, %p272
      %p275 = scmp.ne.s32.totalorder %s258, %s274
      %p276 = scmp.eq.s32.totalorder %s24, 0
      %p277 = por %p275, %p276
      %p278 = scmp.le.s32.totalorder 1, %s18
      %p279 = scmp.lt.s32.totalorder %s18, 5
      %p280 = pnand %p278, %p279
      %p281 = pneg %p280
      // Predicated region
      $region9: #{dehaze_generator.7} parent=5 // pred_check
        _
      $region10: #{dehaze_generator.7} parent=5 // pred_check_branch
        %283 = sbr.rel (%p280) target = $region12
      $region11: #{dehaze_generator.7} parent=5 // pred_region
        %s284 = ssub.s32 %s18, 1
        // Predicated region
        $region13: #{dehaze_generator.7} parent=11 // pred_check
          %p285 = pneg %p151
        $region14: #{dehaze_generator.7} parent=11 // pred_check_branch
          %287 = sbr.rel (%p285) target = $region16
        $region15: #{dehaze_generator.7} parent=11 // pred_region
          _
        $region16: #{dehaze_generator.7} parent=11 // pred_fallthru
          _
        // Predicated region
        $region17: #{dehaze_generator.7} parent=11 // pred_check
          %p288 = pneg %p172
        $region18: #{dehaze_generator.7} parent=11 // pred_check_branch
          %290 = sbr.rel (%p288) target = $region20
        $region19: #{dehaze_generator.7} parent=11 // pred_region
          _
        $region20: #{dehaze_generator.7} parent=11 // pred_fallthru
          _
        // Predicated region
        $region21: #{dehaze_generator.7} parent=11 // pred_check
          %p291 = pneg %p193
        $region22: #{dehaze_generator.7} parent=11 // pred_check_branch
          %293 = sbr.rel (%p291) target = $region24
        $region23: #{dehaze_generator.7} parent=11 // pred_region
          _
        $region24: #{dehaze_generator.7} parent=11 // pred_fallthru
          _
        // Predicated region
        $region25: #{dehaze_generator.7} parent=11 // pred_check
          %p294 = pneg %p214
        $region26: #{dehaze_generator.7} parent=11 // pred_check_branch
          %296 = sbr.rel (%p294) target = $region28
        $region27: #{dehaze_generator.7} parent=11 // pred_region
          _
        $region28: #{dehaze_generator.7} parent=11 // pred_fallthru
          _
      $region12: #{dehaze_generator.7} parent=5 // pred_fallthru
        _
      %p297 = scmp.lt.s32.totalorder %s18, 4
      // Predicated region
      $region29: #{dehaze_generator.7} parent=5 // pred_check
        %p298 = pneg %p297
      $region30: #{dehaze_generator.7} parent=5 // pred_check_branch
        %300 = sbr.rel (%p298) target = $region32
      $region31: #{dehaze_generator.7} parent=5 // pred_region
        // Predicated region
        $region33: #{dehaze_generator.7} parent=31 // pred_check
          %p301 = pneg %p52
        $region34: #{dehaze_generator.7} parent=31 // pred_check_branch
          %303 = sbr.rel (%p301) target = $region36
        $region35: #{dehaze_generator.7} parent=31 // pred_region
          %s304 = smul.u32 8, %s26
          %p305 = scmp.lt.s32.totalorder %s25, 1
          %s306 = scalar_select %p305, %s25, 1
          %p307 = scmp.lt.s32.totalorder %s304, 15
          %s308 = scalar_select %p307, %s304, 15
          %s309 = smul.addr %s308, 2
          %s310 = smul.addr %s306, 32
          %s311 = sadd.s32 %s309, %s310
          %s312 = smul.addr %s311, 4
          %s313 = scalar_lea.vmem %s0, %s312
          %s314 = smul.u32 8, %s26
        $region36: #{dehaze_generator.7} parent=31 // pred_fallthru
          _
        // Predicated region
        $region37: #{dehaze_generator.7} parent=31 // pred_check
          %p315 = pneg %p88
        $region38: #{dehaze_generator.7} parent=31 // pred_check_branch
          %317 = sbr.rel (%p315) target = $region40
        $region39: #{dehaze_generator.7} parent=31 // pred_region
          %s318 = smul.u32 %s26, 8
          %s319 = ssub.s32 %s318, 1
          %p320 = scmp.gt.s32.totalorder %s319, 0
          %s321 = scalar_select %p320, %s319, 0
          %p322 = scmp.lt.s32.totalorder %s25, 1
          %s323 = scalar_select %p322, %s25, 1
          %p324 = scmp.lt.s32.totalorder %s321, 15
          %s325 = scalar_select %p324, %s321, 15
          %s326 = smul.addr %s325, 2
          %s327 = smul.addr %s323, 32
          %s328 = sadd.s32 %s326, %s327
          %s329 = smul.addr %s328, 4
          %s330 = scalar_lea.vmem %s1, %s329
          %s331 = smul.u32 %s26, 8
          %s332 = ssub.s32 %s331, 1
          %p333 = scmp.gt.s32.totalorder %s332, 0
          %s334 = scalar_select %p333, %s332, 0
        $region40: #{dehaze_generator.7} parent=31 // pred_fallthru
          _
        // Predicated region
        $region41: #{dehaze_generator.7} parent=31 // pred_check
          %p335 = pneg %p124
        $region42: #{dehaze_generator.7} parent=31 // pred_check_branch
          %337 = sbr.rel (%p335) target = $region44
        $region43: #{dehaze_generator.7} parent=31 // pred_region
          %s338 = sadd.s32 %s26, 1
          %s339 = smul.u32 %s338, 8
          %p340 = scmp.lt.s32.totalorder %s339, 15
          %s341 = scalar_select %p340, %s339, 15
          %p342 = scmp.lt.s32.totalorder %s25, 1
          %s343 = scalar_select %p342, %s25, 1
          %p344 = scmp.lt.s32.totalorder %s341, 15
          %s345 = scalar_select %p344, %s341, 15
          %s346 = smul.addr %s345, 2
          %s347 = smul.addr %s343, 32
          %s348 = sadd.s32 %s346, %s347
          %s349 = smul.addr %s348, 4
          %s350 = scalar_lea.vmem %s2, %s349
          %s351 = sadd.s32 %s26, 1
          %s352 = smul.u32 %s351, 8
          %p353 = scmp.lt.s32.totalorder %s352, 15
          %s354 = scalar_select %p353, %s352, 15
        $region44: #{dehaze_generator.7} parent=31 // pred_fallthru
          _
      $region32: #{dehaze_generator.7} parent=5 // pred_fallthru
        _
      %p355 = scmp.le.s32.totalorder 1, %s18
      %p356 = scmp.lt.s32.totalorder %s18, 5
      %p357 = pnand %p355, %p356
      %p358 = pneg %p357
      // Predicated region
      $region45: #{dehaze_generator.7} parent=5 // pred_check
        _
      $region46: #{dehaze_generator.7} parent=5 // pred_check_branch
        %360 = sbr.rel (%p357) target = $region48
      $region47: #{dehaze_generator.7} parent=5 // pred_region
        %s361 = ssub.s32 %s18, 1
        %s362 = smul.u32 8, %s28
        %p363 = scmp.lt.s32.totalorder %s27, 1
        %s364 = scalar_select %p363, %s27, 1
        %p365 = scmp.lt.s32.totalorder %s362, 15
        %s366 = scalar_select %p365, %s362, 15
        %s367 = smul.addr %s366, 2
        %s368 = smul.addr %s364, 32
        %s369 = sadd.s32 %s367, %s368
        %s370 = smul.addr %s369, 4
        %s371 = scalar_lea.vmem %s0, %s370
        %p372 = pneg %p58
        %p373 = pneg %p55
        %s374 = smul.u32 %s28, 8
        %s375 = ssub.s32 %s374, 1
        %p376 = scmp.gt.s32.totalorder %s375, 0
        %s377 = scalar_select %p376, %s375, 0
        %p378 = scmp.lt.s32.totalorder %s27, 1
        %s379 = scalar_select %p378, %s27, 1
        %p380 = scmp.lt.s32.totalorder %s377, 15
        %s381 = scalar_select %p380, %s377, 15
        %s382 = smul.addr %s381, 2
        %s383 = smul.addr %s379, 32
        %s384 = sadd.s32 %s382, %s383
        %s385 = smul.addr %s384, 4
        %s386 = scalar_lea.vmem %s1, %s385
        %p387 = pneg %p94
        %p388 = pneg %p91
        %s389 = sadd.s32 %s28, 1
        %s390 = smul.u32 %s389, 8
        %p391 = scmp.lt.s32.totalorder %s390, 15
        %s392 = scalar_select %p391, %s390, 15
        %p393 = scmp.lt.s32.totalorder %s27, 1
        %s394 = scalar_select %p393, %s27, 1
        %p395 = scmp.lt.s32.totalorder %s392, 15
        %s396 = scalar_select %p395, %s392, 15
        %s397 = smul.addr %s396, 2
        %s398 = smul.addr %s394, 32
        %s399 = sadd.s32 %s397, %s398
        %s400 = smul.addr %s399, 4
        %s401 = scalar_lea.vmem %s2, %s400
        %p402 = pneg %p130
        %p403 = pneg %p127
        %p404 = pneg %p151
        %p405 = pneg %p148
        %p406 = pneg %p172
        %p407 = pneg %p169
        %p408 = pneg %p193
        %p409 = pneg %p190
        %p410 = pneg %p214
        %p411 = pneg %p211
        %p412 = pneg %p242
        %p413 = pneg %p239
        %s414 = smul.u32 8, %s28
        %p415 = scmp.lt.s32.totalorder %s27, 1
        %s416 = scalar_select %p415, %s27, 1
        %p417 = scmp.lt.s32.totalorder %s414, 15
        %s418 = scalar_select %p417, %s414, 15
        %s419 = smul.addr %s418, 2
        %s420 = smul.addr %s416, 32
        %s421 = sadd.s32 %s419, %s420
        %s422 = smul.addr %s421, 8
        %s423 = scalar_lea.vmem %s7, %s422
        %p424 = pneg %p270
        %p425 = pneg %p267
        %s426 = sand.u32 %s257, 1
        %s427 = scalar_lea.sflag [#allocation3], %s426
        %s428 = sand.u32 %s257, 1
        %s429 = smul.addr %s428, 2
        %s430 = scalar_lea.vmem [#allocation2], %s429
        %s431 = smul.u32 8, %s28
        %p432 = scmp.lt.s32.totalorder %s27, 1
        %s433 = scalar_select %p432, %s27, 1
        %p434 = scmp.lt.s32.totalorder %s431, 15
        %s435 = scalar_select %p434, %s431, 15
        %s436 = smul.addr %s435, 2
        %s437 = smul.addr %s433, 32
        %s438 = sadd.s32 %s436, %s437
        %s439 = smul.addr %s438, 4
        %s440 = scalar_lea.vmem %s0, %s439
        %s441 = smul.u32 8, %s28
        %s442 = smul.u32 %s28, 8
        %s443 = ssub.s32 %s442, 1
        %p444 = scmp.gt.s32.totalorder %s443, 0
        %s445 = scalar_select %p444, %s443, 0
        %p446 = scmp.lt.s32.totalorder %s27, 1
        %s447 = scalar_select %p446, %s27, 1
        %p448 = scmp.lt.s32.totalorder %s445, 15
        %s449 = scalar_select %p448, %s445, 15
        %s450 = smul.addr %s449, 2
        %s451 = smul.addr %s447, 32
        %s452 = sadd.s32 %s450, %s451
        %s453 = smul.addr %s452, 4
        %s454 = scalar_lea.vmem %s1, %s453
        %s455 = smul.u32 %s28, 8
        %s456 = ssub.s32 %s455, 1
        %p457 = scmp.gt.s32.totalorder %s456, 0
        %s458 = scalar_select %p457, %s456, 0
        %s459 = sadd.s32 %s28, 1
        %s460 = smul.u32 %s459, 8
        %p461 = scmp.lt.s32.totalorder %s460, 15
        %s462 = scalar_select %p461, %s460, 15
        %p463 = scmp.lt.s32.totalorder %s27, 1
        %s464 = scalar_select %p463, %s27, 1
        %p465 = scmp.lt.s32.totalorder %s462, 15
        %s466 = scalar_select %p465, %s462, 15
        %s467 = smul.addr %s466, 2
        %s468 = smul.addr %s464, 32
        %s469 = sadd.s32 %s467, %s468
        %s470 = smul.addr %s469, 4
        %s471 = scalar_lea.vmem %s2, %s470
        %s472 = sadd.s32 %s28, 1
        %s473 = smul.u32 %s472, 8
        %p474 = scmp.lt.s32.totalorder %s473, 15
        %s475 = scalar_select %p474, %s473, 15
        %s476 = smul.u32 8, %s28
        %p477 = scmp.lt.s32.totalorder %s27, 1
        %s478 = scalar_select %p477, %s27, 1
        %p479 = scmp.lt.s32.totalorder %s476, 15
        %s480 = scalar_select %p479, %s476, 15
        %s481 = smul.addr %s480, 2
        %s482 = smul.addr %s478, 32
        %s483 = sadd.s32 %s481, %s482
        %s484 = smul.addr %s483, 8
        %s485 = scalar_lea.vmem %s7, %s484
        %s486 = smul.u32 8, %s28
        %v488 = vld [vmem:[%s440] sm:$0xf]
        %v489 = vld [vmem:[%s440 + $0x4] sm:$0xf]
        %v490 = vld [vmem:[%s440 + $0x8] sm:$0xf]
        %v491 = vld [vmem:[%s440 + $0xc] sm:$0xf]
        %v492 = vld [vmem:[%s440 + $0x10] sm:$0xf]
        %v493 = vld [vmem:[%s440 + $0x14] sm:$0xf]
        %v494 = vld [vmem:[%s440 + $0x18] sm:$0xf]
        %v495 = vld [vmem:[%s440 + $0x1c] sm:$0xf]
        %v496 = vld [vmem:[%s440 + $0x20] sm:$0xf]
        %v497 = vld [vmem:[%s440 + $0x24] sm:$0xf]
        %v498 = vld [vmem:[%s440 + $0x28] sm:$0xf]
        %v499 = vld [vmem:[%s440 + $0x2c] sm:$0xf]
        %v500 = vld [vmem:[%s440 + $0x30] sm:$0xf]
        %v501 = vld [vmem:[%s440 + $0x34] sm:$0xf]
        %v502 = vld [vmem:[%s440 + $0x38] sm:$0xf]
        %v503 = vld [vmem:[%s440 + $0x3c] sm:$0xf]
        %v504 = vunpack.c.l.bf16 %v488
        %v505 = vunpack.c.l.bf16 %v489
        %v506 = vunpack.c.l.bf16 %v490
        %v507 = vunpack.c.l.bf16 %v491
        %v508 = vunpack.c.l.bf16 %v492
        %v509 = vunpack.c.l.bf16 %v493
        %v510 = vunpack.c.l.bf16 %v494
        %v511 = vunpack.c.l.bf16 %v495
        %v512 = vunpack.c.l.bf16 %v496
        %v513 = vunpack.c.l.bf16 %v497
        %v514 = vunpack.c.l.bf16 %v498
        %v515 = vunpack.c.l.bf16 %v499
        %v516 = vunpack.c.l.bf16 %v500
        %v517 = vunpack.c.l.bf16 %v501
        %v518 = vunpack.c.l.bf16 %v502
        %v519 = vunpack.c.l.bf16 %v503
        %v520 = vld [vmem:[%s454] sm:$0xf]
        %v521 = vld [vmem:[%s454 + $0x4] sm:$0xf]
        %v522 = vunpack.c.l.bf16 %v520
        %v523 = vunpack.c.l.bf16 %v521
        %v524 = vld [vmem:[%s471] sm:$0xf]
        %v525 = vld [vmem:[%s471 + $0x4] sm:$0xf]
        %v526 = vunpack.c.l.bf16 %v524
        %v527 = vunpack.c.l.bf16 %v525
        %v528 = vld [vmem:[%s5] sm:$0x1]
        %v529 = vld [vmem:[%s6] sm:$0x1]
        %v531 = vlaneseq
        %v532 = vshrl.u32 %v531, 7
        %v533 = vsub.s32 0, %v532
        %v534 = vrot.slane %v528, %v533
        %v536 = vmul.f32 %v504, %v534
        %v537 = vmul.f32 %v505, %v534
        %v538 = vmul.f32 %v506, %v534
        %v539 = vmul.f32 %v507, %v534
        %v540 = vmul.f32 %v508, %v534
        %v541 = vmul.f32 %v509, %v534
        %v542 = vmul.f32 %v510, %v534
        %v543 = vmul.f32 %v511, %v534
        %v544 = vmul.f32 %v512, %v534
        %v545 = vmul.f32 %v513, %v534
        %v546 = vmul.f32 %v514, %v534
        %v547 = vmul.f32 %v515, %v534
        %v548 = vmul.f32 %v516, %v534
        %v549 = vmul.f32 %v517, %v534
        %v550 = vmul.f32 %v518, %v534
        %v551 = vmul.f32 %v519, %v534
        %v553 = vlaneseq
        %v554 = vshrl.u32 %v553, 7
        %v555 = vsub.s32 0, %v554
        %v556 = vrot.slane %v529, %v555
        %v558 = vadd.f32 %v536, %v556
        %v559 = vadd.f32 %v537, %v556
        %v560 = vadd.f32 %v538, %v556
        %v561 = vadd.f32 %v539, %v556
        %v562 = vadd.f32 %v540, %v556
        %v563 = vadd.f32 %v541, %v556
        %v564 = vadd.f32 %v542, %v556
        %v565 = vadd.f32 %v543, %v556
        %v566 = vadd.f32 %v544, %v556
        %v567 = vadd.f32 %v545, %v556
        %v568 = vadd.f32 %v546, %v556
        %v569 = vadd.f32 %v547, %v556
        %v570 = vadd.f32 %v548, %v556
        %v571 = vadd.f32 %v549, %v556
        %v572 = vadd.f32 %v550, %v556
        %v573 = vadd.f32 %v551, %v556
        %v574 = vmax.f32 %v558, 0.0
        %v575 = vmax.f32 %v559, 0.0
        %v576 = vmax.f32 %v560, 0.0
        %v577 = vmax.f32 %v561, 0.0
        %v578 = vmax.f32 %v562, 0.0
        %v579 = vmax.f32 %v563, 0.0
        %v580 = vmax.f32 %v564, 0.0
        %v581 = vmax.f32 %v565, 0.0
        %v582 = vmax.f32 %v566, 0.0
        %v583 = vmax.f32 %v567, 0.0
        %v584 = vmax.f32 %v568, 0.0
        %v585 = vmax.f32 %v569, 0.0
        %v586 = vmax.f32 %v570, 0.0
        %v587 = vmax.f32 %v571, 0.0
        %v588 = vmax.f32 %v572, 0.0
        %v589 = vmax.f32 %v573, 0.0
        %v590 = vmul.f32 %v522, %v534
        %v591 = vmul.f32 %v523, %v534
        %v592 = vadd.f32 %v590, %v556
        %v593 = vadd.f32 %v591, %v556
        %v594 = vmax.f32 %v592, 0.0
        %v595 = vmax.f32 %v593, 0.0
        %v596 = vmul.f32 %v526, %v534
        %v597 = vmul.f32 %v527, %v534
        %v598 = vadd.f32 %v596, %v556
        %v599 = vadd.f32 %v597, %v556
        %v600 = vmax.f32 %v598, 0.0
        %v601 = vmax.f32 %v599, 0.0
        %p602 = scmp.eq.s32.totalorder %s28, 0
        %s603 = scalar_select %p602, 0.0, 1.0
        %v604 = vstv %s603
        %v605 = vmul.f32 %v594, %v604
        %v606 = vmul.f32 %v595, %v604
        %p607 = scmp.eq.s32.totalorder %s28, 1
        %s608 = scalar_select %p607, 0.0, 1.0
        %v609 = vstv %s608
        %v610 = vmul.f32 %v600, %v609
        %v611 = vmul.f32 %v601, %v609
        %v612 = vpack.c.bf16 %v606, %v605
        %v613 = vpack.c.bf16 %v575, %v574
        %v614 = vpack.c.bf16 %v577, %v576
        %v615 = vpack.c.bf16 %v579, %v578
        %v616 = vpack.c.bf16 %v581, %v580
        %v617 = vpack.c.bf16 %v583, %v582
        %v618 = vpack.c.bf16 %v585, %v584
        %v619 = vpack.c.bf16 %v587, %v586
        %v620 = vpack.c.bf16 %v589, %v588
        %v621 = vpack.c.bf16 %v611, %v610
        %v622 = vld [vmem:[%s3] sm:$0xf]
        %v623 = vld [vmem:[%s3 + $0x4] sm:$0xf]
        %v624 = vld [vmem:[%s3 + $0x8] sm:$0xf]
        %v625 = vld [vmem:[%s3 + $0xc] sm:$0xf]
        %v626 = vld [vmem:[%s3 + $0x10] sm:$0xf]
        %v627 = vld [vmem:[%s3 + $0x14] sm:$0xf]
        %v628 = vld [vmem:[%s3 + $0x18] sm:$0xf]
        %v629 = vld [vmem:[%s3 + $0x1c] sm:$0xf]
        %v638 = vunpack.c.l.b16 %v622
        %v639 = vunpack.c.l.b16 %v623
        %v640 = vunpack.c.l.b16 %v624
        %v641 = vunpack.c.l.b16 %v625
        %v642 = vunpack.c.l.b16 %v626
        %v643 = vunpack.c.l.b16 %v627
        %v644 = vunpack.c.l.b16 %v628
        %v645 = vunpack.c.l.b16 %v629
        %v646 = vpack.c.b16 %v639, %v638
        %v647 = vpack.c.b16 %v641, %v640
        %v648 = vpack.c.b16 %v643, %v642
        %v649 = vpack.c.b16 %v645, %v644
        %vm654 = vcmask 523264
        %v656 = vsel %vm654, %v612, 0
        %v659 = vsel %vm654, %v613, 0
        %v662 = vsel %vm654, %v614, 0
        %v665 = vsel %vm654, %v615, 0
        %v668 = vsel %vm654, %v616, 0
        %v671 = vsel %vm654, %v617, 0
        %v674 = vsel %vm654, %v618, 0
        %v677 = vsel %vm654, %v619, 0
        %679 = vmatprep.subr.bf16.mxu0 0
        %680 = vmatpush1.bf16.msra.mxu0 0
        %681 = vmatprep.subr.bf16.mxu0 0
        %682 = vmatpush1.bf16.msra.mxu0 0
        %683 = vmatprep.subr.bf16.mxu0 0
        %684 = vmatpush1.bf16.msra.mxu0 0
        %685 = vmatprep.subr.bf16.mxu0 0
        %686 = vmatpush1.bf16.msra.mxu0 0
        %687 = vmatprep.subr.bf16.mxu0 0
        %688 = vmatpush1.bf16.msra.mxu0 %v649
        %689 = vmatprep.subr.bf16.mxu0 0
        %690 = vmatpush1.bf16.msra.mxu0 %v648
        %691 = vmatprep.subr.bf16.mxu0 0
        %692 = vmatpush1.bf16.msra.mxu0 %v647
        %693 = vmatprep.subr.bf16.mxu0 0
        %694 = vmatpush1.bf16.msra.mxu0 %v646
        %695 = vmatprep.subr.bf16.mxu0 0
        %696 = vmatpush2.bf16.msra.mxu0 0
        %697 = vmatprep.subr.bf16.mxu0 0
        %698 = vmatpush2.bf16.msra.mxu0 0
        %699 = vmatprep.subr.bf16.mxu0 0
        %700 = vmatpush2.bf16.msra.mxu0 0
        %701 = vmatprep.subr.bf16.mxu0 0
        %702 = vmatpush2.bf16.msra.mxu0 0
        %703 = vmatprep.subr.bf16.mxu0 0
        %704 = vmatpush2.bf16.msra.mxu0 0
        %705 = vmatprep.subr.bf16.mxu0 0
        %706 = vmatpush2.bf16.msra.mxu0 0
        %707 = vmatprep.subr.bf16.mxu0 0
        %708 = vmatpush2.bf16.msra.mxu0 0
        %709 = vmatprep.subr.bf16.mxu0 0
        %710 = vmatpush2.bf16.msra.mxu0 0
        %711 = vmatprep.mubr.bf16.mxu0 0
        %712 = vmatmul.mubr.bf16.gmra.mxu0 %v656
        %v713 = vpop.f32.mrf.mxu0
        %v714 = vadd.f32 0.0, %v713
        %v715 = vpop.f32.mrf.mxu0
        %v716 = vpop.f32.mrf.mxu0
        %v717 = vadd.f32 0.0, %v716
        %v718 = vpop.f32.mrf.mxu0
        %719 = vmatprep.mubr.bf16.mxu0 0
        %720 = vmatmul.mubr.bf16.gmra.mxu0 %v659
        %v721 = vpop.f32.mrf.mxu0
        %v722 = vadd.f32 0.0, %v721
        %v723 = vpop.f32.mrf.mxu0
        %v724 = vpop.f32.mrf.mxu0
        %v725 = vadd.f32 0.0, %v724
        %v726 = vpop.f32.mrf.mxu0
        %727 = vmatprep.mubr.bf16.mxu0 0
        %728 = vmatmul.mubr.bf16.gmra.mxu0 %v662
        %v729 = vpop.f32.mrf.mxu0
        %v730 = vadd.f32 0.0, %v729
        %v731 = vpop.f32.mrf.mxu0
        %v732 = vpop.f32.mrf.mxu0
        %v733 = vadd.f32 0.0, %v732
        %v734 = vpop.f32.mrf.mxu0
        %735 = vmatprep.mubr.bf16.mxu0 0
        %736 = vmatmul.mubr.bf16.gmra.mxu0 %v665
        %v737 = vpop.f32.mrf.mxu0
        %v738 = vadd.f32 0.0, %v737
        %v739 = vpop.f32.mrf.mxu0
        %v740 = vpop.f32.mrf.mxu0
        %v741 = vadd.f32 0.0, %v740
        %v742 = vpop.f32.mrf.mxu0
        %743 = vmatprep.mubr.bf16.mxu0 0
        %744 = vmatmul.mubr.bf16.gmra.mxu0 %v668
        %v745 = vpop.f32.mrf.mxu0
        %v746 = vadd.f32 0.0, %v745
        %v747 = vpop.f32.mrf.mxu0
        %v748 = vpop.f32.mrf.mxu0
        %v749 = vadd.f32 0.0, %v748
        %v750 = vpop.f32.mrf.mxu0
        %751 = vmatprep.mubr.bf16.mxu0 0
        %752 = vmatmul.mubr.bf16.gmra.mxu0 %v671
        %v753 = vpop.f32.mrf.mxu0
        %v754 = vadd.f32 0.0, %v753
        %v755 = vpop.f32.mrf.mxu0
        %v756 = vpop.f32.mrf.mxu0
        %v757 = vadd.f32 0.0, %v756
        %v758 = vpop.f32.mrf.mxu0
        %759 = vmatprep.mubr.bf16.mxu0 0
        %760 = vmatmul.mubr.bf16.gmra.mxu0 %v674
        %v761 = vpop.f32.mrf.mxu0
        %v762 = vadd.f32 0.0, %v761
        %v763 = vpop.f32.mrf.mxu0
        %v764 = vpop.f32.mrf.mxu0
        %v765 = vadd.f32 0.0, %v764
        %v766 = vpop.f32.mrf.mxu0
        %767 = vmatprep.mubr.bf16.mxu0 0
        %768 = vmatmul.mubr.bf16.gmra.mxu0 %v677
        %v769 = vpop.f32.mrf.mxu0
        %v770 = vadd.f32 0.0, %v769
        %v771 = vpop.f32.mrf.mxu0
        %v772 = vpop.f32.mrf.mxu0
        %v773 = vadd.f32 0.0, %v772
        %v774 = vpop.f32.mrf.mxu0
        %775 = vdwg.mxu0
        %vm792 = vcmask 1040384
        %v793 = vrot.slane %v714, 7
        %v794 = vrot.slane %v717, 7
        %v795 = vsel %vm792, %v793, %v794
        %v796 = vrot.slane %v722, 7
        %v797 = vrot.slane %v725, 7
        %v798 = vsel %vm792, %v796, %v797
        %v799 = vrot.slane %v730, 7
        %v800 = vrot.slane %v733, 7
        %v801 = vsel %vm792, %v799, %v800
        %v802 = vrot.slane %v738, 7
        %v803 = vrot.slane %v741, 7
        %v804 = vsel %vm792, %v802, %v803
        %v805 = vrot.slane %v746, 7
        %v806 = vrot.slane %v749, 7
        %v807 = vsel %vm792, %v805, %v806
        %v808 = vrot.slane %v754, 7
        %v809 = vrot.slane %v757, 7
        %v810 = vsel %vm792, %v808, %v809
        %v811 = vrot.slane %v762, 7
        %v812 = vrot.slane %v765, 7
        %v813 = vsel %vm792, %v811, %v812
        %v814 = vrot.slane %v770, 7
        %v815 = vrot.slane %v773, 7
        %v816 = vsel %vm792, %v814, %v815
        %v833 = vsel %vm792, 0.0, %v793
        %v834 = vsel %vm792, 0.0, %v796
        %v835 = vsel %vm792, 0.0, %v799
        %v836 = vsel %vm792, 0.0, %v802
        %v837 = vsel %vm792, 0.0, %v805
        %v838 = vsel %vm792, 0.0, %v808
        %v839 = vsel %vm792, 0.0, %v811
        %v840 = vsel %vm792, 0.0, %v814
        %v841 = vadd.f32 %v833, 0.0
        %v842 = vadd.f32 %v795, 0.0
        %v843 = vadd.f32 %v834, 0.0
        %v844 = vadd.f32 %v798, 0.0
        %v845 = vadd.f32 %v835, 0.0
        %v846 = vadd.f32 %v801, 0.0
        %v847 = vadd.f32 %v836, 0.0
        %v848 = vadd.f32 %v804, 0.0
        %v849 = vadd.f32 %v837, 0.0
        %v850 = vadd.f32 %v807, 0.0
        %v851 = vadd.f32 %v838, 0.0
        %v852 = vadd.f32 %v810, 0.0
        %v853 = vadd.f32 %v839, 0.0
        %v854 = vadd.f32 %v813, 0.0
        %v855 = vadd.f32 %v840, 0.0
        %v856 = vadd.f32 %v816, 0.0
        %857 = vrot.lane.b32.xlu0 %v714, 120
        %v858 = vpop.permute.xlu0 %857
        %859 = vrot.lane.b32.xlu0 %v717, 120
        %v860 = vpop.permute.xlu0 %859
        %861 = vrot.lane.b32.xlu0 %v722, 120
        %v862 = vpop.permute.xlu0 %861
        %863 = vrot.lane.b32.xlu0 %v725, 120
        %v864 = vpop.permute.xlu0 %863
        %865 = vrot.lane.b32.xlu0 %v730, 120
        %v866 = vpop.permute.xlu0 %865
        %867 = vrot.lane.b32.xlu0 %v733, 120
        %v868 = vpop.permute.xlu0 %867
        %869 = vrot.lane.b32.xlu0 %v738, 120
        %v870 = vpop.permute.xlu0 %869
        %871 = vrot.lane.b32.xlu0 %v741, 120
        %v872 = vpop.permute.xlu0 %871
        %873 = vrot.lane.b32.xlu0 %v746, 120
        %v874 = vpop.permute.xlu0 %873
        %875 = vrot.lane.b32.xlu0 %v749, 120
        %v876 = vpop.permute.xlu0 %875
        %877 = vrot.lane.b32.xlu0 %v754, 120
        %v878 = vpop.permute.xlu0 %877
        %879 = vrot.lane.b32.xlu0 %v757, 120
        %v880 = vpop.permute.xlu0 %879
        %881 = vrot.lane.b32.xlu0 %v762, 120
        %v882 = vpop.permute.xlu0 %881
        %883 = vrot.lane.b32.xlu0 %v765, 120
        %v884 = vpop.permute.xlu0 %883
        %885 = vrot.lane.b32.xlu0 %v770, 120
        %v886 = vpop.permute.xlu0 %885
        %887 = vrot.lane.b32.xlu0 %v773, 120
        %v888 = vpop.permute.xlu0 %887
        %v905 = vadd.f32 %v841, %v858
        %v906 = vadd.f32 %v842, %v860
        %v907 = vadd.f32 %v843, %v862
        %v908 = vadd.f32 %v844, %v864
        %v909 = vadd.f32 %v845, %v866
        %v910 = vadd.f32 %v846, %v868
        %v911 = vadd.f32 %v847, %v870
        %v912 = vadd.f32 %v848, %v872
        %v913 = vadd.f32 %v849, %v874
        %v914 = vadd.f32 %v850, %v876
        %v915 = vadd.f32 %v851, %v878
        %v916 = vadd.f32 %v852, %v880
        %v917 = vadd.f32 %v853, %v882
        %v918 = vadd.f32 %v854, %v884
        %v919 = vadd.f32 %v855, %v886
        %v920 = vadd.f32 %v856, %v888
        %vm921 = vcmask 1046528
        %v922 = vrot.slane %v714, 1
        %v923 = vrot.slane %v717, 1
        %v924 = vsel %vm921, %v922, %v923
        %v925 = vrot.slane %v722, 1
        %v926 = vrot.slane %v725, 1
        %v927 = vsel %vm921, %v925, %v926
        %v928 = vrot.slane %v730, 1
        %v929 = vrot.slane %v733, 1
        %v930 = vsel %vm921, %v928, %v929
        %v931 = vrot.slane %v738, 1
        %v932 = vrot.slane %v741, 1
        %v933 = vsel %vm921, %v931, %v932
        %v934 = vrot.slane %v746, 1
        %v935 = vrot.slane %v749, 1
        %v936 = vsel %vm921, %v934, %v935
        %v937 = vrot.slane %v754, 1
        %v938 = vrot.slane %v757, 1
        %v939 = vsel %vm921, %v937, %v938
        %v940 = vrot.slane %v762, 1
        %v941 = vrot.slane %v765, 1
        %v942 = vsel %vm921, %v940, %v941
        %v943 = vrot.slane %v770, 1
        %v944 = vrot.slane %v773, 1
        %v945 = vsel %vm921, %v943, %v944
        %v954 = vsel %vm921, %v923, 0.0
        %v955 = vsel %vm921, %v926, 0.0
        %v956 = vsel %vm921, %v929, 0.0
        %v957 = vsel %vm921, %v932, 0.0
        %v958 = vsel %vm921, %v935, 0.0
        %v959 = vsel %vm921, %v938, 0.0
        %v960 = vsel %vm921, %v941, 0.0
        %v961 = vsel %vm921, %v944, 0.0
        %970 = vrot.lane.b32.xlu0 %v924, 112
        %v971 = vpop.permute.xlu0 %970
        %972 = vrot.lane.b32.xlu0 %v954, 112
        %v973 = vpop.permute.xlu0 %972
        %974 = vrot.lane.b32.xlu0 %v927, 112
        %v975 = vpop.permute.xlu0 %974
        %976 = vrot.lane.b32.xlu0 %v955, 112
        %v977 = vpop.permute.xlu0 %976
        %978 = vrot.lane.b32.xlu0 %v930, 112
        %v979 = vpop.permute.xlu0 %978
        %980 = vrot.lane.b32.xlu0 %v956, 112
        %v981 = vpop.permute.xlu0 %980
        %982 = vrot.lane.b32.xlu0 %v933, 112
        %v983 = vpop.permute.xlu0 %982
        %984 = vrot.lane.b32.xlu0 %v957, 112
        %v985 = vpop.permute.xlu0 %984
        %986 = vrot.lane.b32.xlu0 %v936, 112
        %v987 = vpop.permute.xlu0 %986
        %988 = vrot.lane.b32.xlu0 %v958, 112
        %v989 = vpop.permute.xlu0 %988
        %990 = vrot.lane.b32.xlu0 %v939, 112
        %v991 = vpop.permute.xlu0 %990
        %992 = vrot.lane.b32.xlu0 %v959, 112
        %v993 = vpop.permute.xlu0 %992
        %994 = vrot.lane.b32.xlu0 %v942, 112
        %v995 = vpop.permute.xlu0 %994
        %996 = vrot.lane.b32.xlu0 %v960, 112
        %v997 = vpop.permute.xlu0 %996
        %998 = vrot.lane.b32.xlu0 %v945, 112
        %v999 = vpop.permute.xlu0 %998
        %1000 = vrot.lane.b32.xlu0 %v961, 112
        %v1001 = vpop.permute.xlu0 %1000
        %v1018 = vadd.f32 %v905, %v971
        %v1019 = vadd.f32 %v906, %v973
        %v1020 = vadd.f32 %v907, %v975
        %v1021 = vadd.f32 %v908, %v977
        %v1022 = vadd.f32 %v909, %v979
        %v1023 = vadd.f32 %v910, %v981
        %v1024 = vadd.f32 %v911, %v983
        %v1025 = vadd.f32 %v912, %v985
        %v1026 = vadd.f32 %v913, %v987
        %v1027 = vadd.f32 %v914, %v989
        %v1028 = vadd.f32 %v915, %v991
        %v1029 = vadd.f32 %v916, %v993
        %v1030 = vadd.f32 %v917, %v995
        %v1031 = vadd.f32 %v918, %v997
        %v1032 = vadd.f32 %v919, %v999
        %v1033 = vadd.f32 %v920, %v1001
        %s1034 = scalar_lea.vmem %s3, 32
        %v1035 = vld [vmem:[%s1034] sm:$0xf]
        %v1036 = vld [vmem:[%s1034 + $0x4] sm:$0xf]
        %v1037 = vld [vmem:[%s1034 + $0x8] sm:$0xf]
        %v1038 = vld [vmem:[%s1034 + $0xc] sm:$0xf]
        %v1039 = vld [vmem:[%s1034 + $0x10] sm:$0xf]
        %v1040 = vld [vmem:[%s1034 + $0x14] sm:$0xf]
        %v1041 = vld [vmem:[%s1034 + $0x18] sm:$0xf]
        %v1042 = vld [vmem:[%s1034 + $0x1c] sm:$0xf]
        %v1051 = vunpack.c.l.b16 %v1035
        %v1052 = vunpack.c.l.b16 %v1036
        %v1053 = vunpack.c.l.b16 %v1037
        %v1054 = vunpack.c.l.b16 %v1038
        %v1055 = vunpack.c.l.b16 %v1039
        %v1056 = vunpack.c.l.b16 %v1040
        %v1057 = vunpack.c.l.b16 %v1041
        %v1058 = vunpack.c.l.b16 %v1042
        %v1059 = vpack.c.b16 %v1052, %v1051
        %v1060 = vpack.c.b16 %v1054, %v1053
        %v1061 = vpack.c.b16 %v1056, %v1055
        %v1062 = vpack.c.b16 %v1058, %v1057
        %v1068 = vsel %vm654, %v620, 0
        %1070 = vmatprep.subr.bf16.mxu0 0
        %1071 = vmatpush1.bf16.msra.mxu0 0
        %1072 = vmatprep.subr.bf16.mxu0 0
        %1073 = vmatpush1.bf16.msra.mxu0 0
        %1074 = vmatprep.subr.bf16.mxu0 0
        %1075 = vmatpush1.bf16.msra.mxu0 0
        %1076 = vmatprep.subr.bf16.mxu0 0
        %1077 = vmatpush1.bf16.msra.mxu0 0
        %1078 = vmatprep.subr.bf16.mxu0 0
        %1079 = vmatpush1.bf16.msra.mxu0 %v1062
        %1080 = vmatprep.subr.bf16.mxu0 0
        %1081 = vmatpush1.bf16.msra.mxu0 %v1061
        %1082 = vmatprep.subr.bf16.mxu0 0
        %1083 = vmatpush1.bf16.msra.mxu0 %v1060
        %1084 = vmatprep.subr.bf16.mxu0 0
        %1085 = vmatpush1.bf16.msra.mxu0 %v1059
        %1086 = vmatprep.subr.bf16.mxu0 0
        %1087 = vmatpush2.bf16.msra.mxu0 0
        %1088 = vmatprep.subr.bf16.mxu0 0
        %1089 = vmatpush2.bf16.msra.mxu0 0
        %1090 = vmatprep.subr.bf16.mxu0 0
        %1091 = vmatpush2.bf16.msra.mxu0 0
        %1092 = vmatprep.subr.bf16.mxu0 0
        %1093 = vmatpush2.bf16.msra.mxu0 0
        %1094 = vmatprep.subr.bf16.mxu0 0
        %1095 = vmatpush2.bf16.msra.mxu0 0
        %1096 = vmatprep.subr.bf16.mxu0 0
        %1097 = vmatpush2.bf16.msra.mxu0 0
        %1098 = vmatprep.subr.bf16.mxu0 0
        %1099 = vmatpush2.bf16.msra.mxu0 0
        %1100 = vmatprep.subr.bf16.mxu0 0
        %1101 = vmatpush2.bf16.msra.mxu0 0
        %1102 = vmatprep.mubr.bf16.mxu0 0
        %1103 = vmatmul.mubr.bf16.gmra.mxu0 %v659
        %v1104 = vpop.f32.mrf.mxu0
        %v1105 = vadd.f32 0.0, %v1104
        %v1106 = vpop.f32.mrf.mxu0
        %v1107 = vpop.f32.mrf.mxu0
        %v1108 = vadd.f32 0.0, %v1107
        %v1109 = vpop.f32.mrf.mxu0
        %1110 = vmatprep.mubr.bf16.mxu0 0
        %1111 = vmatmul.mubr.bf16.gmra.mxu0 %v662
        %v1112 = vpop.f32.mrf.mxu0
        %v1113 = vadd.f32 0.0, %v1112
        %v1114 = vpop.f32.mrf.mxu0
        %v1115 = vpop.f32.mrf.mxu0
        %v1116 = vadd.f32 0.0, %v1115
        %v1117 = vpop.f32.mrf.mxu0
        %1118 = vmatprep.mubr.bf16.mxu0 0
        %1119 = vmatmul.mubr.bf16.gmra.mxu0 %v665
        %v1120 = vpop.f32.mrf.mxu0
        %v1121 = vadd.f32 0.0, %v1120
        %v1122 = vpop.f32.mrf.mxu0
        %v1123 = vpop.f32.mrf.mxu0
        %v1124 = vadd.f32 0.0, %v1123
        %v1125 = vpop.f32.mrf.mxu0
        %1126 = vmatprep.mubr.bf16.mxu0 0
        %1127 = vmatmul.mubr.bf16.gmra.mxu0 %v668
        %v1128 = vpop.f32.mrf.mxu0
        %v1129 = vadd.f32 0.0, %v1128
        %v1130 = vpop.f32.mrf.mxu0
        %v1131 = vpop.f32.mrf.mxu0
        %v1132 = vadd.f32 0.0, %v1131
        %v1133 = vpop.f32.mrf.mxu0
        %1134 = vmatprep.mubr.bf16.mxu0 0
        %1135 = vmatmul.mubr.bf16.gmra.mxu0 %v671
        %v1136 = vpop.f32.mrf.mxu0
        %v1137 = vadd.f32 0.0, %v1136
        %v1138 = vpop.f32.mrf.mxu0
        %v1139 = vpop.f32.mrf.mxu0
        %v1140 = vadd.f32 0.0, %v1139
        %v1141 = vpop.f32.mrf.mxu0
        %1142 = vmatprep.mubr.bf16.mxu0 0
        %1143 = vmatmul.mubr.bf16.gmra.mxu0 %v674
        %v1144 = vpop.f32.mrf.mxu0
        %v1145 = vadd.f32 0.0, %v1144
        %v1146 = vpop.f32.mrf.mxu0
        %v1147 = vpop.f32.mrf.mxu0
        %v1148 = vadd.f32 0.0, %v1147
        %v1149 = vpop.f32.mrf.mxu0
        %1150 = vmatprep.mubr.bf16.mxu0 0
        %1151 = vmatmul.mubr.bf16.gmra.mxu0 %v677
        %v1152 = vpop.f32.mrf.mxu0
        %v1153 = vadd.f32 0.0, %v1152
        %v1154 = vpop.f32.mrf.mxu0
        %v1155 = vpop.f32.mrf.mxu0
        %v1156 = vadd.f32 0.0, %v1155
        %v1157 = vpop.f32.mrf.mxu0
        %1158 = vmatprep.mubr.bf16.mxu0 0
        %1159 = vmatmul.mubr.bf16.gmra.mxu0 %v1068
        %v1160 = vpop.f32.mrf.mxu0
        %v1161 = vadd.f32 0.0, %v1160
        %v1162 = vpop.f32.mrf.mxu0
        %v1163 = vpop.f32.mrf.mxu0
        %v1164 = vadd.f32 0.0, %v1163
        %v1165 = vpop.f32.mrf.mxu0
        %1166 = vdwg.mxu0
        %v1183 = vrot.slane %v1105, 7
        %v1184 = vrot.slane %v1108, 7
        %v1185 = vsel %vm792, %v1183, %v1184
        %v1186 = vrot.slane %v1113, 7
        %v1187 = vrot.slane %v1116, 7
        %v1188 = vsel %vm792, %v1186, %v1187
        %v1189 = vrot.slane %v1121, 7
        %v1190 = vrot.slane %v1124, 7
        %v1191 = vsel %vm792, %v1189, %v1190
        %v1192 = vrot.slane %v1129, 7
        %v1193 = vrot.slane %v1132, 7
        %v1194 = vsel %vm792, %v1192, %v1193
        %v1195 = vrot.slane %v1137, 7
        %v1196 = vrot.slane %v1140, 7
        %v1197 = vsel %vm792, %v1195, %v1196
        %v1198 = vrot.slane %v1145, 7
        %v1199 = vrot.slane %v1148, 7
        %v1200 = vsel %vm792, %v1198, %v1199
        %v1201 = vrot.slane %v1153, 7
        %v1202 = vrot.slane %v1156, 7
        %v1203 = vsel %vm792, %v1201, %v1202
        %v1204 = vrot.slane %v1161, 7
        %v1205 = vrot.slane %v1164, 7
        %v1206 = vsel %vm792, %v1204, %v1205
        %v1223 = vsel %vm792, 0.0, %v1183
        %v1224 = vsel %vm792, 0.0, %v1186
        %v1225 = vsel %vm792, 0.0, %v1189
        %v1226 = vsel %vm792, 0.0, %v1192
        %v1227 = vsel %vm792, 0.0, %v1195
        %v1228 = vsel %vm792, 0.0, %v1198
        %v1229 = vsel %vm792, 0.0, %v1201
        %v1230 = vsel %vm792, 0.0, %v1204
        %v1231 = vadd.f32 %v1018, %v1223
        %v1232 = vadd.f32 %v1019, %v1185
        %v1233 = vadd.f32 %v1020, %v1224
        %v1234 = vadd.f32 %v1021, %v1188
        %v1235 = vadd.f32 %v1022, %v1225
        %v1236 = vadd.f32 %v1023, %v1191
        %v1237 = vadd.f32 %v1024, %v1226
        %v1238 = vadd.f32 %v1025, %v1194
        %v1239 = vadd.f32 %v1026, %v1227
        %v1240 = vadd.f32 %v1027, %v1197
        %v1241 = vadd.f32 %v1028, %v1228
        %v1242 = vadd.f32 %v1029, %v1200
        %v1243 = vadd.f32 %v1030, %v1229
        %v1244 = vadd.f32 %v1031, %v1203
        %v1245 = vadd.f32 %v1032, %v1230
        %v1246 = vadd.f32 %v1033, %v1206
        %1247 = vrot.lane.b32.xlu0 %v1105, 120
        %v1248 = vpop.permute.xlu0 %1247
        %1249 = vrot.lane.b32.xlu0 %v1108, 120
        %v1250 = vpop.permute.xlu0 %1249
        %1251 = vrot.lane.b32.xlu0 %v1113, 120
        %v1252 = vpop.permute.xlu0 %1251
        %1253 = vrot.lane.b32.xlu0 %v1116, 120
        %v1254 = vpop.permute.xlu0 %1253
        %1255 = vrot.lane.b32.xlu0 %v1121, 120
        %v1256 = vpop.permute.xlu0 %1255
        %1257 = vrot.lane.b32.xlu0 %v1124, 120
        %v1258 = vpop.permute.xlu0 %1257
        %1259 = vrot.lane.b32.xlu0 %v1129, 120
        %v1260 = vpop.permute.xlu0 %1259
        %1261 = vrot.lane.b32.xlu0 %v1132, 120
        %v1262 = vpop.permute.xlu0 %1261
        %1263 = vrot.lane.b32.xlu0 %v1137, 120
        %v1264 = vpop.permute.xlu0 %1263
        %1265 = vrot.lane.b32.xlu0 %v1140, 120
        %v1266 = vpop.permute.xlu0 %1265
        %1267 = vrot.lane.b32.xlu0 %v1145, 120
        %v1268 = vpop.permute.xlu0 %1267
        %1269 = vrot.lane.b32.xlu0 %v1148, 120
        %v1270 = vpop.permute.xlu0 %1269
        %1271 = vrot.lane.b32.xlu0 %v1153, 120
        %v1272 = vpop.permute.xlu0 %1271
        %1273 = vrot.lane.b32.xlu0 %v1156, 120
        %v1274 = vpop.permute.xlu0 %1273
        %1275 = vrot.lane.b32.xlu0 %v1161, 120
        %v1276 = vpop.permute.xlu0 %1275
        %1277 = vrot.lane.b32.xlu0 %v1164, 120
        %v1278 = vpop.permute.xlu0 %1277
        %v1295 = vadd.f32 %v1231, %v1248
        %v1296 = vadd.f32 %v1232, %v1250
        %v1297 = vadd.f32 %v1233, %v1252
        %v1298 = vadd.f32 %v1234, %v1254
        %v1299 = vadd.f32 %v1235, %v1256
        %v1300 = vadd.f32 %v1236, %v1258
        %v1301 = vadd.f32 %v1237, %v1260
        %v1302 = vadd.f32 %v1238, %v1262
        %v1303 = vadd.f32 %v1239, %v1264
        %v1304 = vadd.f32 %v1240, %v1266
        %v1305 = vadd.f32 %v1241, %v1268
        %v1306 = vadd.f32 %v1242, %v1270
        %v1307 = vadd.f32 %v1243, %v1272
        %v1308 = vadd.f32 %v1244, %v1274
        %v1309 = vadd.f32 %v1245, %v1276
        %v1310 = vadd.f32 %v1246, %v1278
        %v1311 = vrot.slane %v1105, 1
        %v1312 = vrot.slane %v1108, 1
        %v1313 = vsel %vm921, %v1311, %v1312
        %v1314 = vrot.slane %v1113, 1
        %v1315 = vrot.slane %v1116, 1
        %v1316 = vsel %vm921, %v1314, %v1315
        %v1317 = vrot.slane %v1121, 1
        %v1318 = vrot.slane %v1124, 1
        %v1319 = vsel %vm921, %v1317, %v1318
        %v1320 = vrot.slane %v1129, 1
        %v1321 = vrot.slane %v1132, 1
        %v1322 = vsel %vm921, %v1320, %v1321
        %v1323 = vrot.slane %v1137, 1
        %v1324 = vrot.slane %v1140, 1
        %v1325 = vsel %vm921, %v1323, %v1324
        %v1326 = vrot.slane %v1145, 1
        %v1327 = vrot.slane %v1148, 1
        %v1328 = vsel %vm921, %v1326, %v1327
        %v1329 = vrot.slane %v1153, 1
        %v1330 = vrot.slane %v1156, 1
        %v1331 = vsel %vm921, %v1329, %v1330
        %v1332 = vrot.slane %v1161, 1
        %v1333 = vrot.slane %v1164, 1
        %v1334 = vsel %vm921, %v1332, %v1333
        %v1343 = vsel %vm921, %v1312, 0.0
        %v1344 = vsel %vm921, %v1315, 0.0
        %v1345 = vsel %vm921, %v1318, 0.0
        %v1346 = vsel %vm921, %v1321, 0.0
        %v1347 = vsel %vm921, %v1324, 0.0
        %v1348 = vsel %vm921, %v1327, 0.0
        %v1349 = vsel %vm921, %v1330, 0.0
        %v1350 = vsel %vm921, %v1333, 0.0
        %1359 = vrot.lane.b32.xlu0 %v1313, 112
        %v1360 = vpop.permute.xlu0 %1359
        %1361 = vrot.lane.b32.xlu0 %v1343, 112
        %v1362 = vpop.permute.xlu0 %1361
        %1363 = vrot.lane.b32.xlu0 %v1316, 112
        %v1364 = vpop.permute.xlu0 %1363
        %1365 = vrot.lane.b32.xlu0 %v1344, 112
        %v1366 = vpop.permute.xlu0 %1365
        %1367 = vrot.lane.b32.xlu0 %v1319, 112
        %v1368 = vpop.permute.xlu0 %1367
        %1369 = vrot.lane.b32.xlu0 %v1345, 112
        %v1370 = vpop.permute.xlu0 %1369
        %1371 = vrot.lane.b32.xlu0 %v1322, 112
        %v1372 = vpop.permute.xlu0 %1371
        %1373 = vrot.lane.b32.xlu0 %v1346, 112
        %v1374 = vpop.permute.xlu0 %1373
        %1375 = vrot.lane.b32.xlu0 %v1325, 112
        %v1376 = vpop.permute.xlu0 %1375
        %1377 = vrot.lane.b32.xlu0 %v1347, 112
        %v1378 = vpop.permute.xlu0 %1377
        %1379 = vrot.lane.b32.xlu0 %v1328, 112
        %v1380 = vpop.permute.xlu0 %1379
        %1381 = vrot.lane.b32.xlu0 %v1348, 112
        %v1382 = vpop.permute.xlu0 %1381
        %1383 = vrot.lane.b32.xlu0 %v1331, 112
        %v1384 = vpop.permute.xlu0 %1383
        %1385 = vrot.lane.b32.xlu0 %v1349, 112
        %v1386 = vpop.permute.xlu0 %1385
        %1387 = vrot.lane.b32.xlu0 %v1334, 112
        %v1388 = vpop.permute.xlu0 %1387
        %1389 = vrot.lane.b32.xlu0 %v1350, 112
        %v1390 = vpop.permute.xlu0 %1389
        %v1407 = vadd.f32 %v1295, %v1360
        %v1408 = vadd.f32 %v1296, %v1362
        %v1409 = vadd.f32 %v1297, %v1364
        %v1410 = vadd.f32 %v1298, %v1366
        %v1411 = vadd.f32 %v1299, %v1368
        %v1412 = vadd.f32 %v1300, %v1370
        %v1413 = vadd.f32 %v1301, %v1372
        %v1414 = vadd.f32 %v1302, %v1374
        %v1415 = vadd.f32 %v1303, %v1376
        %v1416 = vadd.f32 %v1304, %v1378
        %v1417 = vadd.f32 %v1305, %v1380
        %v1418 = vadd.f32 %v1306, %v1382
        %v1419 = vadd.f32 %v1307, %v1384
        %v1420 = vadd.f32 %v1308, %v1386
        %v1421 = vadd.f32 %v1309, %v1388
        %v1422 = vadd.f32 %v1310, %v1390
        %s1423 = scalar_lea.vmem %s3, 64
        %v1424 = vld [vmem:[%s1423] sm:$0xf]
        %v1425 = vld [vmem:[%s1423 + $0x4] sm:$0xf]
        %v1426 = vld [vmem:[%s1423 + $0x8] sm:$0xf]
        %v1427 = vld [vmem:[%s1423 + $0xc] sm:$0xf]
        %v1428 = vld [vmem:[%s1423 + $0x10] sm:$0xf]
        %v1429 = vld [vmem:[%s1423 + $0x14] sm:$0xf]
        %v1430 = vld [vmem:[%s1423 + $0x18] sm:$0xf]
        %v1431 = vld [vmem:[%s1423 + $0x1c] sm:$0xf]
        %v1440 = vunpack.c.l.b16 %v1424
        %v1441 = vunpack.c.l.b16 %v1425
        %v1442 = vunpack.c.l.b16 %v1426
        %v1443 = vunpack.c.l.b16 %v1427
        %v1444 = vunpack.c.l.b16 %v1428
        %v1445 = vunpack.c.l.b16 %v1429
        %v1446 = vunpack.c.l.b16 %v1430
        %v1447 = vunpack.c.l.b16 %v1431
        %v1448 = vpack.c.b16 %v1441, %v1440
        %v1449 = vpack.c.b16 %v1443, %v1442
        %v1450 = vpack.c.b16 %v1445, %v1444
        %v1451 = vpack.c.b16 %v1447, %v1446
        %v1457 = vsel %vm654, %v621, 0
        %1459 = vmatprep.subr.bf16.mxu0 0
        %1460 = vmatpush1.bf16.msra.mxu0 0
        %1461 = vmatprep.subr.bf16.mxu0 0
        %1462 = vmatpush1.bf16.msra.mxu0 0
        %1463 = vmatprep.subr.bf16.mxu0 0
        %1464 = vmatpush1.bf16.msra.mxu0 0
        %1465 = vmatprep.subr.bf16.mxu0 0
        %1466 = vmatpush1.bf16.msra.mxu0 0
        %1467 = vmatprep.subr.bf16.mxu0 0
        %1468 = vmatpush1.bf16.msra.mxu0 %v1451
        %1469 = vmatprep.subr.bf16.mxu0 0
        %1470 = vmatpush1.bf16.msra.mxu0 %v1450
        %1471 = vmatprep.subr.bf16.mxu0 0
        %1472 = vmatpush1.bf16.msra.mxu0 %v1449
        %1473 = vmatprep.subr.bf16.mxu0 0
        %1474 = vmatpush1.bf16.msra.mxu0 %v1448
        %1475 = vmatprep.subr.bf16.mxu0 0
        %1476 = vmatpush2.bf16.msra.mxu0 0
        %1477 = vmatprep.subr.bf16.mxu0 0
        %1478 = vmatpush2.bf16.msra.mxu0 0
        %1479 = vmatprep.subr.bf16.mxu0 0
        %1480 = vmatpush2.bf16.msra.mxu0 0
        %1481 = vmatprep.subr.bf16.mxu0 0
        %1482 = vmatpush2.bf16.msra.mxu0 0
        %1483 = vmatprep.subr.bf16.mxu0 0
        %1484 = vmatpush2.bf16.msra.mxu0 0
        %1485 = vmatprep.subr.bf16.mxu0 0
        %1486 = vmatpush2.bf16.msra.mxu0 0
        %1487 = vmatprep.subr.bf16.mxu0 0
        %1488 = vmatpush2.bf16.msra.mxu0 0
        %1489 = vmatprep.subr.bf16.mxu0 0
        %1490 = vmatpush2.bf16.msra.mxu0 0
        %1491 = vmatprep.mubr.bf16.mxu0 0
        %1492 = vmatmul.mubr.bf16.gmra.mxu0 %v662
        %v1493 = vpop.f32.mrf.mxu0
        %v1494 = vadd.f32 0.0, %v1493
        %v1495 = vpop.f32.mrf.mxu0
        %v1496 = vpop.f32.mrf.mxu0
        %v1497 = vadd.f32 0.0, %v1496
        %v1498 = vpop.f32.mrf.mxu0
        %1499 = vmatprep.mubr.bf16.mxu0 0
        %1500 = vmatmul.mubr.bf16.gmra.mxu0 %v665
        %v1501 = vpop.f32.mrf.mxu0
        %v1502 = vadd.f32 0.0, %v1501
        %v1503 = vpop.f32.mrf.mxu0
        %v1504 = vpop.f32.mrf.mxu0
        %v1505 = vadd.f32 0.0, %v1504
        %v1506 = vpop.f32.mrf.mxu0
        %1507 = vmatprep.mubr.bf16.mxu0 0
        %1508 = vmatmul.mubr.bf16.gmra.mxu0 %v668
        %v1509 = vpop.f32.mrf.mxu0
        %v1510 = vadd.f32 0.0, %v1509
        %v1511 = vpop.f32.mrf.mxu0
        %v1512 = vpop.f32.mrf.mxu0
        %v1513 = vadd.f32 0.0, %v1512
        %v1514 = vpop.f32.mrf.mxu0
        %1515 = vmatprep.mubr.bf16.mxu0 0
        %1516 = vmatmul.mubr.bf16.gmra.mxu0 %v671
        %v1517 = vpop.f32.mrf.mxu0
        %v1518 = vadd.f32 0.0, %v1517
        %v1519 = vpop.f32.mrf.mxu0
        %v1520 = vpop.f32.mrf.mxu0
        %v1521 = vadd.f32 0.0, %v1520
        %v1522 = vpop.f32.mrf.mxu0
        %1523 = vmatprep.mubr.bf16.mxu0 0
        %1524 = vmatmul.mubr.bf16.gmra.mxu0 %v674
        %v1525 = vpop.f32.mrf.mxu0
        %v1526 = vadd.f32 0.0, %v1525
        %v1527 = vpop.f32.mrf.mxu0
        %v1528 = vpop.f32.mrf.mxu0
        %v1529 = vadd.f32 0.0, %v1528
        %v1530 = vpop.f32.mrf.mxu0
        %1531 = vmatprep.mubr.bf16.mxu0 0
        %1532 = vmatmul.mubr.bf16.gmra.mxu0 %v677
        %v1533 = vpop.f32.mrf.mxu0
        %v1534 = vadd.f32 0.0, %v1533
        %v1535 = vpop.f32.mrf.mxu0
        %v1536 = vpop.f32.mrf.mxu0
        %v1537 = vadd.f32 0.0, %v1536
        %v1538 = vpop.f32.mrf.mxu0
        %1539 = vmatprep.mubr.bf16.mxu0 0
        %1540 = vmatmul.mubr.bf16.gmra.mxu0 %v1068
        %v1541 = vpop.f32.mrf.mxu0
        %v1542 = vadd.f32 0.0, %v1541
        %v1543 = vpop.f32.mrf.mxu0
        %v1544 = vpop.f32.mrf.mxu0
        %v1545 = vadd.f32 0.0, %v1544
        %v1546 = vpop.f32.mrf.mxu0
        %1547 = vmatprep.mubr.bf16.mxu0 0
        %1548 = vmatmul.mubr.bf16.gmra.mxu0 %v1457
        %v1549 = vpop.f32.mrf.mxu0
        %v1550 = vadd.f32 0.0, %v1549
        %v1551 = vpop.f32.mrf.mxu0
        %v1552 = vpop.f32.mrf.mxu0
        %v1553 = vadd.f32 0.0, %v1552
        %v1554 = vpop.f32.mrf.mxu0
        %1555 = vdwg.mxu0
        %v1572 = vrot.slane %v1494, 7
        %v1573 = vrot.slane %v1497, 7
        %v1574 = vsel %vm792, %v1572, %v1573
        %v1575 = vrot.slane %v1502, 7
        %v1576 = vrot.slane %v1505, 7
        %v1577 = vsel %vm792, %v1575, %v1576
        %v1578 = vrot.slane %v1510, 7
        %v1579 = vrot.slane %v1513, 7
        %v1580 = vsel %vm792, %v1578, %v1579
        %v1581 = vrot.slane %v1518, 7
        %v1582 = vrot.slane %v1521, 7
        %v1583 = vsel %vm792, %v1581, %v1582
        %v1584 = vrot.slane %v1526, 7
        %v1585 = vrot.slane %v1529, 7
        %v1586 = vsel %vm792, %v1584, %v1585
        %v1587 = vrot.slane %v1534, 7
        %v1588 = vrot.slane %v1537, 7
        %v1589 = vsel %vm792, %v1587, %v1588
        %v1590 = vrot.slane %v1542, 7
        %v1591 = vrot.slane %v1545, 7
        %v1592 = vsel %vm792, %v1590, %v1591
        %v1593 = vrot.slane %v1550, 7
        %v1594 = vrot.slane %v1553, 7
        %v1595 = vsel %vm792, %v1593, %v1594
        %v1612 = vsel %vm792, 0.0, %v1572
        %v1613 = vsel %vm792, 0.0, %v1575
        %v1614 = vsel %vm792, 0.0, %v1578
        %v1615 = vsel %vm792, 0.0, %v1581
        %v1616 = vsel %vm792, 0.0, %v1584
        %v1617 = vsel %vm792, 0.0, %v1587
        %v1618 = vsel %vm792, 0.0, %v1590
        %v1619 = vsel %vm792, 0.0, %v1593
        %v1620 = vadd.f32 %v1407, %v1612
        %v1621 = vadd.f32 %v1408, %v1574
        %v1622 = vadd.f32 %v1409, %v1613
        %v1623 = vadd.f32 %v1410, %v1577
        %v1624 = vadd.f32 %v1411, %v1614
        %v1625 = vadd.f32 %v1412, %v1580
        %v1626 = vadd.f32 %v1413, %v1615
        %v1627 = vadd.f32 %v1414, %v1583
        %v1628 = vadd.f32 %v1415, %v1616
        %v1629 = vadd.f32 %v1416, %v1586
        %v1630 = vadd.f32 %v1417, %v1617
        %v1631 = vadd.f32 %v1418, %v1589
        %v1632 = vadd.f32 %v1419, %v1618
        %v1633 = vadd.f32 %v1420, %v1592
        %v1634 = vadd.f32 %v1421, %v1619
        %v1635 = vadd.f32 %v1422, %v1595
        %1636 = vrot.lane.b32.xlu0 %v1494, 120
        %v1637 = vpop.permute.xlu0 %1636
        %1638 = vrot.lane.b32.xlu0 %v1497, 120
        %v1639 = vpop.permute.xlu0 %1638
        %1640 = vrot.lane.b32.xlu0 %v1502, 120
        %v1641 = vpop.permute.xlu0 %1640
        %1642 = vrot.lane.b32.xlu0 %v1505, 120
        %v1643 = vpop.permute.xlu0 %1642
        %1644 = vrot.lane.b32.xlu0 %v1510, 120
        %v1645 = vpop.permute.xlu0 %1644
        %1646 = vrot.lane.b32.xlu0 %v1513, 120
        %v1647 = vpop.permute.xlu0 %1646
        %1648 = vrot.lane.b32.xlu0 %v1518, 120
        %v1649 = vpop.permute.xlu0 %1648
        %1650 = vrot.lane.b32.xlu0 %v1521, 120
        %v1651 = vpop.permute.xlu0 %1650
        %1652 = vrot.lane.b32.xlu0 %v1526, 120
        %v1653 = vpop.permute.xlu0 %1652
        %1654 = vrot.lane.b32.xlu0 %v1529, 120
        %v1655 = vpop.permute.xlu0 %1654
        %1656 = vrot.lane.b32.xlu0 %v1534, 120
        %v1657 = vpop.permute.xlu0 %1656
        %1658 = vrot.lane.b32.xlu0 %v1537, 120
        %v1659 = vpop.permute.xlu0 %1658
        %1660 = vrot.lane.b32.xlu0 %v1542, 120
        %v1661 = vpop.permute.xlu0 %1660
        %1662 = vrot.lane.b32.xlu0 %v1545, 120
        %v1663 = vpop.permute.xlu0 %1662
        %1664 = vrot.lane.b32.xlu0 %v1550, 120
        %v1665 = vpop.permute.xlu0 %1664
        %1666 = vrot.lane.b32.xlu0 %v1553, 120
        %v1667 = vpop.permute.xlu0 %1666
        %v1684 = vadd.f32 %v1620, %v1637
        %v1685 = vadd.f32 %v1621, %v1639
        %v1686 = vadd.f32 %v1622, %v1641
        %v1687 = vadd.f32 %v1623, %v1643
        %v1688 = vadd.f32 %v1624, %v1645
        %v1689 = vadd.f32 %v1625, %v1647
        %v1690 = vadd.f32 %v1626, %v1649
        %v1691 = vadd.f32 %v1627, %v1651
        %v1692 = vadd.f32 %v1628, %v1653
        %v1693 = vadd.f32 %v1629, %v1655
        %v1694 = vadd.f32 %v1630, %v1657
        %v1695 = vadd.f32 %v1631, %v1659
        %v1696 = vadd.f32 %v1632, %v1661
        %v1697 = vadd.f32 %v1633, %v1663
        %v1698 = vadd.f32 %v1634, %v1665
        %v1699 = vadd.f32 %v1635, %v1667
        %v1700 = vrot.slane %v1494, 1
        %v1701 = vrot.slane %v1497, 1
        %v1702 = vsel %vm921, %v1700, %v1701
        %v1703 = vrot.slane %v1502, 1
        %v1704 = vrot.slane %v1505, 1
        %v1705 = vsel %vm921, %v1703, %v1704
        %v1706 = vrot.slane %v1510, 1
        %v1707 = vrot.slane %v1513, 1
        %v1708 = vsel %vm921, %v1706, %v1707
        %v1709 = vrot.slane %v1518, 1
        %v1710 = vrot.slane %v1521, 1
        %v1711 = vsel %vm921, %v1709, %v1710
        %v1712 = vrot.slane %v1526, 1
        %v1713 = vrot.slane %v1529, 1
        %v1714 = vsel %vm921, %v1712, %v1713
        %v1715 = vrot.slane %v1534, 1
        %v1716 = vrot.slane %v1537, 1
        %v1717 = vsel %vm921, %v1715, %v1716
        %v1718 = vrot.slane %v1542, 1
        %v1719 = vrot.slane %v1545, 1
        %v1720 = vsel %vm921, %v1718, %v1719
        %v1721 = vrot.slane %v1550, 1
        %v1722 = vrot.slane %v1553, 1
        %v1723 = vsel %vm921, %v1721, %v1722
        %v1732 = vsel %vm921, %v1701, 0.0
        %v1733 = vsel %vm921, %v1704, 0.0
        %v1734 = vsel %vm921, %v1707, 0.0
        %v1735 = vsel %vm921, %v1710, 0.0
        %v1736 = vsel %vm921, %v1713, 0.0
        %v1737 = vsel %vm921, %v1716, 0.0
        %v1738 = vsel %vm921, %v1719, 0.0
        %v1739 = vsel %vm921, %v1722, 0.0
        %1748 = vrot.lane.b32.xlu0 %v1702, 112
        %v1749 = vpop.permute.xlu0 %1748
        %1750 = vrot.lane.b32.xlu0 %v1732, 112
        %v1751 = vpop.permute.xlu0 %1750
        %1752 = vrot.lane.b32.xlu0 %v1705, 112
        %v1753 = vpop.permute.xlu0 %1752
        %1754 = vrot.lane.b32.xlu0 %v1733, 112
        %v1755 = vpop.permute.xlu0 %1754
        %1756 = vrot.lane.b32.xlu0 %v1708, 112
        %v1757 = vpop.permute.xlu0 %1756
        %1758 = vrot.lane.b32.xlu0 %v1734, 112
        %v1759 = vpop.permute.xlu0 %1758
        %1760 = vrot.lane.b32.xlu0 %v1711, 112
        %v1761 = vpop.permute.xlu0 %1760
        %1762 = vrot.lane.b32.xlu0 %v1735, 112
        %v1763 = vpop.permute.xlu0 %1762
        %1764 = vrot.lane.b32.xlu0 %v1714, 112
        %v1765 = vpop.permute.xlu0 %1764
        %1766 = vrot.lane.b32.xlu0 %v1736, 112
        %v1767 = vpop.permute.xlu0 %1766
        %1768 = vrot.lane.b32.xlu0 %v1717, 112
        %v1769 = vpop.permute.xlu0 %1768
        %1770 = vrot.lane.b32.xlu0 %v1737, 112
        %v1771 = vpop.permute.xlu0 %1770
        %1772 = vrot.lane.b32.xlu0 %v1720, 112
        %v1773 = vpop.permute.xlu0 %1772
        %1774 = vrot.lane.b32.xlu0 %v1738, 112
        %v1775 = vpop.permute.xlu0 %1774
        %1776 = vrot.lane.b32.xlu0 %v1723, 112
        %v1777 = vpop.permute.xlu0 %1776
        %1778 = vrot.lane.b32.xlu0 %v1739, 112
        %v1779 = vpop.permute.xlu0 %1778
        %v1796 = vadd.f32 %v1684, %v1749
        %v1797 = vadd.f32 %v1685, %v1751
        %v1798 = vadd.f32 %v1686, %v1753
        %v1799 = vadd.f32 %v1687, %v1755
        %v1800 = vadd.f32 %v1688, %v1757
        %v1801 = vadd.f32 %v1689, %v1759
        %v1802 = vadd.f32 %v1690, %v1761
        %v1803 = vadd.f32 %v1691, %v1763
        %v1804 = vadd.f32 %v1692, %v1765
        %v1805 = vadd.f32 %v1693, %v1767
        %v1806 = vadd.f32 %v1694, %v1769
        %v1807 = vadd.f32 %v1695, %v1771
        %v1808 = vadd.f32 %v1696, %v1773
        %v1809 = vadd.f32 %v1697, %v1775
        %v1810 = vadd.f32 %v1698, %v1777
        %v1811 = vadd.f32 %v1699, %v1779
        %v1812 = vld [vmem:[%s4] sm:$0x1]
        %v1814 = vlaneseq
        %v1815 = vshrl.u32 %v1814, 7
        %v1816 = vsub.s32 0, %v1815
        %v1817 = vrot.slane %v1812, %v1816
        %v1819 = vadd.f32 %v1796, %v1817
        %v1820 = vadd.f32 %v1797, %v1817
        %v1821 = vadd.f32 %v1798, %v1817
        %v1822 = vadd.f32 %v1799, %v1817
        %v1823 = vadd.f32 %v1800, %v1817
        %v1824 = vadd.f32 %v1801, %v1817
        %v1825 = vadd.f32 %v1802, %v1817
        %v1826 = vadd.f32 %v1803, %v1817
        %v1827 = vadd.f32 %v1804, %v1817
        %v1828 = vadd.f32 %v1805, %v1817
        %v1829 = vadd.f32 %v1806, %v1817
        %v1830 = vadd.f32 %v1807, %v1817
        %v1831 = vadd.f32 %v1808, %v1817
        %v1832 = vadd.f32 %v1809, %v1817
        %v1833 = vadd.f32 %v1810, %v1817
        %v1834 = vadd.f32 %v1811, %v1817
        %vm1835 = vcmask 64512
        %1836 = vst.msk [vmem:[%s485] sm:$0xff] %vm1835, %v1819
        %1837 = vst.msk [vmem:[%s485 + $0x8] sm:$0xff] %vm1835, %v1820
        %1838 = vst.msk [vmem:[%s485 + $0x10] sm:$0xff] %vm1835, %v1821
        %1839 = vst.msk [vmem:[%s485 + $0x18] sm:$0xff] %vm1835, %v1822
        %1840 = vst.msk [vmem:[%s485 + $0x20] sm:$0xff] %vm1835, %v1823
        %1841 = vst.msk [vmem:[%s485 + $0x28] sm:$0xff] %vm1835, %v1824
        %1842 = vst.msk [vmem:[%s485 + $0x30] sm:$0xff] %vm1835, %v1825
        %1843 = vst.msk [vmem:[%s485 + $0x38] sm:$0xff] %vm1835, %v1826
        %1844 = vst.msk [vmem:[%s485 + $0x40] sm:$0xff] %vm1835, %v1827
        %1845 = vst.msk [vmem:[%s485 + $0x48] sm:$0xff] %vm1835, %v1828
        %1846 = vst.msk [vmem:[%s485 + $0x50] sm:$0xff] %vm1835, %v1829
        %1847 = vst.msk [vmem:[%s485 + $0x58] sm:$0xff] %vm1835, %v1830
        %1848 = vst.msk [vmem:[%s485 + $0x60] sm:$0xff] %vm1835, %v1831
        %1849 = vst.msk [vmem:[%s485 + $0x68] sm:$0xff] %vm1835, %v1832
        %1850 = vst.msk [vmem:[%s485 + $0x70] sm:$0xff] %vm1835, %v1833
        %1851 = vst.msk [vmem:[%s485 + $0x78] sm:$0xff] %vm1835, %v1834
        %v1852 = vsel %vm1835, %v1819, 0.0
        %v1853 = vsel %vm1835, %v1820, 0.0
        %v1854 = vadd.f32 %v1852, %v1853
        %v1855 = vsel %vm1835, %v1821, 0.0
        %v1856 = vadd.f32 %v1854, %v1855
        %v1857 = vsel %vm1835, %v1822, 0.0
        %v1858 = vadd.f32 %v1856, %v1857
        %v1859 = vsel %vm1835, %v1823, 0.0
        %v1860 = vadd.f32 %v1858, %v1859
        %v1861 = vsel %vm1835, %v1824, 0.0
        %v1862 = vadd.f32 %v1860, %v1861
        %v1863 = vsel %vm1835, %v1825, 0.0
        %v1864 = vadd.f32 %v1862, %v1863
        %v1865 = vsel %vm1835, %v1826, 0.0
        %v1866 = vadd.f32 %v1864, %v1865
        %v1867 = vsel %vm1835, %v1827, 0.0
        %v1868 = vadd.f32 %v1866, %v1867
        %v1869 = vsel %vm1835, %v1828, 0.0
        %v1870 = vadd.f32 %v1868, %v1869
        %v1871 = vsel %vm1835, %v1829, 0.0
        %v1872 = vadd.f32 %v1870, %v1871
        %v1873 = vsel %vm1835, %v1830, 0.0
        %v1874 = vadd.f32 %v1872, %v1873
        %v1875 = vsel %vm1835, %v1831, 0.0
        %v1876 = vadd.f32 %v1874, %v1875
        %v1877 = vsel %vm1835, %v1832, 0.0
        %v1878 = vadd.f32 %v1876, %v1877
        %v1879 = vsel %vm1835, %v1833, 0.0
        %v1880 = vadd.f32 %v1878, %v1879
        %v1881 = vsel %vm1835, %v1834, 0.0
        %v1882 = vadd.f32 %v1880, %v1881
        %v1883 = vrot.slane %v1882, 4
        %v1884 = vadd.f32 %v1882, %v1883
        %v1885 = vrot.slane %v1884, 2
        %v1886 = vadd.f32 %v1884, %v1885
        %v1887 = vrot.slane %v1886, 1
        %v1888 = vadd.f32 %v1886, %v1887
        %v1889 = vmul.f32 %v1819, %v1819
        %v1890 = vmul.f32 %v1820, %v1820
        %v1891 = vmul.f32 %v1821, %v1821
        %v1892 = vmul.f32 %v1822, %v1822
        %v1893 = vmul.f32 %v1823, %v1823
        %v1894 = vmul.f32 %v1824, %v1824
        %v1895 = vmul.f32 %v1825, %v1825
        %v1896 = vmul.f32 %v1826, %v1826
        %v1897 = vmul.f32 %v1827, %v1827
        %v1898 = vmul.f32 %v1828, %v1828
        %v1899 = vmul.f32 %v1829, %v1829
        %v1900 = vmul.f32 %v1830, %v1830
        %v1901 = vmul.f32 %v1831, %v1831
        %v1902 = vmul.f32 %v1832, %v1832
        %v1903 = vmul.f32 %v1833, %v1833
        %v1904 = vmul.f32 %v1834, %v1834
        %v1905 = vsel %vm1835, %v1889, 0.0
        %v1906 = vsel %vm1835, %v1890, 0.0
        %v1907 = vadd.f32 %v1905, %v1906
        %v1908 = vsel %vm1835, %v1891, 0.0
        %v1909 = vadd.f32 %v1907, %v1908
        %v1910 = vsel %vm1835, %v1892, 0.0
        %v1911 = vadd.f32 %v1909, %v1910
        %v1912 = vsel %vm1835, %v1893, 0.0
        %v1913 = vadd.f32 %v1911, %v1912
        %v1914 = vsel %vm1835, %v1894, 0.0
        %v1915 = vadd.f32 %v1913, %v1914
        %v1916 = vsel %vm1835, %v1895, 0.0
        %v1917 = vadd.f32 %v1915, %v1916
        %v1918 = vsel %vm1835, %v1896, 0.0
        %v1919 = vadd.f32 %v1917, %v1918
        %v1920 = vsel %vm1835, %v1897, 0.0
        %v1921 = vadd.f32 %v1919, %v1920
        %v1922 = vsel %vm1835, %v1898, 0.0
        %v1923 = vadd.f32 %v1921, %v1922
        %v1924 = vsel %vm1835, %v1899, 0.0
        %v1925 = vadd.f32 %v1923, %v1924
        %v1926 = vsel %vm1835, %v1900, 0.0
        %v1927 = vadd.f32 %v1925, %v1926
        %v1928 = vsel %vm1835, %v1901, 0.0
        %v1929 = vadd.f32 %v1927, %v1928
        %v1930 = vsel %vm1835, %v1902, 0.0
        %v1931 = vadd.f32 %v1929, %v1930
        %v1932 = vsel %vm1835, %v1903, 0.0
        %v1933 = vadd.f32 %v1931, %v1932
        %v1934 = vsel %vm1835, %v1904, 0.0
        %v1935 = vadd.f32 %v1933, %v1934
        %v1936 = vrot.slane %v1935, 4
        %v1937 = vadd.f32 %v1935, %v1936
        %v1938 = vrot.slane %v1937, 2
        %v1939 = vadd.f32 %v1937, %v1938
        %v1940 = vrot.slane %v1939, 1
        %v1941 = vadd.f32 %v1939, %v1940
        %v1942 = vsel %vm792, %v1888, %v1941
        %vm1943 = vcmask 58368
        %1944 = vst.msk [vmem:[%s430] sm:$0x3] %vm1943, %v1942
        %s1945 = smul.u32 8, %s28
        %p1946 = scmp.lt.s32.totalorder %s27, 1
        %s1947 = scalar_select %p1946, %s27, 1
        %p1948 = scmp.lt.s32.totalorder %s1945, 15
        %s1949 = scalar_select %p1948, %s1945, 15
        %s1950 = smul.addr %s1949, 2
        %s1951 = smul.addr %s1947, 32
        %s1952 = sadd.s32 %s1950, %s1951
        %s1953 = smul.addr %s1952, 8
        %s1954 = scalar_lea.vmem %s7, %s1953
        %s1955 = sand.u32 %s257, 1
        %s1956 = scalar_lea.sflag [#allocation3], %s1955
        %s1957 = sand.u32 %s257, 1
        %s1958 = smul.addr %s1957, 2
        %s1959 = scalar_lea.vmem [#allocation2], %s1958
        // Predicated region
        $region49: #{dehaze_generator.7} parent=47 // pred_check
          %p1960 = pneg %p239
        $region50: #{dehaze_generator.7} parent=47 // pred_check_branch
          %1962 = sbr.rel (%p1960) target = $region52
        $region51: #{dehaze_generator.7} parent=47 // pred_region
          %s1963 = smul.u32 8, %s28
        $region52: #{dehaze_generator.7} parent=47 // pred_fallthru
          _
        // Predicated region
        $region53: #{dehaze_generator.7} parent=47 // pred_check
          %p1964 = pneg %p267
        $region54: #{dehaze_generator.7} parent=47 // pred_check_branch
          %1966 = sbr.rel (%p1964) target = $region56
        $region55: #{dehaze_generator.7} parent=47 // pred_region
          %s1968 = ssub.s32 32, 32
          %1969 = vsyncadd %s1956, %s1968
          %s1970 = smul.addr %s27, 2
          %s1971 = sadd.s32 %s28, %s1970
          %s1972 = smul.addr %s1971, 32
          %s1973 = scalar_lea.hbm %s8, %s1972
          %s1975 = sshll.u32 %s1959, 4
          %s1976 = int_to_ptr.vmem [resolvable:$true] %s1975
          %1978 = dma.vmem_to_hbm [thread:$0]  %s1976, 32, %s1973, %s1956
        $region56: #{dehaze_generator.7} parent=47 // pred_fallthru
          _
      $region48: #{dehaze_generator.7} parent=5 // pred_fallthru
        _
      %p1979 = scmp.le.s32.totalorder 2, %s18
      // Predicated region
      $region57: #{dehaze_generator.7} parent=5 // pred_check
        %p1980 = pneg %p1979
      $region58: #{dehaze_generator.7} parent=5 // pred_check_branch
        %1982 = sbr.rel (%p1980) target = $region60
      $region59: #{dehaze_generator.7} parent=5 // pred_region
        %s1983 = ssub.s32 %s18, 2
        // Predicated region
        $region61: #{dehaze_generator.7} parent=59 // pred_check
          %p1984 = pneg %p245
        $region62: #{dehaze_generator.7} parent=59 // pred_check_branch
          %1986 = sbr.rel (%p1984) target = $region64
        $region63: #{dehaze_generator.7} parent=59 // pred_region
          %s1987 = smul.u32 8, %s30
          %p1988 = scmp.lt.s32.totalorder %s29, 1
          %s1989 = scalar_select %p1988, %s29, 1
          %p1990 = scmp.lt.s32.totalorder %s1987, 15
          %s1991 = scalar_select %p1990, %s1987, 15
          %s1992 = smul.addr %s1991, 2
          %s1993 = smul.addr %s1989, 32
          %s1994 = sadd.s32 %s1992, %s1993
          %s1995 = smul.addr %s1994, 8
          %s1996 = scalar_lea.vmem %s7, %s1995
        $region64: #{dehaze_generator.7} parent=59 // pred_fallthru
          _
        // Predicated region
        $region65: #{dehaze_generator.7} parent=59 // pred_check
          %p1997 = pneg %p273
        $region66: #{dehaze_generator.7} parent=59 // pred_check_branch
          %1999 = sbr.rel (%p1997) target = $region68
        $region67: #{dehaze_generator.7} parent=59 // pred_region
          %s2000 = sand.u32 %s258, 1
          %s2001 = scalar_lea.sflag [#allocation3], %s2000
          %s2002 = sand.u32 %s258, 1
          %s2003 = smul.addr %s2002, 2
          %s2004 = scalar_lea.vmem [#allocation2], %s2003
          %2005 = dma.done %s2001, 32
        $region68: #{dehaze_generator.7} parent=59 // pred_fallthru
          _
      $region60: #{dehaze_generator.7} parent=5 // pred_fallthru
        _
    $region6: #{dehaze_generator.7} parent=1 // loop_footer
      %s22 = sadd.s32 1, %s18
    $region7: #{dehaze_generator.7} parent=1 // loop_footer_branch
      %17 = sbr.rel target = $region3
    $region8: #{dehaze_generator.7} parent=1 // loop_exit
      _
    %2006 = vsyncpa [#allocation3], 1
    %s2007 = scalar_lea.sflag [#allocation3], 1
    %2008 = vsyncpa %s2007, 1

</llo_original>
